<compile_context>
chip_gen: v7x
topology: tpu7x:2x2x1
jax: 0.10.0
libtpu: 0.0.40
codegen_flags: <defaults>
</compile_context>

<pallas_src>
import functools

import jax
import jax.numpy as jnp
from jax.experimental import pallas as pl
from jax.experimental.pallas import tpu as pltpu


def bahdanau_kernel(hidden_ref, enc_ref, wt_ref, ut_ref, bwu_ref, vt_ref, bv_ref,
                    ctx_ref, attn_ref,
                    wh_sc, m_sc, l_sc, acc_sc, score_sc):
    s = pl.program_id(0)
    n_steps = pl.num_programs(0)
    Npad, tile_S, H = enc_ref.shape

    @pl.when(s == 0)
    def _init():
        # Hoisted: W(hidden) + (b_W + b_U), computed once and reused for all S tiles.
        wh_sc[...] = (jnp.dot(hidden_ref[...], wt_ref[...],
                              preferred_element_type=jnp.float32)
                      + bwu_ref[...])
        m_sc[...] = jnp.full_like(m_sc, -jnp.inf)
        l_sc[...] = jnp.zeros_like(l_sc)
        acc_sc[...] = jnp.zeros_like(acc_sc)

    enc = enc_ref[...]                                      # (Npad, tile_S, H) bf16

    # U(enc): fat flattened M dimension for the MXU (no-op view: tile_S % 8 == 0).
    ue = jnp.dot(enc.reshape(Npad * tile_S, H), ut_ref[...],
                 preferred_element_type=jnp.float32)        # (Npad*tile_S, H) f32
    e = jnp.tanh(ue.reshape(Npad, tile_S, H) + wh_sc[...][:, None, :])

    # v-projection: VPU multiply + lane reduce (keep off the MXU), scalar bias from SMEM.
    score = jnp.sum(e * vt_ref[...][None, :, :], axis=-1) + bv_ref[0, 0]  # (Npad, tile_S)

    # Keep raw scores resident (tiny) so the weights are normalized once at the end.
    off = pl.multiple_of(s * tile_S, tile_S)
    score_sc[:, pl.ds(off, tile_S)] = score

    # Online softmax over the sequence axis (S lives on lanes -> dense reductions).
    m_prev = m_sc[...]
    m_new = jnp.maximum(m_prev, jnp.max(score, axis=-1, keepdims=True))   # (Npad, 1)
    alpha = jnp.exp(m_prev - m_new)
    p = jnp.exp(score - m_new)                                            # (Npad, tile_S)
    l_sc[...] = alpha * l_sc[...] + jnp.sum(p, axis=-1, keepdims=True)
    acc_sc[...] = alpha * acc_sc[...] + jnp.sum(
        p[:, :, None] * enc.astype(jnp.float32), axis=1)                  # (Npad, H)
    m_sc[...] = m_new

    @pl.when(s == n_steps - 1)
    def _finalize():
        inv_l = pl.reciprocal(l_sc[...], approx=True)       # EUP slot, ~free
        ctx_ref[...] = (acc_sc[...] * inv_l).astype(ctx_ref.dtype)
        attn_ref[...] = (jnp.exp(score_sc[...] - m_sc[...]) * inv_l
                         ).astype(attn_ref.dtype)


def _choose_tile_s(S, Npad, H, bytes_per_elem=2, budget_bytes=24 * 1024 * 1024):
    """Largest S tile that divides S and keeps the double-buffered enc block
    under a VMEM budget (halve the budget on v7x: 64 MiB physical VMEM)."""
    candidates = [c for c in (1024, 512, 256, 128, 64, 32, 16, 8) if S % c == 0]
    candidates.append(S)  # fallback: single tile
    for c in candidates:
        if 2 * Npad * c * H * bytes_per_elem <= budget_bytes:
            return c
    return candidates[-1]


@functools.partial(jax.jit, static_argnames=())
def bahdanau_attention(hidden, encoder_outputs, Wt, bW, Ut, bU, vt, bv):
    """hidden: (N,H); encoder_outputs: (S,N,H); Wt/Ut pre-transposed (in,out);
    bW/bU: (1,H); vt: (1,H); bv: (1,1). Returns (context (N,H), weights (S,N,1))."""
    S, N, H = encoder_outputs.shape
    f32 = jnp.float32
    Npad = ((N + 7) // 8) * 8                 # pad batch to a sublane multiple
    tile_s = _choose_tile_s(S, Npad, H)
    num_tiles = S // tile_s

    # Layout plumbing in the wrapper: batch-major (Npad, S, H) puts S on lanes
    # for the softmax/score/weights path; MXU operands cast to bf16.
    hidden_p = jnp.zeros((Npad, H), jnp.bfloat16).at[:N].set(hidden.astype(jnp.bfloat16))
    enc_nsh = jnp.transpose(encoder_outputs, (1, 0, 2)).astype(jnp.bfloat16)
    enc_p = jnp.zeros((Npad, S, H), jnp.bfloat16).at[:N].set(enc_nsh)
    Wt_b = Wt.astype(jnp.bfloat16)
    Ut_b = Ut.astype(jnp.bfloat16)
    bWU = (bW + bU).astype(f32)               # fused bias, added once to W(hidden)
    vt_f = vt.astype(f32)
    bv_f = bv.astype(f32)

    ctx_p, attn_p = pl.pallas_call(
        bahdanau_kernel,
        out_shape=(jax.ShapeDtypeStruct((Npad, H), f32),    # context
                   jax.ShapeDtypeStruct((Npad, S), f32)),   # weights, S on lanes
        grid=(num_tiles,),
        in_specs=[
            pl.BlockSpec((Npad, H), lambda s: (0, 0)),            # hidden (bf16)
            pl.BlockSpec((Npad, tile_s, H), lambda s: (0, s, 0)),  # enc tile (bf16)
            pl.BlockSpec((H, H), lambda s: (0, 0)),               # W^T (bf16)
            pl.BlockSpec((H, H), lambda s: (0, 0)),               # U^T (bf16)
            pl.BlockSpec((1, H), lambda s: (0, 0)),               # b_W + b_U (f32)
            pl.BlockSpec((1, H), lambda s: (0, 0)),               # v weight (f32)
            pl.BlockSpec(memory_space=pltpu.MemorySpace.SMEM),    # v bias scalar
        ],
        out_specs=(
            pl.BlockSpec((Npad, H), lambda s: (0, 0)),
            pl.BlockSpec((Npad, S), lambda s: (0, 0)),
        ),
        scratch_shapes=[
            pltpu.VMEM((Npad, H), f32),     # hoisted W(hidden)+bias
            pltpu.VMEM((Npad, 1), f32),     # running max  m
            pltpu.VMEM((Npad, 1), f32),     # running sum  l
            pltpu.VMEM((Npad, H), f32),     # context accumulator
            pltpu.VMEM((Npad, S), f32),     # resident raw scores
        ],
        compiler_params=pltpu.CompilerParams(
            # single grid axis = softmax reduction over S -> "arbitrary"
            dimension_semantics=("arbitrary",),
            # above the 16/32 MiB scoped defaults, below v7x's 64 MiB physical
            vmem_limit_bytes=48 * 1024 * 1024),
    )(hidden_p, enc_p, Wt_b, Ut_b, bWU, vt_f, bv_f)

    context = ctx_p[:N]                                   # (N, H)
    attn = jnp.transpose(attn_p[:N])[:, :, None]          # (S, N, 1)
    return context, attn


def reference(hidden, enc, Wt, bW, Ut, bU, vt, bv):
    wh = hidden @ Wt + bW                                   # (N, H)
    ue = enc @ Ut + bU                                      # (S, N, H)
    score = jnp.tanh(ue + wh[None, :, :]) @ vt.T + bv[0, 0]  # (S, N, 1)
    w = jax.nn.softmax(score, axis=0)
    ctx = jnp.sum(w * enc, axis=0)
    return ctx, w


if __name__ == "__main__":
    S, N, H = 256, 4, 128  # seq_len, batch, hidden_size
    key = jax.random.PRNGKey(0)
    k = jax.random.split(key, 8)

    bound = 1.0 / (H ** 0.5)  # PyTorch nn.Linear default init range
    hidden = jax.random.normal(k[0], (N, H), jnp.float32)
    enc = jax.random.normal(k[1], (S, N, H), jnp.float32)
    Wt = jax.random.uniform(k[2], (H, H), jnp.float32, -bound, bound)   # W^T (in, out)
    bW = jax.random.uniform(k[3], (1, H), jnp.float32, -bound, bound)
    Ut = jax.random.uniform(k[4], (H, H), jnp.float32, -bound, bound)   # U^T (in, out)
    bU = jax.random.uniform(k[5], (1, H), jnp.float32, -bound, bound)
    vt = jax.random.uniform(k[6], (1, H), jnp.float32, -bound, bound)   # v weight (1, H)
    bv = jax.random.uniform(k[7], (1, 1), jnp.float32, -bound, bound)

    ctx, attn = bahdanau_attention(hidden, enc, Wt, bW, Ut, bU, vt, bv)
    jax.block_until_ready((ctx, attn))

    # Kernel feeds the MXU in bf16; compare against an f32 reference evaluated on
    # the same bf16-rounded operands (remaining diff: accumulation order + approx recip).
    hid_r = hidden.astype(jnp.bfloat16).astype(jnp.float32)
    enc_r = enc.astype(jnp.bfloat16).astype(jnp.float32)
    Wt_r = Wt.astype(jnp.bfloat16).astype(jnp.float32)
    Ut_r = Ut.astype(jnp.bfloat16).astype(jnp.float32)
    ctx_ref, attn_ref = reference(hid_r, enc_r, Wt_r, bW, Ut_r, bU, vt, bv)

    assert ctx.shape == (N, H) and attn.shape == (S, N, 1)
    assert jnp.allclose(ctx, ctx_ref, atol=2e-2, rtol=2e-2)
    assert jnp.allclose(attn, attn_ref, atol=1e-3, rtol=2e-2)
    print("KERNEL_OK")
</pallas_src>

<mosaic_0001>
module attributes {stable_mosaic.version = 11 : i64} {
  func.func @bahdanau_kernel(%arg0: i32, %arg1: memref<8x128xbf16, #tpu.memory_space<vmem>>, %arg2: memref<8x256x128xbf16, #tpu.memory_space<vmem>>, %arg3: memref<128x128xbf16, #tpu.memory_space<vmem>>, %arg4: memref<128x128xbf16, #tpu.memory_space<vmem>>, %arg5: memref<1x128xf32, #tpu.memory_space<vmem>>, %arg6: memref<1x128xf32, #tpu.memory_space<vmem>>, %arg7: memref<1x1xf32, #tpu.memory_space<smem>>, %arg8: memref<8x128xf32, #tpu.memory_space<vmem>>, %arg9: memref<8x256xf32, #tpu.memory_space<vmem>>, %arg10: memref<8x128xf32, #tpu.memory_space<vmem>>, %arg11: memref<8x1xf32, #tpu.memory_space<vmem>>, %arg12: memref<8x1xf32, #tpu.memory_space<vmem>>, %arg13: memref<8x128xf32, #tpu.memory_space<vmem>>, %arg14: memref<8x256xf32, #tpu.memory_space<vmem>>) attributes {dimension_semantics = [#tpu.dimension_semantics<arbitrary>], iteration_bounds = array<i64: 1>, scalar_prefetch = 0 : i64, scratch_operands = 5 : i64, tpu.core_type = #tpu.core_type<tc>, window_params = [{pipeline_mode = #tpu.pipeline_mode<synchronous>, transform_indices = @transform_0, window_bounds = array<i64: 8, 128>}, {transform_indices = @transform_1, window_bounds = array<i64: 8, 256, 128>}, {pipeline_mode = #tpu.pipeline_mode<synchronous>, transform_indices = @transform_2, window_bounds = array<i64: 128, 128>}, {pipeline_mode = #tpu.pipeline_mode<synchronous>, transform_indices = @transform_3, window_bounds = array<i64: 128, 128>}, {pipeline_mode = #tpu.pipeline_mode<synchronous>, transform_indices = @transform_4, window_bounds = array<i64: 1, 128>}, {pipeline_mode = #tpu.pipeline_mode<synchronous>, transform_indices = @transform_5, window_bounds = array<i64: 1, 128>}, {transform_indices = @transform_6, window_bounds = array<i64: 1, 1>}, {pipeline_mode = #tpu.pipeline_mode<synchronous>, transform_indices = @transform_7, window_bounds = array<i64: 8, 128>}, {pipeline_mode = #tpu.pipeline_mode<synchronous>, transform_indices = @transform_8, window_bounds = array<i64: 8, 256>}]} {
    %c0_i32 = arith.constant 0 : i32
    %0 = arith.cmpi eq, %arg0, %c0_i32 : i32
    %1 = arith.extui %0 : i1 to i32
    %c0_i32_0 = arith.constant 0 : i32
    %2 = arith.cmpi ne, %1, %c0_i32_0 : i32
    scf.if %2 {
      %c0_30 = arith.constant 0 : index
      %c0_31 = arith.constant 0 : index
      %54 = vector.load %arg1[%c0_30, %c0_31] : memref<8x128xbf16, #tpu.memory_space<vmem>>, vector<8x128xbf16>
      %c0_32 = arith.constant 0 : index
      %c0_33 = arith.constant 0 : index
      %55 = vector.load %arg3[%c0_32, %c0_33] : memref<128x128xbf16, #tpu.memory_space<vmem>>, vector<128x128xbf16>
      %cst_34 = arith.constant dense<0.000000e+00> : vector<8x128xf32>
      %56 = tpu.matmul %54, %55, %cst_34 {dimension_numbers = #tpu.dot_dimension_numbers<[1], [0], [0], [1], [0, 0, 1, 1], [], []>} : vector<8x128xbf16>, vector<128x128xbf16>, vector<8x128xf32> -> vector<8x128xf32>
      %c0_35 = arith.constant 0 : index
      %c0_36 = arith.constant 0 : index
      %57 = vector.load %arg5[%c0_35, %c0_36] : memref<1x128xf32, #tpu.memory_space<vmem>>, vector<1x128xf32>
      %58 = vector.broadcast %57 : vector<1x128xf32> to vector<8x128xf32>
      %59 = arith.addf %56, %58 : vector<8x128xf32>
      %c0_37 = arith.constant 0 : index
      %c0_38 = arith.constant 0 : index
      %60 = vector.load %arg10[%c0_37, %c0_38] : memref<8x128xf32, #tpu.memory_space<vmem>>, vector<8x128xf32>
      tpu.vector_store %arg10[%c0_37, %c0_38], %59 {strides = array<i32>} : memref<8x128xf32, #tpu.memory_space<vmem>>, vector<8x128xf32>,
      %cst_39 = arith.constant 0xFF800000 : f32
      %61 = vector.broadcast %cst_39 : f32 to vector<8x1xf32>
      %c0_40 = arith.constant 0 : index
      %c0_41 = arith.constant 0 : index
      %62 = vector.load %arg11[%c0_40, %c0_41] : memref<8x1xf32, #tpu.memory_space<vmem>>, vector<8x1xf32>
      tpu.vector_store %arg11[%c0_40, %c0_41], %61 {strides = array<i32>} : memref<8x1xf32, #tpu.memory_space<vmem>>, vector<8x1xf32>,
      %cst_42 = arith.constant 0.000000e+00 : f32
      %63 = vector.broadcast %cst_42 : f32 to vector<8x1xf32>
      %c0_43 = arith.constant 0 : index
      %c0_44 = arith.constant 0 : index
      %64 = vector.load %arg12[%c0_43, %c0_44] : memref<8x1xf32, #tpu.memory_space<vmem>>, vector<8x1xf32>
      tpu.vector_store %arg12[%c0_43, %c0_44], %63 {strides = array<i32>} : memref<8x1xf32, #tpu.memory_space<vmem>>, vector<8x1xf32>,
      %cst_45 = arith.constant 0.000000e+00 : f32
      %65 = vector.broadcast %cst_45 : f32 to vector<8x128xf32>
      %c0_46 = arith.constant 0 : index
      %c0_47 = arith.constant 0 : index
      %66 = vector.load %arg13[%c0_46, %c0_47] : memref<8x128xf32, #tpu.memory_space<vmem>>, vector<8x128xf32>
      tpu.vector_store %arg13[%c0_46, %c0_47], %65 {strides = array<i32>} : memref<8x128xf32, #tpu.memory_space<vmem>>, vector<8x128xf32>,
    } else {
    }
    %c0 = arith.constant 0 : index
    %c0_1 = arith.constant 0 : index
    %c0_2 = arith.constant 0 : index
    %3 = vector.load %arg2[%c0, %c0_1, %c0_2] : memref<8x256x128xbf16, #tpu.memory_space<vmem>>, vector<8x256x128xbf16>
    %4 = vector.shape_cast %3 : vector<8x256x128xbf16> to vector<2048x128xbf16>
    %c0_3 = arith.constant 0 : index
    %c0_4 = arith.constant 0 : index
    %5 = vector.load %arg4[%c0_3, %c0_4] : memref<128x128xbf16, #tpu.memory_space<vmem>>, vector<128x128xbf16>
    %cst = arith.constant dense<0.000000e+00> : vector<2048x128xf32>
    %6 = tpu.matmul %4, %5, %cst {dimension_numbers = #tpu.dot_dimension_numbers<[1], [0], [0], [1], [0, 0, 1, 1], [], []>} : vector<2048x128xbf16>, vector<128x128xbf16>, vector<2048x128xf32> -> vector<2048x128xf32>
    %7 = vector.shape_cast %6 : vector<2048x128xf32> to vector<8x256x128xf32>
    %c0_5 = arith.constant 0 : index
    %c0_6 = arith.constant 0 : index
    %8 = vector.load %arg10[%c0_5, %c0_6] : memref<8x128xf32, #tpu.memory_space<vmem>>, vector<8x128xf32>
    %9 = vector.shape_cast %8 : vector<8x128xf32> to vector<8x1x128xf32>
    %10 = vector.broadcast %9 : vector<8x1x128xf32> to vector<8x256x128xf32>
    %11 = arith.addf %7, %10 : vector<8x256x128xf32>
    %12 = math.tanh %11 : vector<8x256x128xf32>
    %c0_7 = arith.constant 0 : index
    %c0_8 = arith.constant 0 : index
    %13 = vector.load %arg6[%c0_7, %c0_8] : memref<1x128xf32, #tpu.memory_space<vmem>>, vector<1x128xf32>
    %14 = vector.shape_cast %13 : vector<1x128xf32> to vector<1x1x128xf32>
    %15 = vector.broadcast %14 : vector<1x1x128xf32> to vector<8x256x128xf32>
    %16 = arith.mulf %12, %15 : vector<8x256x128xf32>
    %cst_9 = arith.constant dense<0.000000e+00> : vector<8x256xf32>
    %17 = vector.multi_reduction <add>, %16, %cst_9 [2] : vector<8x256x128xf32> to vector<8x256xf32>
    %c0_10 = arith.constant 0 : index
    %c0_11 = arith.constant 0 : index
    %18 = memref.load %arg7[%c0_10, %c0_11] : memref<1x1xf32, #tpu.memory_space<smem>>
    %19 = vector.broadcast %18 : f32 to vector<8x256xf32>
    %20 = arith.addf %17, %19 : vector<8x256xf32>
    %c256_i32 = arith.constant 256 : i32
    %21 = arith.muli %arg0, %c256_i32 : i32
    %22 = tpu.assume_multiple %21, 256 : i32
    %c0_12 = arith.constant 0 : index
    %23 = arith.index_cast %22 : i32 to index
    %24 = vector.load %arg14[%c0_12, %23] : memref<8x256xf32, #tpu.memory_space<vmem>>, vector<8x256xf32>
    tpu.vector_store %arg14[%c0_12, %23], %20 {strides = array<i32>} : memref<8x256xf32, #tpu.memory_space<vmem>>, vector<8x256xf32>,
    %c0_13 = arith.constant 0 : index
    %c0_14 = arith.constant 0 : index
    %25 = vector.load %arg11[%c0_13, %c0_14] : memref<8x1xf32, #tpu.memory_space<vmem>>, vector<8x1xf32>
    %cst_15 = arith.constant dense<0xFF800000> : vector<8xf32>
    %26 = vector.multi_reduction <maximumf>, %20, %cst_15 [1] : vector<8x256xf32> to vector<8xf32>
    %27 = vector.shape_cast %26 : vector<8xf32> to vector<8x1xf32>
    %28 = arith.maximumf %25, %27 : vector<8x1xf32>
    %29 = arith.subf %25, %28 : vector<8x1xf32>
    %30 = math.exp %29 : vector<8x1xf32>
    %31 = vector.broadcast %28 : vector<8x1xf32> to vector<8x256xf32>
    %32 = arith.subf %20, %31 : vector<8x256xf32>
    %33 = math.exp %32 : vector<8x256xf32>
    %c0_16 = arith.constant 0 : index
    %c0_17 = arith.constant 0 : index
    %34 = vector.load %arg12[%c0_16, %c0_17] : memref<8x1xf32, #tpu.memory_space<vmem>>, vector<8x1xf32>
    %35 = arith.mulf %30, %34 : vector<8x1xf32>
    %cst_18 = arith.constant dense<0.000000e+00> : vector<8xf32>
    %36 = vector.multi_reduction <add>, %33, %cst_18 [1] : vector<8x256xf32> to vector<8xf32>
    %37 = vector.shape_cast %36 : vector<8xf32> to vector<8x1xf32>
    %38 = arith.addf %35, %37 : vector<8x1xf32>
    %c0_19 = arith.constant 0 : index
    %c0_20 = arith.constant 0 : index
    %39 = vector.load %arg12[%c0_19, %c0_20] : memref<8x1xf32, #tpu.memory_space<vmem>>, vector<8x1xf32>
    tpu.vector_store %arg12[%c0_19, %c0_20], %38 {strides = array<i32>} : memref<8x1xf32, #tpu.memory_space<vmem>>, vector<8x1xf32>,
    %c0_21 = arith.constant 0 : index
    %c0_22 = arith.constant 0 : index
    %40 = vector.load %arg13[%c0_21, %c0_22] : memref<8x128xf32, #tpu.memory_space<vmem>>, vector<8x128xf32>
    %41 = vector.broadcast %30 : vector<8x1xf32> to vector<8x128xf32>
    %42 = arith.mulf %41, %40 : vector<8x128xf32>
    %43 = vector.shape_cast %33 : vector<8x256xf32> to vector<8x256x1xf32>
    %44 = arith.extf %3 : vector<8x256x128xbf16> to vector<8x256x128xf32>
    %45 = vector.broadcast %43 : vector<8x256x1xf32> to vector<8x256x128xf32>
    %46 = arith.mulf %45, %44 : vector<8x256x128xf32>
    %cst_23 = arith.constant dense<0.000000e+00> : vector<8x128xf32>
    %47 = vector.multi_reduction <add>, %46, %cst_23 [1] : vector<8x256x128xf32> to vector<8x128xf32>
    %48 = arith.addf %42, %47 : vector<8x128xf32>
    %c0_24 = arith.constant 0 : index
    %c0_25 = arith.constant 0 : index
    %49 = vector.load %arg13[%c0_24, %c0_25] : memref<8x128xf32, #tpu.memory_space<vmem>>, vector<8x128xf32>
    tpu.vector_store %arg13[%c0_24, %c0_25], %48 {strides = array<i32>} : memref<8x128xf32, #tpu.memory_space<vmem>>, vector<8x128xf32>,
    %c0_26 = arith.constant 0 : index
    %c0_27 = arith.constant 0 : index
    %50 = vector.load %arg11[%c0_26, %c0_27] : memref<8x1xf32, #tpu.memory_space<vmem>>, vector<8x1xf32>
    tpu.vector_store %arg11[%c0_26, %c0_27], %28 {strides = array<i32>} : memref<8x1xf32, #tpu.memory_space<vmem>>, vector<8x1xf32>,
    %c0_i32_28 = arith.constant 0 : i32
    %51 = arith.cmpi eq, %arg0, %c0_i32_28 : i32
    %52 = arith.extui %51 : i1 to i32
    %c0_i32_29 = arith.constant 0 : i32
    %53 = arith.cmpi ne, %52, %c0_i32_29 : i32
    scf.if %53 {
      %c0_30 = arith.constant 0 : index
      %c0_31 = arith.constant 0 : index
      %54 = vector.load %arg12[%c0_30, %c0_31] : memref<8x1xf32, #tpu.memory_space<vmem>>, vector<8x1xf32>
      %55 = tpu.reciprocal %54 {approx = true} : vector<8x1xf32> -> vector<8x1xf32>
      %c0_32 = arith.constant 0 : index
      %c0_33 = arith.constant 0 : index
      %56 = vector.load %arg13[%c0_32, %c0_33] : memref<8x128xf32, #tpu.memory_space<vmem>>, vector<8x128xf32>
      %57 = vector.broadcast %55 : vector<8x1xf32> to vector<8x128xf32>
      %58 = arith.mulf %56, %57 : vector<8x128xf32>
      %c0_34 = arith.constant 0 : index
      %c0_35 = arith.constant 0 : index
      %59 = vector.load %arg8[%c0_34, %c0_35] : memref<8x128xf32, #tpu.memory_space<vmem>>, vector<8x128xf32>
      tpu.vector_store %arg8[%c0_34, %c0_35], %58 {strides = array<i32>} : memref<8x128xf32, #tpu.memory_space<vmem>>, vector<8x128xf32>,
      %c0_36 = arith.constant 0 : index
      %c0_37 = arith.constant 0 : index
      %60 = vector.load %arg14[%c0_36, %c0_37] : memref<8x256xf32, #tpu.memory_space<vmem>>, vector<8x256xf32>
      %c0_38 = arith.constant 0 : index
      %c0_39 = arith.constant 0 : index
      %61 = vector.load %arg11[%c0_38, %c0_39] : memref<8x1xf32, #tpu.memory_space<vmem>>, vector<8x1xf32>
      %62 = vector.broadcast %61 : vector<8x1xf32> to vector<8x256xf32>
      %63 = arith.subf %60, %62 : vector<8x256xf32>
      %64 = math.exp %63 : vector<8x256xf32>
      %65 = vector.broadcast %55 : vector<8x1xf32> to vector<8x256xf32>
      %66 = arith.mulf %64, %65 : vector<8x256xf32>
      %c0_40 = arith.constant 0 : index
      %c0_41 = arith.constant 0 : index
      %67 = vector.load %arg9[%c0_40, %c0_41] : memref<8x256xf32, #tpu.memory_space<vmem>>, vector<8x256xf32>
      tpu.vector_store %arg9[%c0_40, %c0_41], %66 {strides = array<i32>} : memref<8x256xf32, #tpu.memory_space<vmem>>, vector<8x256xf32>,
    } else {
    }
    return
  }
  func.func @transform_0(%arg0: i32) -> (i32, i32) {
    %c0_i32 = arith.constant 0 : i32
    %c0_i32_0 = arith.constant 0 : i32
    %c0_i32_1 = arith.constant 0 : i32
    return %c0_i32, %c0_i32_0 : i32, i32
  }
  func.func @transform_1(%arg0: i32) -> (i32, i32, i32) {
    %c0_i32 = arith.constant 0 : i32
    %c0_i32_0 = arith.constant 0 : i32
    %c0_i32_1 = arith.constant 0 : i32
    return %c0_i32, %arg0, %c0_i32_0 : i32, i32, i32
  }
  func.func @transform_2(%arg0: i32) -> (i32, i32) {
    %c0_i32 = arith.constant 0 : i32
    %c0_i32_0 = arith.constant 0 : i32
    %c0_i32_1 = arith.constant 0 : i32
    return %c0_i32, %c0_i32_0 : i32, i32
  }
  func.func @transform_3(%arg0: i32) -> (i32, i32) {
    %c0_i32 = arith.constant 0 : i32
    %c0_i32_0 = arith.constant 0 : i32
    %c0_i32_1 = arith.constant 0 : i32
    return %c0_i32, %c0_i32_0 : i32, i32
  }
  func.func @transform_4(%arg0: i32) -> (i32, i32) {
    %c0_i32 = arith.constant 0 : i32
    %c0_i32_0 = arith.constant 0 : i32
    %c0_i32_1 = arith.constant 0 : i32
    return %c0_i32, %c0_i32_0 : i32, i32
  }
  func.func @transform_5(%arg0: i32) -> (i32, i32) {
    %c0_i32 = arith.constant 0 : i32
    %c0_i32_0 = arith.constant 0 : i32
    %c0_i32_1 = arith.constant 0 : i32
    return %c0_i32, %c0_i32_0 : i32, i32
  }
  func.func @transform_6(%arg0: i32) -> (i32, i32) {
    %c0_i32 = arith.constant 0 : i32
    %c0_i32_0 = arith.constant 0 : i32
    %c0_i32_1 = arith.constant 0 : i32
    return %c0_i32, %c0_i32_0 : i32, i32
  }
  func.func @transform_7(%arg0: i32) -> (i32, i32) {
    %c0_i32 = arith.constant 0 : i32
    %c0_i32_0 = arith.constant 0 : i32
    %c0_i32_1 = arith.constant 0 : i32
    return %c0_i32, %c0_i32_0 : i32, i32
  }
  func.func @transform_8(%arg0: i32) -> (i32, i32) {
    %c0_i32 = arith.constant 0 : i32
    %c0_i32_0 = arith.constant 0 : i32
    %c0_i32_1 = arith.constant 0 : i32
    return %c0_i32, %c0_i32_0 : i32, i32
  }
}

</mosaic_0001>

<llo_original>
// kernel: bahdanau_attention.1
$region0: #{bahdanau_attention.1}
  #allocation0 [shape = 'u32[]', space=smem, size = 0x4, offset = 0x4, fixed_abs, tag = 'smem constant byte address 0x4 - core index']
  #allocation1 [shape = 'u32[144,128]{1,0:T(1,128)}', space=vmem, size = 0x12000, scoped, tag = 'internal scratch']
  #allocation2 [shape = 'f32[8,128]{1,0:T(8,128)}', space=vmem, size = 0x1000, scoped, tag = 'scratch operand']
  #allocation3 [shape = 'f32[8,1]{1,0:T(8,128)}', space=vmem, size = 0x1000, scoped, tag = 'scratch operand']
  #allocation4 [shape = 'f32[8,1]{1,0:T(8,128)}', space=vmem, size = 0x1000, scoped, tag = 'scratch operand']
  #allocation5 [shape = 'f32[8,128]{1,0:T(8,128)}', space=vmem, size = 0x1000, scoped, tag = 'scratch operand']
  #allocation6 [shape = 'f32[8,256]{1,0:T(8,128)}', space=vmem, size = 0x2000, scoped, tag = 'scratch operand']
  #allocation7 [shape = 'f32[1,1]{1,0:T(1,128)S(6)}', space=smem, size = 0x200, scoped, tag = 'scoped memory for bahdanau_attention.1']
  %s0 = inlined_call_operand.vmem [shape: bf16[8,128], index: 0, kind: input, shape index: {}]
  %s1 = inlined_call_operand.vmem [shape: bf16[8,256,128], index: 1, kind: input, shape index: {}]
  %s2 = inlined_call_operand.vmem [shape: bf16[128,128], index: 2, kind: input, shape index: {}]
  %s3 = inlined_call_operand.vmem [shape: bf16[128,128], index: 3, kind: input, shape index: {}]
  %s4 = inlined_call_operand.vmem [shape: f32[1,128], index: 4, kind: input, shape index: {}]
  %s5 = inlined_call_operand.vmem [shape: f32[1,128], index: 5, kind: input, shape index: {}]
  %s6 = inlined_call_operand.<no memory space> [shape: f32[1,1], index: 6, kind: input, shape index: {}]
  %s7 = inlined_call_operand.vmem [shape: f32[8,128], index: 7, kind: output, shape index: {0}]
  %s8 = inlined_call_operand.vmem [shape: f32[8,256], index: 8, kind: output, shape index: {1}]
  %9 = xla_tuple %s7, %s8
  %s10 = sld [smem:[#allocation0]]
  $region54: #{bahdanau_attention.1} parent=0
    _
  %s12 = ssub.s32 1, %s10
  %s13 = scalar_select 0, %s12, %s10
  %14 = sst [smem:[#allocation7]] %s6
  // Predicated region
  $region2: #{bahdanau_attention.1} parent=0 // pred_check
    _
  $region3: #{bahdanau_attention.1} parent=0 // pred_check_branch
    %16 = sbr.rel (0) target = $region5
  $region4: #{bahdanau_attention.1} parent=0 // pred_region
    _
  $region5: #{bahdanau_attention.1} parent=0 // pred_fallthru
    _
  // Predicated region
  $region6: #{bahdanau_attention.1} parent=0 // pred_check
    _
  $region7: #{bahdanau_attention.1} parent=0 // pred_check_branch
    %18 = sbr.rel (0) target = $region9
  $region8: #{bahdanau_attention.1} parent=0 // pred_region
    _
  $region9: #{bahdanau_attention.1} parent=0 // pred_fallthru
    _
  // Predicated region
  $region10: #{bahdanau_attention.1} parent=0 // pred_check
    _
  $region11: #{bahdanau_attention.1} parent=0 // pred_check_branch
    %20 = sbr.rel (0) target = $region13
  $region12: #{bahdanau_attention.1} parent=0 // pred_region
    _
  $region13: #{bahdanau_attention.1} parent=0 // pred_fallthru
    _
  // Predicated region
  $region14: #{bahdanau_attention.1} parent=0 // pred_check
    _
  $region15: #{bahdanau_attention.1} parent=0 // pred_check_branch
    %22 = sbr.rel (0) target = $region17
  $region16: #{bahdanau_attention.1} parent=0 // pred_region
    _
  $region17: #{bahdanau_attention.1} parent=0 // pred_fallthru
    _
  // Predicated region
  $region18: #{bahdanau_attention.1} parent=0 // pred_check
    _
  $region19: #{bahdanau_attention.1} parent=0 // pred_check_branch
    %24 = sbr.rel (0) target = $region21
  $region20: #{bahdanau_attention.1} parent=0 // pred_region
    _
  $region21: #{bahdanau_attention.1} parent=0 // pred_fallthru
    _
  // Predicated region
  $region22: #{bahdanau_attention.1} parent=0 // pred_check
    _
  $region23: #{bahdanau_attention.1} parent=0 // pred_check_branch
    %26 = sbr.rel (0) target = $region25
  $region24: #{bahdanau_attention.1} parent=0 // pred_region
    _
  $region25: #{bahdanau_attention.1} parent=0 // pred_fallthru
    _
  // Predicated region
  $region26: #{bahdanau_attention.1} parent=0 // pred_check
    _
  $region27: #{bahdanau_attention.1} parent=0 // pred_check_branch
    %28 = sbr.rel (0) target = $region29
  $region28: #{bahdanau_attention.1} parent=0 // pred_region
    _
  $region29: #{bahdanau_attention.1} parent=0 // pred_fallthru
    _
  %p30 = scmp.eq.s32.totalorder 0, 0
  // Predicated region
  $region30: #{bahdanau_attention.1} parent=0 // pred_check
    %p31 = pneg %p30
  $region31: #{bahdanau_attention.1} parent=0 // pred_check_branch
    %33 = sbr.rel (%p31) target = $region33
  $region32: #{bahdanau_attention.1} parent=0 // pred_region
    %v34 = vld [vmem:[%s0] sm:$0xf]
    %v35 = vld [vmem:[%s2] sm:$0xf]
    %v36 = vld [vmem:[%s2 + $0x4] sm:$0xf]
    %v37 = vld [vmem:[%s2 + $0x8] sm:$0xf]
    %v38 = vld [vmem:[%s2 + $0xc] sm:$0xf]
    %v39 = vld [vmem:[%s2 + $0x10] sm:$0xf]
    %v40 = vld [vmem:[%s2 + $0x14] sm:$0xf]
    %v41 = vld [vmem:[%s2 + $0x18] sm:$0xf]
    %v42 = vld [vmem:[%s2 + $0x1c] sm:$0xf]
    %v43 = vld [vmem:[%s2 + $0x20] sm:$0xf]
    %v44 = vld [vmem:[%s2 + $0x24] sm:$0xf]
    %v45 = vld [vmem:[%s2 + $0x28] sm:$0xf]
    %v46 = vld [vmem:[%s2 + $0x2c] sm:$0xf]
    %v47 = vld [vmem:[%s2 + $0x30] sm:$0xf]
    %v48 = vld [vmem:[%s2 + $0x34] sm:$0xf]
    %v49 = vld [vmem:[%s2 + $0x38] sm:$0xf]
    %v50 = vld [vmem:[%s2 + $0x3c] sm:$0xf]
    %v51 = vld [vmem:[%s4] sm:$0x1]
    %v53 = vlaneseq
    %v54 = vshrl.u32 %v53, 7
    %v55 = vsub.s32 0, %v54
    %v56 = vrot.slane %v51, %v55
    %v74 = vunpack.c.l.b16 %v35
    %v75 = vunpack.c.l.b16 %v36
    %v76 = vunpack.c.l.b16 %v37
    %v77 = vunpack.c.l.b16 %v38
    %v78 = vunpack.c.l.b16 %v39
    %v79 = vunpack.c.l.b16 %v40
    %v80 = vunpack.c.l.b16 %v41
    %v81 = vunpack.c.l.b16 %v42
    %v82 = vunpack.c.l.b16 %v43
    %v83 = vunpack.c.l.b16 %v44
    %v84 = vunpack.c.l.b16 %v45
    %v85 = vunpack.c.l.b16 %v46
    %v86 = vunpack.c.l.b16 %v47
    %v87 = vunpack.c.l.b16 %v48
    %v88 = vunpack.c.l.b16 %v49
    %v89 = vunpack.c.l.b16 %v50
    %v90 = vpack.c.b16 %v75, %v74
    %v91 = vpack.c.b16 %v77, %v76
    %v92 = vpack.c.b16 %v79, %v78
    %v93 = vpack.c.b16 %v81, %v80
    %v94 = vpack.c.b16 %v83, %v82
    %v95 = vpack.c.b16 %v85, %v84
    %v96 = vpack.c.b16 %v87, %v86
    %v97 = vpack.c.b16 %v89, %v88
    %106 = vmatprep.subr.bf16.mxu0 0
    %107 = vmatpush1.bf16.msra.mxu0 %v90
    %108 = vmatprep.subr.bf16.mxu0 0
    %109 = vmatpush1.bf16.msra.mxu0 %v91
    %110 = vmatprep.subr.bf16.mxu0 0
    %111 = vmatpush1.bf16.msra.mxu0 %v92
    %112 = vmatprep.subr.bf16.mxu0 0
    %113 = vmatpush1.bf16.msra.mxu0 %v93
    %114 = vmatprep.subr.bf16.mxu0 0
    %115 = vmatpush1.bf16.msra.mxu0 %v94
    %116 = vmatprep.subr.bf16.mxu0 0
    %117 = vmatpush1.bf16.msra.mxu0 %v95
    %118 = vmatprep.subr.bf16.mxu0 0
    %119 = vmatpush1.bf16.msra.mxu0 %v96
    %120 = vmatprep.subr.bf16.mxu0 0
    %121 = vmatpush1.bf16.msra.mxu0 %v97
    %122 = vmatprep.subr.bf16.mxu0 0
    %123 = vmatpush1.bf16.msra.mxu0 0
    %124 = vmatprep.subr.bf16.mxu0 0
    %125 = vmatpush1.bf16.msra.mxu0 0
    %126 = vmatprep.subr.bf16.mxu0 0
    %127 = vmatpush1.bf16.msra.mxu0 0
    %128 = vmatprep.subr.bf16.mxu0 0
    %129 = vmatpush1.bf16.msra.mxu0 0
    %130 = vmatprep.subr.bf16.mxu0 0
    %131 = vmatpush1.bf16.msra.mxu0 0
    %132 = vmatprep.subr.bf16.mxu0 0
    %133 = vmatpush1.bf16.msra.mxu0 0
    %134 = vmatprep.subr.bf16.mxu0 0
    %135 = vmatpush1.bf16.msra.mxu0 0
    %136 = vmatprep.subr.bf16.mxu0 0
    %137 = vmatpush1.bf16.msra.mxu0 0
    %138 = vmatprep.mubr.bf16.mxu0 0
    %139 = vmatmul.mubr.bf16.gmra.mrb[0].mxu0 %v34
    %v140 = vpop.f32.mrb[0].mxu0
    %v141 = vadd.f32 %v56, %v140
    %v142 = vpop.f32.mrb[0].mxu0
    %v143 = vpop.f32.mrb[0].mxu0
    %v144 = vpop.f32.mrb[0].mxu0
    %145 = vdwg.mxu0
    %146 = vst [vmem:[#allocation2] sm:$0xff] %v141
    %vm147 = vcmask 7168
    %148 = vst.msk [vmem:[#allocation3] sm:$0xff] %vm147, -inf
    %149 = vst.msk [vmem:[#allocation4] sm:$0xff] %vm147, 0.0
    %150 = vst [vmem:[#allocation5] sm:$0xff] 0.0
  $region33: #{bahdanau_attention.1} parent=0 // pred_fallthru
    _
  %v151 = vld [vmem:[%s1] sm:$0xf]
  %v152 = vld [vmem:[%s1 + $0x4] sm:$0xf]
  %v153 = vld [vmem:[%s1 + $0x8] sm:$0xf]
  %v154 = vld [vmem:[%s1 + $0xc] sm:$0xf]
  %v155 = vld [vmem:[%s1 + $0x10] sm:$0xf]
  %v156 = vld [vmem:[%s1 + $0x14] sm:$0xf]
  %v157 = vld [vmem:[%s1 + $0x18] sm:$0xf]
  %v158 = vld [vmem:[%s1 + $0x1c] sm:$0xf]
  %v159 = vld [vmem:[%s1 + $0x20] sm:$0xf]
  %v160 = vld [vmem:[%s1 + $0x24] sm:$0xf]
  %v161 = vld [vmem:[%s1 + $0x28] sm:$0xf]
  %v162 = vld [vmem:[%s1 + $0x2c] sm:$0xf]
  %v163 = vld [vmem:[%s1 + $0x30] sm:$0xf]
  %v164 = vld [vmem:[%s1 + $0x34] sm:$0xf]
  %v165 = vld [vmem:[%s1 + $0x38] sm:$0xf]
  %v166 = vld [vmem:[%s1 + $0x3c] sm:$0xf]
  %v167 = vld [vmem:[%s1 + $0x40] sm:$0xf]
  %v168 = vld [vmem:[%s1 + $0x44] sm:$0xf]
  %v169 = vld [vmem:[%s1 + $0x48] sm:$0xf]
  %v170 = vld [vmem:[%s1 + $0x4c] sm:$0xf]
  %v171 = vld [vmem:[%s1 + $0x50] sm:$0xf]
  %v172 = vld [vmem:[%s1 + $0x54] sm:$0xf]
  %v173 = vld [vmem:[%s1 + $0x58] sm:$0xf]
  %v174 = vld [vmem:[%s1 + $0x5c] sm:$0xf]
  %v175 = vld [vmem:[%s1 + $0x60] sm:$0xf]
  %v176 = vld [vmem:[%s1 + $0x64] sm:$0xf]
  %v177 = vld [vmem:[%s1 + $0x68] sm:$0xf]
  %v178 = vld [vmem:[%s1 + $0x6c] sm:$0xf]
  %v179 = vld [vmem:[%s1 + $0x70] sm:$0xf]
  %v180 = vld [vmem:[%s1 + $0x74] sm:$0xf]
  %v181 = vld [vmem:[%s1 + $0x78] sm:$0xf]
  %v182 = vld [vmem:[%s1 + $0x7c] sm:$0xf]
  %v183 = vld [vmem:[%s1 + $0x80] sm:$0xf]
  %v184 = vld [vmem:[%s1 + $0x84] sm:$0xf]
  %v185 = vld [vmem:[%s1 + $0x88] sm:$0xf]
  %v186 = vld [vmem:[%s1 + $0x8c] sm:$0xf]
  %v187 = vld [vmem:[%s1 + $0x90] sm:$0xf]
  %v188 = vld [vmem:[%s1 + $0x94] sm:$0xf]
  %v189 = vld [vmem:[%s1 + $0x98] sm:$0xf]
  %v190 = vld [vmem:[%s1 + $0x9c] sm:$0xf]
  %v191 = vld [vmem:[%s1 + $0xa0] sm:$0xf]
  %v192 = vld [vmem:[%s1 + $0xa4] sm:$0xf]
  %v193 = vld [vmem:[%s1 + $0xa8] sm:$0xf]
  %v194 = vld [vmem:[%s1 + $0xac] sm:$0xf]
  %v195 = vld [vmem:[%s1 + $0xb0] sm:$0xf]
  %v196 = vld [vmem:[%s1 + $0xb4] sm:$0xf]
  %v197 = vld [vmem:[%s1 + $0xb8] sm:$0xf]
  %v198 = vld [vmem:[%s1 + $0xbc] sm:$0xf]
  %v199 = vld [vmem:[%s1 + $0xc0] sm:$0xf]
  %v200 = vld [vmem:[%s1 + $0xc4] sm:$0xf]
  %v201 = vld [vmem:[%s1 + $0xc8] sm:$0xf]
  %v202 = vld [vmem:[%s1 + $0xcc] sm:$0xf]
  %v203 = vld [vmem:[%s1 + $0xd0] sm:$0xf]
  %v204 = vld [vmem:[%s1 + $0xd4] sm:$0xf]
  %v205 = vld [vmem:[%s1 + $0xd8] sm:$0xf]
  %v206 = vld [vmem:[%s1 + $0xdc] sm:$0xf]
  %v207 = vld [vmem:[%s1 + $0xe0] sm:$0xf]
  %v208 = vld [vmem:[%s1 + $0xe4] sm:$0xf]
  %v209 = vld [vmem:[%s1 + $0xe8] sm:$0xf]
  %v210 = vld [vmem:[%s1 + $0xec] sm:$0xf]
  %v211 = vld [vmem:[%s1 + $0xf0] sm:$0xf]
  %v212 = vld [vmem:[%s1 + $0xf4] sm:$0xf]
  %v213 = vld [vmem:[%s1 + $0xf8] sm:$0xf]
  %v214 = vld [vmem:[%s1 + $0xfc] sm:$0xf]
  %v215 = vld [vmem:[%s1 + $0x100] sm:$0xf]
  %v216 = vld [vmem:[%s1 + $0x104] sm:$0xf]
  %v217 = vld [vmem:[%s1 + $0x108] sm:$0xf]
  %v218 = vld [vmem:[%s1 + $0x10c] sm:$0xf]
  %v219 = vld [vmem:[%s1 + $0x110] sm:$0xf]
  %v220 = vld [vmem:[%s1 + $0x114] sm:$0xf]
  %v221 = vld [vmem:[%s1 + $0x118] sm:$0xf]
  %v222 = vld [vmem:[%s1 + $0x11c] sm:$0xf]
  %v223 = vld [vmem:[%s1 + $0x120] sm:$0xf]
  %v224 = vld [vmem:[%s1 + $0x124] sm:$0xf]
  %v225 = vld [vmem:[%s1 + $0x128] sm:$0xf]
  %v226 = vld [vmem:[%s1 + $0x12c] sm:$0xf]
  %v227 = vld [vmem:[%s1 + $0x130] sm:$0xf]
  %v228 = vld [vmem:[%s1 + $0x134] sm:$0xf]
  %v229 = vld [vmem:[%s1 + $0x138] sm:$0xf]
  %v230 = vld [vmem:[%s1 + $0x13c] sm:$0xf]
  %v231 = vld [vmem:[%s1 + $0x140] sm:$0xf]
  %v232 = vld [vmem:[%s1 + $0x144] sm:$0xf]
  %v233 = vld [vmem:[%s1 + $0x148] sm:$0xf]
  %v234 = vld [vmem:[%s1 + $0x14c] sm:$0xf]
  %v235 = vld [vmem:[%s1 + $0x150] sm:$0xf]
  %v236 = vld [vmem:[%s1 + $0x154] sm:$0xf]
  %v237 = vld [vmem:[%s1 + $0x158] sm:$0xf]
  %v238 = vld [vmem:[%s1 + $0x15c] sm:$0xf]
  %v239 = vld [vmem:[%s1 + $0x160] sm:$0xf]
  %v240 = vld [vmem:[%s1 + $0x164] sm:$0xf]
  %v241 = vld [vmem:[%s1 + $0x168] sm:$0xf]
  %v242 = vld [vmem:[%s1 + $0x16c] sm:$0xf]
  %v243 = vld [vmem:[%s1 + $0x170] sm:$0xf]
  %v244 = vld [vmem:[%s1 + $0x174] sm:$0xf]
  %v245 = vld [vmem:[%s1 + $0x178] sm:$0xf]
  %v246 = vld [vmem:[%s1 + $0x17c] sm:$0xf]
  %v247 = vld [vmem:[%s1 + $0x180] sm:$0xf]
  %v248 = vld [vmem:[%s1 + $0x184] sm:$0xf]
  %v249 = vld [vmem:[%s1 + $0x188] sm:$0xf]
  %v250 = vld [vmem:[%s1 + $0x18c] sm:$0xf]
  %v251 = vld [vmem:[%s1 + $0x190] sm:$0xf]
  %v252 = vld [vmem:[%s1 + $0x194] sm:$0xf]
  %v253 = vld [vmem:[%s1 + $0x198] sm:$0xf]
  %v254 = vld [vmem:[%s1 + $0x19c] sm:$0xf]
  %v255 = vld [vmem:[%s1 + $0x1a0] sm:$0xf]
  %v256 = vld [vmem:[%s1 + $0x1a4] sm:$0xf]
  %v257 = vld [vmem:[%s1 + $0x1a8] sm:$0xf]
  %v258 = vld [vmem:[%s1 + $0x1ac] sm:$0xf]
  %v259 = vld [vmem:[%s1 + $0x1b0] sm:$0xf]
  %v260 = vld [vmem:[%s1 + $0x1b4] sm:$0xf]
  %v261 = vld [vmem:[%s1 + $0x1b8] sm:$0xf]
  %v262 = vld [vmem:[%s1 + $0x1bc] sm:$0xf]
  %v263 = vld [vmem:[%s1 + $0x1c0] sm:$0xf]
  %v264 = vld [vmem:[%s1 + $0x1c4] sm:$0xf]
  %v265 = vld [vmem:[%s1 + $0x1c8] sm:$0xf]
  %v266 = vld [vmem:[%s1 + $0x1cc] sm:$0xf]
  %v267 = vld [vmem:[%s1 + $0x1d0] sm:$0xf]
  %v268 = vld [vmem:[%s1 + $0x1d4] sm:$0xf]
  %v269 = vld [vmem:[%s1 + $0x1d8] sm:$0xf]
  %v270 = vld [vmem:[%s1 + $0x1dc] sm:$0xf]
  %v271 = vld [vmem:[%s1 + $0x1e0] sm:$0xf]
  %v272 = vld [vmem:[%s1 + $0x1e4] sm:$0xf]
  %v273 = vld [vmem:[%s1 + $0x1e8] sm:$0xf]
  %v274 = vld [vmem:[%s1 + $0x1ec] sm:$0xf]
  %v275 = vld [vmem:[%s1 + $0x1f0] sm:$0xf]
  %v276 = vld [vmem:[%s1 + $0x1f4] sm:$0xf]
  %v277 = vld [vmem:[%s1 + $0x1f8] sm:$0xf]
  %v278 = vld [vmem:[%s1 + $0x1fc] sm:$0xf]
  %v279 = vld [vmem:[%s1 + $0x200] sm:$0xf]
  %v280 = vld [vmem:[%s1 + $0x204] sm:$0xf]
  %v281 = vld [vmem:[%s1 + $0x208] sm:$0xf]
  %v282 = vld [vmem:[%s1 + $0x20c] sm:$0xf]
  %v283 = vld [vmem:[%s1 + $0x210] sm:$0xf]
  %v284 = vld [vmem:[%s1 + $0x214] sm:$0xf]
  %v285 = vld [vmem:[%s1 + $0x218] sm:$0xf]
  %v286 = vld [vmem:[%s1 + $0x21c] sm:$0xf]
  %v287 = vld [vmem:[%s1 + $0x220] sm:$0xf]
  %v288 = vld [vmem:[%s1 + $0x224] sm:$0xf]
  %v289 = vld [vmem:[%s1 + $0x228] sm:$0xf]
  %v290 = vld [vmem:[%s1 + $0x22c] sm:$0xf]
  %v291 = vld [vmem:[%s1 + $0x230] sm:$0xf]
  %v292 = vld [vmem:[%s1 + $0x234] sm:$0xf]
  %v293 = vld [vmem:[%s1 + $0x238] sm:$0xf]
  %v294 = vld [vmem:[%s1 + $0x23c] sm:$0xf]
  %v295 = vld [vmem:[%s1 + $0x240] sm:$0xf]
  %v296 = vld [vmem:[%s1 + $0x244] sm:$0xf]
  %v297 = vld [vmem:[%s1 + $0x248] sm:$0xf]
  %v298 = vld [vmem:[%s1 + $0x24c] sm:$0xf]
  %v299 = vld [vmem:[%s1 + $0x250] sm:$0xf]
  %v300 = vld [vmem:[%s1 + $0x254] sm:$0xf]
  %v301 = vld [vmem:[%s1 + $0x258] sm:$0xf]
  %v302 = vld [vmem:[%s1 + $0x25c] sm:$0xf]
  %v303 = vld [vmem:[%s1 + $0x260] sm:$0xf]
  %v304 = vld [vmem:[%s1 + $0x264] sm:$0xf]
  %v305 = vld [vmem:[%s1 + $0x268] sm:$0xf]
  %v306 = vld [vmem:[%s1 + $0x26c] sm:$0xf]
  %v307 = vld [vmem:[%s1 + $0x270] sm:$0xf]
  %v308 = vld [vmem:[%s1 + $0x274] sm:$0xf]
  %v309 = vld [vmem:[%s1 + $0x278] sm:$0xf]
  %v310 = vld [vmem:[%s1 + $0x27c] sm:$0xf]
  %v311 = vld [vmem:[%s1 + $0x280] sm:$0xf]
  %v312 = vld [vmem:[%s1 + $0x284] sm:$0xf]
  %v313 = vld [vmem:[%s1 + $0x288] sm:$0xf]
  %v314 = vld [vmem:[%s1 + $0x28c] sm:$0xf]
  %v315 = vld [vmem:[%s1 + $0x290] sm:$0xf]
  %v316 = vld [vmem:[%s1 + $0x294] sm:$0xf]
  %v317 = vld [vmem:[%s1 + $0x298] sm:$0xf]
  %v318 = vld [vmem:[%s1 + $0x29c] sm:$0xf]
  %v319 = vld [vmem:[%s1 + $0x2a0] sm:$0xf]
  %v320 = vld [vmem:[%s1 + $0x2a4] sm:$0xf]
  %v321 = vld [vmem:[%s1 + $0x2a8] sm:$0xf]
  %v322 = vld [vmem:[%s1 + $0x2ac] sm:$0xf]
  %v323 = vld [vmem:[%s1 + $0x2b0] sm:$0xf]
  %v324 = vld [vmem:[%s1 + $0x2b4] sm:$0xf]
  %v325 = vld [vmem:[%s1 + $0x2b8] sm:$0xf]
  %v326 = vld [vmem:[%s1 + $0x2bc] sm:$0xf]
  %v327 = vld [vmem:[%s1 + $0x2c0] sm:$0xf]
  %v328 = vld [vmem:[%s1 + $0x2c4] sm:$0xf]
  %v329 = vld [vmem:[%s1 + $0x2c8] sm:$0xf]
  %v330 = vld [vmem:[%s1 + $0x2cc] sm:$0xf]
  %v331 = vld [vmem:[%s1 + $0x2d0] sm:$0xf]
  %v332 = vld [vmem:[%s1 + $0x2d4] sm:$0xf]
  %v333 = vld [vmem:[%s1 + $0x2d8] sm:$0xf]
  %v334 = vld [vmem:[%s1 + $0x2dc] sm:$0xf]
  %v335 = vld [vmem:[%s1 + $0x2e0] sm:$0xf]
  %v336 = vld [vmem:[%s1 + $0x2e4] sm:$0xf]
  %v337 = vld [vmem:[%s1 + $0x2e8] sm:$0xf]
  %v338 = vld [vmem:[%s1 + $0x2ec] sm:$0xf]
  %v339 = vld [vmem:[%s1 + $0x2f0] sm:$0xf]
  %v340 = vld [vmem:[%s1 + $0x2f4] sm:$0xf]
  %v341 = vld [vmem:[%s1 + $0x2f8] sm:$0xf]
  %v342 = vld [vmem:[%s1 + $0x2fc] sm:$0xf]
  %v343 = vld [vmem:[%s1 + $0x300] sm:$0xf]
  %v344 = vld [vmem:[%s1 + $0x304] sm:$0xf]
  %v345 = vld [vmem:[%s1 + $0x308] sm:$0xf]
  %v346 = vld [vmem:[%s1 + $0x30c] sm:$0xf]
  %v347 = vld [vmem:[%s1 + $0x310] sm:$0xf]
  %v348 = vld [vmem:[%s1 + $0x314] sm:$0xf]
  %v349 = vld [vmem:[%s1 + $0x318] sm:$0xf]
  %v350 = vld [vmem:[%s1 + $0x31c] sm:$0xf]
  %v351 = vld [vmem:[%s1 + $0x320] sm:$0xf]
  %v352 = vld [vmem:[%s1 + $0x324] sm:$0xf]
  %v353 = vld [vmem:[%s1 + $0x328] sm:$0xf]
  %v354 = vld [vmem:[%s1 + $0x32c] sm:$0xf]
  %v355 = vld [vmem:[%s1 + $0x330] sm:$0xf]
  %v356 = vld [vmem:[%s1 + $0x334] sm:$0xf]
  %v357 = vld [vmem:[%s1 + $0x338] sm:$0xf]
  %v358 = vld [vmem:[%s1 + $0x33c] sm:$0xf]
  %v359 = vld [vmem:[%s1 + $0x340] sm:$0xf]
  %v360 = vld [vmem:[%s1 + $0x344] sm:$0xf]
  %v361 = vld [vmem:[%s1 + $0x348] sm:$0xf]
  %v362 = vld [vmem:[%s1 + $0x34c] sm:$0xf]
  %v363 = vld [vmem:[%s1 + $0x350] sm:$0xf]
  %v364 = vld [vmem:[%s1 + $0x354] sm:$0xf]
  %v365 = vld [vmem:[%s1 + $0x358] sm:$0xf]
  %v366 = vld [vmem:[%s1 + $0x35c] sm:$0xf]
  %v367 = vld [vmem:[%s1 + $0x360] sm:$0xf]
  %v368 = vld [vmem:[%s1 + $0x364] sm:$0xf]
  %v369 = vld [vmem:[%s1 + $0x368] sm:$0xf]
  %v370 = vld [vmem:[%s1 + $0x36c] sm:$0xf]
  %v371 = vld [vmem:[%s1 + $0x370] sm:$0xf]
  %v372 = vld [vmem:[%s1 + $0x374] sm:$0xf]
  %v373 = vld [vmem:[%s1 + $0x378] sm:$0xf]
  %v374 = vld [vmem:[%s1 + $0x37c] sm:$0xf]
  %v375 = vld [vmem:[%s1 + $0x380] sm:$0xf]
  %v376 = vld [vmem:[%s1 + $0x384] sm:$0xf]
  %v377 = vld [vmem:[%s1 + $0x388] sm:$0xf]
  %v378 = vld [vmem:[%s1 + $0x38c] sm:$0xf]
  %v379 = vld [vmem:[%s1 + $0x390] sm:$0xf]
  %v380 = vld [vmem:[%s1 + $0x394] sm:$0xf]
  %v381 = vld [vmem:[%s1 + $0x398] sm:$0xf]
  %v382 = vld [vmem:[%s1 + $0x39c] sm:$0xf]
  %v383 = vld [vmem:[%s1 + $0x3a0] sm:$0xf]
  %v384 = vld [vmem:[%s1 + $0x3a4] sm:$0xf]
  %v385 = vld [vmem:[%s1 + $0x3a8] sm:$0xf]
  %v386 = vld [vmem:[%s1 + $0x3ac] sm:$0xf]
  %v387 = vld [vmem:[%s1 + $0x3b0] sm:$0xf]
  %v388 = vld [vmem:[%s1 + $0x3b4] sm:$0xf]
  %v389 = vld [vmem:[%s1 + $0x3b8] sm:$0xf]
  %v390 = vld [vmem:[%s1 + $0x3bc] sm:$0xf]
  %v391 = vld [vmem:[%s1 + $0x3c0] sm:$0xf]
  %v392 = vld [vmem:[%s1 + $0x3c4] sm:$0xf]
  %v393 = vld [vmem:[%s1 + $0x3c8] sm:$0xf]
  %v394 = vld [vmem:[%s1 + $0x3cc] sm:$0xf]
  %v395 = vld [vmem:[%s1 + $0x3d0] sm:$0xf]
  %v396 = vld [vmem:[%s1 + $0x3d4] sm:$0xf]
  %v397 = vld [vmem:[%s1 + $0x3d8] sm:$0xf]
  %v398 = vld [vmem:[%s1 + $0x3dc] sm:$0xf]
  %v399 = vld [vmem:[%s1 + $0x3e0] sm:$0xf]
  %v400 = vld [vmem:[%s1 + $0x3e4] sm:$0xf]
  %v401 = vld [vmem:[%s1 + $0x3e8] sm:$0xf]
  %v402 = vld [vmem:[%s1 + $0x3ec] sm:$0xf]
  %v403 = vld [vmem:[%s1 + $0x3f0] sm:$0xf]
  %v404 = vld [vmem:[%s1 + $0x3f4] sm:$0xf]
  %v405 = vld [vmem:[%s1 + $0x3f8] sm:$0xf]
  %v406 = vld [vmem:[%s1 + $0x3fc] sm:$0xf]
  %v407 = vld [vmem:[%s3] sm:$0xf]
  %v408 = vld [vmem:[%s3 + $0x4] sm:$0xf]
  %v409 = vld [vmem:[%s3 + $0x8] sm:$0xf]
  %v410 = vld [vmem:[%s3 + $0xc] sm:$0xf]
  %v411 = vld [vmem:[%s3 + $0x10] sm:$0xf]
  %v412 = vld [vmem:[%s3 + $0x14] sm:$0xf]
  %v413 = vld [vmem:[%s3 + $0x18] sm:$0xf]
  %v414 = vld [vmem:[%s3 + $0x1c] sm:$0xf]
  %v415 = vld [vmem:[%s3 + $0x20] sm:$0xf]
  %v416 = vld [vmem:[%s3 + $0x24] sm:$0xf]
  %v417 = vld [vmem:[%s3 + $0x28] sm:$0xf]
  %v418 = vld [vmem:[%s3 + $0x2c] sm:$0xf]
  %v419 = vld [vmem:[%s3 + $0x30] sm:$0xf]
  %v420 = vld [vmem:[%s3 + $0x34] sm:$0xf]
  %v421 = vld [vmem:[%s3 + $0x38] sm:$0xf]
  %v422 = vld [vmem:[%s3 + $0x3c] sm:$0xf]
  %v679 = vunpack.c.l.b16 %v151
  %v680 = vunpack.c.l.b16 %v152
  %v681 = vunpack.c.l.b16 %v153
  %v682 = vunpack.c.l.b16 %v154
  %v683 = vunpack.c.l.b16 %v155
  %v684 = vunpack.c.l.b16 %v156
  %v685 = vunpack.c.l.b16 %v157
  %v686 = vunpack.c.l.b16 %v158
  %v687 = vunpack.c.l.b16 %v159
  %v688 = vunpack.c.l.b16 %v160
  %v689 = vunpack.c.l.b16 %v161
  %v690 = vunpack.c.l.b16 %v162
  %v691 = vunpack.c.l.b16 %v163
  %v692 = vunpack.c.l.b16 %v164
  %v693 = vunpack.c.l.b16 %v165
  %v694 = vunpack.c.l.b16 %v166
  %v695 = vunpack.c.l.b16 %v167
  %v696 = vunpack.c.l.b16 %v168
  %v697 = vunpack.c.l.b16 %v169
  %v698 = vunpack.c.l.b16 %v170
  %v699 = vunpack.c.l.b16 %v171
  %v700 = vunpack.c.l.b16 %v172
  %v701 = vunpack.c.l.b16 %v173
  %v702 = vunpack.c.l.b16 %v174
  %v703 = vunpack.c.l.b16 %v175
  %v704 = vunpack.c.l.b16 %v176
  %v705 = vunpack.c.l.b16 %v177
  %v706 = vunpack.c.l.b16 %v178
  %v707 = vunpack.c.l.b16 %v179
  %v708 = vunpack.c.l.b16 %v180
  %v709 = vunpack.c.l.b16 %v181
  %v710 = vunpack.c.l.b16 %v182
  %v711 = vunpack.c.l.b16 %v183
  %v712 = vunpack.c.l.b16 %v184
  %v713 = vunpack.c.l.b16 %v185
  %v714 = vunpack.c.l.b16 %v186
  %v715 = vunpack.c.l.b16 %v187
  %v716 = vunpack.c.l.b16 %v188
  %v717 = vunpack.c.l.b16 %v189
  %v718 = vunpack.c.l.b16 %v190
  %v719 = vunpack.c.l.b16 %v191
  %v720 = vunpack.c.l.b16 %v192
  %v721 = vunpack.c.l.b16 %v193
  %v722 = vunpack.c.l.b16 %v194
  %v723 = vunpack.c.l.b16 %v195
  %v724 = vunpack.c.l.b16 %v196
  %v725 = vunpack.c.l.b16 %v197
  %v726 = vunpack.c.l.b16 %v198
  %v727 = vunpack.c.l.b16 %v199
  %v728 = vunpack.c.l.b16 %v200
  %v729 = vunpack.c.l.b16 %v201
  %v730 = vunpack.c.l.b16 %v202
  %v731 = vunpack.c.l.b16 %v203
  %v732 = vunpack.c.l.b16 %v204
  %v733 = vunpack.c.l.b16 %v205
  %v734 = vunpack.c.l.b16 %v206
  %v735 = vunpack.c.l.b16 %v207
  %v736 = vunpack.c.l.b16 %v208
  %v737 = vunpack.c.l.b16 %v209
  %v738 = vunpack.c.l.b16 %v210
  %v739 = vunpack.c.l.b16 %v211
  %v740 = vunpack.c.l.b16 %v212
  %v741 = vunpack.c.l.b16 %v213
  %v742 = vunpack.c.l.b16 %v214
  %v743 = vunpack.c.l.b16 %v215
  %v744 = vunpack.c.l.b16 %v216
  %v745 = vunpack.c.l.b16 %v217
  %v746 = vunpack.c.l.b16 %v218
  %v747 = vunpack.c.l.b16 %v219
  %v748 = vunpack.c.l.b16 %v220
  %v749 = vunpack.c.l.b16 %v221
  %v750 = vunpack.c.l.b16 %v222
  %v751 = vunpack.c.l.b16 %v223
  %v752 = vunpack.c.l.b16 %v224
  %v753 = vunpack.c.l.b16 %v225
  %v754 = vunpack.c.l.b16 %v226
  %v755 = vunpack.c.l.b16 %v227
  %v756 = vunpack.c.l.b16 %v228
  %v757 = vunpack.c.l.b16 %v229
  %v758 = vunpack.c.l.b16 %v230
  %v759 = vunpack.c.l.b16 %v231
  %v760 = vunpack.c.l.b16 %v232
  %v761 = vunpack.c.l.b16 %v233
  %v762 = vunpack.c.l.b16 %v234
  %v763 = vunpack.c.l.b16 %v235
  %v764 = vunpack.c.l.b16 %v236
  %v765 = vunpack.c.l.b16 %v237
  %v766 = vunpack.c.l.b16 %v238
  %v767 = vunpack.c.l.b16 %v239
  %v768 = vunpack.c.l.b16 %v240
  %v769 = vunpack.c.l.b16 %v241
  %v770 = vunpack.c.l.b16 %v242
  %v771 = vunpack.c.l.b16 %v243
  %v772 = vunpack.c.l.b16 %v244
  %v773 = vunpack.c.l.b16 %v245
  %v774 = vunpack.c.l.b16 %v246
  %v775 = vunpack.c.l.b16 %v247
  %v776 = vunpack.c.l.b16 %v248
  %v777 = vunpack.c.l.b16 %v249
  %v778 = vunpack.c.l.b16 %v250
  %v779 = vunpack.c.l.b16 %v251
  %v780 = vunpack.c.l.b16 %v252
  %v781 = vunpack.c.l.b16 %v253
  %v782 = vunpack.c.l.b16 %v254
  %v783 = vunpack.c.l.b16 %v255
  %v784 = vunpack.c.l.b16 %v256
  %v785 = vunpack.c.l.b16 %v257
  %v786 = vunpack.c.l.b16 %v258
  %v787 = vunpack.c.l.b16 %v259
  %v788 = vunpack.c.l.b16 %v260
  %v789 = vunpack.c.l.b16 %v261
  %v790 = vunpack.c.l.b16 %v262
  %v791 = vunpack.c.l.b16 %v263
  %v792 = vunpack.c.l.b16 %v264
  %v793 = vunpack.c.l.b16 %v265
  %v794 = vunpack.c.l.b16 %v266
  %v795 = vunpack.c.l.b16 %v267
  %v796 = vunpack.c.l.b16 %v268
  %v797 = vunpack.c.l.b16 %v269
  %v798 = vunpack.c.l.b16 %v270
  %v799 = vunpack.c.l.b16 %v271
  %v800 = vunpack.c.l.b16 %v272
  %v801 = vunpack.c.l.b16 %v273
  %v802 = vunpack.c.l.b16 %v274
  %v803 = vunpack.c.l.b16 %v275
  %v804 = vunpack.c.l.b16 %v276
  %v805 = vunpack.c.l.b16 %v277
  %v806 = vunpack.c.l.b16 %v278
  %v807 = vunpack.c.l.b16 %v279
  %v808 = vunpack.c.l.b16 %v280
  %v809 = vunpack.c.l.b16 %v281
  %v810 = vunpack.c.l.b16 %v282
  %v811 = vunpack.c.l.b16 %v283
  %v812 = vunpack.c.l.b16 %v284
  %v813 = vunpack.c.l.b16 %v285
  %v814 = vunpack.c.l.b16 %v286
  %v815 = vunpack.c.l.b16 %v287
  %v816 = vunpack.c.l.b16 %v288
  %v817 = vunpack.c.l.b16 %v289
  %v818 = vunpack.c.l.b16 %v290
  %v819 = vunpack.c.l.b16 %v291
  %v820 = vunpack.c.l.b16 %v292
  %v821 = vunpack.c.l.b16 %v293
  %v822 = vunpack.c.l.b16 %v294
  %v823 = vunpack.c.l.b16 %v295
  %v824 = vunpack.c.l.b16 %v296
  %v825 = vunpack.c.l.b16 %v297
  %v826 = vunpack.c.l.b16 %v298
  %v827 = vunpack.c.l.b16 %v299
  %v828 = vunpack.c.l.b16 %v300
  %v829 = vunpack.c.l.b16 %v301
  %v830 = vunpack.c.l.b16 %v302
  %v831 = vunpack.c.l.b16 %v303
  %v832 = vunpack.c.l.b16 %v304
  %v833 = vunpack.c.l.b16 %v305
  %v834 = vunpack.c.l.b16 %v306
  %v835 = vunpack.c.l.b16 %v307
  %v836 = vunpack.c.l.b16 %v308
  %v837 = vunpack.c.l.b16 %v309
  %v838 = vunpack.c.l.b16 %v310
  %v839 = vunpack.c.l.b16 %v311
  %v840 = vunpack.c.l.b16 %v312
  %v841 = vunpack.c.l.b16 %v313
  %v842 = vunpack.c.l.b16 %v314
  %v843 = vunpack.c.l.b16 %v315
  %v844 = vunpack.c.l.b16 %v316
  %v845 = vunpack.c.l.b16 %v317
  %v846 = vunpack.c.l.b16 %v318
  %v847 = vunpack.c.l.b16 %v319
  %v848 = vunpack.c.l.b16 %v320
  %v849 = vunpack.c.l.b16 %v321
  %v850 = vunpack.c.l.b16 %v322
  %v851 = vunpack.c.l.b16 %v323
  %v852 = vunpack.c.l.b16 %v324
  %v853 = vunpack.c.l.b16 %v325
  %v854 = vunpack.c.l.b16 %v326
  %v855 = vunpack.c.l.b16 %v327
  %v856 = vunpack.c.l.b16 %v328
  %v857 = vunpack.c.l.b16 %v329
  %v858 = vunpack.c.l.b16 %v330
  %v859 = vunpack.c.l.b16 %v331
  %v860 = vunpack.c.l.b16 %v332
  %v861 = vunpack.c.l.b16 %v333
  %v862 = vunpack.c.l.b16 %v334
  %v863 = vunpack.c.l.b16 %v335
  %v864 = vunpack.c.l.b16 %v336
  %v865 = vunpack.c.l.b16 %v337
  %v866 = vunpack.c.l.b16 %v338
  %v867 = vunpack.c.l.b16 %v339
  %v868 = vunpack.c.l.b16 %v340
  %v869 = vunpack.c.l.b16 %v341
  %v870 = vunpack.c.l.b16 %v342
  %v871 = vunpack.c.l.b16 %v343
  %v872 = vunpack.c.l.b16 %v344
  %v873 = vunpack.c.l.b16 %v345
  %v874 = vunpack.c.l.b16 %v346
  %v875 = vunpack.c.l.b16 %v347
  %v876 = vunpack.c.l.b16 %v348
  %v877 = vunpack.c.l.b16 %v349
  %v878 = vunpack.c.l.b16 %v350
  %v879 = vunpack.c.l.b16 %v351
  %v880 = vunpack.c.l.b16 %v352
  %v881 = vunpack.c.l.b16 %v353
  %v882 = vunpack.c.l.b16 %v354
  %v883 = vunpack.c.l.b16 %v355
  %v884 = vunpack.c.l.b16 %v356
  %v885 = vunpack.c.l.b16 %v357
  %v886 = vunpack.c.l.b16 %v358
  %v887 = vunpack.c.l.b16 %v359
  %v888 = vunpack.c.l.b16 %v360
  %v889 = vunpack.c.l.b16 %v361
  %v890 = vunpack.c.l.b16 %v362
  %v891 = vunpack.c.l.b16 %v363
  %v892 = vunpack.c.l.b16 %v364
  %v893 = vunpack.c.l.b16 %v365
  %v894 = vunpack.c.l.b16 %v366
  %v895 = vunpack.c.l.b16 %v367
  %v896 = vunpack.c.l.b16 %v368
  %v897 = vunpack.c.l.b16 %v369
  %v898 = vunpack.c.l.b16 %v370
  %v899 = vunpack.c.l.b16 %v371
  %v900 = vunpack.c.l.b16 %v372
  %v901 = vunpack.c.l.b16 %v373
  %v902 = vunpack.c.l.b16 %v374
  %v903 = vunpack.c.l.b16 %v375
  %v904 = vunpack.c.l.b16 %v376
  %v905 = vunpack.c.l.b16 %v377
  %v906 = vunpack.c.l.b16 %v378
  %v907 = vunpack.c.l.b16 %v379
  %v908 = vunpack.c.l.b16 %v380
  %v909 = vunpack.c.l.b16 %v381
  %v910 = vunpack.c.l.b16 %v382
  %v911 = vunpack.c.l.b16 %v383
  %v912 = vunpack.c.l.b16 %v384
  %v913 = vunpack.c.l.b16 %v385
  %v914 = vunpack.c.l.b16 %v386
  %v915 = vunpack.c.l.b16 %v387
  %v916 = vunpack.c.l.b16 %v388
  %v917 = vunpack.c.l.b16 %v389
  %v918 = vunpack.c.l.b16 %v390
  %v919 = vunpack.c.l.b16 %v391
  %v920 = vunpack.c.l.b16 %v392
  %v921 = vunpack.c.l.b16 %v393
  %v922 = vunpack.c.l.b16 %v394
  %v923 = vunpack.c.l.b16 %v395
  %v924 = vunpack.c.l.b16 %v396
  %v925 = vunpack.c.l.b16 %v397
  %v926 = vunpack.c.l.b16 %v398
  %v927 = vunpack.c.l.b16 %v399
  %v928 = vunpack.c.l.b16 %v400
  %v929 = vunpack.c.l.b16 %v401
  %v930 = vunpack.c.l.b16 %v402
  %v931 = vunpack.c.l.b16 %v403
  %v932 = vunpack.c.l.b16 %v404
  %v933 = vunpack.c.l.b16 %v405
  %v934 = vunpack.c.l.b16 %v406
  %v935 = vpack.c.b16 %v680, %v679
  %v936 = vpack.c.b16 %v682, %v681
  %v937 = vpack.c.b16 %v684, %v683
  %v938 = vpack.c.b16 %v686, %v685
  %v939 = vpack.c.b16 %v688, %v687
  %v940 = vpack.c.b16 %v690, %v689
  %v941 = vpack.c.b16 %v692, %v691
  %v942 = vpack.c.b16 %v694, %v693
  %v943 = vpack.c.b16 %v696, %v695
  %v944 = vpack.c.b16 %v698, %v697
  %v945 = vpack.c.b16 %v700, %v699
  %v946 = vpack.c.b16 %v702, %v701
  %v947 = vpack.c.b16 %v704, %v703
  %v948 = vpack.c.b16 %v706, %v705
  %v949 = vpack.c.b16 %v708, %v707
  %v950 = vpack.c.b16 %v710, %v709
  %v951 = vpack.c.b16 %v712, %v711
  %v952 = vpack.c.b16 %v714, %v713
  %v953 = vpack.c.b16 %v716, %v715
  %v954 = vpack.c.b16 %v718, %v717
  %v955 = vpack.c.b16 %v720, %v719
  %v956 = vpack.c.b16 %v722, %v721
  %v957 = vpack.c.b16 %v724, %v723
  %v958 = vpack.c.b16 %v726, %v725
  %v959 = vpack.c.b16 %v728, %v727
  %v960 = vpack.c.b16 %v730, %v729
  %v961 = vpack.c.b16 %v732, %v731
  %v962 = vpack.c.b16 %v734, %v733
  %v963 = vpack.c.b16 %v736, %v735
  %v964 = vpack.c.b16 %v738, %v737
  %v965 = vpack.c.b16 %v740, %v739
  %v966 = vpack.c.b16 %v742, %v741
  %v967 = vpack.c.b16 %v744, %v743
  %v968 = vpack.c.b16 %v746, %v745
  %v969 = vpack.c.b16 %v748, %v747
  %v970 = vpack.c.b16 %v750, %v749
  %v971 = vpack.c.b16 %v752, %v751
  %v972 = vpack.c.b16 %v754, %v753
  %v973 = vpack.c.b16 %v756, %v755
  %v974 = vpack.c.b16 %v758, %v757
  %v975 = vpack.c.b16 %v760, %v759
  %v976 = vpack.c.b16 %v762, %v761
  %v977 = vpack.c.b16 %v764, %v763
  %v978 = vpack.c.b16 %v766, %v765
  %v979 = vpack.c.b16 %v768, %v767
  %v980 = vpack.c.b16 %v770, %v769
  %v981 = vpack.c.b16 %v772, %v771
  %v982 = vpack.c.b16 %v774, %v773
  %v983 = vpack.c.b16 %v776, %v775
  %v984 = vpack.c.b16 %v778, %v777
  %v985 = vpack.c.b16 %v780, %v779
  %v986 = vpack.c.b16 %v782, %v781
  %v987 = vpack.c.b16 %v784, %v783
  %v988 = vpack.c.b16 %v786, %v785
  %v989 = vpack.c.b16 %v788, %v787
  %v990 = vpack.c.b16 %v790, %v789
  %v991 = vpack.c.b16 %v792, %v791
  %v992 = vpack.c.b16 %v794, %v793
  %v993 = vpack.c.b16 %v796, %v795
  %v994 = vpack.c.b16 %v798, %v797
  %v995 = vpack.c.b16 %v800, %v799
  %v996 = vpack.c.b16 %v802, %v801
  %v997 = vpack.c.b16 %v804, %v803
  %v998 = vpack.c.b16 %v806, %v805
  %v999 = vpack.c.b16 %v808, %v807
  %v1000 = vpack.c.b16 %v810, %v809
  %v1001 = vpack.c.b16 %v812, %v811
  %v1002 = vpack.c.b16 %v814, %v813
  %v1003 = vpack.c.b16 %v816, %v815
  %v1004 = vpack.c.b16 %v818, %v817
  %v1005 = vpack.c.b16 %v820, %v819
  %v1006 = vpack.c.b16 %v822, %v821
  %v1007 = vpack.c.b16 %v824, %v823
  %v1008 = vpack.c.b16 %v826, %v825
  %v1009 = vpack.c.b16 %v828, %v827
  %v1010 = vpack.c.b16 %v830, %v829
  %v1011 = vpack.c.b16 %v832, %v831
  %v1012 = vpack.c.b16 %v834, %v833
  %v1013 = vpack.c.b16 %v836, %v835
  %v1014 = vpack.c.b16 %v838, %v837
  %v1015 = vpack.c.b16 %v840, %v839
  %v1016 = vpack.c.b16 %v842, %v841
  %v1017 = vpack.c.b16 %v844, %v843
  %v1018 = vpack.c.b16 %v846, %v845
  %v1019 = vpack.c.b16 %v848, %v847
  %v1020 = vpack.c.b16 %v850, %v849
  %v1021 = vpack.c.b16 %v852, %v851
  %v1022 = vpack.c.b16 %v854, %v853
  %v1023 = vpack.c.b16 %v856, %v855
  %v1024 = vpack.c.b16 %v858, %v857
  %v1025 = vpack.c.b16 %v860, %v859
  %v1026 = vpack.c.b16 %v862, %v861
  %v1027 = vpack.c.b16 %v864, %v863
  %v1028 = vpack.c.b16 %v866, %v865
  %v1029 = vpack.c.b16 %v868, %v867
  %v1030 = vpack.c.b16 %v870, %v869
  %v1031 = vpack.c.b16 %v872, %v871
  %v1032 = vpack.c.b16 %v874, %v873
  %v1033 = vpack.c.b16 %v876, %v875
  %v1034 = vpack.c.b16 %v878, %v877
  %v1035 = vpack.c.b16 %v880, %v879
  %v1036 = vpack.c.b16 %v882, %v881
  %v1037 = vpack.c.b16 %v884, %v883
  %v1038 = vpack.c.b16 %v886, %v885
  %v1039 = vpack.c.b16 %v888, %v887
  %v1040 = vpack.c.b16 %v890, %v889
  %v1041 = vpack.c.b16 %v892, %v891
  %v1042 = vpack.c.b16 %v894, %v893
  %v1043 = vpack.c.b16 %v896, %v895
  %v1044 = vpack.c.b16 %v898, %v897
  %v1045 = vpack.c.b16 %v900, %v899
  %v1046 = vpack.c.b16 %v902, %v901
  %v1047 = vpack.c.b16 %v904, %v903
  %v1048 = vpack.c.b16 %v906, %v905
  %v1049 = vpack.c.b16 %v908, %v907
  %v1050 = vpack.c.b16 %v910, %v909
  %v1051 = vpack.c.b16 %v912, %v911
  %v1052 = vpack.c.b16 %v914, %v913
  %v1053 = vpack.c.b16 %v916, %v915
  %v1054 = vpack.c.b16 %v918, %v917
  %v1055 = vpack.c.b16 %v920, %v919
  %v1056 = vpack.c.b16 %v922, %v921
  %v1057 = vpack.c.b16 %v924, %v923
  %v1058 = vpack.c.b16 %v926, %v925
  %v1059 = vpack.c.b16 %v928, %v927
  %v1060 = vpack.c.b16 %v930, %v929
  %v1061 = vpack.c.b16 %v932, %v931
  %v1062 = vpack.c.b16 %v934, %v933
  %v1207 = vunpack.c.l.b16 %v407
  %v1208 = vunpack.c.l.b16 %v408
  %v1209 = vunpack.c.l.b16 %v409
  %v1210 = vunpack.c.l.b16 %v410
  %v1211 = vunpack.c.l.b16 %v411
  %v1212 = vunpack.c.l.b16 %v412
  %v1213 = vunpack.c.l.b16 %v413
  %v1214 = vunpack.c.l.b16 %v414
  %v1215 = vunpack.c.l.b16 %v415
  %v1216 = vunpack.c.l.b16 %v416
  %v1217 = vunpack.c.l.b16 %v417
  %v1218 = vunpack.c.l.b16 %v418
  %v1219 = vunpack.c.l.b16 %v419
  %v1220 = vunpack.c.l.b16 %v420
  %v1221 = vunpack.c.l.b16 %v421
  %v1222 = vunpack.c.l.b16 %v422
  %v1223 = vpack.c.b16 %v1208, %v1207
  %v1224 = vpack.c.b16 %v1210, %v1209
  %v1225 = vpack.c.b16 %v1212, %v1211
  %v1226 = vpack.c.b16 %v1214, %v1213
  %v1227 = vpack.c.b16 %v1216, %v1215
  %v1228 = vpack.c.b16 %v1218, %v1217
  %v1229 = vpack.c.b16 %v1220, %v1219
  %v1230 = vpack.c.b16 %v1222, %v1221
  %1239 = vmatprep.subr.bf16.mxu0 0
  %1240 = vmatpush1.bf16.msra.mxu0 %v1223
  %1241 = vmatprep.subr.bf16.mxu0 0
  %1242 = vmatpush1.bf16.msra.mxu0 %v1224
  %1243 = vmatprep.subr.bf16.mxu0 0
  %1244 = vmatpush1.bf16.msra.mxu0 %v1225
  %1245 = vmatprep.subr.bf16.mxu0 0
  %1246 = vmatpush1.bf16.msra.mxu0 %v1226
  %1247 = vmatprep.subr.bf16.mxu0 0
  %1248 = vmatpush1.bf16.msra.mxu0 %v1227
  %1249 = vmatprep.subr.bf16.mxu0 0
  %1250 = vmatpush1.bf16.msra.mxu0 %v1228
  %1251 = vmatprep.subr.bf16.mxu0 0
  %1252 = vmatpush1.bf16.msra.mxu0 %v1229
  %1253 = vmatprep.subr.bf16.mxu0 0
  %1254 = vmatpush1.bf16.msra.mxu0 %v1230
  %1255 = vmatprep.subr.bf16.mxu0 0
  %1256 = vmatpush1.bf16.msra.mxu0 0
  %1257 = vmatprep.subr.bf16.mxu0 0
  %1258 = vmatpush1.bf16.msra.mxu0 0
  %1259 = vmatprep.subr.bf16.mxu0 0
  %1260 = vmatpush1.bf16.msra.mxu0 0
  %1261 = vmatprep.subr.bf16.mxu0 0
  %1262 = vmatpush1.bf16.msra.mxu0 0
  %1263 = vmatprep.subr.bf16.mxu0 0
  %1264 = vmatpush1.bf16.msra.mxu0 0
  %1265 = vmatprep.subr.bf16.mxu0 0
  %1266 = vmatpush1.bf16.msra.mxu0 0
  %1267 = vmatprep.subr.bf16.mxu0 0
  %1268 = vmatpush1.bf16.msra.mxu0 0
  %1269 = vmatprep.subr.bf16.mxu0 0
  %1270 = vmatpush1.bf16.msra.mxu0 0
  %1271 = vmatprep.mubr.bf16.mxu0 0
  %1272 = vmatmul.mubr.bf16.gmra.mrb[0].mxu0 %v935
  %v1273 = vpop.f32.mrb[0].mxu0
  %v1274 = vadd.f32 0.0, %v1273
  %v1275 = vpop.f32.mrb[0].mxu0
  %v1276 = vpop.f32.mrb[0].mxu0
  %v1277 = vadd.f32 0.0, %v1276
  %v1278 = vpop.f32.mrb[0].mxu0
  %1279 = vmatprep.mubr.bf16.mxu0 0
  %1280 = vmatmul.mubr.bf16.gmra.mrb[0].mxu0 %v936
  %v1281 = vpop.f32.mrb[0].mxu0
  %v1282 = vadd.f32 0.0, %v1281
  %v1283 = vpop.f32.mrb[0].mxu0
  %v1284 = vpop.f32.mrb[0].mxu0
  %v1285 = vadd.f32 0.0, %v1284
  %v1286 = vpop.f32.mrb[0].mxu0
  %1287 = vmatprep.mubr.bf16.mxu0 0
  %1288 = vmatmul.mubr.bf16.gmra.mrb[0].mxu0 %v937
  %v1289 = vpop.f32.mrb[0].mxu0
  %v1290 = vadd.f32 0.0, %v1289
  %v1291 = vpop.f32.mrb[0].mxu0
  %v1292 = vpop.f32.mrb[0].mxu0
  %v1293 = vadd.f32 0.0, %v1292
  %v1294 = vpop.f32.mrb[0].mxu0
  %1295 = vmatprep.mubr.bf16.mxu0 0
  %1296 = vmatmul.mubr.bf16.gmra.mrb[0].mxu0 %v938
  %v1297 = vpop.f32.mrb[0].mxu0
  %v1298 = vadd.f32 0.0, %v1297
  %v1299 = vpop.f32.mrb[0].mxu0
  %v1300 = vpop.f32.mrb[0].mxu0
  %v1301 = vadd.f32 0.0, %v1300
  %v1302 = vpop.f32.mrb[0].mxu0
  %1303 = vmatprep.mubr.bf16.mxu0 0
  %1304 = vmatmul.mubr.bf16.gmra.mrb[0].mxu0 %v939
  %v1305 = vpop.f32.mrb[0].mxu0
  %v1306 = vadd.f32 0.0, %v1305
  %v1307 = vpop.f32.mrb[0].mxu0
  %v1308 = vpop.f32.mrb[0].mxu0
  %v1309 = vadd.f32 0.0, %v1308
  %v1310 = vpop.f32.mrb[0].mxu0
  %1311 = vmatprep.mubr.bf16.mxu0 0
  %1312 = vmatmul.mubr.bf16.gmra.mrb[0].mxu0 %v940
  %v1313 = vpop.f32.mrb[0].mxu0
  %v1314 = vadd.f32 0.0, %v1313
  %v1315 = vpop.f32.mrb[0].mxu0
  %v1316 = vpop.f32.mrb[0].mxu0
  %v1317 = vadd.f32 0.0, %v1316
  %v1318 = vpop.f32.mrb[0].mxu0
  %1319 = vmatprep.mubr.bf16.mxu0 0
  %1320 = vmatmul.mubr.bf16.gmra.mrb[0].mxu0 %v941
  %v1321 = vpop.f32.mrb[0].mxu0
  %v1322 = vadd.f32 0.0, %v1321
  %v1323 = vpop.f32.mrb[0].mxu0
  %v1324 = vpop.f32.mrb[0].mxu0
  %v1325 = vadd.f32 0.0, %v1324
  %v1326 = vpop.f32.mrb[0].mxu0
  %1327 = vmatprep.mubr.bf16.mxu0 0
  %1328 = vmatmul.mubr.bf16.gmra.mrb[0].mxu0 %v942
  %v1329 = vpop.f32.mrb[0].mxu0
  %v1330 = vadd.f32 0.0, %v1329
  %v1331 = vpop.f32.mrb[0].mxu0
  %v1332 = vpop.f32.mrb[0].mxu0
  %v1333 = vadd.f32 0.0, %v1332
  %v1334 = vpop.f32.mrb[0].mxu0
  %1335 = vmatprep.mubr.bf16.mxu0 0
  %1336 = vmatmul.mubr.bf16.gmra.mrb[0].mxu0 %v943
  %v1337 = vpop.f32.mrb[0].mxu0
  %v1338 = vadd.f32 0.0, %v1337
  %v1339 = vpop.f32.mrb[0].mxu0
  %v1340 = vpop.f32.mrb[0].mxu0
  %v1341 = vadd.f32 0.0, %v1340
  %v1342 = vpop.f32.mrb[0].mxu0
  %1343 = vmatprep.mubr.bf16.mxu0 0
  %1344 = vmatmul.mubr.bf16.gmra.mrb[0].mxu0 %v944
  %v1345 = vpop.f32.mrb[0].mxu0
  %v1346 = vadd.f32 0.0, %v1345
  %v1347 = vpop.f32.mrb[0].mxu0
  %v1348 = vpop.f32.mrb[0].mxu0
  %v1349 = vadd.f32 0.0, %v1348
  %v1350 = vpop.f32.mrb[0].mxu0
  %1351 = vmatprep.mubr.bf16.mxu0 0
  %1352 = vmatmul.mubr.bf16.gmra.mrb[0].mxu0 %v945
  %v1353 = vpop.f32.mrb[0].mxu0
  %v1354 = vadd.f32 0.0, %v1353
  %v1355 = vpop.f32.mrb[0].mxu0
  %v1356 = vpop.f32.mrb[0].mxu0
  %v1357 = vadd.f32 0.0, %v1356
  %v1358 = vpop.f32.mrb[0].mxu0
  %1359 = vmatprep.mubr.bf16.mxu0 0
  %1360 = vmatmul.mubr.bf16.gmra.mrb[0].mxu0 %v946
  %v1361 = vpop.f32.mrb[0].mxu0
  %v1362 = vadd.f32 0.0, %v1361
  %v1363 = vpop.f32.mrb[0].mxu0
  %v1364 = vpop.f32.mrb[0].mxu0
  %v1365 = vadd.f32 0.0, %v1364
  %v1366 = vpop.f32.mrb[0].mxu0
  %1367 = vmatprep.mubr.bf16.mxu0 0
  %1368 = vmatmul.mubr.bf16.gmra.mrb[0].mxu0 %v947
  %v1369 = vpop.f32.mrb[0].mxu0
  %v1370 = vadd.f32 0.0, %v1369
  %v1371 = vpop.f32.mrb[0].mxu0
  %v1372 = vpop.f32.mrb[0].mxu0
  %v1373 = vadd.f32 0.0, %v1372
  %v1374 = vpop.f32.mrb[0].mxu0
  %1375 = vmatprep.mubr.bf16.mxu0 0
  %1376 = vmatmul.mubr.bf16.gmra.mrb[0].mxu0 %v948
  %v1377 = vpop.f32.mrb[0].mxu0
  %v1378 = vadd.f32 0.0, %v1377
  %v1379 = vpop.f32.mrb[0].mxu0
  %v1380 = vpop.f32.mrb[0].mxu0
  %v1381 = vadd.f32 0.0, %v1380
  %v1382 = vpop.f32.mrb[0].mxu0
  %1383 = vmatprep.mubr.bf16.mxu0 0
  %1384 = vmatmul.mubr.bf16.gmra.mrb[0].mxu0 %v949
  %v1385 = vpop.f32.mrb[0].mxu0
  %v1386 = vadd.f32 0.0, %v1385
  %v1387 = vpop.f32.mrb[0].mxu0
  %v1388 = vpop.f32.mrb[0].mxu0
  %v1389 = vadd.f32 0.0, %v1388
  %v1390 = vpop.f32.mrb[0].mxu0
  %1391 = vmatprep.mubr.bf16.mxu0 0
  %1392 = vmatmul.mubr.bf16.gmra.mrb[0].mxu0 %v950
  %v1393 = vpop.f32.mrb[0].mxu0
  %v1394 = vadd.f32 0.0, %v1393
  %v1395 = vpop.f32.mrb[0].mxu0
  %v1396 = vpop.f32.mrb[0].mxu0
  %v1397 = vadd.f32 0.0, %v1396
  %v1398 = vpop.f32.mrb[0].mxu0
  %1399 = vmatprep.mubr.bf16.mxu0 0
  %1400 = vmatmul.mubr.bf16.gmra.mrb[0].mxu0 %v951
  %v1401 = vpop.f32.mrb[0].mxu0
  %v1402 = vadd.f32 0.0, %v1401
  %v1403 = vpop.f32.mrb[0].mxu0
  %v1404 = vpop.f32.mrb[0].mxu0
  %v1405 = vadd.f32 0.0, %v1404
  %v1406 = vpop.f32.mrb[0].mxu0
  %1407 = vmatprep.mubr.bf16.mxu0 0
  %1408 = vmatmul.mubr.bf16.gmra.mrb[0].mxu0 %v952
  %v1409 = vpop.f32.mrb[0].mxu0
  %v1410 = vadd.f32 0.0, %v1409
  %v1411 = vpop.f32.mrb[0].mxu0
  %v1412 = vpop.f32.mrb[0].mxu0
  %v1413 = vadd.f32 0.0, %v1412
  %v1414 = vpop.f32.mrb[0].mxu0
  %1415 = vmatprep.mubr.bf16.mxu0 0
  %1416 = vmatmul.mubr.bf16.gmra.mrb[0].mxu0 %v953
  %v1417 = vpop.f32.mrb[0].mxu0
  %v1418 = vadd.f32 0.0, %v1417
  %v1419 = vpop.f32.mrb[0].mxu0
  %v1420 = vpop.f32.mrb[0].mxu0
  %v1421 = vadd.f32 0.0, %v1420
  %v1422 = vpop.f32.mrb[0].mxu0
  %1423 = vmatprep.mubr.bf16.mxu0 0
  %1424 = vmatmul.mubr.bf16.gmra.mrb[0].mxu0 %v954
  %v1425 = vpop.f32.mrb[0].mxu0
  %v1426 = vadd.f32 0.0, %v1425
  %v1427 = vpop.f32.mrb[0].mxu0
  %v1428 = vpop.f32.mrb[0].mxu0
  %v1429 = vadd.f32 0.0, %v1428
  %v1430 = vpop.f32.mrb[0].mxu0
  %1431 = vmatprep.mubr.bf16.mxu0 0
  %1432 = vmatmul.mubr.bf16.gmra.mrb[0].mxu0 %v955
  %v1433 = vpop.f32.mrb[0].mxu0
  %v1434 = vadd.f32 0.0, %v1433
  %v1435 = vpop.f32.mrb[0].mxu0
  %v1436 = vpop.f32.mrb[0].mxu0
  %v1437 = vadd.f32 0.0, %v1436
  %v1438 = vpop.f32.mrb[0].mxu0
  %1439 = vmatprep.mubr.bf16.mxu0 0
  %1440 = vmatmul.mubr.bf16.gmra.mrb[0].mxu0 %v956
  %v1441 = vpop.f32.mrb[0].mxu0
  %v1442 = vadd.f32 0.0, %v1441
  %v1443 = vpop.f32.mrb[0].mxu0
  %v1444 = vpop.f32.mrb[0].mxu0
  %v1445 = vadd.f32 0.0, %v1444
  %v1446 = vpop.f32.mrb[0].mxu0
  %1447 = vmatprep.mubr.bf16.mxu0 0
  %1448 = vmatmul.mubr.bf16.gmra.mrb[0].mxu0 %v957
  %v1449 = vpop.f32.mrb[0].mxu0
  %v1450 = vadd.f32 0.0, %v1449
  %v1451 = vpop.f32.mrb[0].mxu0
  %v1452 = vpop.f32.mrb[0].mxu0
  %v1453 = vadd.f32 0.0, %v1452
  %v1454 = vpop.f32.mrb[0].mxu0
  %1455 = vmatprep.mubr.bf16.mxu0 0
  %1456 = vmatmul.mubr.bf16.gmra.mrb[0].mxu0 %v958
  %v1457 = vpop.f32.mrb[0].mxu0
  %v1458 = vadd.f32 0.0, %v1457
  %v1459 = vpop.f32.mrb[0].mxu0
  %v1460 = vpop.f32.mrb[0].mxu0
  %v1461 = vadd.f32 0.0, %v1460
  %v1462 = vpop.f32.mrb[0].mxu0
  %1463 = vmatprep.mubr.bf16.mxu0 0
  %1464 = vmatmul.mubr.bf16.gmra.mrb[0].mxu0 %v959
  %v1465 = vpop.f32.mrb[0].mxu0
  %v1466 = vadd.f32 0.0, %v1465
  %v1467 = vpop.f32.mrb[0].mxu0
  %v1468 = vpop.f32.mrb[0].mxu0
  %v1469 = vadd.f32 0.0, %v1468
  %v1470 = vpop.f32.mrb[0].mxu0
  %1471 = vmatprep.mubr.bf16.mxu0 0
  %1472 = vmatmul.mubr.bf16.gmra.mrb[0].mxu0 %v960
  %v1473 = vpop.f32.mrb[0].mxu0
  %v1474 = vadd.f32 0.0, %v1473
  %v1475 = vpop.f32.mrb[0].mxu0
  %v1476 = vpop.f32.mrb[0].mxu0
  %v1477 = vadd.f32 0.0, %v1476
  %v1478 = vpop.f32.mrb[0].mxu0
  %1479 = vmatprep.mubr.bf16.mxu0 0
  %1480 = vmatmul.mubr.bf16.gmra.mrb[0].mxu0 %v961
  %v1481 = vpop.f32.mrb[0].mxu0
  %v1482 = vadd.f32 0.0, %v1481
  %v1483 = vpop.f32.mrb[0].mxu0
  %v1484 = vpop.f32.mrb[0].mxu0
  %v1485 = vadd.f32 0.0, %v1484
  %v1486 = vpop.f32.mrb[0].mxu0
  %1487 = vmatprep.mubr.bf16.mxu0 0
  %1488 = vmatmul.mubr.bf16.gmra.mrb[0].mxu0 %v962
  %v1489 = vpop.f32.mrb[0].mxu0
  %v1490 = vadd.f32 0.0, %v1489
  %v1491 = vpop.f32.mrb[0].mxu0
  %v1492 = vpop.f32.mrb[0].mxu0
  %v1493 = vadd.f32 0.0, %v1492
  %v1494 = vpop.f32.mrb[0].mxu0
  %1495 = vmatprep.mubr.bf16.mxu0 0
  %1496 = vmatmul.mubr.bf16.gmra.mrb[0].mxu0 %v963
  %v1497 = vpop.f32.mrb[0].mxu0
  %v1498 = vadd.f32 0.0, %v1497
  %v1499 = vpop.f32.mrb[0].mxu0
  %v1500 = vpop.f32.mrb[0].mxu0
  %v1501 = vadd.f32 0.0, %v1500
  %v1502 = vpop.f32.mrb[0].mxu0
  %1503 = vmatprep.mubr.bf16.mxu0 0
  %1504 = vmatmul.mubr.bf16.gmra.mrb[0].mxu0 %v964
  %v1505 = vpop.f32.mrb[0].mxu0
  %v1506 = vadd.f32 0.0, %v1505
  %v1507 = vpop.f32.mrb[0].mxu0
  %v1508 = vpop.f32.mrb[0].mxu0
  %v1509 = vadd.f32 0.0, %v1508
  %v1510 = vpop.f32.mrb[0].mxu0
  %1511 = vmatprep.mubr.bf16.mxu0 0
  %1512 = vmatmul.mubr.bf16.gmra.mrb[0].mxu0 %v965
  %v1513 = vpop.f32.mrb[0].mxu0
  %v1514 = vadd.f32 0.0, %v1513
  %v1515 = vpop.f32.mrb[0].mxu0
  %v1516 = vpop.f32.mrb[0].mxu0
  %v1517 = vadd.f32 0.0, %v1516
  %v1518 = vpop.f32.mrb[0].mxu0
  %1519 = vmatprep.mubr.bf16.mxu0 0
  %1520 = vmatmul.mubr.bf16.gmra.mrb[0].mxu0 %v966
  %v1521 = vpop.f32.mrb[0].mxu0
  %v1522 = vadd.f32 0.0, %v1521
  %v1523 = vpop.f32.mrb[0].mxu0
  %v1524 = vpop.f32.mrb[0].mxu0
  %v1525 = vadd.f32 0.0, %v1524
  %v1526 = vpop.f32.mrb[0].mxu0
  %1527 = vmatprep.mubr.bf16.mxu0 0
  %1528 = vmatmul.mubr.bf16.gmra.mrb[0].mxu0 %v967
  %v1529 = vpop.f32.mrb[0].mxu0
  %v1530 = vadd.f32 0.0, %v1529
  %v1531 = vpop.f32.mrb[0].mxu0
  %v1532 = vpop.f32.mrb[0].mxu0
  %v1533 = vadd.f32 0.0, %v1532
  %v1534 = vpop.f32.mrb[0].mxu0
  %1535 = vmatprep.mubr.bf16.mxu0 0
  %1536 = vmatmul.mubr.bf16.gmra.mrb[0].mxu0 %v968
  %v1537 = vpop.f32.mrb[0].mxu0
  %v1538 = vadd.f32 0.0, %v1537
  %v1539 = vpop.f32.mrb[0].mxu0
  %v1540 = vpop.f32.mrb[0].mxu0
  %v1541 = vadd.f32 0.0, %v1540
  %v1542 = vpop.f32.mrb[0].mxu0
  %1543 = vmatprep.mubr.bf16.mxu0 0
  %1544 = vmatmul.mubr.bf16.gmra.mrb[0].mxu0 %v969
  %v1545 = vpop.f32.mrb[0].mxu0
  %v1546 = vadd.f32 0.0, %v1545
  %v1547 = vpop.f32.mrb[0].mxu0
  %v1548 = vpop.f32.mrb[0].mxu0
  %v1549 = vadd.f32 0.0, %v1548
  %v1550 = vpop.f32.mrb[0].mxu0
  %1551 = vmatprep.mubr.bf16.mxu0 0
  %1552 = vmatmul.mubr.bf16.gmra.mrb[0].mxu0 %v970
  %v1553 = vpop.f32.mrb[0].mxu0
  %v1554 = vadd.f32 0.0, %v1553
  %v1555 = vpop.f32.mrb[0].mxu0
  %v1556 = vpop.f32.mrb[0].mxu0
  %v1557 = vadd.f32 0.0, %v1556
  %v1558 = vpop.f32.mrb[0].mxu0
  %1559 = vmatprep.mubr.bf16.mxu0 0
  %1560 = vmatmul.mubr.bf16.gmra.mrb[0].mxu0 %v971
  %v1561 = vpop.f32.mrb[0].mxu0
  %v1562 = vadd.f32 0.0, %v1561
  %v1563 = vpop.f32.mrb[0].mxu0
  %v1564 = vpop.f32.mrb[0].mxu0
  %v1565 = vadd.f32 0.0, %v1564
  %v1566 = vpop.f32.mrb[0].mxu0
  %1567 = vmatprep.mubr.bf16.mxu0 0
  %1568 = vmatmul.mubr.bf16.gmra.mrb[0].mxu0 %v972
  %v1569 = vpop.f32.mrb[0].mxu0
  %v1570 = vadd.f32 0.0, %v1569
  %v1571 = vpop.f32.mrb[0].mxu0
  %v1572 = vpop.f32.mrb[0].mxu0
  %v1573 = vadd.f32 0.0, %v1572
  %v1574 = vpop.f32.mrb[0].mxu0
  %1575 = vmatprep.mubr.bf16.mxu0 0
  %1576 = vmatmul.mubr.bf16.gmra.mrb[0].mxu0 %v973
  %v1577 = vpop.f32.mrb[0].mxu0
  %v1578 = vadd.f32 0.0, %v1577
  %v1579 = vpop.f32.mrb[0].mxu0
  %v1580 = vpop.f32.mrb[0].mxu0
  %v1581 = vadd.f32 0.0, %v1580
  %v1582 = vpop.f32.mrb[0].mxu0
  %1583 = vmatprep.mubr.bf16.mxu0 0
  %1584 = vmatmul.mubr.bf16.gmra.mrb[0].mxu0 %v974
  %v1585 = vpop.f32.mrb[0].mxu0
  %v1586 = vadd.f32 0.0, %v1585
  %v1587 = vpop.f32.mrb[0].mxu0
  %v1588 = vpop.f32.mrb[0].mxu0
  %v1589 = vadd.f32 0.0, %v1588
  %v1590 = vpop.f32.mrb[0].mxu0
  %1591 = vmatprep.mubr.bf16.mxu0 0
  %1592 = vmatmul.mubr.bf16.gmra.mrb[0].mxu0 %v975
  %v1593 = vpop.f32.mrb[0].mxu0
  %v1594 = vadd.f32 0.0, %v1593
  %v1595 = vpop.f32.mrb[0].mxu0
  %v1596 = vpop.f32.mrb[0].mxu0
  %v1597 = vadd.f32 0.0, %v1596
  %v1598 = vpop.f32.mrb[0].mxu0
  %1599 = vmatprep.mubr.bf16.mxu0 0
  %1600 = vmatmul.mubr.bf16.gmra.mrb[0].mxu0 %v976
  %v1601 = vpop.f32.mrb[0].mxu0
  %v1602 = vadd.f32 0.0, %v1601
  %v1603 = vpop.f32.mrb[0].mxu0
  %v1604 = vpop.f32.mrb[0].mxu0
  %v1605 = vadd.f32 0.0, %v1604
  %v1606 = vpop.f32.mrb[0].mxu0
  %1607 = vmatprep.mubr.bf16.mxu0 0
  %1608 = vmatmul.mubr.bf16.gmra.mrb[0].mxu0 %v977
  %v1609 = vpop.f32.mrb[0].mxu0
  %v1610 = vadd.f32 0.0, %v1609
  %v1611 = vpop.f32.mrb[0].mxu0
  %v1612 = vpop.f32.mrb[0].mxu0
  %v1613 = vadd.f32 0.0, %v1612
  %v1614 = vpop.f32.mrb[0].mxu0
  %1615 = vmatprep.mubr.bf16.mxu0 0
  %1616 = vmatmul.mubr.bf16.gmra.mrb[0].mxu0 %v978
  %v1617 = vpop.f32.mrb[0].mxu0
  %v1618 = vadd.f32 0.0, %v1617
  %v1619 = vpop.f32.mrb[0].mxu0
  %v1620 = vpop.f32.mrb[0].mxu0
  %v1621 = vadd.f32 0.0, %v1620
  %v1622 = vpop.f32.mrb[0].mxu0
  %1623 = vmatprep.mubr.bf16.mxu0 0
  %1624 = vmatmul.mubr.bf16.gmra.mrb[0].mxu0 %v979
  %v1625 = vpop.f32.mrb[0].mxu0
  %v1626 = vadd.f32 0.0, %v1625
  %v1627 = vpop.f32.mrb[0].mxu0
  %v1628 = vpop.f32.mrb[0].mxu0
  %v1629 = vadd.f32 0.0, %v1628
  %v1630 = vpop.f32.mrb[0].mxu0
  %1631 = vmatprep.mubr.bf16.mxu0 0
  %1632 = vmatmul.mubr.bf16.gmra.mrb[0].mxu0 %v980
  %v1633 = vpop.f32.mrb[0].mxu0
  %v1634 = vadd.f32 0.0, %v1633
  %v1635 = vpop.f32.mrb[0].mxu0
  %v1636 = vpop.f32.mrb[0].mxu0
  %v1637 = vadd.f32 0.0, %v1636
  %v1638 = vpop.f32.mrb[0].mxu0
  %1639 = vmatprep.mubr.bf16.mxu0 0
  %1640 = vmatmul.mubr.bf16.gmra.mrb[0].mxu0 %v981
  %v1641 = vpop.f32.mrb[0].mxu0
  %v1642 = vadd.f32 0.0, %v1641
  %v1643 = vpop.f32.mrb[0].mxu0
  %v1644 = vpop.f32.mrb[0].mxu0
  %v1645 = vadd.f32 0.0, %v1644
  %v1646 = vpop.f32.mrb[0].mxu0
  %1647 = vmatprep.mubr.bf16.mxu0 0
  %1648 = vmatmul.mubr.bf16.gmra.mrb[0].mxu0 %v982
  %v1649 = vpop.f32.mrb[0].mxu0
  %v1650 = vadd.f32 0.0, %v1649
  %v1651 = vpop.f32.mrb[0].mxu0
  %v1652 = vpop.f32.mrb[0].mxu0
  %v1653 = vadd.f32 0.0, %v1652
  %v1654 = vpop.f32.mrb[0].mxu0
  %1655 = vmatprep.mubr.bf16.mxu0 0
  %1656 = vmatmul.mubr.bf16.gmra.mrb[0].mxu0 %v983
  %v1657 = vpop.f32.mrb[0].mxu0
  %v1658 = vadd.f32 0.0, %v1657
  %v1659 = vpop.f32.mrb[0].mxu0
  %v1660 = vpop.f32.mrb[0].mxu0
  %v1661 = vadd.f32 0.0, %v1660
  %v1662 = vpop.f32.mrb[0].mxu0
  %1663 = vmatprep.mubr.bf16.mxu0 0
  %1664 = vmatmul.mubr.bf16.gmra.mrb[0].mxu0 %v984
  %v1665 = vpop.f32.mrb[0].mxu0
  %v1666 = vadd.f32 0.0, %v1665
  %v1667 = vpop.f32.mrb[0].mxu0
  %v1668 = vpop.f32.mrb[0].mxu0
  %v1669 = vadd.f32 0.0, %v1668
  %v1670 = vpop.f32.mrb[0].mxu0
  %1671 = vmatprep.mubr.bf16.mxu0 0
  %1672 = vmatmul.mubr.bf16.gmra.mrb[0].mxu0 %v985
  %v1673 = vpop.f32.mrb[0].mxu0
  %v1674 = vadd.f32 0.0, %v1673
  %v1675 = vpop.f32.mrb[0].mxu0
  %v1676 = vpop.f32.mrb[0].mxu0
  %v1677 = vadd.f32 0.0, %v1676
  %v1678 = vpop.f32.mrb[0].mxu0
  %1679 = vmatprep.mubr.bf16.mxu0 0
  %1680 = vmatmul.mubr.bf16.gmra.mrb[0].mxu0 %v986
  %v1681 = vpop.f32.mrb[0].mxu0
  %v1682 = vadd.f32 0.0, %v1681
  %v1683 = vpop.f32.mrb[0].mxu0
  %v1684 = vpop.f32.mrb[0].mxu0
  %v1685 = vadd.f32 0.0, %v1684
  %v1686 = vpop.f32.mrb[0].mxu0
  %1687 = vmatprep.mubr.bf16.mxu0 0
  %1688 = vmatmul.mubr.bf16.gmra.mrb[0].mxu0 %v987
  %v1689 = vpop.f32.mrb[0].mxu0
  %v1690 = vadd.f32 0.0, %v1689
  %v1691 = vpop.f32.mrb[0].mxu0
  %v1692 = vpop.f32.mrb[0].mxu0
  %v1693 = vadd.f32 0.0, %v1692
  %v1694 = vpop.f32.mrb[0].mxu0
  %1695 = vmatprep.mubr.bf16.mxu0 0
  %1696 = vmatmul.mubr.bf16.gmra.mrb[0].mxu0 %v988
  %v1697 = vpop.f32.mrb[0].mxu0
  %v1698 = vadd.f32 0.0, %v1697
  %v1699 = vpop.f32.mrb[0].mxu0
  %v1700 = vpop.f32.mrb[0].mxu0
  %v1701 = vadd.f32 0.0, %v1700
  %v1702 = vpop.f32.mrb[0].mxu0
  %1703 = vmatprep.mubr.bf16.mxu0 0
  %1704 = vmatmul.mubr.bf16.gmra.mrb[0].mxu0 %v989
  %v1705 = vpop.f32.mrb[0].mxu0
  %v1706 = vadd.f32 0.0, %v1705
  %v1707 = vpop.f32.mrb[0].mxu0
  %v1708 = vpop.f32.mrb[0].mxu0
  %v1709 = vadd.f32 0.0, %v1708
  %v1710 = vpop.f32.mrb[0].mxu0
  %1711 = vmatprep.mubr.bf16.mxu0 0
  %1712 = vmatmul.mubr.bf16.gmra.mrb[0].mxu0 %v990
  %v1713 = vpop.f32.mrb[0].mxu0
  %v1714 = vadd.f32 0.0, %v1713
  %v1715 = vpop.f32.mrb[0].mxu0
  %v1716 = vpop.f32.mrb[0].mxu0
  %v1717 = vadd.f32 0.0, %v1716
  %v1718 = vpop.f32.mrb[0].mxu0
  %1719 = vmatprep.mubr.bf16.mxu0 0
  %1720 = vmatmul.mubr.bf16.gmra.mrb[0].mxu0 %v991
  %v1721 = vpop.f32.mrb[0].mxu0
  %v1722 = vadd.f32 0.0, %v1721
  %v1723 = vpop.f32.mrb[0].mxu0
  %v1724 = vpop.f32.mrb[0].mxu0
  %v1725 = vadd.f32 0.0, %v1724
  %v1726 = vpop.f32.mrb[0].mxu0
  %1727 = vmatprep.mubr.bf16.mxu0 0
  %1728 = vmatmul.mubr.bf16.gmra.mrb[0].mxu0 %v992
  %v1729 = vpop.f32.mrb[0].mxu0
  %v1730 = vadd.f32 0.0, %v1729
  %v1731 = vpop.f32.mrb[0].mxu0
  %v1732 = vpop.f32.mrb[0].mxu0
  %v1733 = vadd.f32 0.0, %v1732
  %v1734 = vpop.f32.mrb[0].mxu0
  %1735 = vmatprep.mubr.bf16.mxu0 0
  %1736 = vmatmul.mubr.bf16.gmra.mrb[0].mxu0 %v993
  %v1737 = vpop.f32.mrb[0].mxu0
  %v1738 = vadd.f32 0.0, %v1737
  %v1739 = vpop.f32.mrb[0].mxu0
  %v1740 = vpop.f32.mrb[0].mxu0
  %v1741 = vadd.f32 0.0, %v1740
  %v1742 = vpop.f32.mrb[0].mxu0
  %1743 = vmatprep.mubr.bf16.mxu0 0
  %1744 = vmatmul.mubr.bf16.gmra.mrb[0].mxu0 %v994
  %v1745 = vpop.f32.mrb[0].mxu0
  %v1746 = vadd.f32 0.0, %v1745
  %v1747 = vpop.f32.mrb[0].mxu0
  %v1748 = vpop.f32.mrb[0].mxu0
  %v1749 = vadd.f32 0.0, %v1748
  %v1750 = vpop.f32.mrb[0].mxu0
  %1751 = vmatprep.mubr.bf16.mxu0 0
  %1752 = vmatmul.mubr.bf16.gmra.mrb[0].mxu0 %v995
  %v1753 = vpop.f32.mrb[0].mxu0
  %v1754 = vadd.f32 0.0, %v1753
  %v1755 = vpop.f32.mrb[0].mxu0
  %v1756 = vpop.f32.mrb[0].mxu0
  %v1757 = vadd.f32 0.0, %v1756
  %v1758 = vpop.f32.mrb[0].mxu0
  %1759 = vmatprep.mubr.bf16.mxu0 0
  %1760 = vmatmul.mubr.bf16.gmra.mrb[0].mxu0 %v996
  %v1761 = vpop.f32.mrb[0].mxu0
  %v1762 = vadd.f32 0.0, %v1761
  %v1763 = vpop.f32.mrb[0].mxu0
  %v1764 = vpop.f32.mrb[0].mxu0
  %v1765 = vadd.f32 0.0, %v1764
  %v1766 = vpop.f32.mrb[0].mxu0
  %1767 = vmatprep.mubr.bf16.mxu0 0
  %1768 = vmatmul.mubr.bf16.gmra.mrb[0].mxu0 %v997
  %v1769 = vpop.f32.mrb[0].mxu0
  %v1770 = vadd.f32 0.0, %v1769
  %v1771 = vpop.f32.mrb[0].mxu0
  %v1772 = vpop.f32.mrb[0].mxu0
  %v1773 = vadd.f32 0.0, %v1772
  %v1774 = vpop.f32.mrb[0].mxu0
  %1775 = vmatprep.mubr.bf16.mxu0 0
  %1776 = vmatmul.mubr.bf16.gmra.mrb[0].mxu0 %v998
  %v1777 = vpop.f32.mrb[0].mxu0
  %v1778 = vadd.f32 0.0, %v1777
  %v1779 = vpop.f32.mrb[0].mxu0
  %v1780 = vpop.f32.mrb[0].mxu0
  %v1781 = vadd.f32 0.0, %v1780
  %v1782 = vpop.f32.mrb[0].mxu0
  %1783 = vmatprep.mubr.bf16.mxu0 0
  %1784 = vmatmul.mubr.bf16.gmra.mrb[0].mxu0 %v999
  %v1785 = vpop.f32.mrb[0].mxu0
  %v1786 = vadd.f32 0.0, %v1785
  %v1787 = vpop.f32.mrb[0].mxu0
  %v1788 = vpop.f32.mrb[0].mxu0
  %v1789 = vadd.f32 0.0, %v1788
  %v1790 = vpop.f32.mrb[0].mxu0
  %1791 = vmatprep.mubr.bf16.mxu0 0
  %1792 = vmatmul.mubr.bf16.gmra.mrb[0].mxu0 %v1000
  %v1793 = vpop.f32.mrb[0].mxu0
  %v1794 = vadd.f32 0.0, %v1793
  %v1795 = vpop.f32.mrb[0].mxu0
  %v1796 = vpop.f32.mrb[0].mxu0
  %v1797 = vadd.f32 0.0, %v1796
  %v1798 = vpop.f32.mrb[0].mxu0
  %1799 = vmatprep.mubr.bf16.mxu0 0
  %1800 = vmatmul.mubr.bf16.gmra.mrb[0].mxu0 %v1001
  %v1801 = vpop.f32.mrb[0].mxu0
  %v1802 = vadd.f32 0.0, %v1801
  %v1803 = vpop.f32.mrb[0].mxu0
  %v1804 = vpop.f32.mrb[0].mxu0
  %v1805 = vadd.f32 0.0, %v1804
  %v1806 = vpop.f32.mrb[0].mxu0
  %1807 = vmatprep.mubr.bf16.mxu0 0
  %1808 = vmatmul.mubr.bf16.gmra.mrb[0].mxu0 %v1002
  %v1809 = vpop.f32.mrb[0].mxu0
  %v1810 = vadd.f32 0.0, %v1809
  %v1811 = vpop.f32.mrb[0].mxu0
  %v1812 = vpop.f32.mrb[0].mxu0
  %v1813 = vadd.f32 0.0, %v1812
  %v1814 = vpop.f32.mrb[0].mxu0
  %1815 = vmatprep.mubr.bf16.mxu0 0
  %1816 = vmatmul.mubr.bf16.gmra.mrb[0].mxu0 %v1003
  %v1817 = vpop.f32.mrb[0].mxu0
  %v1818 = vadd.f32 0.0, %v1817
  %v1819 = vpop.f32.mrb[0].mxu0
  %v1820 = vpop.f32.mrb[0].mxu0
  %v1821 = vadd.f32 0.0, %v1820
  %v1822 = vpop.f32.mrb[0].mxu0
  %1823 = vmatprep.mubr.bf16.mxu0 0
  %1824 = vmatmul.mubr.bf16.gmra.mrb[0].mxu0 %v1004
  %v1825 = vpop.f32.mrb[0].mxu0
  %v1826 = vadd.f32 0.0, %v1825
  %v1827 = vpop.f32.mrb[0].mxu0
  %v1828 = vpop.f32.mrb[0].mxu0
  %v1829 = vadd.f32 0.0, %v1828
  %v1830 = vpop.f32.mrb[0].mxu0
  %1831 = vmatprep.mubr.bf16.mxu0 0
  %1832 = vmatmul.mubr.bf16.gmra.mrb[0].mxu0 %v1005
  %v1833 = vpop.f32.mrb[0].mxu0
  %v1834 = vadd.f32 0.0, %v1833
  %v1835 = vpop.f32.mrb[0].mxu0
  %v1836 = vpop.f32.mrb[0].mxu0
  %v1837 = vadd.f32 0.0, %v1836
  %v1838 = vpop.f32.mrb[0].mxu0
  %1839 = vmatprep.mubr.bf16.mxu0 0
  %1840 = vmatmul.mubr.bf16.gmra.mrb[0].mxu0 %v1006
  %v1841 = vpop.f32.mrb[0].mxu0
  %v1842 = vadd.f32 0.0, %v1841
  %v1843 = vpop.f32.mrb[0].mxu0
  %v1844 = vpop.f32.mrb[0].mxu0
  %v1845 = vadd.f32 0.0, %v1844
  %v1846 = vpop.f32.mrb[0].mxu0
  %1847 = vmatprep.mubr.bf16.mxu0 0
  %1848 = vmatmul.mubr.bf16.gmra.mrb[0].mxu0 %v1007
  %v1849 = vpop.f32.mrb[0].mxu0
  %v1850 = vadd.f32 0.0, %v1849
  %v1851 = vpop.f32.mrb[0].mxu0
  %v1852 = vpop.f32.mrb[0].mxu0
  %v1853 = vadd.f32 0.0, %v1852
  %v1854 = vpop.f32.mrb[0].mxu0
  %1855 = vmatprep.mubr.bf16.mxu0 0
  %1856 = vmatmul.mubr.bf16.gmra.mrb[0].mxu0 %v1008
  %v1857 = vpop.f32.mrb[0].mxu0
  %v1858 = vadd.f32 0.0, %v1857
  %v1859 = vpop.f32.mrb[0].mxu0
  %v1860 = vpop.f32.mrb[0].mxu0
  %v1861 = vadd.f32 0.0, %v1860
  %v1862 = vpop.f32.mrb[0].mxu0
  %1863 = vmatprep.mubr.bf16.mxu0 0
  %1864 = vmatmul.mubr.bf16.gmra.mrb[0].mxu0 %v1009
  %v1865 = vpop.f32.mrb[0].mxu0
  %v1866 = vadd.f32 0.0, %v1865
  %v1867 = vpop.f32.mrb[0].mxu0
  %v1868 = vpop.f32.mrb[0].mxu0
  %v1869 = vadd.f32 0.0, %v1868
  %v1870 = vpop.f32.mrb[0].mxu0
  %1871 = vmatprep.mubr.bf16.mxu0 0
  %1872 = vmatmul.mubr.bf16.gmra.mrb[0].mxu0 %v1010
  %v1873 = vpop.f32.mrb[0].mxu0
  %v1874 = vadd.f32 0.0, %v1873
  %v1875 = vpop.f32.mrb[0].mxu0
  %v1876 = vpop.f32.mrb[0].mxu0
  %v1877 = vadd.f32 0.0, %v1876
  %v1878 = vpop.f32.mrb[0].mxu0
  %1879 = vmatprep.mubr.bf16.mxu0 0
  %1880 = vmatmul.mubr.bf16.gmra.mrb[0].mxu0 %v1011
  %v1881 = vpop.f32.mrb[0].mxu0
  %v1882 = vadd.f32 0.0, %v1881
  %v1883 = vpop.f32.mrb[0].mxu0
  %v1884 = vpop.f32.mrb[0].mxu0
  %v1885 = vadd.f32 0.0, %v1884
  %v1886 = vpop.f32.mrb[0].mxu0
  %1887 = vmatprep.mubr.bf16.mxu0 0
  %1888 = vmatmul.mubr.bf16.gmra.mrb[0].mxu0 %v1012
  %v1889 = vpop.f32.mrb[0].mxu0
  %v1890 = vadd.f32 0.0, %v1889
  %v1891 = vpop.f32.mrb[0].mxu0
  %v1892 = vpop.f32.mrb[0].mxu0
  %v1893 = vadd.f32 0.0, %v1892
  %v1894 = vpop.f32.mrb[0].mxu0
  %1895 = vmatprep.mubr.bf16.mxu0 0
  %1896 = vmatmul.mubr.bf16.gmra.mrb[0].mxu0 %v1013
  %v1897 = vpop.f32.mrb[0].mxu0
  %v1898 = vadd.f32 0.0, %v1897
  %v1899 = vpop.f32.mrb[0].mxu0
  %v1900 = vpop.f32.mrb[0].mxu0
  %v1901 = vadd.f32 0.0, %v1900
  %v1902 = vpop.f32.mrb[0].mxu0
  %1903 = vmatprep.mubr.bf16.mxu0 0
  %1904 = vmatmul.mubr.bf16.gmra.mrb[0].mxu0 %v1014
  %v1905 = vpop.f32.mrb[0].mxu0
  %v1906 = vadd.f32 0.0, %v1905
  %v1907 = vpop.f32.mrb[0].mxu0
  %v1908 = vpop.f32.mrb[0].mxu0
  %v1909 = vadd.f32 0.0, %v1908
  %v1910 = vpop.f32.mrb[0].mxu0
  %1911 = vmatprep.mubr.bf16.mxu0 0
  %1912 = vmatmul.mubr.bf16.gmra.mrb[0].mxu0 %v1015
  %v1913 = vpop.f32.mrb[0].mxu0
  %v1914 = vadd.f32 0.0, %v1913
  %v1915 = vpop.f32.mrb[0].mxu0
  %v1916 = vpop.f32.mrb[0].mxu0
  %v1917 = vadd.f32 0.0, %v1916
  %v1918 = vpop.f32.mrb[0].mxu0
  %1919 = vmatprep.mubr.bf16.mxu0 0
  %1920 = vmatmul.mubr.bf16.gmra.mrb[0].mxu0 %v1016
  %v1921 = vpop.f32.mrb[0].mxu0
  %v1922 = vadd.f32 0.0, %v1921
  %v1923 = vpop.f32.mrb[0].mxu0
  %v1924 = vpop.f32.mrb[0].mxu0
  %v1925 = vadd.f32 0.0, %v1924
  %v1926 = vpop.f32.mrb[0].mxu0
  %1927 = vmatprep.mubr.bf16.mxu0 0
  %1928 = vmatmul.mubr.bf16.gmra.mrb[0].mxu0 %v1017
  %v1929 = vpop.f32.mrb[0].mxu0
  %v1930 = vadd.f32 0.0, %v1929
  %v1931 = vpop.f32.mrb[0].mxu0
  %v1932 = vpop.f32.mrb[0].mxu0
  %v1933 = vadd.f32 0.0, %v1932
  %v1934 = vpop.f32.mrb[0].mxu0
  %1935 = vmatprep.mubr.bf16.mxu0 0
  %1936 = vmatmul.mubr.bf16.gmra.mrb[0].mxu0 %v1018
  %v1937 = vpop.f32.mrb[0].mxu0
  %v1938 = vadd.f32 0.0, %v1937
  %v1939 = vpop.f32.mrb[0].mxu0
  %v1940 = vpop.f32.mrb[0].mxu0
  %v1941 = vadd.f32 0.0, %v1940
  %v1942 = vpop.f32.mrb[0].mxu0
  %1943 = vmatprep.mubr.bf16.mxu0 0
  %1944 = vmatmul.mubr.bf16.gmra.mrb[0].mxu0 %v1019
  %v1945 = vpop.f32.mrb[0].mxu0
  %v1946 = vadd.f32 0.0, %v1945
  %v1947 = vpop.f32.mrb[0].mxu0
  %v1948 = vpop.f32.mrb[0].mxu0
  %v1949 = vadd.f32 0.0, %v1948
  %v1950 = vpop.f32.mrb[0].mxu0
  %1951 = vmatprep.mubr.bf16.mxu0 0
  %1952 = vmatmul.mubr.bf16.gmra.mrb[0].mxu0 %v1020
  %v1953 = vpop.f32.mrb[0].mxu0
  %v1954 = vadd.f32 0.0, %v1953
  %v1955 = vpop.f32.mrb[0].mxu0
  %v1956 = vpop.f32.mrb[0].mxu0
  %v1957 = vadd.f32 0.0, %v1956
  %v1958 = vpop.f32.mrb[0].mxu0
  %1959 = vmatprep.mubr.bf16.mxu0 0
  %1960 = vmatmul.mubr.bf16.gmra.mrb[0].mxu0 %v1021
  %v1961 = vpop.f32.mrb[0].mxu0
  %v1962 = vadd.f32 0.0, %v1961
  %v1963 = vpop.f32.mrb[0].mxu0
  %v1964 = vpop.f32.mrb[0].mxu0
  %v1965 = vadd.f32 0.0, %v1964
  %v1966 = vpop.f32.mrb[0].mxu0
  %1967 = vmatprep.mubr.bf16.mxu0 0
  %1968 = vmatmul.mubr.bf16.gmra.mrb[0].mxu0 %v1022
  %v1969 = vpop.f32.mrb[0].mxu0
  %v1970 = vadd.f32 0.0, %v1969
  %v1971 = vpop.f32.mrb[0].mxu0
  %v1972 = vpop.f32.mrb[0].mxu0
  %v1973 = vadd.f32 0.0, %v1972
  %v1974 = vpop.f32.mrb[0].mxu0
  %1975 = vmatprep.mubr.bf16.mxu0 0
  %1976 = vmatmul.mubr.bf16.gmra.mrb[0].mxu0 %v1023
  %v1977 = vpop.f32.mrb[0].mxu0
  %v1978 = vadd.f32 0.0, %v1977
  %v1979 = vpop.f32.mrb[0].mxu0
  %v1980 = vpop.f32.mrb[0].mxu0
  %v1981 = vadd.f32 0.0, %v1980
  %v1982 = vpop.f32.mrb[0].mxu0
  %1983 = vmatprep.mubr.bf16.mxu0 0
  %1984 = vmatmul.mubr.bf16.gmra.mrb[0].mxu0 %v1024
  %v1985 = vpop.f32.mrb[0].mxu0
  %v1986 = vadd.f32 0.0, %v1985
  %v1987 = vpop.f32.mrb[0].mxu0
  %v1988 = vpop.f32.mrb[0].mxu0
  %v1989 = vadd.f32 0.0, %v1988
  %v1990 = vpop.f32.mrb[0].mxu0
  %1991 = vmatprep.mubr.bf16.mxu0 0
  %1992 = vmatmul.mubr.bf16.gmra.mrb[0].mxu0 %v1025
  %v1993 = vpop.f32.mrb[0].mxu0
  %v1994 = vadd.f32 0.0, %v1993
  %v1995 = vpop.f32.mrb[0].mxu0
  %v1996 = vpop.f32.mrb[0].mxu0
  %v1997 = vadd.f32 0.0, %v1996
  %v1998 = vpop.f32.mrb[0].mxu0
  %1999 = vmatprep.mubr.bf16.mxu0 0
  %2000 = vmatmul.mubr.bf16.gmra.mrb[0].mxu0 %v1026
  %v2001 = vpop.f32.mrb[0].mxu0
  %v2002 = vadd.f32 0.0, %v2001
  %v2003 = vpop.f32.mrb[0].mxu0
  %v2004 = vpop.f32.mrb[0].mxu0
  %v2005 = vadd.f32 0.0, %v2004
  %v2006 = vpop.f32.mrb[0].mxu0
  %2007 = vmatprep.mubr.bf16.mxu0 0
  %2008 = vmatmul.mubr.bf16.gmra.mrb[0].mxu0 %v1027
  %v2009 = vpop.f32.mrb[0].mxu0
  %v2010 = vadd.f32 0.0, %v2009
  %v2011 = vpop.f32.mrb[0].mxu0
  %v2012 = vpop.f32.mrb[0].mxu0
  %v2013 = vadd.f32 0.0, %v2012
  %v2014 = vpop.f32.mrb[0].mxu0
  %2015 = vmatprep.mubr.bf16.mxu0 0
  %2016 = vmatmul.mubr.bf16.gmra.mrb[0].mxu0 %v1028
  %v2017 = vpop.f32.mrb[0].mxu0
  %v2018 = vadd.f32 0.0, %v2017
  %v2019 = vpop.f32.mrb[0].mxu0
  %v2020 = vpop.f32.mrb[0].mxu0
  %v2021 = vadd.f32 0.0, %v2020
  %v2022 = vpop.f32.mrb[0].mxu0
  %2023 = vmatprep.mubr.bf16.mxu0 0
  %2024 = vmatmul.mubr.bf16.gmra.mrb[0].mxu0 %v1029
  %v2025 = vpop.f32.mrb[0].mxu0
  %v2026 = vadd.f32 0.0, %v2025
  %v2027 = vpop.f32.mrb[0].mxu0
  %v2028 = vpop.f32.mrb[0].mxu0
  %v2029 = vadd.f32 0.0, %v2028
  %v2030 = vpop.f32.mrb[0].mxu0
  %2031 = vmatprep.mubr.bf16.mxu0 0
  %2032 = vmatmul.mubr.bf16.gmra.mrb[0].mxu0 %v1030
  %v2033 = vpop.f32.mrb[0].mxu0
  %v2034 = vadd.f32 0.0, %v2033
  %v2035 = vpop.f32.mrb[0].mxu0
  %v2036 = vpop.f32.mrb[0].mxu0
  %v2037 = vadd.f32 0.0, %v2036
  %v2038 = vpop.f32.mrb[0].mxu0
  %2039 = vmatprep.mubr.bf16.mxu0 0
  %2040 = vmatmul.mubr.bf16.gmra.mrb[0].mxu0 %v1031
  %v2041 = vpop.f32.mrb[0].mxu0
  %v2042 = vadd.f32 0.0, %v2041
  %v2043 = vpop.f32.mrb[0].mxu0
  %v2044 = vpop.f32.mrb[0].mxu0
  %v2045 = vadd.f32 0.0, %v2044
  %v2046 = vpop.f32.mrb[0].mxu0
  %2047 = vmatprep.mubr.bf16.mxu0 0
  %2048 = vmatmul.mubr.bf16.gmra.mrb[0].mxu0 %v1032
  %v2049 = vpop.f32.mrb[0].mxu0
  %v2050 = vadd.f32 0.0, %v2049
  %v2051 = vpop.f32.mrb[0].mxu0
  %v2052 = vpop.f32.mrb[0].mxu0
  %v2053 = vadd.f32 0.0, %v2052
  %v2054 = vpop.f32.mrb[0].mxu0
  %2055 = vmatprep.mubr.bf16.mxu0 0
  %2056 = vmatmul.mubr.bf16.gmra.mrb[0].mxu0 %v1033
  %v2057 = vpop.f32.mrb[0].mxu0
  %v2058 = vadd.f32 0.0, %v2057
  %v2059 = vpop.f32.mrb[0].mxu0
  %v2060 = vpop.f32.mrb[0].mxu0
  %v2061 = vadd.f32 0.0, %v2060
  %v2062 = vpop.f32.mrb[0].mxu0
  %2063 = vmatprep.mubr.bf16.mxu0 0
  %2064 = vmatmul.mubr.bf16.gmra.mrb[0].mxu0 %v1034
  %v2065 = vpop.f32.mrb[0].mxu0
  %v2066 = vadd.f32 0.0, %v2065
  %v2067 = vpop.f32.mrb[0].mxu0
  %v2068 = vpop.f32.mrb[0].mxu0
  %v2069 = vadd.f32 0.0, %v2068
  %v2070 = vpop.f32.mrb[0].mxu0
  %2071 = vmatprep.mubr.bf16.mxu0 0
  %2072 = vmatmul.mubr.bf16.gmra.mrb[0].mxu0 %v1035
  %v2073 = vpop.f32.mrb[0].mxu0
  %v2074 = vadd.f32 0.0, %v2073
  %v2075 = vpop.f32.mrb[0].mxu0
  %v2076 = vpop.f32.mrb[0].mxu0
  %v2077 = vadd.f32 0.0, %v2076
  %v2078 = vpop.f32.mrb[0].mxu0
  %2079 = vmatprep.mubr.bf16.mxu0 0
  %2080 = vmatmul.mubr.bf16.gmra.mrb[0].mxu0 %v1036
  %v2081 = vpop.f32.mrb[0].mxu0
  %v2082 = vadd.f32 0.0, %v2081
  %v2083 = vpop.f32.mrb[0].mxu0
  %v2084 = vpop.f32.mrb[0].mxu0
  %v2085 = vadd.f32 0.0, %v2084
  %v2086 = vpop.f32.mrb[0].mxu0
  %2087 = vmatprep.mubr.bf16.mxu0 0
  %2088 = vmatmul.mubr.bf16.gmra.mrb[0].mxu0 %v1037
  %v2089 = vpop.f32.mrb[0].mxu0
  %v2090 = vadd.f32 0.0, %v2089
  %v2091 = vpop.f32.mrb[0].mxu0
  %v2092 = vpop.f32.mrb[0].mxu0
  %v2093 = vadd.f32 0.0, %v2092
  %v2094 = vpop.f32.mrb[0].mxu0
  %2095 = vmatprep.mubr.bf16.mxu0 0
  %2096 = vmatmul.mubr.bf16.gmra.mrb[0].mxu0 %v1038
  %v2097 = vpop.f32.mrb[0].mxu0
  %v2098 = vadd.f32 0.0, %v2097
  %v2099 = vpop.f32.mrb[0].mxu0
  %v2100 = vpop.f32.mrb[0].mxu0
  %v2101 = vadd.f32 0.0, %v2100
  %v2102 = vpop.f32.mrb[0].mxu0
  %2103 = vmatprep.mubr.bf16.mxu0 0
  %2104 = vmatmul.mubr.bf16.gmra.mrb[0].mxu0 %v1039
  %v2105 = vpop.f32.mrb[0].mxu0
  %v2106 = vadd.f32 0.0, %v2105
  %v2107 = vpop.f32.mrb[0].mxu0
  %v2108 = vpop.f32.mrb[0].mxu0
  %v2109 = vadd.f32 0.0, %v2108
  %v2110 = vpop.f32.mrb[0].mxu0
  %2111 = vmatprep.mubr.bf16.mxu0 0
  %2112 = vmatmul.mubr.bf16.gmra.mrb[0].mxu0 %v1040
  %v2113 = vpop.f32.mrb[0].mxu0
  %v2114 = vadd.f32 0.0, %v2113
  %v2115 = vpop.f32.mrb[0].mxu0
  %v2116 = vpop.f32.mrb[0].mxu0
  %v2117 = vadd.f32 0.0, %v2116
  %v2118 = vpop.f32.mrb[0].mxu0
  %2119 = vmatprep.mubr.bf16.mxu0 0
  %2120 = vmatmul.mubr.bf16.gmra.mrb[0].mxu0 %v1041
  %v2121 = vpop.f32.mrb[0].mxu0
  %v2122 = vadd.f32 0.0, %v2121
  %v2123 = vpop.f32.mrb[0].mxu0
  %v2124 = vpop.f32.mrb[0].mxu0
  %v2125 = vadd.f32 0.0, %v2124
  %v2126 = vpop.f32.mrb[0].mxu0
  %2127 = vmatprep.mubr.bf16.mxu0 0
  %2128 = vmatmul.mubr.bf16.gmra.mrb[0].mxu0 %v1042
  %v2129 = vpop.f32.mrb[0].mxu0
  %v2130 = vadd.f32 0.0, %v2129
  %v2131 = vpop.f32.mrb[0].mxu0
  %v2132 = vpop.f32.mrb[0].mxu0
  %v2133 = vadd.f32 0.0, %v2132
  %v2134 = vpop.f32.mrb[0].mxu0
  %2135 = vmatprep.mubr.bf16.mxu0 0
  %2136 = vmatmul.mubr.bf16.gmra.mrb[0].mxu0 %v1043
  %v2137 = vpop.f32.mrb[0].mxu0
  %v2138 = vadd.f32 0.0, %v2137
  %v2139 = vpop.f32.mrb[0].mxu0
  %v2140 = vpop.f32.mrb[0].mxu0
  %v2141 = vadd.f32 0.0, %v2140
  %v2142 = vpop.f32.mrb[0].mxu0
  %2143 = vmatprep.mubr.bf16.mxu0 0
  %2144 = vmatmul.mubr.bf16.gmra.mrb[0].mxu0 %v1044
  %v2145 = vpop.f32.mrb[0].mxu0
  %v2146 = vadd.f32 0.0, %v2145
  %v2147 = vpop.f32.mrb[0].mxu0
  %v2148 = vpop.f32.mrb[0].mxu0
  %v2149 = vadd.f32 0.0, %v2148
  %v2150 = vpop.f32.mrb[0].mxu0
  %2151 = vmatprep.mubr.bf16.mxu0 0
  %2152 = vmatmul.mubr.bf16.gmra.mrb[0].mxu0 %v1045
  %v2153 = vpop.f32.mrb[0].mxu0
  %v2154 = vadd.f32 0.0, %v2153
  %v2155 = vpop.f32.mrb[0].mxu0
  %v2156 = vpop.f32.mrb[0].mxu0
  %v2157 = vadd.f32 0.0, %v2156
  %v2158 = vpop.f32.mrb[0].mxu0
  %2159 = vmatprep.mubr.bf16.mxu0 0
  %2160 = vmatmul.mubr.bf16.gmra.mrb[0].mxu0 %v1046
  %v2161 = vpop.f32.mrb[0].mxu0
  %v2162 = vadd.f32 0.0, %v2161
  %v2163 = vpop.f32.mrb[0].mxu0
  %v2164 = vpop.f32.mrb[0].mxu0
  %v2165 = vadd.f32 0.0, %v2164
  %v2166 = vpop.f32.mrb[0].mxu0
  %2167 = vmatprep.mubr.bf16.mxu0 0
  %2168 = vmatmul.mubr.bf16.gmra.mrb[0].mxu0 %v1047
  %v2169 = vpop.f32.mrb[0].mxu0
  %v2170 = vadd.f32 0.0, %v2169
  %v2171 = vpop.f32.mrb[0].mxu0
  %v2172 = vpop.f32.mrb[0].mxu0
  %v2173 = vadd.f32 0.0, %v2172
  %v2174 = vpop.f32.mrb[0].mxu0
  %2175 = vmatprep.mubr.bf16.mxu0 0
  %2176 = vmatmul.mubr.bf16.gmra.mrb[0].mxu0 %v1048
  %v2177 = vpop.f32.mrb[0].mxu0
  %v2178 = vadd.f32 0.0, %v2177
  %v2179 = vpop.f32.mrb[0].mxu0
  %v2180 = vpop.f32.mrb[0].mxu0
  %v2181 = vadd.f32 0.0, %v2180
  %v2182 = vpop.f32.mrb[0].mxu0
  %2183 = vmatprep.mubr.bf16.mxu0 0
  %2184 = vmatmul.mubr.bf16.gmra.mrb[0].mxu0 %v1049
  %v2185 = vpop.f32.mrb[0].mxu0
  %v2186 = vadd.f32 0.0, %v2185
  %v2187 = vpop.f32.mrb[0].mxu0
  %v2188 = vpop.f32.mrb[0].mxu0
  %v2189 = vadd.f32 0.0, %v2188
  %v2190 = vpop.f32.mrb[0].mxu0
  %2191 = vmatprep.mubr.bf16.mxu0 0
  %2192 = vmatmul.mubr.bf16.gmra.mrb[0].mxu0 %v1050
  %v2193 = vpop.f32.mrb[0].mxu0
  %v2194 = vadd.f32 0.0, %v2193
  %v2195 = vpop.f32.mrb[0].mxu0
  %v2196 = vpop.f32.mrb[0].mxu0
  %v2197 = vadd.f32 0.0, %v2196
  %v2198 = vpop.f32.mrb[0].mxu0
  %2199 = vmatprep.mubr.bf16.mxu0 0
  %2200 = vmatmul.mubr.bf16.gmra.mrb[0].mxu0 %v1051
  %v2201 = vpop.f32.mrb[0].mxu0
  %v2202 = vadd.f32 0.0, %v2201
  %v2203 = vpop.f32.mrb[0].mxu0
  %v2204 = vpop.f32.mrb[0].mxu0
  %v2205 = vadd.f32 0.0, %v2204
  %v2206 = vpop.f32.mrb[0].mxu0
  %2207 = vmatprep.mubr.bf16.mxu0 0
  %2208 = vmatmul.mubr.bf16.gmra.mrb[0].mxu0 %v1052
  %v2209 = vpop.f32.mrb[0].mxu0
  %v2210 = vadd.f32 0.0, %v2209
  %v2211 = vpop.f32.mrb[0].mxu0
  %v2212 = vpop.f32.mrb[0].mxu0
  %v2213 = vadd.f32 0.0, %v2212
  %v2214 = vpop.f32.mrb[0].mxu0
  %2215 = vmatprep.mubr.bf16.mxu0 0
  %2216 = vmatmul.mubr.bf16.gmra.mrb[0].mxu0 %v1053
  %v2217 = vpop.f32.mrb[0].mxu0
  %v2218 = vadd.f32 0.0, %v2217
  %v2219 = vpop.f32.mrb[0].mxu0
  %v2220 = vpop.f32.mrb[0].mxu0
  %v2221 = vadd.f32 0.0, %v2220
  %v2222 = vpop.f32.mrb[0].mxu0
  %2223 = vmatprep.mubr.bf16.mxu0 0
  %2224 = vmatmul.mubr.bf16.gmra.mrb[0].mxu0 %v1054
  %v2225 = vpop.f32.mrb[0].mxu0
  %v2226 = vadd.f32 0.0, %v2225
  %v2227 = vpop.f32.mrb[0].mxu0
  %v2228 = vpop.f32.mrb[0].mxu0
  %v2229 = vadd.f32 0.0, %v2228
  %v2230 = vpop.f32.mrb[0].mxu0
  %2231 = vmatprep.mubr.bf16.mxu0 0
  %2232 = vmatmul.mubr.bf16.gmra.mrb[0].mxu0 %v1055
  %v2233 = vpop.f32.mrb[0].mxu0
  %v2234 = vadd.f32 0.0, %v2233
  %v2235 = vpop.f32.mrb[0].mxu0
  %v2236 = vpop.f32.mrb[0].mxu0
  %v2237 = vadd.f32 0.0, %v2236
  %v2238 = vpop.f32.mrb[0].mxu0
  %2239 = vmatprep.mubr.bf16.mxu0 0
  %2240 = vmatmul.mubr.bf16.gmra.mrb[0].mxu0 %v1056
  %v2241 = vpop.f32.mrb[0].mxu0
  %v2242 = vadd.f32 0.0, %v2241
  %v2243 = vpop.f32.mrb[0].mxu0
  %v2244 = vpop.f32.mrb[0].mxu0
  %v2245 = vadd.f32 0.0, %v2244
  %v2246 = vpop.f32.mrb[0].mxu0
  %2247 = vmatprep.mubr.bf16.mxu0 0
  %2248 = vmatmul.mubr.bf16.gmra.mrb[0].mxu0 %v1057
  %v2249 = vpop.f32.mrb[0].mxu0
  %v2250 = vadd.f32 0.0, %v2249
  %v2251 = vpop.f32.mrb[0].mxu0
  %v2252 = vpop.f32.mrb[0].mxu0
  %v2253 = vadd.f32 0.0, %v2252
  %v2254 = vpop.f32.mrb[0].mxu0
  %2255 = vmatprep.mubr.bf16.mxu0 0
  %2256 = vmatmul.mubr.bf16.gmra.mrb[0].mxu0 %v1058
  %v2257 = vpop.f32.mrb[0].mxu0
  %v2258 = vadd.f32 0.0, %v2257
  %v2259 = vpop.f32.mrb[0].mxu0
  %v2260 = vpop.f32.mrb[0].mxu0
  %v2261 = vadd.f32 0.0, %v2260
  %v2262 = vpop.f32.mrb[0].mxu0
  %2263 = vmatprep.mubr.bf16.mxu0 0
  %2264 = vmatmul.mubr.bf16.gmra.mrb[0].mxu0 %v1059
  %v2265 = vpop.f32.mrb[0].mxu0
  %v2266 = vadd.f32 0.0, %v2265
  %v2267 = vpop.f32.mrb[0].mxu0
  %v2268 = vpop.f32.mrb[0].mxu0
  %v2269 = vadd.f32 0.0, %v2268
  %v2270 = vpop.f32.mrb[0].mxu0
  %2271 = vmatprep.mubr.bf16.mxu0 0
  %2272 = vmatmul.mubr.bf16.gmra.mrb[0].mxu0 %v1060
  %v2273 = vpop.f32.mrb[0].mxu0
  %v2274 = vadd.f32 0.0, %v2273
  %v2275 = vpop.f32.mrb[0].mxu0
  %v2276 = vpop.f32.mrb[0].mxu0
  %v2277 = vadd.f32 0.0, %v2276
  %v2278 = vpop.f32.mrb[0].mxu0
  %2279 = vmatprep.mubr.bf16.mxu0 0
  %2280 = vmatmul.mubr.bf16.gmra.mrb[0].mxu0 %v1061
  %v2281 = vpop.f32.mrb[0].mxu0
  %v2282 = vadd.f32 0.0, %v2281
  %v2283 = vpop.f32.mrb[0].mxu0
  %v2284 = vpop.f32.mrb[0].mxu0
  %v2285 = vadd.f32 0.0, %v2284
  %v2286 = vpop.f32.mrb[0].mxu0
  %2287 = vmatprep.mubr.bf16.mxu0 0
  %2288 = vmatmul.mubr.bf16.gmra.mrb[0].mxu0 %v1062
  %v2289 = vpop.f32.mrb[0].mxu0
  %v2290 = vadd.f32 0.0, %v2289
  %v2291 = vpop.f32.mrb[0].mxu0
  %v2292 = vpop.f32.mrb[0].mxu0
  %v2293 = vadd.f32 0.0, %v2292
  %v2294 = vpop.f32.mrb[0].mxu0
  %2295 = vdwg.mxu0
  %v2296 = vld [vmem:[#allocation2] sm:$0xff]
  %v2298 = vcombine.high %v2296, %v2296
  %v2300 = vunpack.c.l.s4 1966171168
  %v2301 = vunpack.c.0.s8 %v2300
  %v2302 = vlaneseq
  %v2303 = vshrl.u32 %v2302, 7
  %v2304 = vsub.s32 %v2301, %v2303
  %v2305 = vrot.slane %v2296, %v2304
  %v2307 = vunpack.c.l.s4 1966171168
  %v2308 = vunpack.c.0.s8 %v2307
  %v2309 = vlaneseq
  %v2310 = vshrl.u32 %v2309, 7
  %v2311 = vsub.s32 %v2308, %v2310
  %v2312 = vrot.slane %v2298, %v2311
  %v2313 = vcombine.high %v2305, %v2305
  %v2314 = vcombine.high %v2312, %v2312
  %v2316 = vunpack.c.l.s4 1966171168
  %v2317 = vunpack.c.0.s8 %v2316
  %v2318 = vlaneseq
  %v2319 = vshrl.u32 %v2318, 7
  %v2320 = vsub.s32 %v2317, %v2319
  %v2321 = vrot.slane %v2305, %v2320
  %v2323 = vunpack.c.l.s4 1966171168
  %v2324 = vunpack.c.0.s8 %v2323
  %v2325 = vlaneseq
  %v2326 = vshrl.u32 %v2325, 7
  %v2327 = vsub.s32 %v2324, %v2326
  %v2328 = vrot.slane %v2312, %v2327
  %v2330 = vunpack.c.l.s4 1966171168
  %v2331 = vunpack.c.0.s8 %v2330
  %v2332 = vlaneseq
  %v2333 = vshrl.u32 %v2332, 7
  %v2334 = vsub.s32 %v2331, %v2333
  %v2335 = vrot.slane %v2313, %v2334
  %v2337 = vunpack.c.l.s4 1966171168
  %v2338 = vunpack.c.0.s8 %v2337
  %v2339 = vlaneseq
  %v2340 = vshrl.u32 %v2339, 7
  %v2341 = vsub.s32 %v2338, %v2340
  %v2342 = vrot.slane %v2314, %v2341
  %v2343 = vcombine.high %v2321, %v2321
  %v2344 = vcombine.high %v2328, %v2328
  %v2345 = vcombine.high %v2335, %v2335
  %v2346 = vcombine.high %v2342, %v2342
  %v2347 = vlaneseq
  %v2348 = vshrl.u32 %v2347, 7
  %v2349 = vsub.s32 0, %v2348
  %v2350 = vrot.slane %v2321, %v2349
  %v2351 = vlaneseq
  %v2352 = vshrl.u32 %v2351, 7
  %v2353 = vsub.s32 0, %v2352
  %v2354 = vrot.slane %v2335, %v2353
  %v2355 = vlaneseq
  %v2356 = vshrl.u32 %v2355, 7
  %v2357 = vsub.s32 0, %v2356
  %v2358 = vrot.slane %v2343, %v2357
  %v2359 = vlaneseq
  %v2360 = vshrl.u32 %v2359, 7
  %v2361 = vsub.s32 0, %v2360
  %v2362 = vrot.slane %v2345, %v2361
  %v2363 = vlaneseq
  %v2364 = vshrl.u32 %v2363, 7
  %v2365 = vsub.s32 0, %v2364
  %v2366 = vrot.slane %v2328, %v2365
  %v2367 = vlaneseq
  %v2368 = vshrl.u32 %v2367, 7
  %v2369 = vsub.s32 0, %v2368
  %v2370 = vrot.slane %v2342, %v2369
  %v2371 = vlaneseq
  %v2372 = vshrl.u32 %v2371, 7
  %v2373 = vsub.s32 0, %v2372
  %v2374 = vrot.slane %v2344, %v2373
  %v2375 = vlaneseq
  %v2376 = vshrl.u32 %v2375, 7
  %v2377 = vsub.s32 0, %v2376
  %v2378 = vrot.slane %v2346, %v2377
  %v2387 = vadd.f32 %v1274, %v2350
  %v2388 = vadd.f32 %v1277, %v2350
  %v2389 = vadd.f32 %v1282, %v2350
  %v2390 = vadd.f32 %v1285, %v2350
  %v2391 = vadd.f32 %v1290, %v2350
  %v2392 = vadd.f32 %v1293, %v2350
  %v2393 = vadd.f32 %v1298, %v2350
  %v2394 = vadd.f32 %v1301, %v2350
  %v2395 = vadd.f32 %v1306, %v2350
  %v2396 = vadd.f32 %v1309, %v2350
  %v2397 = vadd.f32 %v1314, %v2350
  %v2398 = vadd.f32 %v1317, %v2350
  %v2399 = vadd.f32 %v1322, %v2350
  %v2400 = vadd.f32 %v1325, %v2350
  %v2401 = vadd.f32 %v1330, %v2350
  %v2402 = vadd.f32 %v1333, %v2350
  %v2403 = vadd.f32 %v1338, %v2350
  %v2404 = vadd.f32 %v1341, %v2350
  %v2405 = vadd.f32 %v1346, %v2350
  %v2406 = vadd.f32 %v1349, %v2350
  %v2407 = vadd.f32 %v1354, %v2350
  %v2408 = vadd.f32 %v1357, %v2350
  %v2409 = vadd.f32 %v1362, %v2350
  %v2410 = vadd.f32 %v1365, %v2350
  %v2411 = vadd.f32 %v1370, %v2350
  %v2412 = vadd.f32 %v1373, %v2350
  %v2413 = vadd.f32 %v1378, %v2350
  %v2414 = vadd.f32 %v1381, %v2350
  %v2415 = vadd.f32 %v1386, %v2350
  %v2416 = vadd.f32 %v1389, %v2350
  %v2417 = vadd.f32 %v1394, %v2350
  %v2418 = vadd.f32 %v1397, %v2350
  %v2419 = vadd.f32 %v1402, %v2354
  %v2420 = vadd.f32 %v1405, %v2354
  %v2421 = vadd.f32 %v1410, %v2354
  %v2422 = vadd.f32 %v1413, %v2354
  %v2423 = vadd.f32 %v1418, %v2354
  %v2424 = vadd.f32 %v1421, %v2354
  %v2425 = vadd.f32 %v1426, %v2354
  %v2426 = vadd.f32 %v1429, %v2354
  %v2427 = vadd.f32 %v1434, %v2354
  %v2428 = vadd.f32 %v1437, %v2354
  %v2429 = vadd.f32 %v1442, %v2354
  %v2430 = vadd.f32 %v1445, %v2354
  %v2431 = vadd.f32 %v1450, %v2354
  %v2432 = vadd.f32 %v1453, %v2354
  %v2433 = vadd.f32 %v1458, %v2354
  %v2434 = vadd.f32 %v1461, %v2354
  %v2435 = vadd.f32 %v1466, %v2354
  %v2436 = vadd.f32 %v1469, %v2354
  %v2437 = vadd.f32 %v1474, %v2354
  %v2438 = vadd.f32 %v1477, %v2354
  %v2439 = vadd.f32 %v1482, %v2354
  %v2440 = vadd.f32 %v1485, %v2354
  %v2441 = vadd.f32 %v1490, %v2354
  %v2442 = vadd.f32 %v1493, %v2354
  %v2443 = vadd.f32 %v1498, %v2354
  %v2444 = vadd.f32 %v1501, %v2354
  %v2445 = vadd.f32 %v1506, %v2354
  %v2446 = vadd.f32 %v1509, %v2354
  %v2447 = vadd.f32 %v1514, %v2354
  %v2448 = vadd.f32 %v1517, %v2354
  %v2449 = vadd.f32 %v1522, %v2354
  %v2450 = vadd.f32 %v1525, %v2354
  %v2451 = vadd.f32 %v1530, %v2358
  %v2452 = vadd.f32 %v1533, %v2358
  %v2453 = vadd.f32 %v1538, %v2358
  %v2454 = vadd.f32 %v1541, %v2358
  %v2455 = vadd.f32 %v1546, %v2358
  %v2456 = vadd.f32 %v1549, %v2358
  %v2457 = vadd.f32 %v1554, %v2358
  %v2458 = vadd.f32 %v1557, %v2358
  %v2459 = vadd.f32 %v1562, %v2358
  %v2460 = vadd.f32 %v1565, %v2358
  %v2461 = vadd.f32 %v1570, %v2358
  %v2462 = vadd.f32 %v1573, %v2358
  %v2463 = vadd.f32 %v1578, %v2358
  %v2464 = vadd.f32 %v1581, %v2358
  %v2465 = vadd.f32 %v1586, %v2358
  %v2466 = vadd.f32 %v1589, %v2358
  %v2467 = vadd.f32 %v1594, %v2358
  %v2468 = vadd.f32 %v1597, %v2358
  %v2469 = vadd.f32 %v1602, %v2358
  %v2470 = vadd.f32 %v1605, %v2358
  %v2471 = vadd.f32 %v1610, %v2358
  %v2472 = vadd.f32 %v1613, %v2358
  %v2473 = vadd.f32 %v1618, %v2358
  %v2474 = vadd.f32 %v1621, %v2358
  %v2475 = vadd.f32 %v1626, %v2358
  %v2476 = vadd.f32 %v1629, %v2358
  %v2477 = vadd.f32 %v1634, %v2358
  %v2478 = vadd.f32 %v1637, %v2358
  %v2479 = vadd.f32 %v1642, %v2358
  %v2480 = vadd.f32 %v1645, %v2358
  %v2481 = vadd.f32 %v1650, %v2358
  %v2482 = vadd.f32 %v1653, %v2358
  %v2483 = vadd.f32 %v1658, %v2362
  %v2484 = vadd.f32 %v1661, %v2362
  %v2485 = vadd.f32 %v1666, %v2362
  %v2486 = vadd.f32 %v1669, %v2362
  %v2487 = vadd.f32 %v1674, %v2362
  %v2488 = vadd.f32 %v1677, %v2362
  %v2489 = vadd.f32 %v1682, %v2362
  %v2490 = vadd.f32 %v1685, %v2362
  %v2491 = vadd.f32 %v1690, %v2362
  %v2492 = vadd.f32 %v1693, %v2362
  %v2493 = vadd.f32 %v1698, %v2362
  %v2494 = vadd.f32 %v1701, %v2362
  %v2495 = vadd.f32 %v1706, %v2362
  %v2496 = vadd.f32 %v1709, %v2362
  %v2497 = vadd.f32 %v1714, %v2362
  %v2498 = vadd.f32 %v1717, %v2362
  %v2499 = vadd.f32 %v1722, %v2362
  %v2500 = vadd.f32 %v1725, %v2362
  %v2501 = vadd.f32 %v1730, %v2362
  %v2502 = vadd.f32 %v1733, %v2362
  %v2503 = vadd.f32 %v1738, %v2362
  %v2504 = vadd.f32 %v1741, %v2362
  %v2505 = vadd.f32 %v1746, %v2362
  %v2506 = vadd.f32 %v1749, %v2362
  %v2507 = vadd.f32 %v1754, %v2362
  %v2508 = vadd.f32 %v1757, %v2362
  %v2509 = vadd.f32 %v1762, %v2362
  %v2510 = vadd.f32 %v1765, %v2362
  %v2511 = vadd.f32 %v1770, %v2362
  %v2512 = vadd.f32 %v1773, %v2362
  %v2513 = vadd.f32 %v1778, %v2362
  %v2514 = vadd.f32 %v1781, %v2362
  %v2515 = vadd.f32 %v1786, %v2366
  %v2516 = vadd.f32 %v1789, %v2366
  %v2517 = vadd.f32 %v1794, %v2366
  %v2518 = vadd.f32 %v1797, %v2366
  %v2519 = vadd.f32 %v1802, %v2366
  %v2520 = vadd.f32 %v1805, %v2366
  %v2521 = vadd.f32 %v1810, %v2366
  %v2522 = vadd.f32 %v1813, %v2366
  %v2523 = vadd.f32 %v1818, %v2366
  %v2524 = vadd.f32 %v1821, %v2366
  %v2525 = vadd.f32 %v1826, %v2366
  %v2526 = vadd.f32 %v1829, %v2366
  %v2527 = vadd.f32 %v1834, %v2366
  %v2528 = vadd.f32 %v1837, %v2366
  %v2529 = vadd.f32 %v1842, %v2366
  %v2530 = vadd.f32 %v1845, %v2366
  %v2531 = vadd.f32 %v1850, %v2366
  %v2532 = vadd.f32 %v1853, %v2366
  %v2533 = vadd.f32 %v1858, %v2366
  %v2534 = vadd.f32 %v1861, %v2366
  %v2535 = vadd.f32 %v1866, %v2366
  %v2536 = vadd.f32 %v1869, %v2366
  %v2537 = vadd.f32 %v1874, %v2366
  %v2538 = vadd.f32 %v1877, %v2366
  %v2539 = vadd.f32 %v1882, %v2366
  %v2540 = vadd.f32 %v1885, %v2366
  %v2541 = vadd.f32 %v1890, %v2366
  %v2542 = vadd.f32 %v1893, %v2366
  %v2543 = vadd.f32 %v1898, %v2366
  %v2544 = vadd.f32 %v1901, %v2366
  %v2545 = vadd.f32 %v1906, %v2366
  %v2546 = vadd.f32 %v1909, %v2366
  %v2547 = vadd.f32 %v1914, %v2370
  %v2548 = vadd.f32 %v1917, %v2370
  %v2549 = vadd.f32 %v1922, %v2370
  %v2550 = vadd.f32 %v1925, %v2370
  %v2551 = vadd.f32 %v1930, %v2370
  %v2552 = vadd.f32 %v1933, %v2370
  %v2553 = vadd.f32 %v1938, %v2370
  %v2554 = vadd.f32 %v1941, %v2370
  %v2555 = vadd.f32 %v1946, %v2370
  %v2556 = vadd.f32 %v1949, %v2370
  %v2557 = vadd.f32 %v1954, %v2370
  %v2558 = vadd.f32 %v1957, %v2370
  %v2559 = vadd.f32 %v1962, %v2370
  %v2560 = vadd.f32 %v1965, %v2370
  %v2561 = vadd.f32 %v1970, %v2370
  %v2562 = vadd.f32 %v1973, %v2370
  %v2563 = vadd.f32 %v1978, %v2370
  %v2564 = vadd.f32 %v1981, %v2370
  %v2565 = vadd.f32 %v1986, %v2370
  %v2566 = vadd.f32 %v1989, %v2370
  %v2567 = vadd.f32 %v1994, %v2370
  %v2568 = vadd.f32 %v1997, %v2370
  %v2569 = vadd.f32 %v2002, %v2370
  %v2570 = vadd.f32 %v2005, %v2370
  %v2571 = vadd.f32 %v2010, %v2370
  %v2572 = vadd.f32 %v2013, %v2370
  %v2573 = vadd.f32 %v2018, %v2370
  %v2574 = vadd.f32 %v2021, %v2370
  %v2575 = vadd.f32 %v2026, %v2370
  %v2576 = vadd.f32 %v2029, %v2370
  %v2577 = vadd.f32 %v2034, %v2370
  %v2578 = vadd.f32 %v2037, %v2370
  %v2579 = vadd.f32 %v2042, %v2374
  %v2580 = vadd.f32 %v2045, %v2374
  %v2581 = vadd.f32 %v2050, %v2374
  %v2582 = vadd.f32 %v2053, %v2374
  %v2583 = vadd.f32 %v2058, %v2374
  %v2584 = vadd.f32 %v2061, %v2374
  %v2585 = vadd.f32 %v2066, %v2374
  %v2586 = vadd.f32 %v2069, %v2374
  %v2587 = vadd.f32 %v2074, %v2374
  %v2588 = vadd.f32 %v2077, %v2374
  %v2589 = vadd.f32 %v2082, %v2374
  %v2590 = vadd.f32 %v2085, %v2374
  %v2591 = vadd.f32 %v2090, %v2374
  %v2592 = vadd.f32 %v2093, %v2374
  %v2593 = vadd.f32 %v2098, %v2374
  %v2594 = vadd.f32 %v2101, %v2374
  %v2595 = vadd.f32 %v2106, %v2374
  %v2596 = vadd.f32 %v2109, %v2374
  %v2597 = vadd.f32 %v2114, %v2374
  %v2598 = vadd.f32 %v2117, %v2374
  %v2599 = vadd.f32 %v2122, %v2374
  %v2600 = vadd.f32 %v2125, %v2374
  %v2601 = vadd.f32 %v2130, %v2374
  %v2602 = vadd.f32 %v2133, %v2374
  %v2603 = vadd.f32 %v2138, %v2374
  %v2604 = vadd.f32 %v2141, %v2374
  %v2605 = vadd.f32 %v2146, %v2374
  %v2606 = vadd.f32 %v2149, %v2374
  %v2607 = vadd.f32 %v2154, %v2374
  %v2608 = vadd.f32 %v2157, %v2374
  %v2609 = vadd.f32 %v2162, %v2374
  %v2610 = vadd.f32 %v2165, %v2374
  %v2611 = vadd.f32 %v2170, %v2378
  %v2612 = vadd.f32 %v2173, %v2378
  %v2613 = vadd.f32 %v2178, %v2378
  %v2614 = vadd.f32 %v2181, %v2378
  %v2615 = vadd.f32 %v2186, %v2378
  %v2616 = vadd.f32 %v2189, %v2378
  %v2617 = vadd.f32 %v2194, %v2378
  %v2618 = vadd.f32 %v2197, %v2378
  %v2619 = vadd.f32 %v2202, %v2378
  %v2620 = vadd.f32 %v2205, %v2378
  %v2621 = vadd.f32 %v2210, %v2378
  %v2622 = vadd.f32 %v2213, %v2378
  %v2623 = vadd.f32 %v2218, %v2378
  %v2624 = vadd.f32 %v2221, %v2378
  %v2625 = vadd.f32 %v2226, %v2378
  %v2626 = vadd.f32 %v2229, %v2378
  %v2627 = vadd.f32 %v2234, %v2378
  %v2628 = vadd.f32 %v2237, %v2378
  %v2629 = vadd.f32 %v2242, %v2378
  %v2630 = vadd.f32 %v2245, %v2378
  %v2631 = vadd.f32 %v2250, %v2378
  %v2632 = vadd.f32 %v2253, %v2378
  %v2633 = vadd.f32 %v2258, %v2378
  %v2634 = vadd.f32 %v2261, %v2378
  %v2635 = vadd.f32 %v2266, %v2378
  %v2636 = vadd.f32 %v2269, %v2378
  %v2637 = vadd.f32 %v2274, %v2378
  %v2638 = vadd.f32 %v2277, %v2378
  %v2639 = vadd.f32 %v2282, %v2378
  %v2640 = vadd.f32 %v2285, %v2378
  %v2641 = vadd.f32 %v2290, %v2378
  %v2642 = vadd.f32 %v2293, %v2378
  %v2643 = vtanh.pop %v2387
  %v2644 = vtanh.pop %v2388
  %v2645 = vtanh.pop %v2389
  %v2646 = vtanh.pop %v2390
  %v2647 = vtanh.pop %v2391
  %v2648 = vtanh.pop %v2392
  %v2649 = vtanh.pop %v2393
  %v2650 = vtanh.pop %v2394
  %v2651 = vtanh.pop %v2395
  %v2652 = vtanh.pop %v2396
  %v2653 = vtanh.pop %v2397
  %v2654 = vtanh.pop %v2398
  %v2655 = vtanh.pop %v2399
  %v2656 = vtanh.pop %v2400
  %v2657 = vtanh.pop %v2401
  %v2658 = vtanh.pop %v2402
  %v2659 = vtanh.pop %v2403
  %v2660 = vtanh.pop %v2404
  %v2661 = vtanh.pop %v2405
  %v2662 = vtanh.pop %v2406
  %v2663 = vtanh.pop %v2407
  %v2664 = vtanh.pop %v2408
  %v2665 = vtanh.pop %v2409
  %v2666 = vtanh.pop %v2410
  %v2667 = vtanh.pop %v2411
  %v2668 = vtanh.pop %v2412
  %v2669 = vtanh.pop %v2413
  %v2670 = vtanh.pop %v2414
  %v2671 = vtanh.pop %v2415
  %v2672 = vtanh.pop %v2416
  %v2673 = vtanh.pop %v2417
  %v2674 = vtanh.pop %v2418
  %v2675 = vtanh.pop %v2419
  %v2676 = vtanh.pop %v2420
  %v2677 = vtanh.pop %v2421
  %v2678 = vtanh.pop %v2422
  %v2679 = vtanh.pop %v2423
  %v2680 = vtanh.pop %v2424
  %v2681 = vtanh.pop %v2425
  %v2682 = vtanh.pop %v2426
  %v2683 = vtanh.pop %v2427
  %v2684 = vtanh.pop %v2428
  %v2685 = vtanh.pop %v2429
  %v2686 = vtanh.pop %v2430
  %v2687 = vtanh.pop %v2431
  %v2688 = vtanh.pop %v2432
  %v2689 = vtanh.pop %v2433
  %v2690 = vtanh.pop %v2434
  %v2691 = vtanh.pop %v2435
  %v2692 = vtanh.pop %v2436
  %v2693 = vtanh.pop %v2437
  %v2694 = vtanh.pop %v2438
  %v2695 = vtanh.pop %v2439
  %v2696 = vtanh.pop %v2440
  %v2697 = vtanh.pop %v2441
  %v2698 = vtanh.pop %v2442
  %v2699 = vtanh.pop %v2443
  %v2700 = vtanh.pop %v2444
  %v2701 = vtanh.pop %v2445
  %v2702 = vtanh.pop %v2446
  %v2703 = vtanh.pop %v2447
  %v2704 = vtanh.pop %v2448
  %v2705 = vtanh.pop %v2449
  %v2706 = vtanh.pop %v2450
  %v2707 = vtanh.pop %v2451
  %v2708 = vtanh.pop %v2452
  %v2709 = vtanh.pop %v2453
  %v2710 = vtanh.pop %v2454
  %v2711 = vtanh.pop %v2455
  %v2712 = vtanh.pop %v2456
  %v2713 = vtanh.pop %v2457
  %v2714 = vtanh.pop %v2458
  %v2715 = vtanh.pop %v2459
  %v2716 = vtanh.pop %v2460
  %v2717 = vtanh.pop %v2461
  %v2718 = vtanh.pop %v2462
  %v2719 = vtanh.pop %v2463
  %v2720 = vtanh.pop %v2464
  %v2721 = vtanh.pop %v2465
  %v2722 = vtanh.pop %v2466
  %v2723 = vtanh.pop %v2467
  %v2724 = vtanh.pop %v2468
  %v2725 = vtanh.pop %v2469
  %v2726 = vtanh.pop %v2470
  %v2727 = vtanh.pop %v2471
  %v2728 = vtanh.pop %v2472
  %v2729 = vtanh.pop %v2473
  %v2730 = vtanh.pop %v2474
  %v2731 = vtanh.pop %v2475
  %v2732 = vtanh.pop %v2476
  %v2733 = vtanh.pop %v2477
  %v2734 = vtanh.pop %v2478
  %v2735 = vtanh.pop %v2479
  %v2736 = vtanh.pop %v2480
  %v2737 = vtanh.pop %v2481
  %v2738 = vtanh.pop %v2482
  %v2739 = vtanh.pop %v2483
  %v2740 = vtanh.pop %v2484
  %v2741 = vtanh.pop %v2485
  %v2742 = vtanh.pop %v2486
  %v2743 = vtanh.pop %v2487
  %v2744 = vtanh.pop %v2488
  %v2745 = vtanh.pop %v2489
  %v2746 = vtanh.pop %v2490
  %v2747 = vtanh.pop %v2491
  %v2748 = vtanh.pop %v2492
  %v2749 = vtanh.pop %v2493
  %v2750 = vtanh.pop %v2494
  %v2751 = vtanh.pop %v2495
  %v2752 = vtanh.pop %v2496
  %v2753 = vtanh.pop %v2497
  %v2754 = vtanh.pop %v2498
  %v2755 = vtanh.pop %v2499
  %v2756 = vtanh.pop %v2500
  %v2757 = vtanh.pop %v2501
  %v2758 = vtanh.pop %v2502
  %v2759 = vtanh.pop %v2503
  %v2760 = vtanh.pop %v2504
  %v2761 = vtanh.pop %v2505
  %v2762 = vtanh.pop %v2506
  %v2763 = vtanh.pop %v2507
  %v2764 = vtanh.pop %v2508
  %v2765 = vtanh.pop %v2509
  %v2766 = vtanh.pop %v2510
  %v2767 = vtanh.pop %v2511
  %v2768 = vtanh.pop %v2512
  %v2769 = vtanh.pop %v2513
  %v2770 = vtanh.pop %v2514
  %v2771 = vtanh.pop %v2515
  %v2772 = vtanh.pop %v2516
  %v2773 = vtanh.pop %v2517
  %v2774 = vtanh.pop %v2518
  %v2775 = vtanh.pop %v2519
  %v2776 = vtanh.pop %v2520
  %v2777 = vtanh.pop %v2521
  %v2778 = vtanh.pop %v2522
  %v2779 = vtanh.pop %v2523
  %v2780 = vtanh.pop %v2524
  %v2781 = vtanh.pop %v2525
  %v2782 = vtanh.pop %v2526
  %v2783 = vtanh.pop %v2527
  %v2784 = vtanh.pop %v2528
  %v2785 = vtanh.pop %v2529
  %v2786 = vtanh.pop %v2530
  %v2787 = vtanh.pop %v2531
  %v2788 = vtanh.pop %v2532
  %v2789 = vtanh.pop %v2533
  %v2790 = vtanh.pop %v2534
  %v2791 = vtanh.pop %v2535
  %v2792 = vtanh.pop %v2536
  %v2793 = vtanh.pop %v2537
  %v2794 = vtanh.pop %v2538
  %v2795 = vtanh.pop %v2539
  %v2796 = vtanh.pop %v2540
  %v2797 = vtanh.pop %v2541
  %v2798 = vtanh.pop %v2542
  %v2799 = vtanh.pop %v2543
  %v2800 = vtanh.pop %v2544
  %v2801 = vtanh.pop %v2545
  %v2802 = vtanh.pop %v2546
  %v2803 = vtanh.pop %v2547
  %v2804 = vtanh.pop %v2548
  %v2805 = vtanh.pop %v2549
  %v2806 = vtanh.pop %v2550
  %v2807 = vtanh.pop %v2551
  %v2808 = vtanh.pop %v2552
  %v2809 = vtanh.pop %v2553
  %v2810 = vtanh.pop %v2554
  %v2811 = vtanh.pop %v2555
  %v2812 = vtanh.pop %v2556
  %v2813 = vtanh.pop %v2557
  %v2814 = vtanh.pop %v2558
  %v2815 = vtanh.pop %v2559
  %v2816 = vtanh.pop %v2560
  %v2817 = vtanh.pop %v2561
  %v2818 = vtanh.pop %v2562
  %v2819 = vtanh.pop %v2563
  %v2820 = vtanh.pop %v2564
  %v2821 = vtanh.pop %v2565
  %v2822 = vtanh.pop %v2566
  %v2823 = vtanh.pop %v2567
  %v2824 = vtanh.pop %v2568
  %v2825 = vtanh.pop %v2569
  %v2826 = vtanh.pop %v2570
  %v2827 = vtanh.pop %v2571
  %v2828 = vtanh.pop %v2572
  %v2829 = vtanh.pop %v2573
  %v2830 = vtanh.pop %v2574
  %v2831 = vtanh.pop %v2575
  %v2832 = vtanh.pop %v2576
  %v2833 = vtanh.pop %v2577
  %v2834 = vtanh.pop %v2578
  %v2835 = vtanh.pop %v2579
  %v2836 = vtanh.pop %v2580
  %v2837 = vtanh.pop %v2581
  %v2838 = vtanh.pop %v2582
  %v2839 = vtanh.pop %v2583
  %v2840 = vtanh.pop %v2584
  %v2841 = vtanh.pop %v2585
  %v2842 = vtanh.pop %v2586
  %v2843 = vtanh.pop %v2587
  %v2844 = vtanh.pop %v2588
  %v2845 = vtanh.pop %v2589
  %v2846 = vtanh.pop %v2590
  %v2847 = vtanh.pop %v2591
  %v2848 = vtanh.pop %v2592
  %v2849 = vtanh.pop %v2593
  %v2850 = vtanh.pop %v2594
  %v2851 = vtanh.pop %v2595
  %v2852 = vtanh.pop %v2596
  %v2853 = vtanh.pop %v2597
  %v2854 = vtanh.pop %v2598
  %v2855 = vtanh.pop %v2599
  %v2856 = vtanh.pop %v2600
  %v2857 = vtanh.pop %v2601
  %v2858 = vtanh.pop %v2602
  %v2859 = vtanh.pop %v2603
  %v2860 = vtanh.pop %v2604
  %v2861 = vtanh.pop %v2605
  %v2862 = vtanh.pop %v2606
  %v2863 = vtanh.pop %v2607
  %v2864 = vtanh.pop %v2608
  %v2865 = vtanh.pop %v2609
  %v2866 = vtanh.pop %v2610
  %v2867 = vtanh.pop %v2611
  %v2868 = vtanh.pop %v2612
  %v2869 = vtanh.pop %v2613
  %v2870 = vtanh.pop %v2614
  %v2871 = vtanh.pop %v2615
  %v2872 = vtanh.pop %v2616
  %v2873 = vtanh.pop %v2617
  %v2874 = vtanh.pop %v2618
  %v2875 = vtanh.pop %v2619
  %v2876 = vtanh.pop %v2620
  %v2877 = vtanh.pop %v2621
  %v2878 = vtanh.pop %v2622
  %v2879 = vtanh.pop %v2623
  %v2880 = vtanh.pop %v2624
  %v2881 = vtanh.pop %v2625
  %v2882 = vtanh.pop %v2626
  %v2883 = vtanh.pop %v2627
  %v2884 = vtanh.pop %v2628
  %v2885 = vtanh.pop %v2629
  %v2886 = vtanh.pop %v2630
  %v2887 = vtanh.pop %v2631
  %v2888 = vtanh.pop %v2632
  %v2889 = vtanh.pop %v2633
  %v2890 = vtanh.pop %v2634
  %v2891 = vtanh.pop %v2635
  %v2892 = vtanh.pop %v2636
  %v2893 = vtanh.pop %v2637
  %v2894 = vtanh.pop %v2638
  %v2895 = vtanh.pop %v2639
  %v2896 = vtanh.pop %v2640
  %v2897 = vtanh.pop %v2641
  %v2898 = vtanh.pop %v2642
  %v2899 = vld [vmem:[%s5] sm:$0x1]
  %v2901 = vlaneseq
  %v2902 = vshrl.u32 %v2901, 7
  %v2903 = vsub.s32 0, %v2902
  %v2904 = vrot.slane %v2899, %v2903
  %v2906 = vmul.f32 %v2643, %v2904
  %v2907 = vmul.f32 %v2644, %v2904
  %v2908 = vmul.f32 %v2645, %v2904
  %v2909 = vmul.f32 %v2646, %v2904
  %v2910 = vmul.f32 %v2647, %v2904
  %v2911 = vmul.f32 %v2648, %v2904
  %v2912 = vmul.f32 %v2649, %v2904
  %v2913 = vmul.f32 %v2650, %v2904
  %v2914 = vmul.f32 %v2651, %v2904
  %v2915 = vmul.f32 %v2652, %v2904
  %v2916 = vmul.f32 %v2653, %v2904
  %v2917 = vmul.f32 %v2654, %v2904
  %v2918 = vmul.f32 %v2655, %v2904
  %v2919 = vmul.f32 %v2656, %v2904
  %v2920 = vmul.f32 %v2657, %v2904
  %v2921 = vmul.f32 %v2658, %v2904
  %v2922 = vmul.f32 %v2659, %v2904
  %v2923 = vmul.f32 %v2660, %v2904
  %v2924 = vmul.f32 %v2661, %v2904
  %v2925 = vmul.f32 %v2662, %v2904
  %v2926 = vmul.f32 %v2663, %v2904
  %v2927 = vmul.f32 %v2664, %v2904
  %v2928 = vmul.f32 %v2665, %v2904
  %v2929 = vmul.f32 %v2666, %v2904
  %v2930 = vmul.f32 %v2667, %v2904
  %v2931 = vmul.f32 %v2668, %v2904
  %v2932 = vmul.f32 %v2669, %v2904
  %v2933 = vmul.f32 %v2670, %v2904
  %v2934 = vmul.f32 %v2671, %v2904
  %v2935 = vmul.f32 %v2672, %v2904
  %v2936 = vmul.f32 %v2673, %v2904
  %v2937 = vmul.f32 %v2674, %v2904
  %v2938 = vmul.f32 %v2675, %v2904
  %v2939 = vmul.f32 %v2676, %v2904
  %v2940 = vmul.f32 %v2677, %v2904
  %v2941 = vmul.f32 %v2678, %v2904
  %v2942 = vmul.f32 %v2679, %v2904
  %v2943 = vmul.f32 %v2680, %v2904
  %v2944 = vmul.f32 %v2681, %v2904
  %v2945 = vmul.f32 %v2682, %v2904
  %v2946 = vmul.f32 %v2683, %v2904
  %v2947 = vmul.f32 %v2684, %v2904
  %v2948 = vmul.f32 %v2685, %v2904
  %v2949 = vmul.f32 %v2686, %v2904
  %v2950 = vmul.f32 %v2687, %v2904
  %v2951 = vmul.f32 %v2688, %v2904
  %v2952 = vmul.f32 %v2689, %v2904
  %v2953 = vmul.f32 %v2690, %v2904
  %v2954 = vmul.f32 %v2691, %v2904
  %v2955 = vmul.f32 %v2692, %v2904
  %v2956 = vmul.f32 %v2693, %v2904
  %v2957 = vmul.f32 %v2694, %v2904
  %v2958 = vmul.f32 %v2695, %v2904
  %v2959 = vmul.f32 %v2696, %v2904
  %v2960 = vmul.f32 %v2697, %v2904
  %v2961 = vmul.f32 %v2698, %v2904
  %v2962 = vmul.f32 %v2699, %v2904
  %v2963 = vmul.f32 %v2700, %v2904
  %v2964 = vmul.f32 %v2701, %v2904
  %v2965 = vmul.f32 %v2702, %v2904
  %v2966 = vmul.f32 %v2703, %v2904
  %v2967 = vmul.f32 %v2704, %v2904
  %v2968 = vmul.f32 %v2705, %v2904
  %v2969 = vmul.f32 %v2706, %v2904
  %v2970 = vmul.f32 %v2707, %v2904
  %v2971 = vmul.f32 %v2708, %v2904
  %v2972 = vmul.f32 %v2709, %v2904
  %v2973 = vmul.f32 %v2710, %v2904
  %v2974 = vmul.f32 %v2711, %v2904
  %v2975 = vmul.f32 %v2712, %v2904
  %v2976 = vmul.f32 %v2713, %v2904
  %v2977 = vmul.f32 %v2714, %v2904
  %v2978 = vmul.f32 %v2715, %v2904
  %v2979 = vmul.f32 %v2716, %v2904
  %v2980 = vmul.f32 %v2717, %v2904
  %v2981 = vmul.f32 %v2718, %v2904
  %v2982 = vmul.f32 %v2719, %v2904
  %v2983 = vmul.f32 %v2720, %v2904
  %v2984 = vmul.f32 %v2721, %v2904
  %v2985 = vmul.f32 %v2722, %v2904
  %v2986 = vmul.f32 %v2723, %v2904
  %v2987 = vmul.f32 %v2724, %v2904
  %v2988 = vmul.f32 %v2725, %v2904
  %v2989 = vmul.f32 %v2726, %v2904
  %v2990 = vmul.f32 %v2727, %v2904
  %v2991 = vmul.f32 %v2728, %v2904
  %v2992 = vmul.f32 %v2729, %v2904
  %v2993 = vmul.f32 %v2730, %v2904
  %v2994 = vmul.f32 %v2731, %v2904
  %v2995 = vmul.f32 %v2732, %v2904
  %v2996 = vmul.f32 %v2733, %v2904
  %v2997 = vmul.f32 %v2734, %v2904
  %v2998 = vmul.f32 %v2735, %v2904
  %v2999 = vmul.f32 %v2736, %v2904
  %v3000 = vmul.f32 %v2737, %v2904
  %v3001 = vmul.f32 %v2738, %v2904
  %v3002 = vmul.f32 %v2739, %v2904
  %v3003 = vmul.f32 %v2740, %v2904
  %v3004 = vmul.f32 %v2741, %v2904
  %v3005 = vmul.f32 %v2742, %v2904
  %v3006 = vmul.f32 %v2743, %v2904
  %v3007 = vmul.f32 %v2744, %v2904
  %v3008 = vmul.f32 %v2745, %v2904
  %v3009 = vmul.f32 %v2746, %v2904
  %v3010 = vmul.f32 %v2747, %v2904
  %v3011 = vmul.f32 %v2748, %v2904
  %v3012 = vmul.f32 %v2749, %v2904
  %v3013 = vmul.f32 %v2750, %v2904
  %v3014 = vmul.f32 %v2751, %v2904
  %v3015 = vmul.f32 %v2752, %v2904
  %v3016 = vmul.f32 %v2753, %v2904
  %v3017 = vmul.f32 %v2754, %v2904
  %v3018 = vmul.f32 %v2755, %v2904
  %v3019 = vmul.f32 %v2756, %v2904
  %v3020 = vmul.f32 %v2757, %v2904
  %v3021 = vmul.f32 %v2758, %v2904
  %v3022 = vmul.f32 %v2759, %v2904
  %v3023 = vmul.f32 %v2760, %v2904
  %v3024 = vmul.f32 %v2761, %v2904
  %v3025 = vmul.f32 %v2762, %v2904
  %v3026 = vmul.f32 %v2763, %v2904
  %v3027 = vmul.f32 %v2764, %v2904
  %v3028 = vmul.f32 %v2765, %v2904
  %v3029 = vmul.f32 %v2766, %v2904
  %v3030 = vmul.f32 %v2767, %v2904
  %v3031 = vmul.f32 %v2768, %v2904
  %v3032 = vmul.f32 %v2769, %v2904
  %v3033 = vmul.f32 %v2770, %v2904
  %v3034 = vmul.f32 %v2771, %v2904
  %v3035 = vmul.f32 %v2772, %v2904
  %v3036 = vmul.f32 %v2773, %v2904
  %v3037 = vmul.f32 %v2774, %v2904
  %v3038 = vmul.f32 %v2775, %v2904
  %v3039 = vmul.f32 %v2776, %v2904
  %v3040 = vmul.f32 %v2777, %v2904
  %v3041 = vmul.f32 %v2778, %v2904
  %v3042 = vmul.f32 %v2779, %v2904
  %v3043 = vmul.f32 %v2780, %v2904
  %v3044 = vmul.f32 %v2781, %v2904
  %v3045 = vmul.f32 %v2782, %v2904
  %v3046 = vmul.f32 %v2783, %v2904
  %v3047 = vmul.f32 %v2784, %v2904
  %v3048 = vmul.f32 %v2785, %v2904
  %v3049 = vmul.f32 %v2786, %v2904
  %v3050 = vmul.f32 %v2787, %v2904
  %v3051 = vmul.f32 %v2788, %v2904
  %v3052 = vmul.f32 %v2789, %v2904
  %v3053 = vmul.f32 %v2790, %v2904
  %v3054 = vmul.f32 %v2791, %v2904
  %v3055 = vmul.f32 %v2792, %v2904
  %v3056 = vmul.f32 %v2793, %v2904
  %v3057 = vmul.f32 %v2794, %v2904
  %v3058 = vmul.f32 %v2795, %v2904
  %v3059 = vmul.f32 %v2796, %v2904
  %v3060 = vmul.f32 %v2797, %v2904
  %v3061 = vmul.f32 %v2798, %v2904
  %v3062 = vmul.f32 %v2799, %v2904
  %v3063 = vmul.f32 %v2800, %v2904
  %v3064 = vmul.f32 %v2801, %v2904
  %v3065 = vmul.f32 %v2802, %v2904
  %v3066 = vmul.f32 %v2803, %v2904
  %v3067 = vmul.f32 %v2804, %v2904
  %v3068 = vmul.f32 %v2805, %v2904
  %v3069 = vmul.f32 %v2806, %v2904
  %v3070 = vmul.f32 %v2807, %v2904
  %v3071 = vmul.f32 %v2808, %v2904
  %v3072 = vmul.f32 %v2809, %v2904
  %v3073 = vmul.f32 %v2810, %v2904
  %v3074 = vmul.f32 %v2811, %v2904
  %v3075 = vmul.f32 %v2812, %v2904
  %v3076 = vmul.f32 %v2813, %v2904
  %v3077 = vmul.f32 %v2814, %v2904
  %v3078 = vmul.f32 %v2815, %v2904
  %v3079 = vmul.f32 %v2816, %v2904
  %v3080 = vmul.f32 %v2817, %v2904
  %v3081 = vmul.f32 %v2818, %v2904
  %v3082 = vmul.f32 %v2819, %v2904
  %v3083 = vmul.f32 %v2820, %v2904
  %v3084 = vmul.f32 %v2821, %v2904
  %v3085 = vmul.f32 %v2822, %v2904
  %v3086 = vmul.f32 %v2823, %v2904
  %v3087 = vmul.f32 %v2824, %v2904
  %v3088 = vmul.f32 %v2825, %v2904
  %v3089 = vmul.f32 %v2826, %v2904
  %v3090 = vmul.f32 %v2827, %v2904
  %v3091 = vmul.f32 %v2828, %v2904
  %v3092 = vmul.f32 %v2829, %v2904
  %v3093 = vmul.f32 %v2830, %v2904
  %v3094 = vmul.f32 %v2831, %v2904
  %v3095 = vmul.f32 %v2832, %v2904
  %v3096 = vmul.f32 %v2833, %v2904
  %v3097 = vmul.f32 %v2834, %v2904
  %v3098 = vmul.f32 %v2835, %v2904
  %v3099 = vmul.f32 %v2836, %v2904
  %v3100 = vmul.f32 %v2837, %v2904
  %v3101 = vmul.f32 %v2838, %v2904
  %v3102 = vmul.f32 %v2839, %v2904
  %v3103 = vmul.f32 %v2840, %v2904
  %v3104 = vmul.f32 %v2841, %v2904
  %v3105 = vmul.f32 %v2842, %v2904
  %v3106 = vmul.f32 %v2843, %v2904
  %v3107 = vmul.f32 %v2844, %v2904
  %v3108 = vmul.f32 %v2845, %v2904
  %v3109 = vmul.f32 %v2846, %v2904
  %v3110 = vmul.f32 %v2847, %v2904
  %v3111 = vmul.f32 %v2848, %v2904
  %v3112 = vmul.f32 %v2849, %v2904
  %v3113 = vmul.f32 %v2850, %v2904
  %v3114 = vmul.f32 %v2851, %v2904
  %v3115 = vmul.f32 %v2852, %v2904
  %v3116 = vmul.f32 %v2853, %v2904
  %v3117 = vmul.f32 %v2854, %v2904
  %v3118 = vmul.f32 %v2855, %v2904
  %v3119 = vmul.f32 %v2856, %v2904
  %v3120 = vmul.f32 %v2857, %v2904
  %v3121 = vmul.f32 %v2858, %v2904
  %v3122 = vmul.f32 %v2859, %v2904
  %v3123 = vmul.f32 %v2860, %v2904
  %v3124 = vmul.f32 %v2861, %v2904
  %v3125 = vmul.f32 %v2862, %v2904
  %v3126 = vmul.f32 %v2863, %v2904
  %v3127 = vmul.f32 %v2864, %v2904
  %v3128 = vmul.f32 %v2865, %v2904
  %v3129 = vmul.f32 %v2866, %v2904
  %v3130 = vmul.f32 %v2867, %v2904
  %v3131 = vmul.f32 %v2868, %v2904
  %v3132 = vmul.f32 %v2869, %v2904
  %v3133 = vmul.f32 %v2870, %v2904
  %v3134 = vmul.f32 %v2871, %v2904
  %v3135 = vmul.f32 %v2872, %v2904
  %v3136 = vmul.f32 %v2873, %v2904
  %v3137 = vmul.f32 %v2874, %v2904
  %v3138 = vmul.f32 %v2875, %v2904
  %v3139 = vmul.f32 %v2876, %v2904
  %v3140 = vmul.f32 %v2877, %v2904
  %v3141 = vmul.f32 %v2878, %v2904
  %v3142 = vmul.f32 %v2879, %v2904
  %v3143 = vmul.f32 %v2880, %v2904
  %v3144 = vmul.f32 %v2881, %v2904
  %v3145 = vmul.f32 %v2882, %v2904
  %v3146 = vmul.f32 %v2883, %v2904
  %v3147 = vmul.f32 %v2884, %v2904
  %v3148 = vmul.f32 %v2885, %v2904
  %v3149 = vmul.f32 %v2886, %v2904
  %v3150 = vmul.f32 %v2887, %v2904
  %v3151 = vmul.f32 %v2888, %v2904
  %v3152 = vmul.f32 %v2889, %v2904
  %v3153 = vmul.f32 %v2890, %v2904
  %v3154 = vmul.f32 %v2891, %v2904
  %v3155 = vmul.f32 %v2892, %v2904
  %v3156 = vmul.f32 %v2893, %v2904
  %v3157 = vmul.f32 %v2894, %v2904
  %v3158 = vmul.f32 %v2895, %v2904
  %v3159 = vmul.f32 %v2896, %v2904
  %v3160 = vmul.f32 %v2897, %v2904
  %v3161 = vmul.f32 %v2898, %v2904
  %3162 = vadd.xlane.f32.xlu0 %v2906
  %v3163 = vpop.xlane.xlu0 %3162
  %3164 = vadd.xlane.f32.xlu0 %v2907
  %v3165 = vpop.xlane.xlu0 %3164
  %3166 = vadd.xlane.f32.xlu0 %v2908
  %v3167 = vpop.xlane.xlu0 %3166
  %3168 = vadd.xlane.f32.xlu0 %v2909
  %v3169 = vpop.xlane.xlu0 %3168
  %3170 = vadd.xlane.f32.xlu0 %v2910
  %v3171 = vpop.xlane.xlu0 %3170
  %3172 = vadd.xlane.f32.xlu0 %v2911
  %v3173 = vpop.xlane.xlu0 %3172
  %3174 = vadd.xlane.f32.xlu0 %v2912
  %v3175 = vpop.xlane.xlu0 %3174
  %3176 = vadd.xlane.f32.xlu0 %v2913
  %v3177 = vpop.xlane.xlu0 %3176
  %3178 = vadd.xlane.f32.xlu0 %v2914
  %v3179 = vpop.xlane.xlu0 %3178
  %3180 = vadd.xlane.f32.xlu0 %v2915
  %v3181 = vpop.xlane.xlu0 %3180
  %3182 = vadd.xlane.f32.xlu0 %v2916
  %v3183 = vpop.xlane.xlu0 %3182
  %3184 = vadd.xlane.f32.xlu0 %v2917
  %v3185 = vpop.xlane.xlu0 %3184
  %3186 = vadd.xlane.f32.xlu0 %v2918
  %v3187 = vpop.xlane.xlu0 %3186
  %3188 = vadd.xlane.f32.xlu0 %v2919
  %v3189 = vpop.xlane.xlu0 %3188
  %3190 = vadd.xlane.f32.xlu0 %v2920
  %v3191 = vpop.xlane.xlu0 %3190
  %3192 = vadd.xlane.f32.xlu0 %v2921
  %v3193 = vpop.xlane.xlu0 %3192
  %3194 = vadd.xlane.f32.xlu0 %v2922
  %v3195 = vpop.xlane.xlu0 %3194
  %3196 = vadd.xlane.f32.xlu0 %v2923
  %v3197 = vpop.xlane.xlu0 %3196
  %3198 = vadd.xlane.f32.xlu0 %v2924
  %v3199 = vpop.xlane.xlu0 %3198
  %3200 = vadd.xlane.f32.xlu0 %v2925
  %v3201 = vpop.xlane.xlu0 %3200
  %3202 = vadd.xlane.f32.xlu0 %v2926
  %v3203 = vpop.xlane.xlu0 %3202
  %3204 = vadd.xlane.f32.xlu0 %v2927
  %v3205 = vpop.xlane.xlu0 %3204
  %3206 = vadd.xlane.f32.xlu0 %v2928
  %v3207 = vpop.xlane.xlu0 %3206
  %3208 = vadd.xlane.f32.xlu0 %v2929
  %v3209 = vpop.xlane.xlu0 %3208
  %3210 = vadd.xlane.f32.xlu0 %v2930
  %v3211 = vpop.xlane.xlu0 %3210
  %3212 = vadd.xlane.f32.xlu0 %v2931
  %v3213 = vpop.xlane.xlu0 %3212
  %3214 = vadd.xlane.f32.xlu0 %v2932
  %v3215 = vpop.xlane.xlu0 %3214
  %3216 = vadd.xlane.f32.xlu0 %v2933
  %v3217 = vpop.xlane.xlu0 %3216
  %3218 = vadd.xlane.f32.xlu0 %v2934
  %v3219 = vpop.xlane.xlu0 %3218
  %3220 = vadd.xlane.f32.xlu0 %v2935
  %v3221 = vpop.xlane.xlu0 %3220
  %3222 = vadd.xlane.f32.xlu0 %v2936
  %v3223 = vpop.xlane.xlu0 %3222
  %3224 = vadd.xlane.f32.xlu0 %v2937
  %v3225 = vpop.xlane.xlu0 %3224
  %3226 = vadd.xlane.f32.xlu0 %v2938
  %v3227 = vpop.xlane.xlu0 %3226
  %3228 = vadd.xlane.f32.xlu0 %v2939
  %v3229 = vpop.xlane.xlu0 %3228
  %3230 = vadd.xlane.f32.xlu0 %v2940
  %v3231 = vpop.xlane.xlu0 %3230
  %3232 = vadd.xlane.f32.xlu0 %v2941
  %v3233 = vpop.xlane.xlu0 %3232
  %3234 = vadd.xlane.f32.xlu0 %v2942
  %v3235 = vpop.xlane.xlu0 %3234
  %3236 = vadd.xlane.f32.xlu0 %v2943
  %v3237 = vpop.xlane.xlu0 %3236
  %3238 = vadd.xlane.f32.xlu0 %v2944
  %v3239 = vpop.xlane.xlu0 %3238
  %3240 = vadd.xlane.f32.xlu0 %v2945
  %v3241 = vpop.xlane.xlu0 %3240
  %3242 = vadd.xlane.f32.xlu0 %v2946
  %v3243 = vpop.xlane.xlu0 %3242
  %3244 = vadd.xlane.f32.xlu0 %v2947
  %v3245 = vpop.xlane.xlu0 %3244
  %3246 = vadd.xlane.f32.xlu0 %v2948
  %v3247 = vpop.xlane.xlu0 %3246
  %3248 = vadd.xlane.f32.xlu0 %v2949
  %v3249 = vpop.xlane.xlu0 %3248
  %3250 = vadd.xlane.f32.xlu0 %v2950
  %v3251 = vpop.xlane.xlu0 %3250
  %3252 = vadd.xlane.f32.xlu0 %v2951
  %v3253 = vpop.xlane.xlu0 %3252
  %3254 = vadd.xlane.f32.xlu0 %v2952
  %v3255 = vpop.xlane.xlu0 %3254
  %3256 = vadd.xlane.f32.xlu0 %v2953
  %v3257 = vpop.xlane.xlu0 %3256
  %3258 = vadd.xlane.f32.xlu0 %v2954
  %v3259 = vpop.xlane.xlu0 %3258
  %3260 = vadd.xlane.f32.xlu0 %v2955
  %v3261 = vpop.xlane.xlu0 %3260
  %3262 = vadd.xlane.f32.xlu0 %v2956
  %v3263 = vpop.xlane.xlu0 %3262
  %3264 = vadd.xlane.f32.xlu0 %v2957
  %v3265 = vpop.xlane.xlu0 %3264
  %3266 = vadd.xlane.f32.xlu0 %v2958
  %v3267 = vpop.xlane.xlu0 %3266
  %3268 = vadd.xlane.f32.xlu0 %v2959
  %v3269 = vpop.xlane.xlu0 %3268
  %3270 = vadd.xlane.f32.xlu0 %v2960
  %v3271 = vpop.xlane.xlu0 %3270
  %3272 = vadd.xlane.f32.xlu0 %v2961
  %v3273 = vpop.xlane.xlu0 %3272
  %3274 = vadd.xlane.f32.xlu0 %v2962
  %v3275 = vpop.xlane.xlu0 %3274
  %3276 = vadd.xlane.f32.xlu0 %v2963
  %v3277 = vpop.xlane.xlu0 %3276
  %3278 = vadd.xlane.f32.xlu0 %v2964
  %v3279 = vpop.xlane.xlu0 %3278
  %3280 = vadd.xlane.f32.xlu0 %v2965
  %v3281 = vpop.xlane.xlu0 %3280
  %3282 = vadd.xlane.f32.xlu0 %v2966
  %v3283 = vpop.xlane.xlu0 %3282
  %3284 = vadd.xlane.f32.xlu0 %v2967
  %v3285 = vpop.xlane.xlu0 %3284
  %3286 = vadd.xlane.f32.xlu0 %v2968
  %v3287 = vpop.xlane.xlu0 %3286
  %3288 = vadd.xlane.f32.xlu0 %v2969
  %v3289 = vpop.xlane.xlu0 %3288
  %3290 = vadd.xlane.f32.xlu0 %v2970
  %v3291 = vpop.xlane.xlu0 %3290
  %3292 = vadd.xlane.f32.xlu0 %v2971
  %v3293 = vpop.xlane.xlu0 %3292
  %3294 = vadd.xlane.f32.xlu0 %v2972
  %v3295 = vpop.xlane.xlu0 %3294
  %3296 = vadd.xlane.f32.xlu0 %v2973
  %v3297 = vpop.xlane.xlu0 %3296
  %3298 = vadd.xlane.f32.xlu0 %v2974
  %v3299 = vpop.xlane.xlu0 %3298
  %3300 = vadd.xlane.f32.xlu0 %v2975
  %v3301 = vpop.xlane.xlu0 %3300
  %3302 = vadd.xlane.f32.xlu0 %v2976
  %v3303 = vpop.xlane.xlu0 %3302
  %3304 = vadd.xlane.f32.xlu0 %v2977
  %v3305 = vpop.xlane.xlu0 %3304
  %3306 = vadd.xlane.f32.xlu0 %v2978
  %v3307 = vpop.xlane.xlu0 %3306
  %3308 = vadd.xlane.f32.xlu0 %v2979
  %v3309 = vpop.xlane.xlu0 %3308
  %3310 = vadd.xlane.f32.xlu0 %v2980
  %v3311 = vpop.xlane.xlu0 %3310
  %3312 = vadd.xlane.f32.xlu0 %v2981
  %v3313 = vpop.xlane.xlu0 %3312
  %3314 = vadd.xlane.f32.xlu0 %v2982
  %v3315 = vpop.xlane.xlu0 %3314
  %3316 = vadd.xlane.f32.xlu0 %v2983
  %v3317 = vpop.xlane.xlu0 %3316
  %3318 = vadd.xlane.f32.xlu0 %v2984
  %v3319 = vpop.xlane.xlu0 %3318
  %3320 = vadd.xlane.f32.xlu0 %v2985
  %v3321 = vpop.xlane.xlu0 %3320
  %3322 = vadd.xlane.f32.xlu0 %v2986
  %v3323 = vpop.xlane.xlu0 %3322
  %3324 = vadd.xlane.f32.xlu0 %v2987
  %v3325 = vpop.xlane.xlu0 %3324
  %3326 = vadd.xlane.f32.xlu0 %v2988
  %v3327 = vpop.xlane.xlu0 %3326
  %3328 = vadd.xlane.f32.xlu0 %v2989
  %v3329 = vpop.xlane.xlu0 %3328
  %3330 = vadd.xlane.f32.xlu0 %v2990
  %v3331 = vpop.xlane.xlu0 %3330
  %3332 = vadd.xlane.f32.xlu0 %v2991
  %v3333 = vpop.xlane.xlu0 %3332
  %3334 = vadd.xlane.f32.xlu0 %v2992
  %v3335 = vpop.xlane.xlu0 %3334
  %3336 = vadd.xlane.f32.xlu0 %v2993
  %v3337 = vpop.xlane.xlu0 %3336
  %3338 = vadd.xlane.f32.xlu0 %v2994
  %v3339 = vpop.xlane.xlu0 %3338
  %3340 = vadd.xlane.f32.xlu0 %v2995
  %v3341 = vpop.xlane.xlu0 %3340
  %3342 = vadd.xlane.f32.xlu0 %v2996
  %v3343 = vpop.xlane.xlu0 %3342
  %3344 = vadd.xlane.f32.xlu0 %v2997
  %v3345 = vpop.xlane.xlu0 %3344
  %3346 = vadd.xlane.f32.xlu0 %v2998
  %v3347 = vpop.xlane.xlu0 %3346
  %3348 = vadd.xlane.f32.xlu0 %v2999
  %v3349 = vpop.xlane.xlu0 %3348
  %3350 = vadd.xlane.f32.xlu0 %v3000
  %v3351 = vpop.xlane.xlu0 %3350
  %3352 = vadd.xlane.f32.xlu0 %v3001
  %v3353 = vpop.xlane.xlu0 %3352
  %3354 = vadd.xlane.f32.xlu0 %v3002
  %v3355 = vpop.xlane.xlu0 %3354
  %3356 = vadd.xlane.f32.xlu0 %v3003
  %v3357 = vpop.xlane.xlu0 %3356
  %3358 = vadd.xlane.f32.xlu0 %v3004
  %v3359 = vpop.xlane.xlu0 %3358
  %3360 = vadd.xlane.f32.xlu0 %v3005
  %v3361 = vpop.xlane.xlu0 %3360
  %3362 = vadd.xlane.f32.xlu0 %v3006
  %v3363 = vpop.xlane.xlu0 %3362
  %3364 = vadd.xlane.f32.xlu0 %v3007
  %v3365 = vpop.xlane.xlu0 %3364
  %3366 = vadd.xlane.f32.xlu0 %v3008
  %v3367 = vpop.xlane.xlu0 %3366
  %3368 = vadd.xlane.f32.xlu0 %v3009
  %v3369 = vpop.xlane.xlu0 %3368
  %3370 = vadd.xlane.f32.xlu0 %v3010
  %v3371 = vpop.xlane.xlu0 %3370
  %3372 = vadd.xlane.f32.xlu0 %v3011
  %v3373 = vpop.xlane.xlu0 %3372
  %3374 = vadd.xlane.f32.xlu0 %v3012
  %v3375 = vpop.xlane.xlu0 %3374
  %3376 = vadd.xlane.f32.xlu0 %v3013
  %v3377 = vpop.xlane.xlu0 %3376
  %3378 = vadd.xlane.f32.xlu0 %v3014
  %v3379 = vpop.xlane.xlu0 %3378
  %3380 = vadd.xlane.f32.xlu0 %v3015
  %v3381 = vpop.xlane.xlu0 %3380
  %3382 = vadd.xlane.f32.xlu0 %v3016
  %v3383 = vpop.xlane.xlu0 %3382
  %3384 = vadd.xlane.f32.xlu0 %v3017
  %v3385 = vpop.xlane.xlu0 %3384
  %3386 = vadd.xlane.f32.xlu0 %v3018
  %v3387 = vpop.xlane.xlu0 %3386
  %3388 = vadd.xlane.f32.xlu0 %v3019
  %v3389 = vpop.xlane.xlu0 %3388
  %3390 = vadd.xlane.f32.xlu0 %v3020
  %v3391 = vpop.xlane.xlu0 %3390
  %3392 = vadd.xlane.f32.xlu0 %v3021
  %v3393 = vpop.xlane.xlu0 %3392
  %3394 = vadd.xlane.f32.xlu0 %v3022
  %v3395 = vpop.xlane.xlu0 %3394
  %3396 = vadd.xlane.f32.xlu0 %v3023
  %v3397 = vpop.xlane.xlu0 %3396
  %3398 = vadd.xlane.f32.xlu0 %v3024
  %v3399 = vpop.xlane.xlu0 %3398
  %3400 = vadd.xlane.f32.xlu0 %v3025
  %v3401 = vpop.xlane.xlu0 %3400
  %3402 = vadd.xlane.f32.xlu0 %v3026
  %v3403 = vpop.xlane.xlu0 %3402
  %3404 = vadd.xlane.f32.xlu0 %v3027
  %v3405 = vpop.xlane.xlu0 %3404
  %3406 = vadd.xlane.f32.xlu0 %v3028
  %v3407 = vpop.xlane.xlu0 %3406
  %3408 = vadd.xlane.f32.xlu0 %v3029
  %v3409 = vpop.xlane.xlu0 %3408
  %3410 = vadd.xlane.f32.xlu0 %v3030
  %v3411 = vpop.xlane.xlu0 %3410
  %3412 = vadd.xlane.f32.xlu0 %v3031
  %v3413 = vpop.xlane.xlu0 %3412
  %3414 = vadd.xlane.f32.xlu0 %v3032
  %v3415 = vpop.xlane.xlu0 %3414
  %3416 = vadd.xlane.f32.xlu0 %v3033
  %v3417 = vpop.xlane.xlu0 %3416
  %3418 = vadd.xlane.f32.xlu0 %v3034
  %v3419 = vpop.xlane.xlu0 %3418
  %3420 = vadd.xlane.f32.xlu0 %v3035
  %v3421 = vpop.xlane.xlu0 %3420
  %3422 = vadd.xlane.f32.xlu0 %v3036
  %v3423 = vpop.xlane.xlu0 %3422
  %3424 = vadd.xlane.f32.xlu0 %v3037
  %v3425 = vpop.xlane.xlu0 %3424
  %3426 = vadd.xlane.f32.xlu0 %v3038
  %v3427 = vpop.xlane.xlu0 %3426
  %3428 = vadd.xlane.f32.xlu0 %v3039
  %v3429 = vpop.xlane.xlu0 %3428
  %3430 = vadd.xlane.f32.xlu0 %v3040
  %v3431 = vpop.xlane.xlu0 %3430
  %3432 = vadd.xlane.f32.xlu0 %v3041
  %v3433 = vpop.xlane.xlu0 %3432
  %3434 = vadd.xlane.f32.xlu0 %v3042
  %v3435 = vpop.xlane.xlu0 %3434
  %3436 = vadd.xlane.f32.xlu0 %v3043
  %v3437 = vpop.xlane.xlu0 %3436
  %3438 = vadd.xlane.f32.xlu0 %v3044
  %v3439 = vpop.xlane.xlu0 %3438
  %3440 = vadd.xlane.f32.xlu0 %v3045
  %v3441 = vpop.xlane.xlu0 %3440
  %3442 = vadd.xlane.f32.xlu0 %v3046
  %v3443 = vpop.xlane.xlu0 %3442
  %3444 = vadd.xlane.f32.xlu0 %v3047
  %v3445 = vpop.xlane.xlu0 %3444
  %3446 = vadd.xlane.f32.xlu0 %v3048
  %v3447 = vpop.xlane.xlu0 %3446
  %3448 = vadd.xlane.f32.xlu0 %v3049
  %v3449 = vpop.xlane.xlu0 %3448
  %3450 = vadd.xlane.f32.xlu0 %v3050
  %v3451 = vpop.xlane.xlu0 %3450
  %3452 = vadd.xlane.f32.xlu0 %v3051
  %v3453 = vpop.xlane.xlu0 %3452
  %3454 = vadd.xlane.f32.xlu0 %v3052
  %v3455 = vpop.xlane.xlu0 %3454
  %3456 = vadd.xlane.f32.xlu0 %v3053
  %v3457 = vpop.xlane.xlu0 %3456
  %3458 = vadd.xlane.f32.xlu0 %v3054
  %v3459 = vpop.xlane.xlu0 %3458
  %3460 = vadd.xlane.f32.xlu0 %v3055
  %v3461 = vpop.xlane.xlu0 %3460
  %3462 = vadd.xlane.f32.xlu0 %v3056
  %v3463 = vpop.xlane.xlu0 %3462
  %3464 = vadd.xlane.f32.xlu0 %v3057
  %v3465 = vpop.xlane.xlu0 %3464
  %3466 = vadd.xlane.f32.xlu0 %v3058
  %v3467 = vpop.xlane.xlu0 %3466
  %3468 = vadd.xlane.f32.xlu0 %v3059
  %v3469 = vpop.xlane.xlu0 %3468
  %3470 = vadd.xlane.f32.xlu0 %v3060
  %v3471 = vpop.xlane.xlu0 %3470
  %3472 = vadd.xlane.f32.xlu0 %v3061
  %v3473 = vpop.xlane.xlu0 %3472
  %3474 = vadd.xlane.f32.xlu0 %v3062
  %v3475 = vpop.xlane.xlu0 %3474
  %3476 = vadd.xlane.f32.xlu0 %v3063
  %v3477 = vpop.xlane.xlu0 %3476
  %3478 = vadd.xlane.f32.xlu0 %v3064
  %v3479 = vpop.xlane.xlu0 %3478
  %3480 = vadd.xlane.f32.xlu0 %v3065
  %v3481 = vpop.xlane.xlu0 %3480
  %3482 = vadd.xlane.f32.xlu0 %v3066
  %v3483 = vpop.xlane.xlu0 %3482
  %3484 = vadd.xlane.f32.xlu0 %v3067
  %v3485 = vpop.xlane.xlu0 %3484
  %3486 = vadd.xlane.f32.xlu0 %v3068
  %v3487 = vpop.xlane.xlu0 %3486
  %3488 = vadd.xlane.f32.xlu0 %v3069
  %v3489 = vpop.xlane.xlu0 %3488
  %3490 = vadd.xlane.f32.xlu0 %v3070
  %v3491 = vpop.xlane.xlu0 %3490
  %3492 = vadd.xlane.f32.xlu0 %v3071
  %v3493 = vpop.xlane.xlu0 %3492
  %3494 = vadd.xlane.f32.xlu0 %v3072
  %v3495 = vpop.xlane.xlu0 %3494
  %3496 = vadd.xlane.f32.xlu0 %v3073
  %v3497 = vpop.xlane.xlu0 %3496
  %3498 = vadd.xlane.f32.xlu0 %v3074
  %v3499 = vpop.xlane.xlu0 %3498
  %3500 = vadd.xlane.f32.xlu0 %v3075
  %v3501 = vpop.xlane.xlu0 %3500
  %3502 = vadd.xlane.f32.xlu0 %v3076
  %v3503 = vpop.xlane.xlu0 %3502
  %3504 = vadd.xlane.f32.xlu0 %v3077
  %v3505 = vpop.xlane.xlu0 %3504
  %3506 = vadd.xlane.f32.xlu0 %v3078
  %v3507 = vpop.xlane.xlu0 %3506
  %3508 = vadd.xlane.f32.xlu0 %v3079
  %v3509 = vpop.xlane.xlu0 %3508
  %3510 = vadd.xlane.f32.xlu0 %v3080
  %v3511 = vpop.xlane.xlu0 %3510
  %3512 = vadd.xlane.f32.xlu0 %v3081
  %v3513 = vpop.xlane.xlu0 %3512
  %3514 = vadd.xlane.f32.xlu0 %v3082
  %v3515 = vpop.xlane.xlu0 %3514
  %3516 = vadd.xlane.f32.xlu0 %v3083
  %v3517 = vpop.xlane.xlu0 %3516
  %3518 = vadd.xlane.f32.xlu0 %v3084
  %v3519 = vpop.xlane.xlu0 %3518
  %3520 = vadd.xlane.f32.xlu0 %v3085
  %v3521 = vpop.xlane.xlu0 %3520
  %3522 = vadd.xlane.f32.xlu0 %v3086
  %v3523 = vpop.xlane.xlu0 %3522
  %3524 = vadd.xlane.f32.xlu0 %v3087
  %v3525 = vpop.xlane.xlu0 %3524
  %3526 = vadd.xlane.f32.xlu0 %v3088
  %v3527 = vpop.xlane.xlu0 %3526
  %3528 = vadd.xlane.f32.xlu0 %v3089
  %v3529 = vpop.xlane.xlu0 %3528
  %3530 = vadd.xlane.f32.xlu0 %v3090
  %v3531 = vpop.xlane.xlu0 %3530
  %3532 = vadd.xlane.f32.xlu0 %v3091
  %v3533 = vpop.xlane.xlu0 %3532
  %3534 = vadd.xlane.f32.xlu0 %v3092
  %v3535 = vpop.xlane.xlu0 %3534
  %3536 = vadd.xlane.f32.xlu0 %v3093
  %v3537 = vpop.xlane.xlu0 %3536
  %3538 = vadd.xlane.f32.xlu0 %v3094
  %v3539 = vpop.xlane.xlu0 %3538
  %3540 = vadd.xlane.f32.xlu0 %v3095
  %v3541 = vpop.xlane.xlu0 %3540
  %3542 = vadd.xlane.f32.xlu0 %v3096
  %v3543 = vpop.xlane.xlu0 %3542
  %3544 = vadd.xlane.f32.xlu0 %v3097
  %v3545 = vpop.xlane.xlu0 %3544
  %3546 = vadd.xlane.f32.xlu0 %v3098
  %v3547 = vpop.xlane.xlu0 %3546
  %3548 = vadd.xlane.f32.xlu0 %v3099
  %v3549 = vpop.xlane.xlu0 %3548
  %3550 = vadd.xlane.f32.xlu0 %v3100
  %v3551 = vpop.xlane.xlu0 %3550
  %3552 = vadd.xlane.f32.xlu0 %v3101
  %v3553 = vpop.xlane.xlu0 %3552
  %3554 = vadd.xlane.f32.xlu0 %v3102
  %v3555 = vpop.xlane.xlu0 %3554
  %3556 = vadd.xlane.f32.xlu0 %v3103
  %v3557 = vpop.xlane.xlu0 %3556
  %3558 = vadd.xlane.f32.xlu0 %v3104
  %v3559 = vpop.xlane.xlu0 %3558
  %3560 = vadd.xlane.f32.xlu0 %v3105
  %v3561 = vpop.xlane.xlu0 %3560
  %3562 = vadd.xlane.f32.xlu0 %v3106
  %v3563 = vpop.xlane.xlu0 %3562
  %3564 = vadd.xlane.f32.xlu0 %v3107
  %v3565 = vpop.xlane.xlu0 %3564
  %3566 = vadd.xlane.f32.xlu0 %v3108
  %v3567 = vpop.xlane.xlu0 %3566
  %3568 = vadd.xlane.f32.xlu0 %v3109
  %v3569 = vpop.xlane.xlu0 %3568
  %3570 = vadd.xlane.f32.xlu0 %v3110
  %v3571 = vpop.xlane.xlu0 %3570
  %3572 = vadd.xlane.f32.xlu0 %v3111
  %v3573 = vpop.xlane.xlu0 %3572
  %3574 = vadd.xlane.f32.xlu0 %v3112
  %v3575 = vpop.xlane.xlu0 %3574
  %3576 = vadd.xlane.f32.xlu0 %v3113
  %v3577 = vpop.xlane.xlu0 %3576
  %3578 = vadd.xlane.f32.xlu0 %v3114
  %v3579 = vpop.xlane.xlu0 %3578
  %3580 = vadd.xlane.f32.xlu0 %v3115
  %v3581 = vpop.xlane.xlu0 %3580
  %3582 = vadd.xlane.f32.xlu0 %v3116
  %v3583 = vpop.xlane.xlu0 %3582
  %3584 = vadd.xlane.f32.xlu0 %v3117
  %v3585 = vpop.xlane.xlu0 %3584
  %3586 = vadd.xlane.f32.xlu0 %v3118
  %v3587 = vpop.xlane.xlu0 %3586
  %3588 = vadd.xlane.f32.xlu0 %v3119
  %v3589 = vpop.xlane.xlu0 %3588
  %3590 = vadd.xlane.f32.xlu0 %v3120
  %v3591 = vpop.xlane.xlu0 %3590
  %3592 = vadd.xlane.f32.xlu0 %v3121
  %v3593 = vpop.xlane.xlu0 %3592
  %3594 = vadd.xlane.f32.xlu0 %v3122
  %v3595 = vpop.xlane.xlu0 %3594
  %3596 = vadd.xlane.f32.xlu0 %v3123
  %v3597 = vpop.xlane.xlu0 %3596
  %3598 = vadd.xlane.f32.xlu0 %v3124
  %v3599 = vpop.xlane.xlu0 %3598
  %3600 = vadd.xlane.f32.xlu0 %v3125
  %v3601 = vpop.xlane.xlu0 %3600
  %3602 = vadd.xlane.f32.xlu0 %v3126
  %v3603 = vpop.xlane.xlu0 %3602
  %3604 = vadd.xlane.f32.xlu0 %v3127
  %v3605 = vpop.xlane.xlu0 %3604
  %3606 = vadd.xlane.f32.xlu0 %v3128
  %v3607 = vpop.xlane.xlu0 %3606
  %3608 = vadd.xlane.f32.xlu0 %v3129
  %v3609 = vpop.xlane.xlu0 %3608
  %3610 = vadd.xlane.f32.xlu0 %v3130
  %v3611 = vpop.xlane.xlu0 %3610
  %3612 = vadd.xlane.f32.xlu0 %v3131
  %v3613 = vpop.xlane.xlu0 %3612
  %3614 = vadd.xlane.f32.xlu0 %v3132
  %v3615 = vpop.xlane.xlu0 %3614
  %3616 = vadd.xlane.f32.xlu0 %v3133
  %v3617 = vpop.xlane.xlu0 %3616
  %3618 = vadd.xlane.f32.xlu0 %v3134
  %v3619 = vpop.xlane.xlu0 %3618
  %3620 = vadd.xlane.f32.xlu0 %v3135
  %v3621 = vpop.xlane.xlu0 %3620
  %3622 = vadd.xlane.f32.xlu0 %v3136
  %v3623 = vpop.xlane.xlu0 %3622
  %3624 = vadd.xlane.f32.xlu0 %v3137
  %v3625 = vpop.xlane.xlu0 %3624
  %3626 = vadd.xlane.f32.xlu0 %v3138
  %v3627 = vpop.xlane.xlu0 %3626
  %3628 = vadd.xlane.f32.xlu0 %v3139
  %v3629 = vpop.xlane.xlu0 %3628
  %3630 = vadd.xlane.f32.xlu0 %v3140
  %v3631 = vpop.xlane.xlu0 %3630
  %3632 = vadd.xlane.f32.xlu0 %v3141
  %v3633 = vpop.xlane.xlu0 %3632
  %3634 = vadd.xlane.f32.xlu0 %v3142
  %v3635 = vpop.xlane.xlu0 %3634
  %3636 = vadd.xlane.f32.xlu0 %v3143
  %v3637 = vpop.xlane.xlu0 %3636
  %3638 = vadd.xlane.f32.xlu0 %v3144
  %v3639 = vpop.xlane.xlu0 %3638
  %3640 = vadd.xlane.f32.xlu0 %v3145
  %v3641 = vpop.xlane.xlu0 %3640
  %3642 = vadd.xlane.f32.xlu0 %v3146
  %v3643 = vpop.xlane.xlu0 %3642
  %3644 = vadd.xlane.f32.xlu0 %v3147
  %v3645 = vpop.xlane.xlu0 %3644
  %3646 = vadd.xlane.f32.xlu0 %v3148
  %v3647 = vpop.xlane.xlu0 %3646
  %3648 = vadd.xlane.f32.xlu0 %v3149
  %v3649 = vpop.xlane.xlu0 %3648
  %3650 = vadd.xlane.f32.xlu0 %v3150
  %v3651 = vpop.xlane.xlu0 %3650
  %3652 = vadd.xlane.f32.xlu0 %v3151
  %v3653 = vpop.xlane.xlu0 %3652
  %3654 = vadd.xlane.f32.xlu0 %v3152
  %v3655 = vpop.xlane.xlu0 %3654
  %3656 = vadd.xlane.f32.xlu0 %v3153
  %v3657 = vpop.xlane.xlu0 %3656
  %3658 = vadd.xlane.f32.xlu0 %v3154
  %v3659 = vpop.xlane.xlu0 %3658
  %3660 = vadd.xlane.f32.xlu0 %v3155
  %v3661 = vpop.xlane.xlu0 %3660
  %3662 = vadd.xlane.f32.xlu0 %v3156
  %v3663 = vpop.xlane.xlu0 %3662
  %3664 = vadd.xlane.f32.xlu0 %v3157
  %v3665 = vpop.xlane.xlu0 %3664
  %3666 = vadd.xlane.f32.xlu0 %v3158
  %v3667 = vpop.xlane.xlu0 %3666
  %3668 = vadd.xlane.f32.xlu0 %v3159
  %v3669 = vpop.xlane.xlu0 %3668
  %3670 = vadd.xlane.f32.xlu0 %v3160
  %v3671 = vpop.xlane.xlu0 %3670
  %3672 = vadd.xlane.f32.xlu0 %v3161
  %v3673 = vpop.xlane.xlu0 %3672
  %s3674 = sld [smem:[#allocation7]]
  %v3675 = vstv %s3674
  %v3676 = vadd.f32 %v3163, %v3675
  %v3677 = vadd.f32 %v3165, %v3675
  %v3678 = vadd.f32 %v3167, %v3675
  %v3679 = vadd.f32 %v3169, %v3675
  %v3680 = vadd.f32 %v3171, %v3675
  %v3681 = vadd.f32 %v3173, %v3675
  %v3682 = vadd.f32 %v3175, %v3675
  %v3683 = vadd.f32 %v3177, %v3675
  %v3684 = vadd.f32 %v3179, %v3675
  %v3685 = vadd.f32 %v3181, %v3675
  %v3686 = vadd.f32 %v3183, %v3675
  %v3687 = vadd.f32 %v3185, %v3675
  %v3688 = vadd.f32 %v3187, %v3675
  %v3689 = vadd.f32 %v3189, %v3675
  %v3690 = vadd.f32 %v3191, %v3675
  %v3691 = vadd.f32 %v3193, %v3675
  %v3692 = vadd.f32 %v3195, %v3675
  %v3693 = vadd.f32 %v3197, %v3675
  %v3694 = vadd.f32 %v3199, %v3675
  %v3695 = vadd.f32 %v3201, %v3675
  %v3696 = vadd.f32 %v3203, %v3675
  %v3697 = vadd.f32 %v3205, %v3675
  %v3698 = vadd.f32 %v3207, %v3675
  %v3699 = vadd.f32 %v3209, %v3675
  %v3700 = vadd.f32 %v3211, %v3675
  %v3701 = vadd.f32 %v3213, %v3675
  %v3702 = vadd.f32 %v3215, %v3675
  %v3703 = vadd.f32 %v3217, %v3675
  %v3704 = vadd.f32 %v3219, %v3675
  %v3705 = vadd.f32 %v3221, %v3675
  %v3706 = vadd.f32 %v3223, %v3675
  %v3707 = vadd.f32 %v3225, %v3675
  %v3708 = vadd.f32 %v3227, %v3675
  %v3709 = vadd.f32 %v3229, %v3675
  %v3710 = vadd.f32 %v3231, %v3675
  %v3711 = vadd.f32 %v3233, %v3675
  %v3712 = vadd.f32 %v3235, %v3675
  %v3713 = vadd.f32 %v3237, %v3675
  %v3714 = vadd.f32 %v3239, %v3675
  %v3715 = vadd.f32 %v3241, %v3675
  %v3716 = vadd.f32 %v3243, %v3675
  %v3717 = vadd.f32 %v3245, %v3675
  %v3718 = vadd.f32 %v3247, %v3675
  %v3719 = vadd.f32 %v3249, %v3675
  %v3720 = vadd.f32 %v3251, %v3675
  %v3721 = vadd.f32 %v3253, %v3675
  %v3722 = vadd.f32 %v3255, %v3675
  %v3723 = vadd.f32 %v3257, %v3675
  %v3724 = vadd.f32 %v3259, %v3675
  %v3725 = vadd.f32 %v3261, %v3675
  %v3726 = vadd.f32 %v3263, %v3675
  %v3727 = vadd.f32 %v3265, %v3675
  %v3728 = vadd.f32 %v3267, %v3675
  %v3729 = vadd.f32 %v3269, %v3675
  %v3730 = vadd.f32 %v3271, %v3675
  %v3731 = vadd.f32 %v3273, %v3675
  %v3732 = vadd.f32 %v3275, %v3675
  %v3733 = vadd.f32 %v3277, %v3675
  %v3734 = vadd.f32 %v3279, %v3675
  %v3735 = vadd.f32 %v3281, %v3675
  %v3736 = vadd.f32 %v3283, %v3675
  %v3737 = vadd.f32 %v3285, %v3675
  %v3738 = vadd.f32 %v3287, %v3675
  %v3739 = vadd.f32 %v3289, %v3675
  %v3740 = vadd.f32 %v3291, %v3675
  %v3741 = vadd.f32 %v3293, %v3675
  %v3742 = vadd.f32 %v3295, %v3675
  %v3743 = vadd.f32 %v3297, %v3675
  %v3744 = vadd.f32 %v3299, %v3675
  %v3745 = vadd.f32 %v3301, %v3675
  %v3746 = vadd.f32 %v3303, %v3675
  %v3747 = vadd.f32 %v3305, %v3675
  %v3748 = vadd.f32 %v3307, %v3675
  %v3749 = vadd.f32 %v3309, %v3675
  %v3750 = vadd.f32 %v3311, %v3675
  %v3751 = vadd.f32 %v3313, %v3675
  %v3752 = vadd.f32 %v3315, %v3675
  %v3753 = vadd.f32 %v3317, %v3675
  %v3754 = vadd.f32 %v3319, %v3675
  %v3755 = vadd.f32 %v3321, %v3675
  %v3756 = vadd.f32 %v3323, %v3675
  %v3757 = vadd.f32 %v3325, %v3675
  %v3758 = vadd.f32 %v3327, %v3675
  %v3759 = vadd.f32 %v3329, %v3675
  %v3760 = vadd.f32 %v3331, %v3675
  %v3761 = vadd.f32 %v3333, %v3675
  %v3762 = vadd.f32 %v3335, %v3675
  %v3763 = vadd.f32 %v3337, %v3675
  %v3764 = vadd.f32 %v3339, %v3675
  %v3765 = vadd.f32 %v3341, %v3675
  %v3766 = vadd.f32 %v3343, %v3675
  %v3767 = vadd.f32 %v3345, %v3675
  %v3768 = vadd.f32 %v3347, %v3675
  %v3769 = vadd.f32 %v3349, %v3675
  %v3770 = vadd.f32 %v3351, %v3675
  %v3771 = vadd.f32 %v3353, %v3675
  %v3772 = vadd.f32 %v3355, %v3675
  %v3773 = vadd.f32 %v3357, %v3675
  %v3774 = vadd.f32 %v3359, %v3675
  %v3775 = vadd.f32 %v3361, %v3675
  %v3776 = vadd.f32 %v3363, %v3675
  %v3777 = vadd.f32 %v3365, %v3675
  %v3778 = vadd.f32 %v3367, %v3675
  %v3779 = vadd.f32 %v3369, %v3675
  %v3780 = vadd.f32 %v3371, %v3675
  %v3781 = vadd.f32 %v3373, %v3675
  %v3782 = vadd.f32 %v3375, %v3675
  %v3783 = vadd.f32 %v3377, %v3675
  %v3784 = vadd.f32 %v3379, %v3675
  %v3785 = vadd.f32 %v3381, %v3675
  %v3786 = vadd.f32 %v3383, %v3675
  %v3787 = vadd.f32 %v3385, %v3675
  %v3788 = vadd.f32 %v3387, %v3675
  %v3789 = vadd.f32 %v3389, %v3675
  %v3790 = vadd.f32 %v3391, %v3675
  %v3791 = vadd.f32 %v3393, %v3675
  %v3792 = vadd.f32 %v3395, %v3675
  %v3793 = vadd.f32 %v3397, %v3675
  %v3794 = vadd.f32 %v3399, %v3675
  %v3795 = vadd.f32 %v3401, %v3675
  %v3796 = vadd.f32 %v3403, %v3675
  %v3797 = vadd.f32 %v3405, %v3675
  %v3798 = vadd.f32 %v3407, %v3675
  %v3799 = vadd.f32 %v3409, %v3675
  %v3800 = vadd.f32 %v3411, %v3675
  %v3801 = vadd.f32 %v3413, %v3675
  %v3802 = vadd.f32 %v3415, %v3675
  %v3803 = vadd.f32 %v3417, %v3675
  %v3804 = vadd.f32 %v3419, %v3675
  %v3805 = vadd.f32 %v3421, %v3675
  %v3806 = vadd.f32 %v3423, %v3675
  %v3807 = vadd.f32 %v3425, %v3675
  %v3808 = vadd.f32 %v3427, %v3675
  %v3809 = vadd.f32 %v3429, %v3675
  %v3810 = vadd.f32 %v3431, %v3675
  %v3811 = vadd.f32 %v3433, %v3675
  %v3812 = vadd.f32 %v3435, %v3675
  %v3813 = vadd.f32 %v3437, %v3675
  %v3814 = vadd.f32 %v3439, %v3675
  %v3815 = vadd.f32 %v3441, %v3675
  %v3816 = vadd.f32 %v3443, %v3675
  %v3817 = vadd.f32 %v3445, %v3675
  %v3818 = vadd.f32 %v3447, %v3675
  %v3819 = vadd.f32 %v3449, %v3675
  %v3820 = vadd.f32 %v3451, %v3675
  %v3821 = vadd.f32 %v3453, %v3675
  %v3822 = vadd.f32 %v3455, %v3675
  %v3823 = vadd.f32 %v3457, %v3675
  %v3824 = vadd.f32 %v3459, %v3675
  %v3825 = vadd.f32 %v3461, %v3675
  %v3826 = vadd.f32 %v3463, %v3675
  %v3827 = vadd.f32 %v3465, %v3675
  %v3828 = vadd.f32 %v3467, %v3675
  %v3829 = vadd.f32 %v3469, %v3675
  %v3830 = vadd.f32 %v3471, %v3675
  %v3831 = vadd.f32 %v3473, %v3675
  %v3832 = vadd.f32 %v3475, %v3675
  %v3833 = vadd.f32 %v3477, %v3675
  %v3834 = vadd.f32 %v3479, %v3675
  %v3835 = vadd.f32 %v3481, %v3675
  %v3836 = vadd.f32 %v3483, %v3675
  %v3837 = vadd.f32 %v3485, %v3675
  %v3838 = vadd.f32 %v3487, %v3675
  %v3839 = vadd.f32 %v3489, %v3675
  %v3840 = vadd.f32 %v3491, %v3675
  %v3841 = vadd.f32 %v3493, %v3675
  %v3842 = vadd.f32 %v3495, %v3675
  %v3843 = vadd.f32 %v3497, %v3675
  %v3844 = vadd.f32 %v3499, %v3675
  %v3845 = vadd.f32 %v3501, %v3675
  %v3846 = vadd.f32 %v3503, %v3675
  %v3847 = vadd.f32 %v3505, %v3675
  %v3848 = vadd.f32 %v3507, %v3675
  %v3849 = vadd.f32 %v3509, %v3675
  %v3850 = vadd.f32 %v3511, %v3675
  %v3851 = vadd.f32 %v3513, %v3675
  %v3852 = vadd.f32 %v3515, %v3675
  %v3853 = vadd.f32 %v3517, %v3675
  %v3854 = vadd.f32 %v3519, %v3675
  %v3855 = vadd.f32 %v3521, %v3675
  %v3856 = vadd.f32 %v3523, %v3675
  %v3857 = vadd.f32 %v3525, %v3675
  %v3858 = vadd.f32 %v3527, %v3675
  %v3859 = vadd.f32 %v3529, %v3675
  %v3860 = vadd.f32 %v3531, %v3675
  %v3861 = vadd.f32 %v3533, %v3675
  %v3862 = vadd.f32 %v3535, %v3675
  %v3863 = vadd.f32 %v3537, %v3675
  %v3864 = vadd.f32 %v3539, %v3675
  %v3865 = vadd.f32 %v3541, %v3675
  %v3866 = vadd.f32 %v3543, %v3675
  %v3867 = vadd.f32 %v3545, %v3675
  %v3868 = vadd.f32 %v3547, %v3675
  %v3869 = vadd.f32 %v3549, %v3675
  %v3870 = vadd.f32 %v3551, %v3675
  %v3871 = vadd.f32 %v3553, %v3675
  %v3872 = vadd.f32 %v3555, %v3675
  %v3873 = vadd.f32 %v3557, %v3675
  %v3874 = vadd.f32 %v3559, %v3675
  %v3875 = vadd.f32 %v3561, %v3675
  %v3876 = vadd.f32 %v3563, %v3675
  %v3877 = vadd.f32 %v3565, %v3675
  %v3878 = vadd.f32 %v3567, %v3675
  %v3879 = vadd.f32 %v3569, %v3675
  %v3880 = vadd.f32 %v3571, %v3675
  %v3881 = vadd.f32 %v3573, %v3675
  %v3882 = vadd.f32 %v3575, %v3675
  %v3883 = vadd.f32 %v3577, %v3675
  %v3884 = vadd.f32 %v3579, %v3675
  %v3885 = vadd.f32 %v3581, %v3675
  %v3886 = vadd.f32 %v3583, %v3675
  %v3887 = vadd.f32 %v3585, %v3675
  %v3888 = vadd.f32 %v3587, %v3675
  %v3889 = vadd.f32 %v3589, %v3675
  %v3890 = vadd.f32 %v3591, %v3675
  %v3891 = vadd.f32 %v3593, %v3675
  %v3892 = vadd.f32 %v3595, %v3675
  %v3893 = vadd.f32 %v3597, %v3675
  %v3894 = vadd.f32 %v3599, %v3675
  %v3895 = vadd.f32 %v3601, %v3675
  %v3896 = vadd.f32 %v3603, %v3675
  %v3897 = vadd.f32 %v3605, %v3675
  %v3898 = vadd.f32 %v3607, %v3675
  %v3899 = vadd.f32 %v3609, %v3675
  %v3900 = vadd.f32 %v3611, %v3675
  %v3901 = vadd.f32 %v3613, %v3675
  %v3902 = vadd.f32 %v3615, %v3675
  %v3903 = vadd.f32 %v3617, %v3675
  %v3904 = vadd.f32 %v3619, %v3675
  %v3905 = vadd.f32 %v3621, %v3675
  %v3906 = vadd.f32 %v3623, %v3675
  %v3907 = vadd.f32 %v3625, %v3675
  %v3908 = vadd.f32 %v3627, %v3675
  %v3909 = vadd.f32 %v3629, %v3675
  %v3910 = vadd.f32 %v3631, %v3675
  %v3911 = vadd.f32 %v3633, %v3675
  %v3912 = vadd.f32 %v3635, %v3675
  %v3913 = vadd.f32 %v3637, %v3675
  %v3914 = vadd.f32 %v3639, %v3675
  %v3915 = vadd.f32 %v3641, %v3675
  %v3916 = vadd.f32 %v3643, %v3675
  %v3917 = vadd.f32 %v3645, %v3675
  %v3918 = vadd.f32 %v3647, %v3675
  %v3919 = vadd.f32 %v3649, %v3675
  %v3920 = vadd.f32 %v3651, %v3675
  %v3921 = vadd.f32 %v3653, %v3675
  %v3922 = vadd.f32 %v3655, %v3675
  %v3923 = vadd.f32 %v3657, %v3675
  %v3924 = vadd.f32 %v3659, %v3675
  %v3925 = vadd.f32 %v3661, %v3675
  %v3926 = vadd.f32 %v3663, %v3675
  %v3927 = vadd.f32 %v3665, %v3675
  %v3928 = vadd.f32 %v3667, %v3675
  %v3929 = vadd.f32 %v3669, %v3675
  %v3930 = vadd.f32 %v3671, %v3675
  %v3931 = vadd.f32 %v3673, %v3675
  %s3932 = smul.u32 0, 256
  %v4189 = vlaneseq
  %v4190 = vand.u32 %v4189, 127
  %v4191 = vlaneseq
  %v4192 = vshrl.u32 %v4191, 7
  %v4193 = vsub.s32 %v4190, %v4192
  %v4194 = vrot.slane %v3676, %v4193
  %v4195 = vadd.s32 %v4190, 4294967288
  %v4196 = vlaneseq
  %v4197 = vshrl.u32 %v4196, 7
  %v4198 = vsub.s32 %v4195, %v4197
  %v4199 = vrot.slane %v3677, %v4198
  %vm4200 = vcmask 130112
  %v4201 = vsel %vm4200, %v4199, %v4194
  %v4202 = vadd.s32 %v4190, 4294967280
  %v4203 = vlaneseq
  %v4204 = vshrl.u32 %v4203, 7
  %v4205 = vsub.s32 %v4202, %v4204
  %v4206 = vrot.slane %v3678, %v4205
  %vm4207 = vcmask 195712
  %v4208 = vsel %vm4207, %v4206, %v4201
  %v4209 = vadd.s32 %v4190, 4294967272
  %v4210 = vlaneseq
  %v4211 = vshrl.u32 %v4210, 7
  %v4212 = vsub.s32 %v4209, %v4211
  %v4213 = vrot.slane %v3679, %v4212
  %vm4214 = vcmask 261312
  %v4215 = vsel %vm4214, %v4213, %v4208
  %v4216 = vadd.s32 %v4190, 4294967264
  %v4217 = vlaneseq
  %v4218 = vshrl.u32 %v4217, 7
  %v4219 = vsub.s32 %v4216, %v4218
  %v4220 = vrot.slane %v3680, %v4219
  %vm4221 = vcmask 326912
  %v4222 = vsel %vm4221, %v4220, %v4215
  %v4223 = vadd.s32 %v4190, 4294967256
  %v4224 = vlaneseq
  %v4225 = vshrl.u32 %v4224, 7
  %v4226 = vsub.s32 %v4223, %v4225
  %v4227 = vrot.slane %v3681, %v4226
  %vm4228 = vcmask 392512
  %v4229 = vsel %vm4228, %v4227, %v4222
  %v4230 = vadd.s32 %v4190, 4294967248
  %v4231 = vlaneseq
  %v4232 = vshrl.u32 %v4231, 7
  %v4233 = vsub.s32 %v4230, %v4232
  %v4234 = vrot.slane %v3682, %v4233
  %vm4235 = vcmask 458112
  %v4236 = vsel %vm4235, %v4234, %v4229
  %v4237 = vadd.s32 %v4190, 4294967240
  %v4238 = vlaneseq
  %v4239 = vshrl.u32 %v4238, 7
  %v4240 = vsub.s32 %v4237, %v4239
  %v4241 = vrot.slane %v3683, %v4240
  %vm4242 = vcmask 523712
  %v4243 = vsel %vm4242, %v4241, %v4236
  %v4244 = vadd.s32 %v4190, 4294967232
  %v4245 = vlaneseq
  %v4246 = vshrl.u32 %v4245, 7
  %v4247 = vsub.s32 %v4244, %v4246
  %v4248 = vrot.slane %v3684, %v4247
  %vm4249 = vcmask 589312
  %v4250 = vsel %vm4249, %v4248, %v4243
  %v4251 = vadd.s32 %v4190, 4294967224
  %v4252 = vlaneseq
  %v4253 = vshrl.u32 %v4252, 7
  %v4254 = vsub.s32 %v4251, %v4253
  %v4255 = vrot.slane %v3685, %v4254
  %vm4256 = vcmask 654912
  %v4257 = vsel %vm4256, %v4255, %v4250
  %v4258 = vadd.s32 %v4190, 4294967216
  %v4259 = vlaneseq
  %v4260 = vshrl.u32 %v4259, 7
  %v4261 = vsub.s32 %v4258, %v4260
  %v4262 = vrot.slane %v3686, %v4261
  %vm4263 = vcmask 720512
  %v4264 = vsel %vm4263, %v4262, %v4257
  %v4265 = vadd.s32 %v4190, 4294967208
  %v4266 = vlaneseq
  %v4267 = vshrl.u32 %v4266, 7
  %v4268 = vsub.s32 %v4265, %v4267
  %v4269 = vrot.slane %v3687, %v4268
  %vm4270 = vcmask 786112
  %v4271 = vsel %vm4270, %v4269, %v4264
  %v4272 = vadd.s32 %v4190, 4294967200
  %v4273 = vlaneseq
  %v4274 = vshrl.u32 %v4273, 7
  %v4275 = vsub.s32 %v4272, %v4274
  %v4276 = vrot.slane %v3688, %v4275
  %vm4277 = vcmask 851712
  %v4278 = vsel %vm4277, %v4276, %v4271
  %v4279 = vadd.s32 %v4190, 4294967192
  %v4280 = vlaneseq
  %v4281 = vshrl.u32 %v4280, 7
  %v4282 = vsub.s32 %v4279, %v4281
  %v4283 = vrot.slane %v3689, %v4282
  %vm4284 = vcmask 917312
  %v4285 = vsel %vm4284, %v4283, %v4278
  %v4286 = vadd.s32 %v4190, 4294967184
  %v4287 = vlaneseq
  %v4288 = vshrl.u32 %v4287, 7
  %v4289 = vsub.s32 %v4286, %v4288
  %v4290 = vrot.slane %v3690, %v4289
  %vm4291 = vcmask 982912
  %v4292 = vsel %vm4291, %v4290, %v4285
  %v4293 = vadd.s32 %v4190, 4294967176
  %v4294 = vlaneseq
  %v4295 = vshrl.u32 %v4294, 7
  %v4296 = vsub.s32 %v4293, %v4295
  %v4297 = vrot.slane %v3691, %v4296
  %vm4298 = vcmask 1048512
  %v4299 = vsel %vm4298, %v4297, %v4292
  %v4300 = vlaneseq
  %v4301 = vshrl.u32 %v4300, 7
  %v4302 = vsub.s32 %v4190, %v4301
  %v4303 = vrot.slane %v3692, %v4302
  %v4304 = vlaneseq
  %v4305 = vshrl.u32 %v4304, 7
  %v4306 = vsub.s32 %v4195, %v4305
  %v4307 = vrot.slane %v3693, %v4306
  %v4308 = vsel %vm4200, %v4307, %v4303
  %v4309 = vlaneseq
  %v4310 = vshrl.u32 %v4309, 7
  %v4311 = vsub.s32 %v4202, %v4310
  %v4312 = vrot.slane %v3694, %v4311
  %v4313 = vsel %vm4207, %v4312, %v4308
  %v4314 = vlaneseq
  %v4315 = vshrl.u32 %v4314, 7
  %v4316 = vsub.s32 %v4209, %v4315
  %v4317 = vrot.slane %v3695, %v4316
  %v4318 = vsel %vm4214, %v4317, %v4313
  %v4319 = vlaneseq
  %v4320 = vshrl.u32 %v4319, 7
  %v4321 = vsub.s32 %v4216, %v4320
  %v4322 = vrot.slane %v3696, %v4321
  %v4323 = vsel %vm4221, %v4322, %v4318
  %v4324 = vlaneseq
  %v4325 = vshrl.u32 %v4324, 7
  %v4326 = vsub.s32 %v4223, %v4325
  %v4327 = vrot.slane %v3697, %v4326
  %v4328 = vsel %vm4228, %v4327, %v4323
  %v4329 = vlaneseq
  %v4330 = vshrl.u32 %v4329, 7
  %v4331 = vsub.s32 %v4230, %v4330
  %v4332 = vrot.slane %v3698, %v4331
  %v4333 = vsel %vm4235, %v4332, %v4328
  %v4334 = vlaneseq
  %v4335 = vshrl.u32 %v4334, 7
  %v4336 = vsub.s32 %v4237, %v4335
  %v4337 = vrot.slane %v3699, %v4336
  %v4338 = vsel %vm4242, %v4337, %v4333
  %v4339 = vlaneseq
  %v4340 = vshrl.u32 %v4339, 7
  %v4341 = vsub.s32 %v4244, %v4340
  %v4342 = vrot.slane %v3700, %v4341
  %v4343 = vsel %vm4249, %v4342, %v4338
  %v4344 = vlaneseq
  %v4345 = vshrl.u32 %v4344, 7
  %v4346 = vsub.s32 %v4251, %v4345
  %v4347 = vrot.slane %v3701, %v4346
  %v4348 = vsel %vm4256, %v4347, %v4343
  %v4349 = vlaneseq
  %v4350 = vshrl.u32 %v4349, 7
  %v4351 = vsub.s32 %v4258, %v4350
  %v4352 = vrot.slane %v3702, %v4351
  %v4353 = vsel %vm4263, %v4352, %v4348
  %v4354 = vlaneseq
  %v4355 = vshrl.u32 %v4354, 7
  %v4356 = vsub.s32 %v4265, %v4355
  %v4357 = vrot.slane %v3703, %v4356
  %v4358 = vsel %vm4270, %v4357, %v4353
  %v4359 = vlaneseq
  %v4360 = vshrl.u32 %v4359, 7
  %v4361 = vsub.s32 %v4272, %v4360
  %v4362 = vrot.slane %v3704, %v4361
  %v4363 = vsel %vm4277, %v4362, %v4358
  %v4364 = vlaneseq
  %v4365 = vshrl.u32 %v4364, 7
  %v4366 = vsub.s32 %v4279, %v4365
  %v4367 = vrot.slane %v3705, %v4366
  %v4368 = vsel %vm4284, %v4367, %v4363
  %v4369 = vlaneseq
  %v4370 = vshrl.u32 %v4369, 7
  %v4371 = vsub.s32 %v4286, %v4370
  %v4372 = vrot.slane %v3706, %v4371
  %v4373 = vsel %vm4291, %v4372, %v4368
  %v4374 = vlaneseq
  %v4375 = vshrl.u32 %v4374, 7
  %v4376 = vsub.s32 %v4293, %v4375
  %v4377 = vrot.slane %v3707, %v4376
  %v4378 = vsel %vm4298, %v4377, %v4373
  %v4379 = vlaneseq
  %v4380 = vshrl.u32 %v4379, 7
  %v4381 = vsub.s32 %v4190, %v4380
  %v4382 = vrot.slane %v3708, %v4381
  %v4383 = vlaneseq
  %v4384 = vshrl.u32 %v4383, 7
  %v4385 = vsub.s32 %v4195, %v4384
  %v4386 = vrot.slane %v3709, %v4385
  %v4387 = vsel %vm4200, %v4386, %v4382
  %v4388 = vlaneseq
  %v4389 = vshrl.u32 %v4388, 7
  %v4390 = vsub.s32 %v4202, %v4389
  %v4391 = vrot.slane %v3710, %v4390
  %v4392 = vsel %vm4207, %v4391, %v4387
  %v4393 = vlaneseq
  %v4394 = vshrl.u32 %v4393, 7
  %v4395 = vsub.s32 %v4209, %v4394
  %v4396 = vrot.slane %v3711, %v4395
  %v4397 = vsel %vm4214, %v4396, %v4392
  %v4398 = vlaneseq
  %v4399 = vshrl.u32 %v4398, 7
  %v4400 = vsub.s32 %v4216, %v4399
  %v4401 = vrot.slane %v3712, %v4400
  %v4402 = vsel %vm4221, %v4401, %v4397
  %v4403 = vlaneseq
  %v4404 = vshrl.u32 %v4403, 7
  %v4405 = vsub.s32 %v4223, %v4404
  %v4406 = vrot.slane %v3713, %v4405
  %v4407 = vsel %vm4228, %v4406, %v4402
  %v4408 = vlaneseq
  %v4409 = vshrl.u32 %v4408, 7
  %v4410 = vsub.s32 %v4230, %v4409
  %v4411 = vrot.slane %v3714, %v4410
  %v4412 = vsel %vm4235, %v4411, %v4407
  %v4413 = vlaneseq
  %v4414 = vshrl.u32 %v4413, 7
  %v4415 = vsub.s32 %v4237, %v4414
  %v4416 = vrot.slane %v3715, %v4415
  %v4417 = vsel %vm4242, %v4416, %v4412
  %v4418 = vlaneseq
  %v4419 = vshrl.u32 %v4418, 7
  %v4420 = vsub.s32 %v4244, %v4419
  %v4421 = vrot.slane %v3716, %v4420
  %v4422 = vsel %vm4249, %v4421, %v4417
  %v4423 = vlaneseq
  %v4424 = vshrl.u32 %v4423, 7
  %v4425 = vsub.s32 %v4251, %v4424
  %v4426 = vrot.slane %v3717, %v4425
  %v4427 = vsel %vm4256, %v4426, %v4422
  %v4428 = vlaneseq
  %v4429 = vshrl.u32 %v4428, 7
  %v4430 = vsub.s32 %v4258, %v4429
  %v4431 = vrot.slane %v3718, %v4430
  %v4432 = vsel %vm4263, %v4431, %v4427
  %v4433 = vlaneseq
  %v4434 = vshrl.u32 %v4433, 7
  %v4435 = vsub.s32 %v4265, %v4434
  %v4436 = vrot.slane %v3719, %v4435
  %v4437 = vsel %vm4270, %v4436, %v4432
  %v4438 = vlaneseq
  %v4439 = vshrl.u32 %v4438, 7
  %v4440 = vsub.s32 %v4272, %v4439
  %v4441 = vrot.slane %v3720, %v4440
  %v4442 = vsel %vm4277, %v4441, %v4437
  %v4443 = vlaneseq
  %v4444 = vshrl.u32 %v4443, 7
  %v4445 = vsub.s32 %v4279, %v4444
  %v4446 = vrot.slane %v3721, %v4445
  %v4447 = vsel %vm4284, %v4446, %v4442
  %v4448 = vlaneseq
  %v4449 = vshrl.u32 %v4448, 7
  %v4450 = vsub.s32 %v4286, %v4449
  %v4451 = vrot.slane %v3722, %v4450
  %v4452 = vsel %vm4291, %v4451, %v4447
  %v4453 = vlaneseq
  %v4454 = vshrl.u32 %v4453, 7
  %v4455 = vsub.s32 %v4293, %v4454
  %v4456 = vrot.slane %v3723, %v4455
  %v4457 = vsel %vm4298, %v4456, %v4452
  %v4458 = vlaneseq
  %v4459 = vshrl.u32 %v4458, 7
  %v4460 = vsub.s32 %v4190, %v4459
  %v4461 = vrot.slane %v3724, %v4460
  %v4462 = vlaneseq
  %v4463 = vshrl.u32 %v4462, 7
  %v4464 = vsub.s32 %v4195, %v4463
  %v4465 = vrot.slane %v3725, %v4464
  %v4466 = vsel %vm4200, %v4465, %v4461
  %v4467 = vlaneseq
  %v4468 = vshrl.u32 %v4467, 7
  %v4469 = vsub.s32 %v4202, %v4468
  %v4470 = vrot.slane %v3726, %v4469
  %v4471 = vsel %vm4207, %v4470, %v4466
  %v4472 = vlaneseq
  %v4473 = vshrl.u32 %v4472, 7
  %v4474 = vsub.s32 %v4209, %v4473
  %v4475 = vrot.slane %v3727, %v4474
  %v4476 = vsel %vm4214, %v4475, %v4471
  %v4477 = vlaneseq
  %v4478 = vshrl.u32 %v4477, 7
  %v4479 = vsub.s32 %v4216, %v4478
  %v4480 = vrot.slane %v3728, %v4479
  %v4481 = vsel %vm4221, %v4480, %v4476
  %v4482 = vlaneseq
  %v4483 = vshrl.u32 %v4482, 7
  %v4484 = vsub.s32 %v4223, %v4483
  %v4485 = vrot.slane %v3729, %v4484
  %v4486 = vsel %vm4228, %v4485, %v4481
  %v4487 = vlaneseq
  %v4488 = vshrl.u32 %v4487, 7
  %v4489 = vsub.s32 %v4230, %v4488
  %v4490 = vrot.slane %v3730, %v4489
  %v4491 = vsel %vm4235, %v4490, %v4486
  %v4492 = vlaneseq
  %v4493 = vshrl.u32 %v4492, 7
  %v4494 = vsub.s32 %v4237, %v4493
  %v4495 = vrot.slane %v3731, %v4494
  %v4496 = vsel %vm4242, %v4495, %v4491
  %v4497 = vlaneseq
  %v4498 = vshrl.u32 %v4497, 7
  %v4499 = vsub.s32 %v4244, %v4498
  %v4500 = vrot.slane %v3732, %v4499
  %v4501 = vsel %vm4249, %v4500, %v4496
  %v4502 = vlaneseq
  %v4503 = vshrl.u32 %v4502, 7
  %v4504 = vsub.s32 %v4251, %v4503
  %v4505 = vrot.slane %v3733, %v4504
  %v4506 = vsel %vm4256, %v4505, %v4501
  %v4507 = vlaneseq
  %v4508 = vshrl.u32 %v4507, 7
  %v4509 = vsub.s32 %v4258, %v4508
  %v4510 = vrot.slane %v3734, %v4509
  %v4511 = vsel %vm4263, %v4510, %v4506
  %v4512 = vlaneseq
  %v4513 = vshrl.u32 %v4512, 7
  %v4514 = vsub.s32 %v4265, %v4513
  %v4515 = vrot.slane %v3735, %v4514
  %v4516 = vsel %vm4270, %v4515, %v4511
  %v4517 = vlaneseq
  %v4518 = vshrl.u32 %v4517, 7
  %v4519 = vsub.s32 %v4272, %v4518
  %v4520 = vrot.slane %v3736, %v4519
  %v4521 = vsel %vm4277, %v4520, %v4516
  %v4522 = vlaneseq
  %v4523 = vshrl.u32 %v4522, 7
  %v4524 = vsub.s32 %v4279, %v4523
  %v4525 = vrot.slane %v3737, %v4524
  %v4526 = vsel %vm4284, %v4525, %v4521
  %v4527 = vlaneseq
  %v4528 = vshrl.u32 %v4527, 7
  %v4529 = vsub.s32 %v4286, %v4528
  %v4530 = vrot.slane %v3738, %v4529
  %v4531 = vsel %vm4291, %v4530, %v4526
  %v4532 = vlaneseq
  %v4533 = vshrl.u32 %v4532, 7
  %v4534 = vsub.s32 %v4293, %v4533
  %v4535 = vrot.slane %v3739, %v4534
  %v4536 = vsel %vm4298, %v4535, %v4531
  %v4537 = vlaneseq
  %v4538 = vshrl.u32 %v4537, 7
  %v4539 = vsub.s32 %v4190, %v4538
  %v4540 = vrot.slane %v3740, %v4539
  %v4541 = vlaneseq
  %v4542 = vshrl.u32 %v4541, 7
  %v4543 = vsub.s32 %v4195, %v4542
  %v4544 = vrot.slane %v3741, %v4543
  %v4545 = vsel %vm4200, %v4544, %v4540
  %v4546 = vlaneseq
  %v4547 = vshrl.u32 %v4546, 7
  %v4548 = vsub.s32 %v4202, %v4547
  %v4549 = vrot.slane %v3742, %v4548
  %v4550 = vsel %vm4207, %v4549, %v4545
  %v4551 = vlaneseq
  %v4552 = vshrl.u32 %v4551, 7
  %v4553 = vsub.s32 %v4209, %v4552
  %v4554 = vrot.slane %v3743, %v4553
  %v4555 = vsel %vm4214, %v4554, %v4550
  %v4556 = vlaneseq
  %v4557 = vshrl.u32 %v4556, 7
  %v4558 = vsub.s32 %v4216, %v4557
  %v4559 = vrot.slane %v3744, %v4558
  %v4560 = vsel %vm4221, %v4559, %v4555
  %v4561 = vlaneseq
  %v4562 = vshrl.u32 %v4561, 7
  %v4563 = vsub.s32 %v4223, %v4562
  %v4564 = vrot.slane %v3745, %v4563
  %v4565 = vsel %vm4228, %v4564, %v4560
  %v4566 = vlaneseq
  %v4567 = vshrl.u32 %v4566, 7
  %v4568 = vsub.s32 %v4230, %v4567
  %v4569 = vrot.slane %v3746, %v4568
  %v4570 = vsel %vm4235, %v4569, %v4565
  %v4571 = vlaneseq
  %v4572 = vshrl.u32 %v4571, 7
  %v4573 = vsub.s32 %v4237, %v4572
  %v4574 = vrot.slane %v3747, %v4573
  %v4575 = vsel %vm4242, %v4574, %v4570
  %v4576 = vlaneseq
  %v4577 = vshrl.u32 %v4576, 7
  %v4578 = vsub.s32 %v4244, %v4577
  %v4579 = vrot.slane %v3748, %v4578
  %v4580 = vsel %vm4249, %v4579, %v4575
  %v4581 = vlaneseq
  %v4582 = vshrl.u32 %v4581, 7
  %v4583 = vsub.s32 %v4251, %v4582
  %v4584 = vrot.slane %v3749, %v4583
  %v4585 = vsel %vm4256, %v4584, %v4580
  %v4586 = vlaneseq
  %v4587 = vshrl.u32 %v4586, 7
  %v4588 = vsub.s32 %v4258, %v4587
  %v4589 = vrot.slane %v3750, %v4588
  %v4590 = vsel %vm4263, %v4589, %v4585
  %v4591 = vlaneseq
  %v4592 = vshrl.u32 %v4591, 7
  %v4593 = vsub.s32 %v4265, %v4592
  %v4594 = vrot.slane %v3751, %v4593
  %v4595 = vsel %vm4270, %v4594, %v4590
  %v4596 = vlaneseq
  %v4597 = vshrl.u32 %v4596, 7
  %v4598 = vsub.s32 %v4272, %v4597
  %v4599 = vrot.slane %v3752, %v4598
  %v4600 = vsel %vm4277, %v4599, %v4595
  %v4601 = vlaneseq
  %v4602 = vshrl.u32 %v4601, 7
  %v4603 = vsub.s32 %v4279, %v4602
  %v4604 = vrot.slane %v3753, %v4603
  %v4605 = vsel %vm4284, %v4604, %v4600
  %v4606 = vlaneseq
  %v4607 = vshrl.u32 %v4606, 7
  %v4608 = vsub.s32 %v4286, %v4607
  %v4609 = vrot.slane %v3754, %v4608
  %v4610 = vsel %vm4291, %v4609, %v4605
  %v4611 = vlaneseq
  %v4612 = vshrl.u32 %v4611, 7
  %v4613 = vsub.s32 %v4293, %v4612
  %v4614 = vrot.slane %v3755, %v4613
  %v4615 = vsel %vm4298, %v4614, %v4610
  %v4616 = vlaneseq
  %v4617 = vshrl.u32 %v4616, 7
  %v4618 = vsub.s32 %v4190, %v4617
  %v4619 = vrot.slane %v3756, %v4618
  %v4620 = vlaneseq
  %v4621 = vshrl.u32 %v4620, 7
  %v4622 = vsub.s32 %v4195, %v4621
  %v4623 = vrot.slane %v3757, %v4622
  %v4624 = vsel %vm4200, %v4623, %v4619
  %v4625 = vlaneseq
  %v4626 = vshrl.u32 %v4625, 7
  %v4627 = vsub.s32 %v4202, %v4626
  %v4628 = vrot.slane %v3758, %v4627
  %v4629 = vsel %vm4207, %v4628, %v4624
  %v4630 = vlaneseq
  %v4631 = vshrl.u32 %v4630, 7
  %v4632 = vsub.s32 %v4209, %v4631
  %v4633 = vrot.slane %v3759, %v4632
  %v4634 = vsel %vm4214, %v4633, %v4629
  %v4635 = vlaneseq
  %v4636 = vshrl.u32 %v4635, 7
  %v4637 = vsub.s32 %v4216, %v4636
  %v4638 = vrot.slane %v3760, %v4637
  %v4639 = vsel %vm4221, %v4638, %v4634
  %v4640 = vlaneseq
  %v4641 = vshrl.u32 %v4640, 7
  %v4642 = vsub.s32 %v4223, %v4641
  %v4643 = vrot.slane %v3761, %v4642
  %v4644 = vsel %vm4228, %v4643, %v4639
  %v4645 = vlaneseq
  %v4646 = vshrl.u32 %v4645, 7
  %v4647 = vsub.s32 %v4230, %v4646
  %v4648 = vrot.slane %v3762, %v4647
  %v4649 = vsel %vm4235, %v4648, %v4644
  %v4650 = vlaneseq
  %v4651 = vshrl.u32 %v4650, 7
  %v4652 = vsub.s32 %v4237, %v4651
  %v4653 = vrot.slane %v3763, %v4652
  %v4654 = vsel %vm4242, %v4653, %v4649
  %v4655 = vlaneseq
  %v4656 = vshrl.u32 %v4655, 7
  %v4657 = vsub.s32 %v4244, %v4656
  %v4658 = vrot.slane %v3764, %v4657
  %v4659 = vsel %vm4249, %v4658, %v4654
  %v4660 = vlaneseq
  %v4661 = vshrl.u32 %v4660, 7
  %v4662 = vsub.s32 %v4251, %v4661
  %v4663 = vrot.slane %v3765, %v4662
  %v4664 = vsel %vm4256, %v4663, %v4659
  %v4665 = vlaneseq
  %v4666 = vshrl.u32 %v4665, 7
  %v4667 = vsub.s32 %v4258, %v4666
  %v4668 = vrot.slane %v3766, %v4667
  %v4669 = vsel %vm4263, %v4668, %v4664
  %v4670 = vlaneseq
  %v4671 = vshrl.u32 %v4670, 7
  %v4672 = vsub.s32 %v4265, %v4671
  %v4673 = vrot.slane %v3767, %v4672
  %v4674 = vsel %vm4270, %v4673, %v4669
  %v4675 = vlaneseq
  %v4676 = vshrl.u32 %v4675, 7
  %v4677 = vsub.s32 %v4272, %v4676
  %v4678 = vrot.slane %v3768, %v4677
  %v4679 = vsel %vm4277, %v4678, %v4674
  %v4680 = vlaneseq
  %v4681 = vshrl.u32 %v4680, 7
  %v4682 = vsub.s32 %v4279, %v4681
  %v4683 = vrot.slane %v3769, %v4682
  %v4684 = vsel %vm4284, %v4683, %v4679
  %v4685 = vlaneseq
  %v4686 = vshrl.u32 %v4685, 7
  %v4687 = vsub.s32 %v4286, %v4686
  %v4688 = vrot.slane %v3770, %v4687
  %v4689 = vsel %vm4291, %v4688, %v4684
  %v4690 = vlaneseq
  %v4691 = vshrl.u32 %v4690, 7
  %v4692 = vsub.s32 %v4293, %v4691
  %v4693 = vrot.slane %v3771, %v4692
  %v4694 = vsel %vm4298, %v4693, %v4689
  %v4695 = vlaneseq
  %v4696 = vshrl.u32 %v4695, 7
  %v4697 = vsub.s32 %v4190, %v4696
  %v4698 = vrot.slane %v3772, %v4697
  %v4699 = vlaneseq
  %v4700 = vshrl.u32 %v4699, 7
  %v4701 = vsub.s32 %v4195, %v4700
  %v4702 = vrot.slane %v3773, %v4701
  %v4703 = vsel %vm4200, %v4702, %v4698
  %v4704 = vlaneseq
  %v4705 = vshrl.u32 %v4704, 7
  %v4706 = vsub.s32 %v4202, %v4705
  %v4707 = vrot.slane %v3774, %v4706
  %v4708 = vsel %vm4207, %v4707, %v4703
  %v4709 = vlaneseq
  %v4710 = vshrl.u32 %v4709, 7
  %v4711 = vsub.s32 %v4209, %v4710
  %v4712 = vrot.slane %v3775, %v4711
  %v4713 = vsel %vm4214, %v4712, %v4708
  %v4714 = vlaneseq
  %v4715 = vshrl.u32 %v4714, 7
  %v4716 = vsub.s32 %v4216, %v4715
  %v4717 = vrot.slane %v3776, %v4716
  %v4718 = vsel %vm4221, %v4717, %v4713
  %v4719 = vlaneseq
  %v4720 = vshrl.u32 %v4719, 7
  %v4721 = vsub.s32 %v4223, %v4720
  %v4722 = vrot.slane %v3777, %v4721
  %v4723 = vsel %vm4228, %v4722, %v4718
  %v4724 = vlaneseq
  %v4725 = vshrl.u32 %v4724, 7
  %v4726 = vsub.s32 %v4230, %v4725
  %v4727 = vrot.slane %v3778, %v4726
  %v4728 = vsel %vm4235, %v4727, %v4723
  %v4729 = vlaneseq
  %v4730 = vshrl.u32 %v4729, 7
  %v4731 = vsub.s32 %v4237, %v4730
  %v4732 = vrot.slane %v3779, %v4731
  %v4733 = vsel %vm4242, %v4732, %v4728
  %v4734 = vlaneseq
  %v4735 = vshrl.u32 %v4734, 7
  %v4736 = vsub.s32 %v4244, %v4735
  %v4737 = vrot.slane %v3780, %v4736
  %v4738 = vsel %vm4249, %v4737, %v4733
  %v4739 = vlaneseq
  %v4740 = vshrl.u32 %v4739, 7
  %v4741 = vsub.s32 %v4251, %v4740
  %v4742 = vrot.slane %v3781, %v4741
  %v4743 = vsel %vm4256, %v4742, %v4738
  %v4744 = vlaneseq
  %v4745 = vshrl.u32 %v4744, 7
  %v4746 = vsub.s32 %v4258, %v4745
  %v4747 = vrot.slane %v3782, %v4746
  %v4748 = vsel %vm4263, %v4747, %v4743
  %v4749 = vlaneseq
  %v4750 = vshrl.u32 %v4749, 7
  %v4751 = vsub.s32 %v4265, %v4750
  %v4752 = vrot.slane %v3783, %v4751
  %v4753 = vsel %vm4270, %v4752, %v4748
  %v4754 = vlaneseq
  %v4755 = vshrl.u32 %v4754, 7
  %v4756 = vsub.s32 %v4272, %v4755
  %v4757 = vrot.slane %v3784, %v4756
  %v4758 = vsel %vm4277, %v4757, %v4753
  %v4759 = vlaneseq
  %v4760 = vshrl.u32 %v4759, 7
  %v4761 = vsub.s32 %v4279, %v4760
  %v4762 = vrot.slane %v3785, %v4761
  %v4763 = vsel %vm4284, %v4762, %v4758
  %v4764 = vlaneseq
  %v4765 = vshrl.u32 %v4764, 7
  %v4766 = vsub.s32 %v4286, %v4765
  %v4767 = vrot.slane %v3786, %v4766
  %v4768 = vsel %vm4291, %v4767, %v4763
  %v4769 = vlaneseq
  %v4770 = vshrl.u32 %v4769, 7
  %v4771 = vsub.s32 %v4293, %v4770
  %v4772 = vrot.slane %v3787, %v4771
  %v4773 = vsel %vm4298, %v4772, %v4768
  %v4774 = vlaneseq
  %v4775 = vshrl.u32 %v4774, 7
  %v4776 = vsub.s32 %v4190, %v4775
  %v4777 = vrot.slane %v3788, %v4776
  %v4778 = vlaneseq
  %v4779 = vshrl.u32 %v4778, 7
  %v4780 = vsub.s32 %v4195, %v4779
  %v4781 = vrot.slane %v3789, %v4780
  %v4782 = vsel %vm4200, %v4781, %v4777
  %v4783 = vlaneseq
  %v4784 = vshrl.u32 %v4783, 7
  %v4785 = vsub.s32 %v4202, %v4784
  %v4786 = vrot.slane %v3790, %v4785
  %v4787 = vsel %vm4207, %v4786, %v4782
  %v4788 = vlaneseq
  %v4789 = vshrl.u32 %v4788, 7
  %v4790 = vsub.s32 %v4209, %v4789
  %v4791 = vrot.slane %v3791, %v4790
  %v4792 = vsel %vm4214, %v4791, %v4787
  %v4793 = vlaneseq
  %v4794 = vshrl.u32 %v4793, 7
  %v4795 = vsub.s32 %v4216, %v4794
  %v4796 = vrot.slane %v3792, %v4795
  %v4797 = vsel %vm4221, %v4796, %v4792
  %v4798 = vlaneseq
  %v4799 = vshrl.u32 %v4798, 7
  %v4800 = vsub.s32 %v4223, %v4799
  %v4801 = vrot.slane %v3793, %v4800
  %v4802 = vsel %vm4228, %v4801, %v4797
  %v4803 = vlaneseq
  %v4804 = vshrl.u32 %v4803, 7
  %v4805 = vsub.s32 %v4230, %v4804
  %v4806 = vrot.slane %v3794, %v4805
  %v4807 = vsel %vm4235, %v4806, %v4802
  %v4808 = vlaneseq
  %v4809 = vshrl.u32 %v4808, 7
  %v4810 = vsub.s32 %v4237, %v4809
  %v4811 = vrot.slane %v3795, %v4810
  %v4812 = vsel %vm4242, %v4811, %v4807
  %v4813 = vlaneseq
  %v4814 = vshrl.u32 %v4813, 7
  %v4815 = vsub.s32 %v4244, %v4814
  %v4816 = vrot.slane %v3796, %v4815
  %v4817 = vsel %vm4249, %v4816, %v4812
  %v4818 = vlaneseq
  %v4819 = vshrl.u32 %v4818, 7
  %v4820 = vsub.s32 %v4251, %v4819
  %v4821 = vrot.slane %v3797, %v4820
  %v4822 = vsel %vm4256, %v4821, %v4817
  %v4823 = vlaneseq
  %v4824 = vshrl.u32 %v4823, 7
  %v4825 = vsub.s32 %v4258, %v4824
  %v4826 = vrot.slane %v3798, %v4825
  %v4827 = vsel %vm4263, %v4826, %v4822
  %v4828 = vlaneseq
  %v4829 = vshrl.u32 %v4828, 7
  %v4830 = vsub.s32 %v4265, %v4829
  %v4831 = vrot.slane %v3799, %v4830
  %v4832 = vsel %vm4270, %v4831, %v4827
  %v4833 = vlaneseq
  %v4834 = vshrl.u32 %v4833, 7
  %v4835 = vsub.s32 %v4272, %v4834
  %v4836 = vrot.slane %v3800, %v4835
  %v4837 = vsel %vm4277, %v4836, %v4832
  %v4838 = vlaneseq
  %v4839 = vshrl.u32 %v4838, 7
  %v4840 = vsub.s32 %v4279, %v4839
  %v4841 = vrot.slane %v3801, %v4840
  %v4842 = vsel %vm4284, %v4841, %v4837
  %v4843 = vlaneseq
  %v4844 = vshrl.u32 %v4843, 7
  %v4845 = vsub.s32 %v4286, %v4844
  %v4846 = vrot.slane %v3802, %v4845
  %v4847 = vsel %vm4291, %v4846, %v4842
  %v4848 = vlaneseq
  %v4849 = vshrl.u32 %v4848, 7
  %v4850 = vsub.s32 %v4293, %v4849
  %v4851 = vrot.slane %v3803, %v4850
  %v4852 = vsel %vm4298, %v4851, %v4847
  %v4853 = vlaneseq
  %v4854 = vshrl.u32 %v4853, 7
  %v4855 = vsub.s32 %v4190, %v4854
  %v4856 = vrot.slane %v3804, %v4855
  %v4857 = vlaneseq
  %v4858 = vshrl.u32 %v4857, 7
  %v4859 = vsub.s32 %v4195, %v4858
  %v4860 = vrot.slane %v3805, %v4859
  %v4861 = vsel %vm4200, %v4860, %v4856
  %v4862 = vlaneseq
  %v4863 = vshrl.u32 %v4862, 7
  %v4864 = vsub.s32 %v4202, %v4863
  %v4865 = vrot.slane %v3806, %v4864
  %v4866 = vsel %vm4207, %v4865, %v4861
  %v4867 = vlaneseq
  %v4868 = vshrl.u32 %v4867, 7
  %v4869 = vsub.s32 %v4209, %v4868
  %v4870 = vrot.slane %v3807, %v4869
  %v4871 = vsel %vm4214, %v4870, %v4866
  %v4872 = vlaneseq
  %v4873 = vshrl.u32 %v4872, 7
  %v4874 = vsub.s32 %v4216, %v4873
  %v4875 = vrot.slane %v3808, %v4874
  %v4876 = vsel %vm4221, %v4875, %v4871
  %v4877 = vlaneseq
  %v4878 = vshrl.u32 %v4877, 7
  %v4879 = vsub.s32 %v4223, %v4878
  %v4880 = vrot.slane %v3809, %v4879
  %v4881 = vsel %vm4228, %v4880, %v4876
  %v4882 = vlaneseq
  %v4883 = vshrl.u32 %v4882, 7
  %v4884 = vsub.s32 %v4230, %v4883
  %v4885 = vrot.slane %v3810, %v4884
  %v4886 = vsel %vm4235, %v4885, %v4881
  %v4887 = vlaneseq
  %v4888 = vshrl.u32 %v4887, 7
  %v4889 = vsub.s32 %v4237, %v4888
  %v4890 = vrot.slane %v3811, %v4889
  %v4891 = vsel %vm4242, %v4890, %v4886
  %v4892 = vlaneseq
  %v4893 = vshrl.u32 %v4892, 7
  %v4894 = vsub.s32 %v4244, %v4893
  %v4895 = vrot.slane %v3812, %v4894
  %v4896 = vsel %vm4249, %v4895, %v4891
  %v4897 = vlaneseq
  %v4898 = vshrl.u32 %v4897, 7
  %v4899 = vsub.s32 %v4251, %v4898
  %v4900 = vrot.slane %v3813, %v4899
  %v4901 = vsel %vm4256, %v4900, %v4896
  %v4902 = vlaneseq
  %v4903 = vshrl.u32 %v4902, 7
  %v4904 = vsub.s32 %v4258, %v4903
  %v4905 = vrot.slane %v3814, %v4904
  %v4906 = vsel %vm4263, %v4905, %v4901
  %v4907 = vlaneseq
  %v4908 = vshrl.u32 %v4907, 7
  %v4909 = vsub.s32 %v4265, %v4908
  %v4910 = vrot.slane %v3815, %v4909
  %v4911 = vsel %vm4270, %v4910, %v4906
  %v4912 = vlaneseq
  %v4913 = vshrl.u32 %v4912, 7
  %v4914 = vsub.s32 %v4272, %v4913
  %v4915 = vrot.slane %v3816, %v4914
  %v4916 = vsel %vm4277, %v4915, %v4911
  %v4917 = vlaneseq
  %v4918 = vshrl.u32 %v4917, 7
  %v4919 = vsub.s32 %v4279, %v4918
  %v4920 = vrot.slane %v3817, %v4919
  %v4921 = vsel %vm4284, %v4920, %v4916
  %v4922 = vlaneseq
  %v4923 = vshrl.u32 %v4922, 7
  %v4924 = vsub.s32 %v4286, %v4923
  %v4925 = vrot.slane %v3818, %v4924
  %v4926 = vsel %vm4291, %v4925, %v4921
  %v4927 = vlaneseq
  %v4928 = vshrl.u32 %v4927, 7
  %v4929 = vsub.s32 %v4293, %v4928
  %v4930 = vrot.slane %v3819, %v4929
  %v4931 = vsel %vm4298, %v4930, %v4926
  %v4932 = vlaneseq
  %v4933 = vshrl.u32 %v4932, 7
  %v4934 = vsub.s32 %v4190, %v4933
  %v4935 = vrot.slane %v3820, %v4934
  %v4936 = vlaneseq
  %v4937 = vshrl.u32 %v4936, 7
  %v4938 = vsub.s32 %v4195, %v4937
  %v4939 = vrot.slane %v3821, %v4938
  %v4940 = vsel %vm4200, %v4939, %v4935
  %v4941 = vlaneseq
  %v4942 = vshrl.u32 %v4941, 7
  %v4943 = vsub.s32 %v4202, %v4942
  %v4944 = vrot.slane %v3822, %v4943
  %v4945 = vsel %vm4207, %v4944, %v4940
  %v4946 = vlaneseq
  %v4947 = vshrl.u32 %v4946, 7
  %v4948 = vsub.s32 %v4209, %v4947
  %v4949 = vrot.slane %v3823, %v4948
  %v4950 = vsel %vm4214, %v4949, %v4945
  %v4951 = vlaneseq
  %v4952 = vshrl.u32 %v4951, 7
  %v4953 = vsub.s32 %v4216, %v4952
  %v4954 = vrot.slane %v3824, %v4953
  %v4955 = vsel %vm4221, %v4954, %v4950
  %v4956 = vlaneseq
  %v4957 = vshrl.u32 %v4956, 7
  %v4958 = vsub.s32 %v4223, %v4957
  %v4959 = vrot.slane %v3825, %v4958
  %v4960 = vsel %vm4228, %v4959, %v4955
  %v4961 = vlaneseq
  %v4962 = vshrl.u32 %v4961, 7
  %v4963 = vsub.s32 %v4230, %v4962
  %v4964 = vrot.slane %v3826, %v4963
  %v4965 = vsel %vm4235, %v4964, %v4960
  %v4966 = vlaneseq
  %v4967 = vshrl.u32 %v4966, 7
  %v4968 = vsub.s32 %v4237, %v4967
  %v4969 = vrot.slane %v3827, %v4968
  %v4970 = vsel %vm4242, %v4969, %v4965
  %v4971 = vlaneseq
  %v4972 = vshrl.u32 %v4971, 7
  %v4973 = vsub.s32 %v4244, %v4972
  %v4974 = vrot.slane %v3828, %v4973
  %v4975 = vsel %vm4249, %v4974, %v4970
  %v4976 = vlaneseq
  %v4977 = vshrl.u32 %v4976, 7
  %v4978 = vsub.s32 %v4251, %v4977
  %v4979 = vrot.slane %v3829, %v4978
  %v4980 = vsel %vm4256, %v4979, %v4975
  %v4981 = vlaneseq
  %v4982 = vshrl.u32 %v4981, 7
  %v4983 = vsub.s32 %v4258, %v4982
  %v4984 = vrot.slane %v3830, %v4983
  %v4985 = vsel %vm4263, %v4984, %v4980
  %v4986 = vlaneseq
  %v4987 = vshrl.u32 %v4986, 7
  %v4988 = vsub.s32 %v4265, %v4987
  %v4989 = vrot.slane %v3831, %v4988
  %v4990 = vsel %vm4270, %v4989, %v4985
  %v4991 = vlaneseq
  %v4992 = vshrl.u32 %v4991, 7
  %v4993 = vsub.s32 %v4272, %v4992
  %v4994 = vrot.slane %v3832, %v4993
  %v4995 = vsel %vm4277, %v4994, %v4990
  %v4996 = vlaneseq
  %v4997 = vshrl.u32 %v4996, 7
  %v4998 = vsub.s32 %v4279, %v4997
  %v4999 = vrot.slane %v3833, %v4998
  %v5000 = vsel %vm4284, %v4999, %v4995
  %v5001 = vlaneseq
  %v5002 = vshrl.u32 %v5001, 7
  %v5003 = vsub.s32 %v4286, %v5002
  %v5004 = vrot.slane %v3834, %v5003
  %v5005 = vsel %vm4291, %v5004, %v5000
  %v5006 = vlaneseq
  %v5007 = vshrl.u32 %v5006, 7
  %v5008 = vsub.s32 %v4293, %v5007
  %v5009 = vrot.slane %v3835, %v5008
  %v5010 = vsel %vm4298, %v5009, %v5005
  %v5011 = vlaneseq
  %v5012 = vshrl.u32 %v5011, 7
  %v5013 = vsub.s32 %v4190, %v5012
  %v5014 = vrot.slane %v3836, %v5013
  %v5015 = vlaneseq
  %v5016 = vshrl.u32 %v5015, 7
  %v5017 = vsub.s32 %v4195, %v5016
  %v5018 = vrot.slane %v3837, %v5017
  %v5019 = vsel %vm4200, %v5018, %v5014
  %v5020 = vlaneseq
  %v5021 = vshrl.u32 %v5020, 7
  %v5022 = vsub.s32 %v4202, %v5021
  %v5023 = vrot.slane %v3838, %v5022
  %v5024 = vsel %vm4207, %v5023, %v5019
  %v5025 = vlaneseq
  %v5026 = vshrl.u32 %v5025, 7
  %v5027 = vsub.s32 %v4209, %v5026
  %v5028 = vrot.slane %v3839, %v5027
  %v5029 = vsel %vm4214, %v5028, %v5024
  %v5030 = vlaneseq
  %v5031 = vshrl.u32 %v5030, 7
  %v5032 = vsub.s32 %v4216, %v5031
  %v5033 = vrot.slane %v3840, %v5032
  %v5034 = vsel %vm4221, %v5033, %v5029
  %v5035 = vlaneseq
  %v5036 = vshrl.u32 %v5035, 7
  %v5037 = vsub.s32 %v4223, %v5036
  %v5038 = vrot.slane %v3841, %v5037
  %v5039 = vsel %vm4228, %v5038, %v5034
  %v5040 = vlaneseq
  %v5041 = vshrl.u32 %v5040, 7
  %v5042 = vsub.s32 %v4230, %v5041
  %v5043 = vrot.slane %v3842, %v5042
  %v5044 = vsel %vm4235, %v5043, %v5039
  %v5045 = vlaneseq
  %v5046 = vshrl.u32 %v5045, 7
  %v5047 = vsub.s32 %v4237, %v5046
  %v5048 = vrot.slane %v3843, %v5047
  %v5049 = vsel %vm4242, %v5048, %v5044
  %v5050 = vlaneseq
  %v5051 = vshrl.u32 %v5050, 7
  %v5052 = vsub.s32 %v4244, %v5051
  %v5053 = vrot.slane %v3844, %v5052
  %v5054 = vsel %vm4249, %v5053, %v5049
  %v5055 = vlaneseq
  %v5056 = vshrl.u32 %v5055, 7
  %v5057 = vsub.s32 %v4251, %v5056
  %v5058 = vrot.slane %v3845, %v5057
  %v5059 = vsel %vm4256, %v5058, %v5054
  %v5060 = vlaneseq
  %v5061 = vshrl.u32 %v5060, 7
  %v5062 = vsub.s32 %v4258, %v5061
  %v5063 = vrot.slane %v3846, %v5062
  %v5064 = vsel %vm4263, %v5063, %v5059
  %v5065 = vlaneseq
  %v5066 = vshrl.u32 %v5065, 7
  %v5067 = vsub.s32 %v4265, %v5066
  %v5068 = vrot.slane %v3847, %v5067
  %v5069 = vsel %vm4270, %v5068, %v5064
  %v5070 = vlaneseq
  %v5071 = vshrl.u32 %v5070, 7
  %v5072 = vsub.s32 %v4272, %v5071
  %v5073 = vrot.slane %v3848, %v5072
  %v5074 = vsel %vm4277, %v5073, %v5069
  %v5075 = vlaneseq
  %v5076 = vshrl.u32 %v5075, 7
  %v5077 = vsub.s32 %v4279, %v5076
  %v5078 = vrot.slane %v3849, %v5077
  %v5079 = vsel %vm4284, %v5078, %v5074
  %v5080 = vlaneseq
  %v5081 = vshrl.u32 %v5080, 7
  %v5082 = vsub.s32 %v4286, %v5081
  %v5083 = vrot.slane %v3850, %v5082
  %v5084 = vsel %vm4291, %v5083, %v5079
  %v5085 = vlaneseq
  %v5086 = vshrl.u32 %v5085, 7
  %v5087 = vsub.s32 %v4293, %v5086
  %v5088 = vrot.slane %v3851, %v5087
  %v5089 = vsel %vm4298, %v5088, %v5084
  %v5090 = vlaneseq
  %v5091 = vshrl.u32 %v5090, 7
  %v5092 = vsub.s32 %v4190, %v5091
  %v5093 = vrot.slane %v3852, %v5092
  %v5094 = vlaneseq
  %v5095 = vshrl.u32 %v5094, 7
  %v5096 = vsub.s32 %v4195, %v5095
  %v5097 = vrot.slane %v3853, %v5096
  %v5098 = vsel %vm4200, %v5097, %v5093
  %v5099 = vlaneseq
  %v5100 = vshrl.u32 %v5099, 7
  %v5101 = vsub.s32 %v4202, %v5100
  %v5102 = vrot.slane %v3854, %v5101
  %v5103 = vsel %vm4207, %v5102, %v5098
  %v5104 = vlaneseq
  %v5105 = vshrl.u32 %v5104, 7
  %v5106 = vsub.s32 %v4209, %v5105
  %v5107 = vrot.slane %v3855, %v5106
  %v5108 = vsel %vm4214, %v5107, %v5103
  %v5109 = vlaneseq
  %v5110 = vshrl.u32 %v5109, 7
  %v5111 = vsub.s32 %v4216, %v5110
  %v5112 = vrot.slane %v3856, %v5111
  %v5113 = vsel %vm4221, %v5112, %v5108
  %v5114 = vlaneseq
  %v5115 = vshrl.u32 %v5114, 7
  %v5116 = vsub.s32 %v4223, %v5115
  %v5117 = vrot.slane %v3857, %v5116
  %v5118 = vsel %vm4228, %v5117, %v5113
  %v5119 = vlaneseq
  %v5120 = vshrl.u32 %v5119, 7
  %v5121 = vsub.s32 %v4230, %v5120
  %v5122 = vrot.slane %v3858, %v5121
  %v5123 = vsel %vm4235, %v5122, %v5118
  %v5124 = vlaneseq
  %v5125 = vshrl.u32 %v5124, 7
  %v5126 = vsub.s32 %v4237, %v5125
  %v5127 = vrot.slane %v3859, %v5126
  %v5128 = vsel %vm4242, %v5127, %v5123
  %v5129 = vlaneseq
  %v5130 = vshrl.u32 %v5129, 7
  %v5131 = vsub.s32 %v4244, %v5130
  %v5132 = vrot.slane %v3860, %v5131
  %v5133 = vsel %vm4249, %v5132, %v5128
  %v5134 = vlaneseq
  %v5135 = vshrl.u32 %v5134, 7
  %v5136 = vsub.s32 %v4251, %v5135
  %v5137 = vrot.slane %v3861, %v5136
  %v5138 = vsel %vm4256, %v5137, %v5133
  %v5139 = vlaneseq
  %v5140 = vshrl.u32 %v5139, 7
  %v5141 = vsub.s32 %v4258, %v5140
  %v5142 = vrot.slane %v3862, %v5141
  %v5143 = vsel %vm4263, %v5142, %v5138
  %v5144 = vlaneseq
  %v5145 = vshrl.u32 %v5144, 7
  %v5146 = vsub.s32 %v4265, %v5145
  %v5147 = vrot.slane %v3863, %v5146
  %v5148 = vsel %vm4270, %v5147, %v5143
  %v5149 = vlaneseq
  %v5150 = vshrl.u32 %v5149, 7
  %v5151 = vsub.s32 %v4272, %v5150
  %v5152 = vrot.slane %v3864, %v5151
  %v5153 = vsel %vm4277, %v5152, %v5148
  %v5154 = vlaneseq
  %v5155 = vshrl.u32 %v5154, 7
  %v5156 = vsub.s32 %v4279, %v5155
  %v5157 = vrot.slane %v3865, %v5156
  %v5158 = vsel %vm4284, %v5157, %v5153
  %v5159 = vlaneseq
  %v5160 = vshrl.u32 %v5159, 7
  %v5161 = vsub.s32 %v4286, %v5160
  %v5162 = vrot.slane %v3866, %v5161
  %v5163 = vsel %vm4291, %v5162, %v5158
  %v5164 = vlaneseq
  %v5165 = vshrl.u32 %v5164, 7
  %v5166 = vsub.s32 %v4293, %v5165
  %v5167 = vrot.slane %v3867, %v5166
  %v5168 = vsel %vm4298, %v5167, %v5163
  %v5169 = vlaneseq
  %v5170 = vshrl.u32 %v5169, 7
  %v5171 = vsub.s32 %v4190, %v5170
  %v5172 = vrot.slane %v3868, %v5171
  %v5173 = vlaneseq
  %v5174 = vshrl.u32 %v5173, 7
  %v5175 = vsub.s32 %v4195, %v5174
  %v5176 = vrot.slane %v3869, %v5175
  %v5177 = vsel %vm4200, %v5176, %v5172
  %v5178 = vlaneseq
  %v5179 = vshrl.u32 %v5178, 7
  %v5180 = vsub.s32 %v4202, %v5179
  %v5181 = vrot.slane %v3870, %v5180
  %v5182 = vsel %vm4207, %v5181, %v5177
  %v5183 = vlaneseq
  %v5184 = vshrl.u32 %v5183, 7
  %v5185 = vsub.s32 %v4209, %v5184
  %v5186 = vrot.slane %v3871, %v5185
  %v5187 = vsel %vm4214, %v5186, %v5182
  %v5188 = vlaneseq
  %v5189 = vshrl.u32 %v5188, 7
  %v5190 = vsub.s32 %v4216, %v5189
  %v5191 = vrot.slane %v3872, %v5190
  %v5192 = vsel %vm4221, %v5191, %v5187
  %v5193 = vlaneseq
  %v5194 = vshrl.u32 %v5193, 7
  %v5195 = vsub.s32 %v4223, %v5194
  %v5196 = vrot.slane %v3873, %v5195
  %v5197 = vsel %vm4228, %v5196, %v5192
  %v5198 = vlaneseq
  %v5199 = vshrl.u32 %v5198, 7
  %v5200 = vsub.s32 %v4230, %v5199
  %v5201 = vrot.slane %v3874, %v5200
  %v5202 = vsel %vm4235, %v5201, %v5197
  %v5203 = vlaneseq
  %v5204 = vshrl.u32 %v5203, 7
  %v5205 = vsub.s32 %v4237, %v5204
  %v5206 = vrot.slane %v3875, %v5205
  %v5207 = vsel %vm4242, %v5206, %v5202
  %v5208 = vlaneseq
  %v5209 = vshrl.u32 %v5208, 7
  %v5210 = vsub.s32 %v4244, %v5209
  %v5211 = vrot.slane %v3876, %v5210
  %v5212 = vsel %vm4249, %v5211, %v5207
  %v5213 = vlaneseq
  %v5214 = vshrl.u32 %v5213, 7
  %v5215 = vsub.s32 %v4251, %v5214
  %v5216 = vrot.slane %v3877, %v5215
  %v5217 = vsel %vm4256, %v5216, %v5212
  %v5218 = vlaneseq
  %v5219 = vshrl.u32 %v5218, 7
  %v5220 = vsub.s32 %v4258, %v5219
  %v5221 = vrot.slane %v3878, %v5220
  %v5222 = vsel %vm4263, %v5221, %v5217
  %v5223 = vlaneseq
  %v5224 = vshrl.u32 %v5223, 7
  %v5225 = vsub.s32 %v4265, %v5224
  %v5226 = vrot.slane %v3879, %v5225
  %v5227 = vsel %vm4270, %v5226, %v5222
  %v5228 = vlaneseq
  %v5229 = vshrl.u32 %v5228, 7
  %v5230 = vsub.s32 %v4272, %v5229
  %v5231 = vrot.slane %v3880, %v5230
  %v5232 = vsel %vm4277, %v5231, %v5227
  %v5233 = vlaneseq
  %v5234 = vshrl.u32 %v5233, 7
  %v5235 = vsub.s32 %v4279, %v5234
  %v5236 = vrot.slane %v3881, %v5235
  %v5237 = vsel %vm4284, %v5236, %v5232
  %v5238 = vlaneseq
  %v5239 = vshrl.u32 %v5238, 7
  %v5240 = vsub.s32 %v4286, %v5239
  %v5241 = vrot.slane %v3882, %v5240
  %v5242 = vsel %vm4291, %v5241, %v5237
  %v5243 = vlaneseq
  %v5244 = vshrl.u32 %v5243, 7
  %v5245 = vsub.s32 %v4293, %v5244
  %v5246 = vrot.slane %v3883, %v5245
  %v5247 = vsel %vm4298, %v5246, %v5242
  %v5248 = vlaneseq
  %v5249 = vshrl.u32 %v5248, 7
  %v5250 = vsub.s32 %v4190, %v5249
  %v5251 = vrot.slane %v3884, %v5250
  %v5252 = vlaneseq
  %v5253 = vshrl.u32 %v5252, 7
  %v5254 = vsub.s32 %v4195, %v5253
  %v5255 = vrot.slane %v3885, %v5254
  %v5256 = vsel %vm4200, %v5255, %v5251
  %v5257 = vlaneseq
  %v5258 = vshrl.u32 %v5257, 7
  %v5259 = vsub.s32 %v4202, %v5258
  %v5260 = vrot.slane %v3886, %v5259
  %v5261 = vsel %vm4207, %v5260, %v5256
  %v5262 = vlaneseq
  %v5263 = vshrl.u32 %v5262, 7
  %v5264 = vsub.s32 %v4209, %v5263
  %v5265 = vrot.slane %v3887, %v5264
  %v5266 = vsel %vm4214, %v5265, %v5261
  %v5267 = vlaneseq
  %v5268 = vshrl.u32 %v5267, 7
  %v5269 = vsub.s32 %v4216, %v5268
  %v5270 = vrot.slane %v3888, %v5269
  %v5271 = vsel %vm4221, %v5270, %v5266
  %v5272 = vlaneseq
  %v5273 = vshrl.u32 %v5272, 7
  %v5274 = vsub.s32 %v4223, %v5273
  %v5275 = vrot.slane %v3889, %v5274
  %v5276 = vsel %vm4228, %v5275, %v5271
  %v5277 = vlaneseq
  %v5278 = vshrl.u32 %v5277, 7
  %v5279 = vsub.s32 %v4230, %v5278
  %v5280 = vrot.slane %v3890, %v5279
  %v5281 = vsel %vm4235, %v5280, %v5276
  %v5282 = vlaneseq
  %v5283 = vshrl.u32 %v5282, 7
  %v5284 = vsub.s32 %v4237, %v5283
  %v5285 = vrot.slane %v3891, %v5284
  %v5286 = vsel %vm4242, %v5285, %v5281
  %v5287 = vlaneseq
  %v5288 = vshrl.u32 %v5287, 7
  %v5289 = vsub.s32 %v4244, %v5288
  %v5290 = vrot.slane %v3892, %v5289
  %v5291 = vsel %vm4249, %v5290, %v5286
  %v5292 = vlaneseq
  %v5293 = vshrl.u32 %v5292, 7
  %v5294 = vsub.s32 %v4251, %v5293
  %v5295 = vrot.slane %v3893, %v5294
  %v5296 = vsel %vm4256, %v5295, %v5291
  %v5297 = vlaneseq
  %v5298 = vshrl.u32 %v5297, 7
  %v5299 = vsub.s32 %v4258, %v5298
  %v5300 = vrot.slane %v3894, %v5299
  %v5301 = vsel %vm4263, %v5300, %v5296
  %v5302 = vlaneseq
  %v5303 = vshrl.u32 %v5302, 7
  %v5304 = vsub.s32 %v4265, %v5303
  %v5305 = vrot.slane %v3895, %v5304
  %v5306 = vsel %vm4270, %v5305, %v5301
  %v5307 = vlaneseq
  %v5308 = vshrl.u32 %v5307, 7
  %v5309 = vsub.s32 %v4272, %v5308
  %v5310 = vrot.slane %v3896, %v5309
  %v5311 = vsel %vm4277, %v5310, %v5306
  %v5312 = vlaneseq
  %v5313 = vshrl.u32 %v5312, 7
  %v5314 = vsub.s32 %v4279, %v5313
  %v5315 = vrot.slane %v3897, %v5314
  %v5316 = vsel %vm4284, %v5315, %v5311
  %v5317 = vlaneseq
  %v5318 = vshrl.u32 %v5317, 7
  %v5319 = vsub.s32 %v4286, %v5318
  %v5320 = vrot.slane %v3898, %v5319
  %v5321 = vsel %vm4291, %v5320, %v5316
  %v5322 = vlaneseq
  %v5323 = vshrl.u32 %v5322, 7
  %v5324 = vsub.s32 %v4293, %v5323
  %v5325 = vrot.slane %v3899, %v5324
  %v5326 = vsel %vm4298, %v5325, %v5321
  %v5327 = vlaneseq
  %v5328 = vshrl.u32 %v5327, 7
  %v5329 = vsub.s32 %v4190, %v5328
  %v5330 = vrot.slane %v3900, %v5329
  %v5331 = vlaneseq
  %v5332 = vshrl.u32 %v5331, 7
  %v5333 = vsub.s32 %v4195, %v5332
  %v5334 = vrot.slane %v3901, %v5333
  %v5335 = vsel %vm4200, %v5334, %v5330
  %v5336 = vlaneseq
  %v5337 = vshrl.u32 %v5336, 7
  %v5338 = vsub.s32 %v4202, %v5337
  %v5339 = vrot.slane %v3902, %v5338
  %v5340 = vsel %vm4207, %v5339, %v5335
  %v5341 = vlaneseq
  %v5342 = vshrl.u32 %v5341, 7
  %v5343 = vsub.s32 %v4209, %v5342
  %v5344 = vrot.slane %v3903, %v5343
  %v5345 = vsel %vm4214, %v5344, %v5340
  %v5346 = vlaneseq
  %v5347 = vshrl.u32 %v5346, 7
  %v5348 = vsub.s32 %v4216, %v5347
  %v5349 = vrot.slane %v3904, %v5348
  %v5350 = vsel %vm4221, %v5349, %v5345
  %v5351 = vlaneseq
  %v5352 = vshrl.u32 %v5351, 7
  %v5353 = vsub.s32 %v4223, %v5352
  %v5354 = vrot.slane %v3905, %v5353
  %v5355 = vsel %vm4228, %v5354, %v5350
  %v5356 = vlaneseq
  %v5357 = vshrl.u32 %v5356, 7
  %v5358 = vsub.s32 %v4230, %v5357
  %v5359 = vrot.slane %v3906, %v5358
  %v5360 = vsel %vm4235, %v5359, %v5355
  %v5361 = vlaneseq
  %v5362 = vshrl.u32 %v5361, 7
  %v5363 = vsub.s32 %v4237, %v5362
  %v5364 = vrot.slane %v3907, %v5363
  %v5365 = vsel %vm4242, %v5364, %v5360
  %v5366 = vlaneseq
  %v5367 = vshrl.u32 %v5366, 7
  %v5368 = vsub.s32 %v4244, %v5367
  %v5369 = vrot.slane %v3908, %v5368
  %v5370 = vsel %vm4249, %v5369, %v5365
  %v5371 = vlaneseq
  %v5372 = vshrl.u32 %v5371, 7
  %v5373 = vsub.s32 %v4251, %v5372
  %v5374 = vrot.slane %v3909, %v5373
  %v5375 = vsel %vm4256, %v5374, %v5370
  %v5376 = vlaneseq
  %v5377 = vshrl.u32 %v5376, 7
  %v5378 = vsub.s32 %v4258, %v5377
  %v5379 = vrot.slane %v3910, %v5378
  %v5380 = vsel %vm4263, %v5379, %v5375
  %v5381 = vlaneseq
  %v5382 = vshrl.u32 %v5381, 7
  %v5383 = vsub.s32 %v4265, %v5382
  %v5384 = vrot.slane %v3911, %v5383
  %v5385 = vsel %vm4270, %v5384, %v5380
  %v5386 = vlaneseq
  %v5387 = vshrl.u32 %v5386, 7
  %v5388 = vsub.s32 %v4272, %v5387
  %v5389 = vrot.slane %v3912, %v5388
  %v5390 = vsel %vm4277, %v5389, %v5385
  %v5391 = vlaneseq
  %v5392 = vshrl.u32 %v5391, 7
  %v5393 = vsub.s32 %v4279, %v5392
  %v5394 = vrot.slane %v3913, %v5393
  %v5395 = vsel %vm4284, %v5394, %v5390
  %v5396 = vlaneseq
  %v5397 = vshrl.u32 %v5396, 7
  %v5398 = vsub.s32 %v4286, %v5397
  %v5399 = vrot.slane %v3914, %v5398
  %v5400 = vsel %vm4291, %v5399, %v5395
  %v5401 = vlaneseq
  %v5402 = vshrl.u32 %v5401, 7
  %v5403 = vsub.s32 %v4293, %v5402
  %v5404 = vrot.slane %v3915, %v5403
  %v5405 = vsel %vm4298, %v5404, %v5400
  %v5406 = vlaneseq
  %v5407 = vshrl.u32 %v5406, 7
  %v5408 = vsub.s32 %v4190, %v5407
  %v5409 = vrot.slane %v3916, %v5408
  %v5410 = vlaneseq
  %v5411 = vshrl.u32 %v5410, 7
  %v5412 = vsub.s32 %v4195, %v5411
  %v5413 = vrot.slane %v3917, %v5412
  %v5414 = vsel %vm4200, %v5413, %v5409
  %v5415 = vlaneseq
  %v5416 = vshrl.u32 %v5415, 7
  %v5417 = vsub.s32 %v4202, %v5416
  %v5418 = vrot.slane %v3918, %v5417
  %v5419 = vsel %vm4207, %v5418, %v5414
  %v5420 = vlaneseq
  %v5421 = vshrl.u32 %v5420, 7
  %v5422 = vsub.s32 %v4209, %v5421
  %v5423 = vrot.slane %v3919, %v5422
  %v5424 = vsel %vm4214, %v5423, %v5419
  %v5425 = vlaneseq
  %v5426 = vshrl.u32 %v5425, 7
  %v5427 = vsub.s32 %v4216, %v5426
  %v5428 = vrot.slane %v3920, %v5427
  %v5429 = vsel %vm4221, %v5428, %v5424
  %v5430 = vlaneseq
  %v5431 = vshrl.u32 %v5430, 7
  %v5432 = vsub.s32 %v4223, %v5431
  %v5433 = vrot.slane %v3921, %v5432
  %v5434 = vsel %vm4228, %v5433, %v5429
  %v5435 = vlaneseq
  %v5436 = vshrl.u32 %v5435, 7
  %v5437 = vsub.s32 %v4230, %v5436
  %v5438 = vrot.slane %v3922, %v5437
  %v5439 = vsel %vm4235, %v5438, %v5434
  %v5440 = vlaneseq
  %v5441 = vshrl.u32 %v5440, 7
  %v5442 = vsub.s32 %v4237, %v5441
  %v5443 = vrot.slane %v3923, %v5442
  %v5444 = vsel %vm4242, %v5443, %v5439
  %v5445 = vlaneseq
  %v5446 = vshrl.u32 %v5445, 7
  %v5447 = vsub.s32 %v4244, %v5446
  %v5448 = vrot.slane %v3924, %v5447
  %v5449 = vsel %vm4249, %v5448, %v5444
  %v5450 = vlaneseq
  %v5451 = vshrl.u32 %v5450, 7
  %v5452 = vsub.s32 %v4251, %v5451
  %v5453 = vrot.slane %v3925, %v5452
  %v5454 = vsel %vm4256, %v5453, %v5449
  %v5455 = vlaneseq
  %v5456 = vshrl.u32 %v5455, 7
  %v5457 = vsub.s32 %v4258, %v5456
  %v5458 = vrot.slane %v3926, %v5457
  %v5459 = vsel %vm4263, %v5458, %v5454
  %v5460 = vlaneseq
  %v5461 = vshrl.u32 %v5460, 7
  %v5462 = vsub.s32 %v4265, %v5461
  %v5463 = vrot.slane %v3927, %v5462
  %v5464 = vsel %vm4270, %v5463, %v5459
  %v5465 = vlaneseq
  %v5466 = vshrl.u32 %v5465, 7
  %v5467 = vsub.s32 %v4272, %v5466
  %v5468 = vrot.slane %v3928, %v5467
  %v5469 = vsel %vm4277, %v5468, %v5464
  %v5470 = vlaneseq
  %v5471 = vshrl.u32 %v5470, 7
  %v5472 = vsub.s32 %v4279, %v5471
  %v5473 = vrot.slane %v3929, %v5472
  %v5474 = vsel %vm4284, %v5473, %v5469
  %v5475 = vlaneseq
  %v5476 = vshrl.u32 %v5475, 7
  %v5477 = vsub.s32 %v4286, %v5476
  %v5478 = vrot.slane %v3930, %v5477
  %v5479 = vsel %vm4291, %v5478, %v5474
  %v5480 = vlaneseq
  %v5481 = vshrl.u32 %v5480, 7
  %v5482 = vsub.s32 %v4293, %v5481
  %v5483 = vrot.slane %v3931, %v5482
  %v5484 = vsel %vm4298, %v5483, %v5479
  %vm5485 = vcmask 1041409
  %v5486 = vsel %vm5485, %v4457, %v4299
  %vm5487 = vcmask 1042434
  %v5488 = vsel %vm5487, %v4615, %v5486
  %vm5489 = vcmask 1043459
  %v5490 = vsel %vm5489, %v4773, %v5488
  %vm5491 = vcmask 1044484
  %v5492 = vsel %vm5491, %v4931, %v5490
  %vm5493 = vcmask 1045509
  %v5494 = vsel %vm5493, %v5089, %v5492
  %vm5495 = vcmask 1046534
  %v5496 = vsel %vm5495, %v5247, %v5494
  %vm5497 = vcmask 1047559
  %v5498 = vsel %vm5497, %v5405, %v5496
  %v5499 = vsel %vm5485, %v4536, %v4378
  %v5500 = vsel %vm5487, %v4694, %v5499
  %v5501 = vsel %vm5489, %v4852, %v5500
  %v5502 = vsel %vm5491, %v5010, %v5501
  %v5503 = vsel %vm5493, %v5168, %v5502
  %v5504 = vsel %vm5495, %v5326, %v5503
  %v5505 = vsel %vm5497, %v5484, %v5504
  %s5508 = sshra.s32 %s3932, 7
  %s5509 = sand.u32 %s3932, 127
  %s5510 = smul.addr %s5508, 8
  %s5511 = scalar_lea.vmem [#allocation6], %s5510
  %5512 = vst [vmem:[%s5511] sm:$0xff] %v5498
  %5513 = vst [vmem:[%s5511 + $0x8] sm:$0xff] %v5505
  %v5514 = vld [vmem:[#allocation3] sm:$0xff]
  %v5515 = vmax.f32 %v5498, %v5505
  %5516 = vmax.xlane.f32.xlu0 %v5515
  %v5517 = vpop.xlane.xlu0 %5516
  %v5518 = vmax.f32 %v5514, %v5517
  %v5519 = vsub.f32 %v5514, %v5518
  %v5520 = vmul.f32 %v5519, 1.442695
  %v5521 = vpow.pop %v5520
  %5523 = vset.pattern.permute.xlu0 0
  %5524 = vperm.xlu0 %5523, %v5518
  %v5525 = vpop.permute.xlu0 %5524
  %v5526 = vlaneseq
  %v5527 = vshrl.u32 %v5526, 7
  %v5528 = vsub.s32 0, %v5527
  %v5529 = vrot.slane %v5525, %v5528
  %v5530 = vlaneseq
  %v5531 = vshrl.u32 %v5530, 7
  %v5532 = vsub.s32 1, %v5531
  %v5533 = vrot.slane %v5525, %v5532
  %v5534 = vlaneseq
  %v5535 = vshrl.u32 %v5534, 7
  %v5536 = vsub.s32 2, %v5535
  %v5537 = vrot.slane %v5525, %v5536
  %v5538 = vlaneseq
  %v5539 = vshrl.u32 %v5538, 7
  %v5540 = vsub.s32 3, %v5539
  %v5541 = vrot.slane %v5525, %v5540
  %v5542 = vlaneseq
  %v5543 = vshrl.u32 %v5542, 7
  %v5544 = vsub.s32 4, %v5543
  %v5545 = vrot.slane %v5525, %v5544
  %v5546 = vlaneseq
  %v5547 = vshrl.u32 %v5546, 7
  %v5548 = vsub.s32 5, %v5547
  %v5549 = vrot.slane %v5525, %v5548
  %v5550 = vlaneseq
  %v5551 = vshrl.u32 %v5550, 7
  %v5552 = vsub.s32 6, %v5551
  %v5553 = vrot.slane %v5525, %v5552
  %v5554 = vlaneseq
  %v5555 = vshrl.u32 %v5554, 7
  %v5556 = vsub.s32 7, %v5555
  %v5557 = vrot.slane %v5525, %v5556
  %v5566 = vsub.f32 %v3676, %v5529
  %v5567 = vsub.f32 %v3677, %v5529
  %v5568 = vsub.f32 %v3678, %v5529
  %v5569 = vsub.f32 %v3679, %v5529
  %v5570 = vsub.f32 %v3680, %v5529
  %v5571 = vsub.f32 %v3681, %v5529
  %v5572 = vsub.f32 %v3682, %v5529
  %v5573 = vsub.f32 %v3683, %v5529
  %v5574 = vsub.f32 %v3684, %v5529
  %v5575 = vsub.f32 %v3685, %v5529
  %v5576 = vsub.f32 %v3686, %v5529
  %v5577 = vsub.f32 %v3687, %v5529
  %v5578 = vsub.f32 %v3688, %v5529
  %v5579 = vsub.f32 %v3689, %v5529
  %v5580 = vsub.f32 %v3690, %v5529
  %v5581 = vsub.f32 %v3691, %v5529
  %v5582 = vsub.f32 %v3692, %v5529
  %v5583 = vsub.f32 %v3693, %v5529
  %v5584 = vsub.f32 %v3694, %v5529
  %v5585 = vsub.f32 %v3695, %v5529
  %v5586 = vsub.f32 %v3696, %v5529
  %v5587 = vsub.f32 %v3697, %v5529
  %v5588 = vsub.f32 %v3698, %v5529
  %v5589 = vsub.f32 %v3699, %v5529
  %v5590 = vsub.f32 %v3700, %v5529
  %v5591 = vsub.f32 %v3701, %v5529
  %v5592 = vsub.f32 %v3702, %v5529
  %v5593 = vsub.f32 %v3703, %v5529
  %v5594 = vsub.f32 %v3704, %v5529
  %v5595 = vsub.f32 %v3705, %v5529
  %v5596 = vsub.f32 %v3706, %v5529
  %v5597 = vsub.f32 %v3707, %v5529
  %v5598 = vsub.f32 %v3708, %v5533
  %v5599 = vsub.f32 %v3709, %v5533
  %v5600 = vsub.f32 %v3710, %v5533
  %v5601 = vsub.f32 %v3711, %v5533
  %v5602 = vsub.f32 %v3712, %v5533
  %v5603 = vsub.f32 %v3713, %v5533
  %v5604 = vsub.f32 %v3714, %v5533
  %v5605 = vsub.f32 %v3715, %v5533
  %v5606 = vsub.f32 %v3716, %v5533
  %v5607 = vsub.f32 %v3717, %v5533
  %v5608 = vsub.f32 %v3718, %v5533
  %v5609 = vsub.f32 %v3719, %v5533
  %v5610 = vsub.f32 %v3720, %v5533
  %v5611 = vsub.f32 %v3721, %v5533
  %v5612 = vsub.f32 %v3722, %v5533
  %v5613 = vsub.f32 %v3723, %v5533
  %v5614 = vsub.f32 %v3724, %v5533
  %v5615 = vsub.f32 %v3725, %v5533
  %v5616 = vsub.f32 %v3726, %v5533
  %v5617 = vsub.f32 %v3727, %v5533
  %v5618 = vsub.f32 %v3728, %v5533
  %v5619 = vsub.f32 %v3729, %v5533
  %v5620 = vsub.f32 %v3730, %v5533
  %v5621 = vsub.f32 %v3731, %v5533
  %v5622 = vsub.f32 %v3732, %v5533
  %v5623 = vsub.f32 %v3733, %v5533
  %v5624 = vsub.f32 %v3734, %v5533
  %v5625 = vsub.f32 %v3735, %v5533
  %v5626 = vsub.f32 %v3736, %v5533
  %v5627 = vsub.f32 %v3737, %v5533
  %v5628 = vsub.f32 %v3738, %v5533
  %v5629 = vsub.f32 %v3739, %v5533
  %v5630 = vsub.f32 %v3740, %v5537
  %v5631 = vsub.f32 %v3741, %v5537
  %v5632 = vsub.f32 %v3742, %v5537
  %v5633 = vsub.f32 %v3743, %v5537
  %v5634 = vsub.f32 %v3744, %v5537
  %v5635 = vsub.f32 %v3745, %v5537
  %v5636 = vsub.f32 %v3746, %v5537
  %v5637 = vsub.f32 %v3747, %v5537
  %v5638 = vsub.f32 %v3748, %v5537
  %v5639 = vsub.f32 %v3749, %v5537
  %v5640 = vsub.f32 %v3750, %v5537
  %v5641 = vsub.f32 %v3751, %v5537
  %v5642 = vsub.f32 %v3752, %v5537
  %v5643 = vsub.f32 %v3753, %v5537
  %v5644 = vsub.f32 %v3754, %v5537
  %v5645 = vsub.f32 %v3755, %v5537
  %v5646 = vsub.f32 %v3756, %v5537
  %v5647 = vsub.f32 %v3757, %v5537
  %v5648 = vsub.f32 %v3758, %v5537
  %v5649 = vsub.f32 %v3759, %v5537
  %v5650 = vsub.f32 %v3760, %v5537
  %v5651 = vsub.f32 %v3761, %v5537
  %v5652 = vsub.f32 %v3762, %v5537
  %v5653 = vsub.f32 %v3763, %v5537
  %v5654 = vsub.f32 %v3764, %v5537
  %v5655 = vsub.f32 %v3765, %v5537
  %v5656 = vsub.f32 %v3766, %v5537
  %v5657 = vsub.f32 %v3767, %v5537
  %v5658 = vsub.f32 %v3768, %v5537
  %v5659 = vsub.f32 %v3769, %v5537
  %v5660 = vsub.f32 %v3770, %v5537
  %v5661 = vsub.f32 %v3771, %v5537
  %v5662 = vsub.f32 %v3772, %v5541
  %v5663 = vsub.f32 %v3773, %v5541
  %v5664 = vsub.f32 %v3774, %v5541
  %v5665 = vsub.f32 %v3775, %v5541
  %v5666 = vsub.f32 %v3776, %v5541
  %v5667 = vsub.f32 %v3777, %v5541
  %v5668 = vsub.f32 %v3778, %v5541
  %v5669 = vsub.f32 %v3779, %v5541
  %v5670 = vsub.f32 %v3780, %v5541
  %v5671 = vsub.f32 %v3781, %v5541
  %v5672 = vsub.f32 %v3782, %v5541
  %v5673 = vsub.f32 %v3783, %v5541
  %v5674 = vsub.f32 %v3784, %v5541
  %v5675 = vsub.f32 %v3785, %v5541
  %v5676 = vsub.f32 %v3786, %v5541
  %v5677 = vsub.f32 %v3787, %v5541
  %v5678 = vsub.f32 %v3788, %v5541
  %v5679 = vsub.f32 %v3789, %v5541
  %v5680 = vsub.f32 %v3790, %v5541
  %v5681 = vsub.f32 %v3791, %v5541
  %v5682 = vsub.f32 %v3792, %v5541
  %v5683 = vsub.f32 %v3793, %v5541
  %v5684 = vsub.f32 %v3794, %v5541
  %v5685 = vsub.f32 %v3795, %v5541
  %v5686 = vsub.f32 %v3796, %v5541
  %v5687 = vsub.f32 %v3797, %v5541
  %v5688 = vsub.f32 %v3798, %v5541
  %v5689 = vsub.f32 %v3799, %v5541
  %v5690 = vsub.f32 %v3800, %v5541
  %v5691 = vsub.f32 %v3801, %v5541
  %v5692 = vsub.f32 %v3802, %v5541
  %v5693 = vsub.f32 %v3803, %v5541
  %v5694 = vsub.f32 %v3804, %v5545
  %v5695 = vsub.f32 %v3805, %v5545
  %v5696 = vsub.f32 %v3806, %v5545
  %v5697 = vsub.f32 %v3807, %v5545
  %v5698 = vsub.f32 %v3808, %v5545
  %v5699 = vsub.f32 %v3809, %v5545
  %v5700 = vsub.f32 %v3810, %v5545
  %v5701 = vsub.f32 %v3811, %v5545
  %v5702 = vsub.f32 %v3812, %v5545
  %v5703 = vsub.f32 %v3813, %v5545
  %v5704 = vsub.f32 %v3814, %v5545
  %v5705 = vsub.f32 %v3815, %v5545
  %v5706 = vsub.f32 %v3816, %v5545
  %v5707 = vsub.f32 %v3817, %v5545
  %v5708 = vsub.f32 %v3818, %v5545
  %v5709 = vsub.f32 %v3819, %v5545
  %v5710 = vsub.f32 %v3820, %v5545
  %v5711 = vsub.f32 %v3821, %v5545
  %v5712 = vsub.f32 %v3822, %v5545
  %v5713 = vsub.f32 %v3823, %v5545
  %v5714 = vsub.f32 %v3824, %v5545
  %v5715 = vsub.f32 %v3825, %v5545
  %v5716 = vsub.f32 %v3826, %v5545
  %v5717 = vsub.f32 %v3827, %v5545
  %v5718 = vsub.f32 %v3828, %v5545
  %v5719 = vsub.f32 %v3829, %v5545
  %v5720 = vsub.f32 %v3830, %v5545
  %v5721 = vsub.f32 %v3831, %v5545
  %v5722 = vsub.f32 %v3832, %v5545
  %v5723 = vsub.f32 %v3833, %v5545
  %v5724 = vsub.f32 %v3834, %v5545
  %v5725 = vsub.f32 %v3835, %v5545
  %v5726 = vsub.f32 %v3836, %v5549
  %v5727 = vsub.f32 %v3837, %v5549
  %v5728 = vsub.f32 %v3838, %v5549
  %v5729 = vsub.f32 %v3839, %v5549
  %v5730 = vsub.f32 %v3840, %v5549
  %v5731 = vsub.f32 %v3841, %v5549
  %v5732 = vsub.f32 %v3842, %v5549
  %v5733 = vsub.f32 %v3843, %v5549
  %v5734 = vsub.f32 %v3844, %v5549
  %v5735 = vsub.f32 %v3845, %v5549
  %v5736 = vsub.f32 %v3846, %v5549
  %v5737 = vsub.f32 %v3847, %v5549
  %v5738 = vsub.f32 %v3848, %v5549
  %v5739 = vsub.f32 %v3849, %v5549
  %v5740 = vsub.f32 %v3850, %v5549
  %v5741 = vsub.f32 %v3851, %v5549
  %v5742 = vsub.f32 %v3852, %v5549
  %v5743 = vsub.f32 %v3853, %v5549
  %v5744 = vsub.f32 %v3854, %v5549
  %v5745 = vsub.f32 %v3855, %v5549
  %v5746 = vsub.f32 %v3856, %v5549
  %v5747 = vsub.f32 %v3857, %v5549
  %v5748 = vsub.f32 %v3858, %v5549
  %v5749 = vsub.f32 %v3859, %v5549
  %v5750 = vsub.f32 %v3860, %v5549
  %v5751 = vsub.f32 %v3861, %v5549
  %v5752 = vsub.f32 %v3862, %v5549
  %v5753 = vsub.f32 %v3863, %v5549
  %v5754 = vsub.f32 %v3864, %v5549
  %v5755 = vsub.f32 %v3865, %v5549
  %v5756 = vsub.f32 %v3866, %v5549
  %v5757 = vsub.f32 %v3867, %v5549
  %v5758 = vsub.f32 %v3868, %v5553
  %v5759 = vsub.f32 %v3869, %v5553
  %v5760 = vsub.f32 %v3870, %v5553
  %v5761 = vsub.f32 %v3871, %v5553
  %v5762 = vsub.f32 %v3872, %v5553
  %v5763 = vsub.f32 %v3873, %v5553
  %v5764 = vsub.f32 %v3874, %v5553
  %v5765 = vsub.f32 %v3875, %v5553
  %v5766 = vsub.f32 %v3876, %v5553
  %v5767 = vsub.f32 %v3877, %v5553
  %v5768 = vsub.f32 %v3878, %v5553
  %v5769 = vsub.f32 %v3879, %v5553
  %v5770 = vsub.f32 %v3880, %v5553
  %v5771 = vsub.f32 %v3881, %v5553
  %v5772 = vsub.f32 %v3882, %v5553
  %v5773 = vsub.f32 %v3883, %v5553
  %v5774 = vsub.f32 %v3884, %v5553
  %v5775 = vsub.f32 %v3885, %v5553
  %v5776 = vsub.f32 %v3886, %v5553
  %v5777 = vsub.f32 %v3887, %v5553
  %v5778 = vsub.f32 %v3888, %v5553
  %v5779 = vsub.f32 %v3889, %v5553
  %v5780 = vsub.f32 %v3890, %v5553
  %v5781 = vsub.f32 %v3891, %v5553
  %v5782 = vsub.f32 %v3892, %v5553
  %v5783 = vsub.f32 %v3893, %v5553
  %v5784 = vsub.f32 %v3894, %v5553
  %v5785 = vsub.f32 %v3895, %v5553
  %v5786 = vsub.f32 %v3896, %v5553
  %v5787 = vsub.f32 %v3897, %v5553
  %v5788 = vsub.f32 %v3898, %v5553
  %v5789 = vsub.f32 %v3899, %v5553
  %v5790 = vsub.f32 %v3900, %v5557
  %v5791 = vsub.f32 %v3901, %v5557
  %v5792 = vsub.f32 %v3902, %v5557
  %v5793 = vsub.f32 %v3903, %v5557
  %v5794 = vsub.f32 %v3904, %v5557
  %v5795 = vsub.f32 %v3905, %v5557
  %v5796 = vsub.f32 %v3906, %v5557
  %v5797 = vsub.f32 %v3907, %v5557
  %v5798 = vsub.f32 %v3908, %v5557
  %v5799 = vsub.f32 %v3909, %v5557
  %v5800 = vsub.f32 %v3910, %v5557
  %v5801 = vsub.f32 %v3911, %v5557
  %v5802 = vsub.f32 %v3912, %v5557
  %v5803 = vsub.f32 %v3913, %v5557
  %v5804 = vsub.f32 %v3914, %v5557
  %v5805 = vsub.f32 %v3915, %v5557
  %v5806 = vsub.f32 %v3916, %v5557
  %v5807 = vsub.f32 %v3917, %v5557
  %v5808 = vsub.f32 %v3918, %v5557
  %v5809 = vsub.f32 %v3919, %v5557
  %v5810 = vsub.f32 %v3920, %v5557
  %v5811 = vsub.f32 %v3921, %v5557
  %v5812 = vsub.f32 %v3922, %v5557
  %v5813 = vsub.f32 %v3923, %v5557
  %v5814 = vsub.f32 %v3924, %v5557
  %v5815 = vsub.f32 %v3925, %v5557
  %v5816 = vsub.f32 %v3926, %v5557
  %v5817 = vsub.f32 %v3927, %v5557
  %v5818 = vsub.f32 %v3928, %v5557
  %v5819 = vsub.f32 %v3929, %v5557
  %v5820 = vsub.f32 %v3930, %v5557
  %v5821 = vsub.f32 %v3931, %v5557
  %v5822 = vmul.f32 %v5566, 1.442695
  %v5823 = vpow.pop %v5822
  %v5824 = vmul.f32 %v5567, 1.442695
  %v5825 = vpow.pop %v5824
  %v5826 = vmul.f32 %v5568, 1.442695
  %v5827 = vpow.pop %v5826
  %v5828 = vmul.f32 %v5569, 1.442695
  %v5829 = vpow.pop %v5828
  %v5830 = vmul.f32 %v5570, 1.442695
  %v5831 = vpow.pop %v5830
  %v5832 = vmul.f32 %v5571, 1.442695
  %v5833 = vpow.pop %v5832
  %v5834 = vmul.f32 %v5572, 1.442695
  %v5835 = vpow.pop %v5834
  %v5836 = vmul.f32 %v5573, 1.442695
  %v5837 = vpow.pop %v5836
  %v5838 = vmul.f32 %v5574, 1.442695
  %v5839 = vpow.pop %v5838
  %v5840 = vmul.f32 %v5575, 1.442695
  %v5841 = vpow.pop %v5840
  %v5842 = vmul.f32 %v5576, 1.442695
  %v5843 = vpow.pop %v5842
  %v5844 = vmul.f32 %v5577, 1.442695
  %v5845 = vpow.pop %v5844
  %v5846 = vmul.f32 %v5578, 1.442695
  %v5847 = vpow.pop %v5846
  %v5848 = vmul.f32 %v5579, 1.442695
  %v5849 = vpow.pop %v5848
  %v5850 = vmul.f32 %v5580, 1.442695
  %v5851 = vpow.pop %v5850
  %v5852 = vmul.f32 %v5581, 1.442695
  %v5853 = vpow.pop %v5852
  %v5854 = vmul.f32 %v5582, 1.442695
  %v5855 = vpow.pop %v5854
  %v5856 = vmul.f32 %v5583, 1.442695
  %v5857 = vpow.pop %v5856
  %v5858 = vmul.f32 %v5584, 1.442695
  %v5859 = vpow.pop %v5858
  %v5860 = vmul.f32 %v5585, 1.442695
  %v5861 = vpow.pop %v5860
  %v5862 = vmul.f32 %v5586, 1.442695
  %v5863 = vpow.pop %v5862
  %v5864 = vmul.f32 %v5587, 1.442695
  %v5865 = vpow.pop %v5864
  %v5866 = vmul.f32 %v5588, 1.442695
  %v5867 = vpow.pop %v5866
  %v5868 = vmul.f32 %v5589, 1.442695
  %v5869 = vpow.pop %v5868
  %v5870 = vmul.f32 %v5590, 1.442695
  %v5871 = vpow.pop %v5870
  %v5872 = vmul.f32 %v5591, 1.442695
  %v5873 = vpow.pop %v5872
  %v5874 = vmul.f32 %v5592, 1.442695
  %v5875 = vpow.pop %v5874
  %v5876 = vmul.f32 %v5593, 1.442695
  %v5877 = vpow.pop %v5876
  %v5878 = vmul.f32 %v5594, 1.442695
  %v5879 = vpow.pop %v5878
  %v5880 = vmul.f32 %v5595, 1.442695
  %v5881 = vpow.pop %v5880
  %v5882 = vmul.f32 %v5596, 1.442695
  %v5883 = vpow.pop %v5882
  %v5884 = vmul.f32 %v5597, 1.442695
  %v5885 = vpow.pop %v5884
  %v5886 = vmul.f32 %v5598, 1.442695
  %v5887 = vpow.pop %v5886
  %v5888 = vmul.f32 %v5599, 1.442695
  %v5889 = vpow.pop %v5888
  %v5890 = vmul.f32 %v5600, 1.442695
  %v5891 = vpow.pop %v5890
  %v5892 = vmul.f32 %v5601, 1.442695
  %v5893 = vpow.pop %v5892
  %v5894 = vmul.f32 %v5602, 1.442695
  %v5895 = vpow.pop %v5894
  %v5896 = vmul.f32 %v5603, 1.442695
  %v5897 = vpow.pop %v5896
  %v5898 = vmul.f32 %v5604, 1.442695
  %v5899 = vpow.pop %v5898
  %v5900 = vmul.f32 %v5605, 1.442695
  %v5901 = vpow.pop %v5900
  %v5902 = vmul.f32 %v5606, 1.442695
  %v5903 = vpow.pop %v5902
  %v5904 = vmul.f32 %v5607, 1.442695
  %v5905 = vpow.pop %v5904
  %v5906 = vmul.f32 %v5608, 1.442695
  %v5907 = vpow.pop %v5906
  %v5908 = vmul.f32 %v5609, 1.442695
  %v5909 = vpow.pop %v5908
  %v5910 = vmul.f32 %v5610, 1.442695
  %v5911 = vpow.pop %v5910
  %v5912 = vmul.f32 %v5611, 1.442695
  %v5913 = vpow.pop %v5912
  %v5914 = vmul.f32 %v5612, 1.442695
  %v5915 = vpow.pop %v5914
  %v5916 = vmul.f32 %v5613, 1.442695
  %v5917 = vpow.pop %v5916
  %v5918 = vmul.f32 %v5614, 1.442695
  %v5919 = vpow.pop %v5918
  %v5920 = vmul.f32 %v5615, 1.442695
  %v5921 = vpow.pop %v5920
  %v5922 = vmul.f32 %v5616, 1.442695
  %v5923 = vpow.pop %v5922
  %v5924 = vmul.f32 %v5617, 1.442695
  %v5925 = vpow.pop %v5924
  %v5926 = vmul.f32 %v5618, 1.442695
  %v5927 = vpow.pop %v5926
  %v5928 = vmul.f32 %v5619, 1.442695
  %v5929 = vpow.pop %v5928
  %v5930 = vmul.f32 %v5620, 1.442695
  %v5931 = vpow.pop %v5930
  %v5932 = vmul.f32 %v5621, 1.442695
  %v5933 = vpow.pop %v5932
  %v5934 = vmul.f32 %v5622, 1.442695
  %v5935 = vpow.pop %v5934
  %v5936 = vmul.f32 %v5623, 1.442695
  %v5937 = vpow.pop %v5936
  %v5938 = vmul.f32 %v5624, 1.442695
  %v5939 = vpow.pop %v5938
  %v5940 = vmul.f32 %v5625, 1.442695
  %v5941 = vpow.pop %v5940
  %v5942 = vmul.f32 %v5626, 1.442695
  %v5943 = vpow.pop %v5942
  %v5944 = vmul.f32 %v5627, 1.442695
  %v5945 = vpow.pop %v5944
  %v5946 = vmul.f32 %v5628, 1.442695
  %v5947 = vpow.pop %v5946
  %v5948 = vmul.f32 %v5629, 1.442695
  %v5949 = vpow.pop %v5948
  %v5950 = vmul.f32 %v5630, 1.442695
  %v5951 = vpow.pop %v5950
  %v5952 = vmul.f32 %v5631, 1.442695
  %v5953 = vpow.pop %v5952
  %v5954 = vmul.f32 %v5632, 1.442695
  %v5955 = vpow.pop %v5954
  %v5956 = vmul.f32 %v5633, 1.442695
  %v5957 = vpow.pop %v5956
  %v5958 = vmul.f32 %v5634, 1.442695
  %v5959 = vpow.pop %v5958
  %v5960 = vmul.f32 %v5635, 1.442695
  %v5961 = vpow.pop %v5960
  %v5962 = vmul.f32 %v5636, 1.442695
  %v5963 = vpow.pop %v5962
  %v5964 = vmul.f32 %v5637, 1.442695
  %v5965 = vpow.pop %v5964
  %v5966 = vmul.f32 %v5638, 1.442695
  %v5967 = vpow.pop %v5966
  %v5968 = vmul.f32 %v5639, 1.442695
  %v5969 = vpow.pop %v5968
  %v5970 = vmul.f32 %v5640, 1.442695
  %v5971 = vpow.pop %v5970
  %v5972 = vmul.f32 %v5641, 1.442695
  %v5973 = vpow.pop %v5972
  %v5974 = vmul.f32 %v5642, 1.442695
  %v5975 = vpow.pop %v5974
  %v5976 = vmul.f32 %v5643, 1.442695
  %v5977 = vpow.pop %v5976
  %v5978 = vmul.f32 %v5644, 1.442695
  %v5979 = vpow.pop %v5978
  %v5980 = vmul.f32 %v5645, 1.442695
  %v5981 = vpow.pop %v5980
  %v5982 = vmul.f32 %v5646, 1.442695
  %v5983 = vpow.pop %v5982
  %v5984 = vmul.f32 %v5647, 1.442695
  %v5985 = vpow.pop %v5984
  %v5986 = vmul.f32 %v5648, 1.442695
  %v5987 = vpow.pop %v5986
  %v5988 = vmul.f32 %v5649, 1.442695
  %v5989 = vpow.pop %v5988
  %v5990 = vmul.f32 %v5650, 1.442695
  %v5991 = vpow.pop %v5990
  %v5992 = vmul.f32 %v5651, 1.442695
  %v5993 = vpow.pop %v5992
  %v5994 = vmul.f32 %v5652, 1.442695
  %v5995 = vpow.pop %v5994
  %v5996 = vmul.f32 %v5653, 1.442695
  %v5997 = vpow.pop %v5996
  %v5998 = vmul.f32 %v5654, 1.442695
  %v5999 = vpow.pop %v5998
  %v6000 = vmul.f32 %v5655, 1.442695
  %v6001 = vpow.pop %v6000
  %v6002 = vmul.f32 %v5656, 1.442695
  %v6003 = vpow.pop %v6002
  %v6004 = vmul.f32 %v5657, 1.442695
  %v6005 = vpow.pop %v6004
  %v6006 = vmul.f32 %v5658, 1.442695
  %v6007 = vpow.pop %v6006
  %v6008 = vmul.f32 %v5659, 1.442695
  %v6009 = vpow.pop %v6008
  %v6010 = vmul.f32 %v5660, 1.442695
  %v6011 = vpow.pop %v6010
  %v6012 = vmul.f32 %v5661, 1.442695
  %v6013 = vpow.pop %v6012
  %v6014 = vmul.f32 %v5662, 1.442695
  %v6015 = vpow.pop %v6014
  %v6016 = vmul.f32 %v5663, 1.442695
  %v6017 = vpow.pop %v6016
  %v6018 = vmul.f32 %v5664, 1.442695
  %v6019 = vpow.pop %v6018
  %v6020 = vmul.f32 %v5665, 1.442695
  %v6021 = vpow.pop %v6020
  %v6022 = vmul.f32 %v5666, 1.442695
  %v6023 = vpow.pop %v6022
  %v6024 = vmul.f32 %v5667, 1.442695
  %v6025 = vpow.pop %v6024
  %v6026 = vmul.f32 %v5668, 1.442695
  %v6027 = vpow.pop %v6026
  %v6028 = vmul.f32 %v5669, 1.442695
  %v6029 = vpow.pop %v6028
  %v6030 = vmul.f32 %v5670, 1.442695
  %v6031 = vpow.pop %v6030
  %v6032 = vmul.f32 %v5671, 1.442695
  %v6033 = vpow.pop %v6032
  %v6034 = vmul.f32 %v5672, 1.442695
  %v6035 = vpow.pop %v6034
  %v6036 = vmul.f32 %v5673, 1.442695
  %v6037 = vpow.pop %v6036
  %v6038 = vmul.f32 %v5674, 1.442695
  %v6039 = vpow.pop %v6038
  %v6040 = vmul.f32 %v5675, 1.442695
  %v6041 = vpow.pop %v6040
  %v6042 = vmul.f32 %v5676, 1.442695
  %v6043 = vpow.pop %v6042
  %v6044 = vmul.f32 %v5677, 1.442695
  %v6045 = vpow.pop %v6044
  %v6046 = vmul.f32 %v5678, 1.442695
  %v6047 = vpow.pop %v6046
  %v6048 = vmul.f32 %v5679, 1.442695
  %v6049 = vpow.pop %v6048
  %v6050 = vmul.f32 %v5680, 1.442695
  %v6051 = vpow.pop %v6050
  %v6052 = vmul.f32 %v5681, 1.442695
  %v6053 = vpow.pop %v6052
  %v6054 = vmul.f32 %v5682, 1.442695
  %v6055 = vpow.pop %v6054
  %v6056 = vmul.f32 %v5683, 1.442695
  %v6057 = vpow.pop %v6056
  %v6058 = vmul.f32 %v5684, 1.442695
  %v6059 = vpow.pop %v6058
  %v6060 = vmul.f32 %v5685, 1.442695
  %v6061 = vpow.pop %v6060
  %v6062 = vmul.f32 %v5686, 1.442695
  %v6063 = vpow.pop %v6062
  %v6064 = vmul.f32 %v5687, 1.442695
  %v6065 = vpow.pop %v6064
  %v6066 = vmul.f32 %v5688, 1.442695
  %v6067 = vpow.pop %v6066
  %v6068 = vmul.f32 %v5689, 1.442695
  %v6069 = vpow.pop %v6068
  %v6070 = vmul.f32 %v5690, 1.442695
  %v6071 = vpow.pop %v6070
  %v6072 = vmul.f32 %v5691, 1.442695
  %v6073 = vpow.pop %v6072
  %v6074 = vmul.f32 %v5692, 1.442695
  %v6075 = vpow.pop %v6074
  %v6076 = vmul.f32 %v5693, 1.442695
  %v6077 = vpow.pop %v6076
  %v6078 = vmul.f32 %v5694, 1.442695
  %v6079 = vpow.pop %v6078
  %v6080 = vmul.f32 %v5695, 1.442695
  %v6081 = vpow.pop %v6080
  %v6082 = vmul.f32 %v5696, 1.442695
  %v6083 = vpow.pop %v6082
  %v6084 = vmul.f32 %v5697, 1.442695
  %v6085 = vpow.pop %v6084
  %v6086 = vmul.f32 %v5698, 1.442695
  %v6087 = vpow.pop %v6086
  %v6088 = vmul.f32 %v5699, 1.442695
  %v6089 = vpow.pop %v6088
  %v6090 = vmul.f32 %v5700, 1.442695
  %v6091 = vpow.pop %v6090
  %v6092 = vmul.f32 %v5701, 1.442695
  %v6093 = vpow.pop %v6092
  %v6094 = vmul.f32 %v5702, 1.442695
  %v6095 = vpow.pop %v6094
  %v6096 = vmul.f32 %v5703, 1.442695
  %v6097 = vpow.pop %v6096
  %v6098 = vmul.f32 %v5704, 1.442695
  %v6099 = vpow.pop %v6098
  %v6100 = vmul.f32 %v5705, 1.442695
  %v6101 = vpow.pop %v6100
  %v6102 = vmul.f32 %v5706, 1.442695
  %v6103 = vpow.pop %v6102
  %v6104 = vmul.f32 %v5707, 1.442695
  %v6105 = vpow.pop %v6104
  %v6106 = vmul.f32 %v5708, 1.442695
  %v6107 = vpow.pop %v6106
  %v6108 = vmul.f32 %v5709, 1.442695
  %v6109 = vpow.pop %v6108
  %v6110 = vmul.f32 %v5710, 1.442695
  %v6111 = vpow.pop %v6110
  %v6112 = vmul.f32 %v5711, 1.442695
  %v6113 = vpow.pop %v6112
  %v6114 = vmul.f32 %v5712, 1.442695
  %v6115 = vpow.pop %v6114
  %v6116 = vmul.f32 %v5713, 1.442695
  %v6117 = vpow.pop %v6116
  %v6118 = vmul.f32 %v5714, 1.442695
  %v6119 = vpow.pop %v6118
  %v6120 = vmul.f32 %v5715, 1.442695
  %v6121 = vpow.pop %v6120
  %v6122 = vmul.f32 %v5716, 1.442695
  %v6123 = vpow.pop %v6122
  %v6124 = vmul.f32 %v5717, 1.442695
  %v6125 = vpow.pop %v6124
  %v6126 = vmul.f32 %v5718, 1.442695
  %v6127 = vpow.pop %v6126
  %v6128 = vmul.f32 %v5719, 1.442695
  %v6129 = vpow.pop %v6128
  %v6130 = vmul.f32 %v5720, 1.442695
  %v6131 = vpow.pop %v6130
  %v6132 = vmul.f32 %v5721, 1.442695
  %v6133 = vpow.pop %v6132
  %v6134 = vmul.f32 %v5722, 1.442695
  %v6135 = vpow.pop %v6134
  %v6136 = vmul.f32 %v5723, 1.442695
  %v6137 = vpow.pop %v6136
  %v6138 = vmul.f32 %v5724, 1.442695
  %v6139 = vpow.pop %v6138
  %v6140 = vmul.f32 %v5725, 1.442695
  %v6141 = vpow.pop %v6140
  %v6142 = vmul.f32 %v5726, 1.442695
  %v6143 = vpow.pop %v6142
  %v6144 = vmul.f32 %v5727, 1.442695
  %v6145 = vpow.pop %v6144
  %v6146 = vmul.f32 %v5728, 1.442695
  %v6147 = vpow.pop %v6146
  %v6148 = vmul.f32 %v5729, 1.442695
  %v6149 = vpow.pop %v6148
  %v6150 = vmul.f32 %v5730, 1.442695
  %v6151 = vpow.pop %v6150
  %v6152 = vmul.f32 %v5731, 1.442695
  %v6153 = vpow.pop %v6152
  %v6154 = vmul.f32 %v5732, 1.442695
  %v6155 = vpow.pop %v6154
  %v6156 = vmul.f32 %v5733, 1.442695
  %v6157 = vpow.pop %v6156
  %v6158 = vmul.f32 %v5734, 1.442695
  %v6159 = vpow.pop %v6158
  %v6160 = vmul.f32 %v5735, 1.442695
  %v6161 = vpow.pop %v6160
  %v6162 = vmul.f32 %v5736, 1.442695
  %v6163 = vpow.pop %v6162
  %v6164 = vmul.f32 %v5737, 1.442695
  %v6165 = vpow.pop %v6164
  %v6166 = vmul.f32 %v5738, 1.442695
  %v6167 = vpow.pop %v6166
  %v6168 = vmul.f32 %v5739, 1.442695
  %v6169 = vpow.pop %v6168
  %v6170 = vmul.f32 %v5740, 1.442695
  %v6171 = vpow.pop %v6170
  %v6172 = vmul.f32 %v5741, 1.442695
  %v6173 = vpow.pop %v6172
  %v6174 = vmul.f32 %v5742, 1.442695
  %v6175 = vpow.pop %v6174
  %v6176 = vmul.f32 %v5743, 1.442695
  %v6177 = vpow.pop %v6176
  %v6178 = vmul.f32 %v5744, 1.442695
  %v6179 = vpow.pop %v6178
  %v6180 = vmul.f32 %v5745, 1.442695
  %v6181 = vpow.pop %v6180
  %v6182 = vmul.f32 %v5746, 1.442695
  %v6183 = vpow.pop %v6182
  %v6184 = vmul.f32 %v5747, 1.442695
  %v6185 = vpow.pop %v6184
  %v6186 = vmul.f32 %v5748, 1.442695
  %v6187 = vpow.pop %v6186
  %v6188 = vmul.f32 %v5749, 1.442695
  %v6189 = vpow.pop %v6188
  %v6190 = vmul.f32 %v5750, 1.442695
  %v6191 = vpow.pop %v6190
  %v6192 = vmul.f32 %v5751, 1.442695
  %v6193 = vpow.pop %v6192
  %v6194 = vmul.f32 %v5752, 1.442695
  %v6195 = vpow.pop %v6194
  %v6196 = vmul.f32 %v5753, 1.442695
  %v6197 = vpow.pop %v6196
  %v6198 = vmul.f32 %v5754, 1.442695
  %v6199 = vpow.pop %v6198
  %v6200 = vmul.f32 %v5755, 1.442695
  %v6201 = vpow.pop %v6200
  %v6202 = vmul.f32 %v5756, 1.442695
  %v6203 = vpow.pop %v6202
  %v6204 = vmul.f32 %v5757, 1.442695
  %v6205 = vpow.pop %v6204
  %v6206 = vmul.f32 %v5758, 1.442695
  %v6207 = vpow.pop %v6206
  %v6208 = vmul.f32 %v5759, 1.442695
  %v6209 = vpow.pop %v6208
  %v6210 = vmul.f32 %v5760, 1.442695
  %v6211 = vpow.pop %v6210
  %v6212 = vmul.f32 %v5761, 1.442695
  %v6213 = vpow.pop %v6212
  %v6214 = vmul.f32 %v5762, 1.442695
  %v6215 = vpow.pop %v6214
  %v6216 = vmul.f32 %v5763, 1.442695
  %v6217 = vpow.pop %v6216
  %v6218 = vmul.f32 %v5764, 1.442695
  %v6219 = vpow.pop %v6218
  %v6220 = vmul.f32 %v5765, 1.442695
  %v6221 = vpow.pop %v6220
  %v6222 = vmul.f32 %v5766, 1.442695
  %v6223 = vpow.pop %v6222
  %v6224 = vmul.f32 %v5767, 1.442695
  %v6225 = vpow.pop %v6224
  %v6226 = vmul.f32 %v5768, 1.442695
  %v6227 = vpow.pop %v6226
  %v6228 = vmul.f32 %v5769, 1.442695
  %v6229 = vpow.pop %v6228
  %v6230 = vmul.f32 %v5770, 1.442695
  %v6231 = vpow.pop %v6230
  %v6232 = vmul.f32 %v5771, 1.442695
  %v6233 = vpow.pop %v6232
  %v6234 = vmul.f32 %v5772, 1.442695
  %v6235 = vpow.pop %v6234
  %v6236 = vmul.f32 %v5773, 1.442695
  %v6237 = vpow.pop %v6236
  %v6238 = vmul.f32 %v5774, 1.442695
  %v6239 = vpow.pop %v6238
  %v6240 = vmul.f32 %v5775, 1.442695
  %v6241 = vpow.pop %v6240
  %v6242 = vmul.f32 %v5776, 1.442695
  %v6243 = vpow.pop %v6242
  %v6244 = vmul.f32 %v5777, 1.442695
  %v6245 = vpow.pop %v6244
  %v6246 = vmul.f32 %v5778, 1.442695
  %v6247 = vpow.pop %v6246
  %v6248 = vmul.f32 %v5779, 1.442695
  %v6249 = vpow.pop %v6248
  %v6250 = vmul.f32 %v5780, 1.442695
  %v6251 = vpow.pop %v6250
  %v6252 = vmul.f32 %v5781, 1.442695
  %v6253 = vpow.pop %v6252
  %v6254 = vmul.f32 %v5782, 1.442695
  %v6255 = vpow.pop %v6254
  %v6256 = vmul.f32 %v5783, 1.442695
  %v6257 = vpow.pop %v6256
  %v6258 = vmul.f32 %v5784, 1.442695
  %v6259 = vpow.pop %v6258
  %v6260 = vmul.f32 %v5785, 1.442695
  %v6261 = vpow.pop %v6260
  %v6262 = vmul.f32 %v5786, 1.442695
  %v6263 = vpow.pop %v6262
  %v6264 = vmul.f32 %v5787, 1.442695
  %v6265 = vpow.pop %v6264
  %v6266 = vmul.f32 %v5788, 1.442695
  %v6267 = vpow.pop %v6266
  %v6268 = vmul.f32 %v5789, 1.442695
  %v6269 = vpow.pop %v6268
  %v6270 = vmul.f32 %v5790, 1.442695
  %v6271 = vpow.pop %v6270
  %v6272 = vmul.f32 %v5791, 1.442695
  %v6273 = vpow.pop %v6272
  %v6274 = vmul.f32 %v5792, 1.442695
  %v6275 = vpow.pop %v6274
  %v6276 = vmul.f32 %v5793, 1.442695
  %v6277 = vpow.pop %v6276
  %v6278 = vmul.f32 %v5794, 1.442695
  %v6279 = vpow.pop %v6278
  %v6280 = vmul.f32 %v5795, 1.442695
  %v6281 = vpow.pop %v6280
  %v6282 = vmul.f32 %v5796, 1.442695
  %v6283 = vpow.pop %v6282
  %v6284 = vmul.f32 %v5797, 1.442695
  %v6285 = vpow.pop %v6284
  %v6286 = vmul.f32 %v5798, 1.442695
  %v6287 = vpow.pop %v6286
  %v6288 = vmul.f32 %v5799, 1.442695
  %v6289 = vpow.pop %v6288
  %v6290 = vmul.f32 %v5800, 1.442695
  %v6291 = vpow.pop %v6290
  %v6292 = vmul.f32 %v5801, 1.442695
  %v6293 = vpow.pop %v6292
  %v6294 = vmul.f32 %v5802, 1.442695
  %v6295 = vpow.pop %v6294
  %v6296 = vmul.f32 %v5803, 1.442695
  %v6297 = vpow.pop %v6296
  %v6298 = vmul.f32 %v5804, 1.442695
  %v6299 = vpow.pop %v6298
  %v6300 = vmul.f32 %v5805, 1.442695
  %v6301 = vpow.pop %v6300
  %v6302 = vmul.f32 %v5806, 1.442695
  %v6303 = vpow.pop %v6302
  %v6304 = vmul.f32 %v5807, 1.442695
  %v6305 = vpow.pop %v6304
  %v6306 = vmul.f32 %v5808, 1.442695
  %v6307 = vpow.pop %v6306
  %v6308 = vmul.f32 %v5809, 1.442695
  %v6309 = vpow.pop %v6308
  %v6310 = vmul.f32 %v5810, 1.442695
  %v6311 = vpow.pop %v6310
  %v6312 = vmul.f32 %v5811, 1.442695
  %v6313 = vpow.pop %v6312
  %v6314 = vmul.f32 %v5812, 1.442695
  %v6315 = vpow.pop %v6314
  %v6316 = vmul.f32 %v5813, 1.442695
  %v6317 = vpow.pop %v6316
  %v6318 = vmul.f32 %v5814, 1.442695
  %v6319 = vpow.pop %v6318
  %v6320 = vmul.f32 %v5815, 1.442695
  %v6321 = vpow.pop %v6320
  %v6322 = vmul.f32 %v5816, 1.442695
  %v6323 = vpow.pop %v6322
  %v6324 = vmul.f32 %v5817, 1.442695
  %v6325 = vpow.pop %v6324
  %v6326 = vmul.f32 %v5818, 1.442695
  %v6327 = vpow.pop %v6326
  %v6328 = vmul.f32 %v5819, 1.442695
  %v6329 = vpow.pop %v6328
  %v6330 = vmul.f32 %v5820, 1.442695
  %v6331 = vpow.pop %v6330
  %v6332 = vmul.f32 %v5821, 1.442695
  %v6333 = vpow.pop %v6332
  %v6334 = vld [vmem:[#allocation4] sm:$0xff]
  %v6335 = vmul.f32 %v5521, %v6334
  %6592 = vset.pattern.permute.xlu0 0
  %6593 = vperm.xlu0 %6592, %v5823
  %v6594 = vpop.permute.xlu0 %6593
  %6595 = vset.pattern.permute.xlu0 0
  %6596 = vperm.xlu0 %6595, %v5825
  %v6597 = vpop.permute.xlu0 %6596
  %6598 = vset.pattern.permute.xlu0 0
  %6599 = vperm.xlu0 %6598, %v5827
  %v6600 = vpop.permute.xlu0 %6599
  %6601 = vset.pattern.permute.xlu0 0
  %6602 = vperm.xlu0 %6601, %v5829
  %v6603 = vpop.permute.xlu0 %6602
  %6604 = vset.pattern.permute.xlu0 0
  %6605 = vperm.xlu0 %6604, %v5831
  %v6606 = vpop.permute.xlu0 %6605
  %6607 = vset.pattern.permute.xlu0 0
  %6608 = vperm.xlu0 %6607, %v5833
  %v6609 = vpop.permute.xlu0 %6608
  %6610 = vset.pattern.permute.xlu0 0
  %6611 = vperm.xlu0 %6610, %v5835
  %v6612 = vpop.permute.xlu0 %6611
  %6613 = vset.pattern.permute.xlu0 0
  %6614 = vperm.xlu0 %6613, %v5837
  %v6615 = vpop.permute.xlu0 %6614
  %6616 = vset.pattern.permute.xlu0 0
  %6617 = vperm.xlu0 %6616, %v5839
  %v6618 = vpop.permute.xlu0 %6617
  %6619 = vset.pattern.permute.xlu0 0
  %6620 = vperm.xlu0 %6619, %v5841
  %v6621 = vpop.permute.xlu0 %6620
  %6622 = vset.pattern.permute.xlu0 0
  %6623 = vperm.xlu0 %6622, %v5843
  %v6624 = vpop.permute.xlu0 %6623
  %6625 = vset.pattern.permute.xlu0 0
  %6626 = vperm.xlu0 %6625, %v5845
  %v6627 = vpop.permute.xlu0 %6626
  %6628 = vset.pattern.permute.xlu0 0
  %6629 = vperm.xlu0 %6628, %v5847
  %v6630 = vpop.permute.xlu0 %6629
  %6631 = vset.pattern.permute.xlu0 0
  %6632 = vperm.xlu0 %6631, %v5849
  %v6633 = vpop.permute.xlu0 %6632
  %6634 = vset.pattern.permute.xlu0 0
  %6635 = vperm.xlu0 %6634, %v5851
  %v6636 = vpop.permute.xlu0 %6635
  %6637 = vset.pattern.permute.xlu0 0
  %6638 = vperm.xlu0 %6637, %v5853
  %v6639 = vpop.permute.xlu0 %6638
  %6640 = vset.pattern.permute.xlu0 0
  %6641 = vperm.xlu0 %6640, %v5855
  %v6642 = vpop.permute.xlu0 %6641
  %6643 = vset.pattern.permute.xlu0 0
  %6644 = vperm.xlu0 %6643, %v5857
  %v6645 = vpop.permute.xlu0 %6644
  %6646 = vset.pattern.permute.xlu0 0
  %6647 = vperm.xlu0 %6646, %v5859
  %v6648 = vpop.permute.xlu0 %6647
  %6649 = vset.pattern.permute.xlu0 0
  %6650 = vperm.xlu0 %6649, %v5861
  %v6651 = vpop.permute.xlu0 %6650
  %6652 = vset.pattern.permute.xlu0 0
  %6653 = vperm.xlu0 %6652, %v5863
  %v6654 = vpop.permute.xlu0 %6653
  %6655 = vset.pattern.permute.xlu0 0
  %6656 = vperm.xlu0 %6655, %v5865
  %v6657 = vpop.permute.xlu0 %6656
  %6658 = vset.pattern.permute.xlu0 0
  %6659 = vperm.xlu0 %6658, %v5867
  %v6660 = vpop.permute.xlu0 %6659
  %6661 = vset.pattern.permute.xlu0 0
  %6662 = vperm.xlu0 %6661, %v5869
  %v6663 = vpop.permute.xlu0 %6662
  %6664 = vset.pattern.permute.xlu0 0
  %6665 = vperm.xlu0 %6664, %v5871
  %v6666 = vpop.permute.xlu0 %6665
  %6667 = vset.pattern.permute.xlu0 0
  %6668 = vperm.xlu0 %6667, %v5873
  %v6669 = vpop.permute.xlu0 %6668
  %6670 = vset.pattern.permute.xlu0 0
  %6671 = vperm.xlu0 %6670, %v5875
  %v6672 = vpop.permute.xlu0 %6671
  %6673 = vset.pattern.permute.xlu0 0
  %6674 = vperm.xlu0 %6673, %v5877
  %v6675 = vpop.permute.xlu0 %6674
  %6676 = vset.pattern.permute.xlu0 0
  %6677 = vperm.xlu0 %6676, %v5879
  %v6678 = vpop.permute.xlu0 %6677
  %6679 = vset.pattern.permute.xlu0 0
  %6680 = vperm.xlu0 %6679, %v5881
  %v6681 = vpop.permute.xlu0 %6680
  %6682 = vset.pattern.permute.xlu0 0
  %6683 = vperm.xlu0 %6682, %v5883
  %v6684 = vpop.permute.xlu0 %6683
  %6685 = vset.pattern.permute.xlu0 0
  %6686 = vperm.xlu0 %6685, %v5885
  %v6687 = vpop.permute.xlu0 %6686
  %6688 = vset.pattern.permute.xlu0 0
  %6689 = vperm.xlu0 %6688, %v5887
  %v6690 = vpop.permute.xlu0 %6689
  %6691 = vset.pattern.permute.xlu0 0
  %6692 = vperm.xlu0 %6691, %v5889
  %v6693 = vpop.permute.xlu0 %6692
  %6694 = vset.pattern.permute.xlu0 0
  %6695 = vperm.xlu0 %6694, %v5891
  %v6696 = vpop.permute.xlu0 %6695
  %6697 = vset.pattern.permute.xlu0 0
  %6698 = vperm.xlu0 %6697, %v5893
  %v6699 = vpop.permute.xlu0 %6698
  %6700 = vset.pattern.permute.xlu0 0
  %6701 = vperm.xlu0 %6700, %v5895
  %v6702 = vpop.permute.xlu0 %6701
  %6703 = vset.pattern.permute.xlu0 0
  %6704 = vperm.xlu0 %6703, %v5897
  %v6705 = vpop.permute.xlu0 %6704
  %6706 = vset.pattern.permute.xlu0 0
  %6707 = vperm.xlu0 %6706, %v5899
  %v6708 = vpop.permute.xlu0 %6707
  %6709 = vset.pattern.permute.xlu0 0
  %6710 = vperm.xlu0 %6709, %v5901
  %v6711 = vpop.permute.xlu0 %6710
  %6712 = vset.pattern.permute.xlu0 0
  %6713 = vperm.xlu0 %6712, %v5903
  %v6714 = vpop.permute.xlu0 %6713
  %6715 = vset.pattern.permute.xlu0 0
  %6716 = vperm.xlu0 %6715, %v5905
  %v6717 = vpop.permute.xlu0 %6716
  %6718 = vset.pattern.permute.xlu0 0
  %6719 = vperm.xlu0 %6718, %v5907
  %v6720 = vpop.permute.xlu0 %6719
  %6721 = vset.pattern.permute.xlu0 0
  %6722 = vperm.xlu0 %6721, %v5909
  %v6723 = vpop.permute.xlu0 %6722
  %6724 = vset.pattern.permute.xlu0 0
  %6725 = vperm.xlu0 %6724, %v5911
  %v6726 = vpop.permute.xlu0 %6725
  %6727 = vset.pattern.permute.xlu0 0
  %6728 = vperm.xlu0 %6727, %v5913
  %v6729 = vpop.permute.xlu0 %6728
  %6730 = vset.pattern.permute.xlu0 0
  %6731 = vperm.xlu0 %6730, %v5915
  %v6732 = vpop.permute.xlu0 %6731
  %6733 = vset.pattern.permute.xlu0 0
  %6734 = vperm.xlu0 %6733, %v5917
  %v6735 = vpop.permute.xlu0 %6734
  %6736 = vset.pattern.permute.xlu0 0
  %6737 = vperm.xlu0 %6736, %v5919
  %v6738 = vpop.permute.xlu0 %6737
  %6739 = vset.pattern.permute.xlu0 0
  %6740 = vperm.xlu0 %6739, %v5921
  %v6741 = vpop.permute.xlu0 %6740
  %6742 = vset.pattern.permute.xlu0 0
  %6743 = vperm.xlu0 %6742, %v5923
  %v6744 = vpop.permute.xlu0 %6743
  %6745 = vset.pattern.permute.xlu0 0
  %6746 = vperm.xlu0 %6745, %v5925
  %v6747 = vpop.permute.xlu0 %6746
  %6748 = vset.pattern.permute.xlu0 0
  %6749 = vperm.xlu0 %6748, %v5927
  %v6750 = vpop.permute.xlu0 %6749
  %6751 = vset.pattern.permute.xlu0 0
  %6752 = vperm.xlu0 %6751, %v5929
  %v6753 = vpop.permute.xlu0 %6752
  %6754 = vset.pattern.permute.xlu0 0
  %6755 = vperm.xlu0 %6754, %v5931
  %v6756 = vpop.permute.xlu0 %6755
  %6757 = vset.pattern.permute.xlu0 0
  %6758 = vperm.xlu0 %6757, %v5933
  %v6759 = vpop.permute.xlu0 %6758
  %6760 = vset.pattern.permute.xlu0 0
  %6761 = vperm.xlu0 %6760, %v5935
  %v6762 = vpop.permute.xlu0 %6761
  %6763 = vset.pattern.permute.xlu0 0
  %6764 = vperm.xlu0 %6763, %v5937
  %v6765 = vpop.permute.xlu0 %6764
  %6766 = vset.pattern.permute.xlu0 0
  %6767 = vperm.xlu0 %6766, %v5939
  %v6768 = vpop.permute.xlu0 %6767
  %6769 = vset.pattern.permute.xlu0 0
  %6770 = vperm.xlu0 %6769, %v5941
  %v6771 = vpop.permute.xlu0 %6770
  %6772 = vset.pattern.permute.xlu0 0
  %6773 = vperm.xlu0 %6772, %v5943
  %v6774 = vpop.permute.xlu0 %6773
  %6775 = vset.pattern.permute.xlu0 0
  %6776 = vperm.xlu0 %6775, %v5945
  %v6777 = vpop.permute.xlu0 %6776
  %6778 = vset.pattern.permute.xlu0 0
  %6779 = vperm.xlu0 %6778, %v5947
  %v6780 = vpop.permute.xlu0 %6779
  %6781 = vset.pattern.permute.xlu0 0
  %6782 = vperm.xlu0 %6781, %v5949
  %v6783 = vpop.permute.xlu0 %6782
  %6784 = vset.pattern.permute.xlu0 0
  %6785 = vperm.xlu0 %6784, %v5951
  %v6786 = vpop.permute.xlu0 %6785
  %6787 = vset.pattern.permute.xlu0 0
  %6788 = vperm.xlu0 %6787, %v5953
  %v6789 = vpop.permute.xlu0 %6788
  %6790 = vset.pattern.permute.xlu0 0
  %6791 = vperm.xlu0 %6790, %v5955
  %v6792 = vpop.permute.xlu0 %6791
  %6793 = vset.pattern.permute.xlu0 0
  %6794 = vperm.xlu0 %6793, %v5957
  %v6795 = vpop.permute.xlu0 %6794
  %6796 = vset.pattern.permute.xlu0 0
  %6797 = vperm.xlu0 %6796, %v5959
  %v6798 = vpop.permute.xlu0 %6797
  %6799 = vset.pattern.permute.xlu0 0
  %6800 = vperm.xlu0 %6799, %v5961
  %v6801 = vpop.permute.xlu0 %6800
  %6802 = vset.pattern.permute.xlu0 0
  %6803 = vperm.xlu0 %6802, %v5963
  %v6804 = vpop.permute.xlu0 %6803
  %6805 = vset.pattern.permute.xlu0 0
  %6806 = vperm.xlu0 %6805, %v5965
  %v6807 = vpop.permute.xlu0 %6806
  %6808 = vset.pattern.permute.xlu0 0
  %6809 = vperm.xlu0 %6808, %v5967
  %v6810 = vpop.permute.xlu0 %6809
  %6811 = vset.pattern.permute.xlu0 0
  %6812 = vperm.xlu0 %6811, %v5969
  %v6813 = vpop.permute.xlu0 %6812
  %6814 = vset.pattern.permute.xlu0 0
  %6815 = vperm.xlu0 %6814, %v5971
  %v6816 = vpop.permute.xlu0 %6815
  %6817 = vset.pattern.permute.xlu0 0
  %6818 = vperm.xlu0 %6817, %v5973
  %v6819 = vpop.permute.xlu0 %6818
  %6820 = vset.pattern.permute.xlu0 0
  %6821 = vperm.xlu0 %6820, %v5975
  %v6822 = vpop.permute.xlu0 %6821
  %6823 = vset.pattern.permute.xlu0 0
  %6824 = vperm.xlu0 %6823, %v5977
  %v6825 = vpop.permute.xlu0 %6824
  %6826 = vset.pattern.permute.xlu0 0
  %6827 = vperm.xlu0 %6826, %v5979
  %v6828 = vpop.permute.xlu0 %6827
  %6829 = vset.pattern.permute.xlu0 0
  %6830 = vperm.xlu0 %6829, %v5981
  %v6831 = vpop.permute.xlu0 %6830
  %6832 = vset.pattern.permute.xlu0 0
  %6833 = vperm.xlu0 %6832, %v5983
  %v6834 = vpop.permute.xlu0 %6833
  %6835 = vset.pattern.permute.xlu0 0
  %6836 = vperm.xlu0 %6835, %v5985
  %v6837 = vpop.permute.xlu0 %6836
  %6838 = vset.pattern.permute.xlu0 0
  %6839 = vperm.xlu0 %6838, %v5987
  %v6840 = vpop.permute.xlu0 %6839
  %6841 = vset.pattern.permute.xlu0 0
  %6842 = vperm.xlu0 %6841, %v5989
  %v6843 = vpop.permute.xlu0 %6842
  %6844 = vset.pattern.permute.xlu0 0
  %6845 = vperm.xlu0 %6844, %v5991
  %v6846 = vpop.permute.xlu0 %6845
  %6847 = vset.pattern.permute.xlu0 0
  %6848 = vperm.xlu0 %6847, %v5993
  %v6849 = vpop.permute.xlu0 %6848
  %6850 = vset.pattern.permute.xlu0 0
  %6851 = vperm.xlu0 %6850, %v5995
  %v6852 = vpop.permute.xlu0 %6851
  %6853 = vset.pattern.permute.xlu0 0
  %6854 = vperm.xlu0 %6853, %v5997
  %v6855 = vpop.permute.xlu0 %6854
  %6856 = vset.pattern.permute.xlu0 0
  %6857 = vperm.xlu0 %6856, %v5999
  %v6858 = vpop.permute.xlu0 %6857
  %6859 = vset.pattern.permute.xlu0 0
  %6860 = vperm.xlu0 %6859, %v6001
  %v6861 = vpop.permute.xlu0 %6860
  %6862 = vset.pattern.permute.xlu0 0
  %6863 = vperm.xlu0 %6862, %v6003
  %v6864 = vpop.permute.xlu0 %6863
  %6865 = vset.pattern.permute.xlu0 0
  %6866 = vperm.xlu0 %6865, %v6005
  %v6867 = vpop.permute.xlu0 %6866
  %6868 = vset.pattern.permute.xlu0 0
  %6869 = vperm.xlu0 %6868, %v6007
  %v6870 = vpop.permute.xlu0 %6869
  %6871 = vset.pattern.permute.xlu0 0
  %6872 = vperm.xlu0 %6871, %v6009
  %v6873 = vpop.permute.xlu0 %6872
  %6874 = vset.pattern.permute.xlu0 0
  %6875 = vperm.xlu0 %6874, %v6011
  %v6876 = vpop.permute.xlu0 %6875
  %6877 = vset.pattern.permute.xlu0 0
  %6878 = vperm.xlu0 %6877, %v6013
  %v6879 = vpop.permute.xlu0 %6878
  %6880 = vset.pattern.permute.xlu0 0
  %6881 = vperm.xlu0 %6880, %v6015
  %v6882 = vpop.permute.xlu0 %6881
  %6883 = vset.pattern.permute.xlu0 0
  %6884 = vperm.xlu0 %6883, %v6017
  %v6885 = vpop.permute.xlu0 %6884
  %6886 = vset.pattern.permute.xlu0 0
  %6887 = vperm.xlu0 %6886, %v6019
  %v6888 = vpop.permute.xlu0 %6887
  %6889 = vset.pattern.permute.xlu0 0
  %6890 = vperm.xlu0 %6889, %v6021
  %v6891 = vpop.permute.xlu0 %6890
  %6892 = vset.pattern.permute.xlu0 0
  %6893 = vperm.xlu0 %6892, %v6023
  %v6894 = vpop.permute.xlu0 %6893
  %6895 = vset.pattern.permute.xlu0 0
  %6896 = vperm.xlu0 %6895, %v6025
  %v6897 = vpop.permute.xlu0 %6896
  %6898 = vset.pattern.permute.xlu0 0
  %6899 = vperm.xlu0 %6898, %v6027
  %v6900 = vpop.permute.xlu0 %6899
  %6901 = vset.pattern.permute.xlu0 0
  %6902 = vperm.xlu0 %6901, %v6029
  %v6903 = vpop.permute.xlu0 %6902
  %6904 = vset.pattern.permute.xlu0 0
  %6905 = vperm.xlu0 %6904, %v6031
  %v6906 = vpop.permute.xlu0 %6905
  %6907 = vset.pattern.permute.xlu0 0
  %6908 = vperm.xlu0 %6907, %v6033
  %v6909 = vpop.permute.xlu0 %6908
  %6910 = vset.pattern.permute.xlu0 0
  %6911 = vperm.xlu0 %6910, %v6035
  %v6912 = vpop.permute.xlu0 %6911
  %6913 = vset.pattern.permute.xlu0 0
  %6914 = vperm.xlu0 %6913, %v6037
  %v6915 = vpop.permute.xlu0 %6914
  %6916 = vset.pattern.permute.xlu0 0
  %6917 = vperm.xlu0 %6916, %v6039
  %v6918 = vpop.permute.xlu0 %6917
  %6919 = vset.pattern.permute.xlu0 0
  %6920 = vperm.xlu0 %6919, %v6041
  %v6921 = vpop.permute.xlu0 %6920
  %6922 = vset.pattern.permute.xlu0 0
  %6923 = vperm.xlu0 %6922, %v6043
  %v6924 = vpop.permute.xlu0 %6923
  %6925 = vset.pattern.permute.xlu0 0
  %6926 = vperm.xlu0 %6925, %v6045
  %v6927 = vpop.permute.xlu0 %6926
  %6928 = vset.pattern.permute.xlu0 0
  %6929 = vperm.xlu0 %6928, %v6047
  %v6930 = vpop.permute.xlu0 %6929
  %6931 = vset.pattern.permute.xlu0 0
  %6932 = vperm.xlu0 %6931, %v6049
  %v6933 = vpop.permute.xlu0 %6932
  %6934 = vset.pattern.permute.xlu0 0
  %6935 = vperm.xlu0 %6934, %v6051
  %v6936 = vpop.permute.xlu0 %6935
  %6937 = vset.pattern.permute.xlu0 0
  %6938 = vperm.xlu0 %6937, %v6053
  %v6939 = vpop.permute.xlu0 %6938
  %6940 = vset.pattern.permute.xlu0 0
  %6941 = vperm.xlu0 %6940, %v6055
  %v6942 = vpop.permute.xlu0 %6941
  %6943 = vset.pattern.permute.xlu0 0
  %6944 = vperm.xlu0 %6943, %v6057
  %v6945 = vpop.permute.xlu0 %6944
  %6946 = vset.pattern.permute.xlu0 0
  %6947 = vperm.xlu0 %6946, %v6059
  %v6948 = vpop.permute.xlu0 %6947
  %6949 = vset.pattern.permute.xlu0 0
  %6950 = vperm.xlu0 %6949, %v6061
  %v6951 = vpop.permute.xlu0 %6950
  %6952 = vset.pattern.permute.xlu0 0
  %6953 = vperm.xlu0 %6952, %v6063
  %v6954 = vpop.permute.xlu0 %6953
  %6955 = vset.pattern.permute.xlu0 0
  %6956 = vperm.xlu0 %6955, %v6065
  %v6957 = vpop.permute.xlu0 %6956
  %6958 = vset.pattern.permute.xlu0 0
  %6959 = vperm.xlu0 %6958, %v6067
  %v6960 = vpop.permute.xlu0 %6959
  %6961 = vset.pattern.permute.xlu0 0
  %6962 = vperm.xlu0 %6961, %v6069
  %v6963 = vpop.permute.xlu0 %6962
  %6964 = vset.pattern.permute.xlu0 0
  %6965 = vperm.xlu0 %6964, %v6071
  %v6966 = vpop.permute.xlu0 %6965
  %6967 = vset.pattern.permute.xlu0 0
  %6968 = vperm.xlu0 %6967, %v6073
  %v6969 = vpop.permute.xlu0 %6968
  %6970 = vset.pattern.permute.xlu0 0
  %6971 = vperm.xlu0 %6970, %v6075
  %v6972 = vpop.permute.xlu0 %6971
  %6973 = vset.pattern.permute.xlu0 0
  %6974 = vperm.xlu0 %6973, %v6077
  %v6975 = vpop.permute.xlu0 %6974
  %6976 = vset.pattern.permute.xlu0 0
  %6977 = vperm.xlu0 %6976, %v6079
  %v6978 = vpop.permute.xlu0 %6977
  %6979 = vset.pattern.permute.xlu0 0
  %6980 = vperm.xlu0 %6979, %v6081
  %v6981 = vpop.permute.xlu0 %6980
  %6982 = vset.pattern.permute.xlu0 0
  %6983 = vperm.xlu0 %6982, %v6083
  %v6984 = vpop.permute.xlu0 %6983
  %6985 = vset.pattern.permute.xlu0 0
  %6986 = vperm.xlu0 %6985, %v6085
  %v6987 = vpop.permute.xlu0 %6986
  %6988 = vset.pattern.permute.xlu0 0
  %6989 = vperm.xlu0 %6988, %v6087
  %v6990 = vpop.permute.xlu0 %6989
  %6991 = vset.pattern.permute.xlu0 0
  %6992 = vperm.xlu0 %6991, %v6089
  %v6993 = vpop.permute.xlu0 %6992
  %6994 = vset.pattern.permute.xlu0 0
  %6995 = vperm.xlu0 %6994, %v6091
  %v6996 = vpop.permute.xlu0 %6995
  %6997 = vset.pattern.permute.xlu0 0
  %6998 = vperm.xlu0 %6997, %v6093
  %v6999 = vpop.permute.xlu0 %6998
  %7000 = vset.pattern.permute.xlu0 0
  %7001 = vperm.xlu0 %7000, %v6095
  %v7002 = vpop.permute.xlu0 %7001
  %7003 = vset.pattern.permute.xlu0 0
  %7004 = vperm.xlu0 %7003, %v6097
  %v7005 = vpop.permute.xlu0 %7004
  %7006 = vset.pattern.permute.xlu0 0
  %7007 = vperm.xlu0 %7006, %v6099
  %v7008 = vpop.permute.xlu0 %7007
  %7009 = vset.pattern.permute.xlu0 0
  %7010 = vperm.xlu0 %7009, %v6101
  %v7011 = vpop.permute.xlu0 %7010
  %7012 = vset.pattern.permute.xlu0 0
  %7013 = vperm.xlu0 %7012, %v6103
  %v7014 = vpop.permute.xlu0 %7013
  %7015 = vset.pattern.permute.xlu0 0
  %7016 = vperm.xlu0 %7015, %v6105
  %v7017 = vpop.permute.xlu0 %7016
  %7018 = vset.pattern.permute.xlu0 0
  %7019 = vperm.xlu0 %7018, %v6107
  %v7020 = vpop.permute.xlu0 %7019
  %7021 = vset.pattern.permute.xlu0 0
  %7022 = vperm.xlu0 %7021, %v6109
  %v7023 = vpop.permute.xlu0 %7022
  %7024 = vset.pattern.permute.xlu0 0
  %7025 = vperm.xlu0 %7024, %v6111
  %v7026 = vpop.permute.xlu0 %7025
  %7027 = vset.pattern.permute.xlu0 0
  %7028 = vperm.xlu0 %7027, %v6113
  %v7029 = vpop.permute.xlu0 %7028
  %7030 = vset.pattern.permute.xlu0 0
  %7031 = vperm.xlu0 %7030, %v6115
  %v7032 = vpop.permute.xlu0 %7031
  %7033 = vset.pattern.permute.xlu0 0
  %7034 = vperm.xlu0 %7033, %v6117
  %v7035 = vpop.permute.xlu0 %7034
  %7036 = vset.pattern.permute.xlu0 0
  %7037 = vperm.xlu0 %7036, %v6119
  %v7038 = vpop.permute.xlu0 %7037
  %7039 = vset.pattern.permute.xlu0 0
  %7040 = vperm.xlu0 %7039, %v6121
  %v7041 = vpop.permute.xlu0 %7040
  %7042 = vset.pattern.permute.xlu0 0
  %7043 = vperm.xlu0 %7042, %v6123
  %v7044 = vpop.permute.xlu0 %7043
  %7045 = vset.pattern.permute.xlu0 0
  %7046 = vperm.xlu0 %7045, %v6125
  %v7047 = vpop.permute.xlu0 %7046
  %7048 = vset.pattern.permute.xlu0 0
  %7049 = vperm.xlu0 %7048, %v6127
  %v7050 = vpop.permute.xlu0 %7049
  %7051 = vset.pattern.permute.xlu0 0
  %7052 = vperm.xlu0 %7051, %v6129
  %v7053 = vpop.permute.xlu0 %7052
  %7054 = vset.pattern.permute.xlu0 0
  %7055 = vperm.xlu0 %7054, %v6131
  %v7056 = vpop.permute.xlu0 %7055
  %7057 = vset.pattern.permute.xlu0 0
  %7058 = vperm.xlu0 %7057, %v6133
  %v7059 = vpop.permute.xlu0 %7058
  %7060 = vset.pattern.permute.xlu0 0
  %7061 = vperm.xlu0 %7060, %v6135
  %v7062 = vpop.permute.xlu0 %7061
  %7063 = vset.pattern.permute.xlu0 0
  %7064 = vperm.xlu0 %7063, %v6137
  %v7065 = vpop.permute.xlu0 %7064
  %7066 = vset.pattern.permute.xlu0 0
  %7067 = vperm.xlu0 %7066, %v6139
  %v7068 = vpop.permute.xlu0 %7067
  %7069 = vset.pattern.permute.xlu0 0
  %7070 = vperm.xlu0 %7069, %v6141
  %v7071 = vpop.permute.xlu0 %7070
  %7072 = vset.pattern.permute.xlu0 0
  %7073 = vperm.xlu0 %7072, %v6143
  %v7074 = vpop.permute.xlu0 %7073
  %7075 = vset.pattern.permute.xlu0 0
  %7076 = vperm.xlu0 %7075, %v6145
  %v7077 = vpop.permute.xlu0 %7076
  %7078 = vset.pattern.permute.xlu0 0
  %7079 = vperm.xlu0 %7078, %v6147
  %v7080 = vpop.permute.xlu0 %7079
  %7081 = vset.pattern.permute.xlu0 0
  %7082 = vperm.xlu0 %7081, %v6149
  %v7083 = vpop.permute.xlu0 %7082
  %7084 = vset.pattern.permute.xlu0 0
  %7085 = vperm.xlu0 %7084, %v6151
  %v7086 = vpop.permute.xlu0 %7085
  %7087 = vset.pattern.permute.xlu0 0
  %7088 = vperm.xlu0 %7087, %v6153
  %v7089 = vpop.permute.xlu0 %7088
  %7090 = vset.pattern.permute.xlu0 0
  %7091 = vperm.xlu0 %7090, %v6155
  %v7092 = vpop.permute.xlu0 %7091
  %7093 = vset.pattern.permute.xlu0 0
  %7094 = vperm.xlu0 %7093, %v6157
  %v7095 = vpop.permute.xlu0 %7094
  %7096 = vset.pattern.permute.xlu0 0
  %7097 = vperm.xlu0 %7096, %v6159
  %v7098 = vpop.permute.xlu0 %7097
  %7099 = vset.pattern.permute.xlu0 0
  %7100 = vperm.xlu0 %7099, %v6161
  %v7101 = vpop.permute.xlu0 %7100
  %7102 = vset.pattern.permute.xlu0 0
  %7103 = vperm.xlu0 %7102, %v6163
  %v7104 = vpop.permute.xlu0 %7103
  %7105 = vset.pattern.permute.xlu0 0
  %7106 = vperm.xlu0 %7105, %v6165
  %v7107 = vpop.permute.xlu0 %7106
  %7108 = vset.pattern.permute.xlu0 0
  %7109 = vperm.xlu0 %7108, %v6167
  %v7110 = vpop.permute.xlu0 %7109
  %7111 = vset.pattern.permute.xlu0 0
  %7112 = vperm.xlu0 %7111, %v6169
  %v7113 = vpop.permute.xlu0 %7112
  %7114 = vset.pattern.permute.xlu0 0
  %7115 = vperm.xlu0 %7114, %v6171
  %v7116 = vpop.permute.xlu0 %7115
  %7117 = vset.pattern.permute.xlu0 0
  %7118 = vperm.xlu0 %7117, %v6173
  %v7119 = vpop.permute.xlu0 %7118
  %7120 = vset.pattern.permute.xlu0 0
  %7121 = vperm.xlu0 %7120, %v6175
  %v7122 = vpop.permute.xlu0 %7121
  %7123 = vset.pattern.permute.xlu0 0
  %7124 = vperm.xlu0 %7123, %v6177
  %v7125 = vpop.permute.xlu0 %7124
  %7126 = vset.pattern.permute.xlu0 0
  %7127 = vperm.xlu0 %7126, %v6179
  %v7128 = vpop.permute.xlu0 %7127
  %7129 = vset.pattern.permute.xlu0 0
  %7130 = vperm.xlu0 %7129, %v6181
  %v7131 = vpop.permute.xlu0 %7130
  %7132 = vset.pattern.permute.xlu0 0
  %7133 = vperm.xlu0 %7132, %v6183
  %v7134 = vpop.permute.xlu0 %7133
  %7135 = vset.pattern.permute.xlu0 0
  %7136 = vperm.xlu0 %7135, %v6185
  %v7137 = vpop.permute.xlu0 %7136
  %7138 = vset.pattern.permute.xlu0 0
  %7139 = vperm.xlu0 %7138, %v6187
  %v7140 = vpop.permute.xlu0 %7139
  %7141 = vset.pattern.permute.xlu0 0
  %7142 = vperm.xlu0 %7141, %v6189
  %v7143 = vpop.permute.xlu0 %7142
  %7144 = vset.pattern.permute.xlu0 0
  %7145 = vperm.xlu0 %7144, %v6191
  %v7146 = vpop.permute.xlu0 %7145
  %7147 = vset.pattern.permute.xlu0 0
  %7148 = vperm.xlu0 %7147, %v6193
  %v7149 = vpop.permute.xlu0 %7148
  %7150 = vset.pattern.permute.xlu0 0
  %7151 = vperm.xlu0 %7150, %v6195
  %v7152 = vpop.permute.xlu0 %7151
  %7153 = vset.pattern.permute.xlu0 0
  %7154 = vperm.xlu0 %7153, %v6197
  %v7155 = vpop.permute.xlu0 %7154
  %7156 = vset.pattern.permute.xlu0 0
  %7157 = vperm.xlu0 %7156, %v6199
  %v7158 = vpop.permute.xlu0 %7157
  %7159 = vset.pattern.permute.xlu0 0
  %7160 = vperm.xlu0 %7159, %v6201
  %v7161 = vpop.permute.xlu0 %7160
  %7162 = vset.pattern.permute.xlu0 0
  %7163 = vperm.xlu0 %7162, %v6203
  %v7164 = vpop.permute.xlu0 %7163
  %7165 = vset.pattern.permute.xlu0 0
  %7166 = vperm.xlu0 %7165, %v6205
  %v7167 = vpop.permute.xlu0 %7166
  %7168 = vset.pattern.permute.xlu0 0
  %7169 = vperm.xlu0 %7168, %v6207
  %v7170 = vpop.permute.xlu0 %7169
  %7171 = vset.pattern.permute.xlu0 0
  %7172 = vperm.xlu0 %7171, %v6209
  %v7173 = vpop.permute.xlu0 %7172
  %7174 = vset.pattern.permute.xlu0 0
  %7175 = vperm.xlu0 %7174, %v6211
  %v7176 = vpop.permute.xlu0 %7175
  %7177 = vset.pattern.permute.xlu0 0
  %7178 = vperm.xlu0 %7177, %v6213
  %v7179 = vpop.permute.xlu0 %7178
  %7180 = vset.pattern.permute.xlu0 0
  %7181 = vperm.xlu0 %7180, %v6215
  %v7182 = vpop.permute.xlu0 %7181
  %7183 = vset.pattern.permute.xlu0 0
  %7184 = vperm.xlu0 %7183, %v6217
  %v7185 = vpop.permute.xlu0 %7184
  %7186 = vset.pattern.permute.xlu0 0
  %7187 = vperm.xlu0 %7186, %v6219
  %v7188 = vpop.permute.xlu0 %7187
  %7189 = vset.pattern.permute.xlu0 0
  %7190 = vperm.xlu0 %7189, %v6221
  %v7191 = vpop.permute.xlu0 %7190
  %7192 = vset.pattern.permute.xlu0 0
  %7193 = vperm.xlu0 %7192, %v6223
  %v7194 = vpop.permute.xlu0 %7193
  %7195 = vset.pattern.permute.xlu0 0
  %7196 = vperm.xlu0 %7195, %v6225
  %v7197 = vpop.permute.xlu0 %7196
  %7198 = vset.pattern.permute.xlu0 0
  %7199 = vperm.xlu0 %7198, %v6227
  %v7200 = vpop.permute.xlu0 %7199
  %7201 = vset.pattern.permute.xlu0 0
  %7202 = vperm.xlu0 %7201, %v6229
  %v7203 = vpop.permute.xlu0 %7202
  %7204 = vset.pattern.permute.xlu0 0
  %7205 = vperm.xlu0 %7204, %v6231
  %v7206 = vpop.permute.xlu0 %7205
  %7207 = vset.pattern.permute.xlu0 0
  %7208 = vperm.xlu0 %7207, %v6233
  %v7209 = vpop.permute.xlu0 %7208
  %7210 = vset.pattern.permute.xlu0 0
  %7211 = vperm.xlu0 %7210, %v6235
  %v7212 = vpop.permute.xlu0 %7211
  %7213 = vset.pattern.permute.xlu0 0
  %7214 = vperm.xlu0 %7213, %v6237
  %v7215 = vpop.permute.xlu0 %7214
  %7216 = vset.pattern.permute.xlu0 0
  %7217 = vperm.xlu0 %7216, %v6239
  %v7218 = vpop.permute.xlu0 %7217
  %7219 = vset.pattern.permute.xlu0 0
  %7220 = vperm.xlu0 %7219, %v6241
  %v7221 = vpop.permute.xlu0 %7220
  %7222 = vset.pattern.permute.xlu0 0
  %7223 = vperm.xlu0 %7222, %v6243
  %v7224 = vpop.permute.xlu0 %7223
  %7225 = vset.pattern.permute.xlu0 0
  %7226 = vperm.xlu0 %7225, %v6245
  %v7227 = vpop.permute.xlu0 %7226
  %7228 = vset.pattern.permute.xlu0 0
  %7229 = vperm.xlu0 %7228, %v6247
  %v7230 = vpop.permute.xlu0 %7229
  %7231 = vset.pattern.permute.xlu0 0
  %7232 = vperm.xlu0 %7231, %v6249
  %v7233 = vpop.permute.xlu0 %7232
  %7234 = vset.pattern.permute.xlu0 0
  %7235 = vperm.xlu0 %7234, %v6251
  %v7236 = vpop.permute.xlu0 %7235
  %7237 = vset.pattern.permute.xlu0 0
  %7238 = vperm.xlu0 %7237, %v6253
  %v7239 = vpop.permute.xlu0 %7238
  %7240 = vset.pattern.permute.xlu0 0
  %7241 = vperm.xlu0 %7240, %v6255
  %v7242 = vpop.permute.xlu0 %7241
  %7243 = vset.pattern.permute.xlu0 0
  %7244 = vperm.xlu0 %7243, %v6257
  %v7245 = vpop.permute.xlu0 %7244
  %7246 = vset.pattern.permute.xlu0 0
  %7247 = vperm.xlu0 %7246, %v6259
  %v7248 = vpop.permute.xlu0 %7247
  %7249 = vset.pattern.permute.xlu0 0
  %7250 = vperm.xlu0 %7249, %v6261
  %v7251 = vpop.permute.xlu0 %7250
  %7252 = vset.pattern.permute.xlu0 0
  %7253 = vperm.xlu0 %7252, %v6263
  %v7254 = vpop.permute.xlu0 %7253
  %7255 = vset.pattern.permute.xlu0 0
  %7256 = vperm.xlu0 %7255, %v6265
  %v7257 = vpop.permute.xlu0 %7256
  %7258 = vset.pattern.permute.xlu0 0
  %7259 = vperm.xlu0 %7258, %v6267
  %v7260 = vpop.permute.xlu0 %7259
  %7261 = vset.pattern.permute.xlu0 0
  %7262 = vperm.xlu0 %7261, %v6269
  %v7263 = vpop.permute.xlu0 %7262
  %7264 = vset.pattern.permute.xlu0 0
  %7265 = vperm.xlu0 %7264, %v6271
  %v7266 = vpop.permute.xlu0 %7265
  %7267 = vset.pattern.permute.xlu0 0
  %7268 = vperm.xlu0 %7267, %v6273
  %v7269 = vpop.permute.xlu0 %7268
  %7270 = vset.pattern.permute.xlu0 0
  %7271 = vperm.xlu0 %7270, %v6275
  %v7272 = vpop.permute.xlu0 %7271
  %7273 = vset.pattern.permute.xlu0 0
  %7274 = vperm.xlu0 %7273, %v6277
  %v7275 = vpop.permute.xlu0 %7274
  %7276 = vset.pattern.permute.xlu0 0
  %7277 = vperm.xlu0 %7276, %v6279
  %v7278 = vpop.permute.xlu0 %7277
  %7279 = vset.pattern.permute.xlu0 0
  %7280 = vperm.xlu0 %7279, %v6281
  %v7281 = vpop.permute.xlu0 %7280
  %7282 = vset.pattern.permute.xlu0 0
  %7283 = vperm.xlu0 %7282, %v6283
  %v7284 = vpop.permute.xlu0 %7283
  %7285 = vset.pattern.permute.xlu0 0
  %7286 = vperm.xlu0 %7285, %v6285
  %v7287 = vpop.permute.xlu0 %7286
  %7288 = vset.pattern.permute.xlu0 0
  %7289 = vperm.xlu0 %7288, %v6287
  %v7290 = vpop.permute.xlu0 %7289
  %7291 = vset.pattern.permute.xlu0 0
  %7292 = vperm.xlu0 %7291, %v6289
  %v7293 = vpop.permute.xlu0 %7292
  %7294 = vset.pattern.permute.xlu0 0
  %7295 = vperm.xlu0 %7294, %v6291
  %v7296 = vpop.permute.xlu0 %7295
  %7297 = vset.pattern.permute.xlu0 0
  %7298 = vperm.xlu0 %7297, %v6293
  %v7299 = vpop.permute.xlu0 %7298
  %7300 = vset.pattern.permute.xlu0 0
  %7301 = vperm.xlu0 %7300, %v6295
  %v7302 = vpop.permute.xlu0 %7301
  %7303 = vset.pattern.permute.xlu0 0
  %7304 = vperm.xlu0 %7303, %v6297
  %v7305 = vpop.permute.xlu0 %7304
  %7306 = vset.pattern.permute.xlu0 0
  %7307 = vperm.xlu0 %7306, %v6299
  %v7308 = vpop.permute.xlu0 %7307
  %7309 = vset.pattern.permute.xlu0 0
  %7310 = vperm.xlu0 %7309, %v6301
  %v7311 = vpop.permute.xlu0 %7310
  %7312 = vset.pattern.permute.xlu0 0
  %7313 = vperm.xlu0 %7312, %v6303
  %v7314 = vpop.permute.xlu0 %7313
  %7315 = vset.pattern.permute.xlu0 0
  %7316 = vperm.xlu0 %7315, %v6305
  %v7317 = vpop.permute.xlu0 %7316
  %7318 = vset.pattern.permute.xlu0 0
  %7319 = vperm.xlu0 %7318, %v6307
  %v7320 = vpop.permute.xlu0 %7319
  %7321 = vset.pattern.permute.xlu0 0
  %7322 = vperm.xlu0 %7321, %v6309
  %v7323 = vpop.permute.xlu0 %7322
  %7324 = vset.pattern.permute.xlu0 0
  %7325 = vperm.xlu0 %7324, %v6311
  %v7326 = vpop.permute.xlu0 %7325
  %7327 = vset.pattern.permute.xlu0 0
  %7328 = vperm.xlu0 %7327, %v6313
  %v7329 = vpop.permute.xlu0 %7328
  %7330 = vset.pattern.permute.xlu0 0
  %7331 = vperm.xlu0 %7330, %v6315
  %v7332 = vpop.permute.xlu0 %7331
  %7333 = vset.pattern.permute.xlu0 0
  %7334 = vperm.xlu0 %7333, %v6317
  %v7335 = vpop.permute.xlu0 %7334
  %7336 = vset.pattern.permute.xlu0 0
  %7337 = vperm.xlu0 %7336, %v6319
  %v7338 = vpop.permute.xlu0 %7337
  %7339 = vset.pattern.permute.xlu0 0
  %7340 = vperm.xlu0 %7339, %v6321
  %v7341 = vpop.permute.xlu0 %7340
  %7342 = vset.pattern.permute.xlu0 0
  %7343 = vperm.xlu0 %7342, %v6323
  %v7344 = vpop.permute.xlu0 %7343
  %7345 = vset.pattern.permute.xlu0 0
  %7346 = vperm.xlu0 %7345, %v6325
  %v7347 = vpop.permute.xlu0 %7346
  %7348 = vset.pattern.permute.xlu0 0
  %7349 = vperm.xlu0 %7348, %v6327
  %v7350 = vpop.permute.xlu0 %7349
  %7351 = vset.pattern.permute.xlu0 0
  %7352 = vperm.xlu0 %7351, %v6329
  %v7353 = vpop.permute.xlu0 %7352
  %7354 = vset.pattern.permute.xlu0 0
  %7355 = vperm.xlu0 %7354, %v6331
  %v7356 = vpop.permute.xlu0 %7355
  %7357 = vset.pattern.permute.xlu0 0
  %7358 = vperm.xlu0 %7357, %v6333
  %v7359 = vpop.permute.xlu0 %7358
  %v7360 = vlaneseq
  %v7361 = vshrl.u32 %v7360, 7
  %v7362 = vsub.s32 %v4190, %v7361
  %v7363 = vrot.slane %v6594, %v7362
  %v7364 = vlaneseq
  %v7365 = vshrl.u32 %v7364, 7
  %v7366 = vsub.s32 %v4195, %v7365
  %v7367 = vrot.slane %v6597, %v7366
  %v7368 = vsel %vm4200, %v7367, %v7363
  %v7369 = vlaneseq
  %v7370 = vshrl.u32 %v7369, 7
  %v7371 = vsub.s32 %v4202, %v7370
  %v7372 = vrot.slane %v6600, %v7371
  %v7373 = vsel %vm4207, %v7372, %v7368
  %v7374 = vlaneseq
  %v7375 = vshrl.u32 %v7374, 7
  %v7376 = vsub.s32 %v4209, %v7375
  %v7377 = vrot.slane %v6603, %v7376
  %v7378 = vsel %vm4214, %v7377, %v7373
  %v7379 = vlaneseq
  %v7380 = vshrl.u32 %v7379, 7
  %v7381 = vsub.s32 %v4216, %v7380
  %v7382 = vrot.slane %v6606, %v7381
  %v7383 = vsel %vm4221, %v7382, %v7378
  %v7384 = vlaneseq
  %v7385 = vshrl.u32 %v7384, 7
  %v7386 = vsub.s32 %v4223, %v7385
  %v7387 = vrot.slane %v6609, %v7386
  %v7388 = vsel %vm4228, %v7387, %v7383
  %v7389 = vlaneseq
  %v7390 = vshrl.u32 %v7389, 7
  %v7391 = vsub.s32 %v4230, %v7390
  %v7392 = vrot.slane %v6612, %v7391
  %v7393 = vsel %vm4235, %v7392, %v7388
  %v7394 = vlaneseq
  %v7395 = vshrl.u32 %v7394, 7
  %v7396 = vsub.s32 %v4237, %v7395
  %v7397 = vrot.slane %v6615, %v7396
  %v7398 = vsel %vm4242, %v7397, %v7393
  %v7399 = vlaneseq
  %v7400 = vshrl.u32 %v7399, 7
  %v7401 = vsub.s32 %v4244, %v7400
  %v7402 = vrot.slane %v6618, %v7401
  %v7403 = vsel %vm4249, %v7402, %v7398
  %v7404 = vlaneseq
  %v7405 = vshrl.u32 %v7404, 7
  %v7406 = vsub.s32 %v4251, %v7405
  %v7407 = vrot.slane %v6621, %v7406
  %v7408 = vsel %vm4256, %v7407, %v7403
  %v7409 = vlaneseq
  %v7410 = vshrl.u32 %v7409, 7
  %v7411 = vsub.s32 %v4258, %v7410
  %v7412 = vrot.slane %v6624, %v7411
  %v7413 = vsel %vm4263, %v7412, %v7408
  %v7414 = vlaneseq
  %v7415 = vshrl.u32 %v7414, 7
  %v7416 = vsub.s32 %v4265, %v7415
  %v7417 = vrot.slane %v6627, %v7416
  %v7418 = vsel %vm4270, %v7417, %v7413
  %v7419 = vlaneseq
  %v7420 = vshrl.u32 %v7419, 7
  %v7421 = vsub.s32 %v4272, %v7420
  %v7422 = vrot.slane %v6630, %v7421
  %v7423 = vsel %vm4277, %v7422, %v7418
  %v7424 = vlaneseq
  %v7425 = vshrl.u32 %v7424, 7
  %v7426 = vsub.s32 %v4279, %v7425
  %v7427 = vrot.slane %v6633, %v7426
  %v7428 = vsel %vm4284, %v7427, %v7423
  %v7429 = vlaneseq
  %v7430 = vshrl.u32 %v7429, 7
  %v7431 = vsub.s32 %v4286, %v7430
  %v7432 = vrot.slane %v6636, %v7431
  %v7433 = vsel %vm4291, %v7432, %v7428
  %v7434 = vlaneseq
  %v7435 = vshrl.u32 %v7434, 7
  %v7436 = vsub.s32 %v4293, %v7435
  %v7437 = vrot.slane %v6639, %v7436
  %v7438 = vsel %vm4298, %v7437, %v7433
  %v7439 = vlaneseq
  %v7440 = vshrl.u32 %v7439, 7
  %v7441 = vsub.s32 %v4190, %v7440
  %v7442 = vrot.slane %v6642, %v7441
  %v7443 = vlaneseq
  %v7444 = vshrl.u32 %v7443, 7
  %v7445 = vsub.s32 %v4195, %v7444
  %v7446 = vrot.slane %v6645, %v7445
  %v7447 = vsel %vm4200, %v7446, %v7442
  %v7448 = vlaneseq
  %v7449 = vshrl.u32 %v7448, 7
  %v7450 = vsub.s32 %v4202, %v7449
  %v7451 = vrot.slane %v6648, %v7450
  %v7452 = vsel %vm4207, %v7451, %v7447
  %v7453 = vlaneseq
  %v7454 = vshrl.u32 %v7453, 7
  %v7455 = vsub.s32 %v4209, %v7454
  %v7456 = vrot.slane %v6651, %v7455
  %v7457 = vsel %vm4214, %v7456, %v7452
  %v7458 = vlaneseq
  %v7459 = vshrl.u32 %v7458, 7
  %v7460 = vsub.s32 %v4216, %v7459
  %v7461 = vrot.slane %v6654, %v7460
  %v7462 = vsel %vm4221, %v7461, %v7457
  %v7463 = vlaneseq
  %v7464 = vshrl.u32 %v7463, 7
  %v7465 = vsub.s32 %v4223, %v7464
  %v7466 = vrot.slane %v6657, %v7465
  %v7467 = vsel %vm4228, %v7466, %v7462
  %v7468 = vlaneseq
  %v7469 = vshrl.u32 %v7468, 7
  %v7470 = vsub.s32 %v4230, %v7469
  %v7471 = vrot.slane %v6660, %v7470
  %v7472 = vsel %vm4235, %v7471, %v7467
  %v7473 = vlaneseq
  %v7474 = vshrl.u32 %v7473, 7
  %v7475 = vsub.s32 %v4237, %v7474
  %v7476 = vrot.slane %v6663, %v7475
  %v7477 = vsel %vm4242, %v7476, %v7472
  %v7478 = vlaneseq
  %v7479 = vshrl.u32 %v7478, 7
  %v7480 = vsub.s32 %v4244, %v7479
  %v7481 = vrot.slane %v6666, %v7480
  %v7482 = vsel %vm4249, %v7481, %v7477
  %v7483 = vlaneseq
  %v7484 = vshrl.u32 %v7483, 7
  %v7485 = vsub.s32 %v4251, %v7484
  %v7486 = vrot.slane %v6669, %v7485
  %v7487 = vsel %vm4256, %v7486, %v7482
  %v7488 = vlaneseq
  %v7489 = vshrl.u32 %v7488, 7
  %v7490 = vsub.s32 %v4258, %v7489
  %v7491 = vrot.slane %v6672, %v7490
  %v7492 = vsel %vm4263, %v7491, %v7487
  %v7493 = vlaneseq
  %v7494 = vshrl.u32 %v7493, 7
  %v7495 = vsub.s32 %v4265, %v7494
  %v7496 = vrot.slane %v6675, %v7495
  %v7497 = vsel %vm4270, %v7496, %v7492
  %v7498 = vlaneseq
  %v7499 = vshrl.u32 %v7498, 7
  %v7500 = vsub.s32 %v4272, %v7499
  %v7501 = vrot.slane %v6678, %v7500
  %v7502 = vsel %vm4277, %v7501, %v7497
  %v7503 = vlaneseq
  %v7504 = vshrl.u32 %v7503, 7
  %v7505 = vsub.s32 %v4279, %v7504
  %v7506 = vrot.slane %v6681, %v7505
  %v7507 = vsel %vm4284, %v7506, %v7502
  %v7508 = vlaneseq
  %v7509 = vshrl.u32 %v7508, 7
  %v7510 = vsub.s32 %v4286, %v7509
  %v7511 = vrot.slane %v6684, %v7510
  %v7512 = vsel %vm4291, %v7511, %v7507
  %v7513 = vlaneseq
  %v7514 = vshrl.u32 %v7513, 7
  %v7515 = vsub.s32 %v4293, %v7514
  %v7516 = vrot.slane %v6687, %v7515
  %v7517 = vsel %vm4298, %v7516, %v7512
  %v7518 = vlaneseq
  %v7519 = vshrl.u32 %v7518, 7
  %v7520 = vsub.s32 %v4190, %v7519
  %v7521 = vrot.slane %v6690, %v7520
  %v7522 = vlaneseq
  %v7523 = vshrl.u32 %v7522, 7
  %v7524 = vsub.s32 %v4195, %v7523
  %v7525 = vrot.slane %v6693, %v7524
  %v7526 = vsel %vm4200, %v7525, %v7521
  %v7527 = vlaneseq
  %v7528 = vshrl.u32 %v7527, 7
  %v7529 = vsub.s32 %v4202, %v7528
  %v7530 = vrot.slane %v6696, %v7529
  %v7531 = vsel %vm4207, %v7530, %v7526
  %v7532 = vlaneseq
  %v7533 = vshrl.u32 %v7532, 7
  %v7534 = vsub.s32 %v4209, %v7533
  %v7535 = vrot.slane %v6699, %v7534
  %v7536 = vsel %vm4214, %v7535, %v7531
  %v7537 = vlaneseq
  %v7538 = vshrl.u32 %v7537, 7
  %v7539 = vsub.s32 %v4216, %v7538
  %v7540 = vrot.slane %v6702, %v7539
  %v7541 = vsel %vm4221, %v7540, %v7536
  %v7542 = vlaneseq
  %v7543 = vshrl.u32 %v7542, 7
  %v7544 = vsub.s32 %v4223, %v7543
  %v7545 = vrot.slane %v6705, %v7544
  %v7546 = vsel %vm4228, %v7545, %v7541
  %v7547 = vlaneseq
  %v7548 = vshrl.u32 %v7547, 7
  %v7549 = vsub.s32 %v4230, %v7548
  %v7550 = vrot.slane %v6708, %v7549
  %v7551 = vsel %vm4235, %v7550, %v7546
  %v7552 = vlaneseq
  %v7553 = vshrl.u32 %v7552, 7
  %v7554 = vsub.s32 %v4237, %v7553
  %v7555 = vrot.slane %v6711, %v7554
  %v7556 = vsel %vm4242, %v7555, %v7551
  %v7557 = vlaneseq
  %v7558 = vshrl.u32 %v7557, 7
  %v7559 = vsub.s32 %v4244, %v7558
  %v7560 = vrot.slane %v6714, %v7559
  %v7561 = vsel %vm4249, %v7560, %v7556
  %v7562 = vlaneseq
  %v7563 = vshrl.u32 %v7562, 7
  %v7564 = vsub.s32 %v4251, %v7563
  %v7565 = vrot.slane %v6717, %v7564
  %v7566 = vsel %vm4256, %v7565, %v7561
  %v7567 = vlaneseq
  %v7568 = vshrl.u32 %v7567, 7
  %v7569 = vsub.s32 %v4258, %v7568
  %v7570 = vrot.slane %v6720, %v7569
  %v7571 = vsel %vm4263, %v7570, %v7566
  %v7572 = vlaneseq
  %v7573 = vshrl.u32 %v7572, 7
  %v7574 = vsub.s32 %v4265, %v7573
  %v7575 = vrot.slane %v6723, %v7574
  %v7576 = vsel %vm4270, %v7575, %v7571
  %v7577 = vlaneseq
  %v7578 = vshrl.u32 %v7577, 7
  %v7579 = vsub.s32 %v4272, %v7578
  %v7580 = vrot.slane %v6726, %v7579
  %v7581 = vsel %vm4277, %v7580, %v7576
  %v7582 = vlaneseq
  %v7583 = vshrl.u32 %v7582, 7
  %v7584 = vsub.s32 %v4279, %v7583
  %v7585 = vrot.slane %v6729, %v7584
  %v7586 = vsel %vm4284, %v7585, %v7581
  %v7587 = vlaneseq
  %v7588 = vshrl.u32 %v7587, 7
  %v7589 = vsub.s32 %v4286, %v7588
  %v7590 = vrot.slane %v6732, %v7589
  %v7591 = vsel %vm4291, %v7590, %v7586
  %v7592 = vlaneseq
  %v7593 = vshrl.u32 %v7592, 7
  %v7594 = vsub.s32 %v4293, %v7593
  %v7595 = vrot.slane %v6735, %v7594
  %v7596 = vsel %vm4298, %v7595, %v7591
  %v7597 = vlaneseq
  %v7598 = vshrl.u32 %v7597, 7
  %v7599 = vsub.s32 %v4190, %v7598
  %v7600 = vrot.slane %v6738, %v7599
  %v7601 = vlaneseq
  %v7602 = vshrl.u32 %v7601, 7
  %v7603 = vsub.s32 %v4195, %v7602
  %v7604 = vrot.slane %v6741, %v7603
  %v7605 = vsel %vm4200, %v7604, %v7600
  %v7606 = vlaneseq
  %v7607 = vshrl.u32 %v7606, 7
  %v7608 = vsub.s32 %v4202, %v7607
  %v7609 = vrot.slane %v6744, %v7608
  %v7610 = vsel %vm4207, %v7609, %v7605
  %v7611 = vlaneseq
  %v7612 = vshrl.u32 %v7611, 7
  %v7613 = vsub.s32 %v4209, %v7612
  %v7614 = vrot.slane %v6747, %v7613
  %v7615 = vsel %vm4214, %v7614, %v7610
  %v7616 = vlaneseq
  %v7617 = vshrl.u32 %v7616, 7
  %v7618 = vsub.s32 %v4216, %v7617
  %v7619 = vrot.slane %v6750, %v7618
  %v7620 = vsel %vm4221, %v7619, %v7615
  %v7621 = vlaneseq
  %v7622 = vshrl.u32 %v7621, 7
  %v7623 = vsub.s32 %v4223, %v7622
  %v7624 = vrot.slane %v6753, %v7623
  %v7625 = vsel %vm4228, %v7624, %v7620
  %v7626 = vlaneseq
  %v7627 = vshrl.u32 %v7626, 7
  %v7628 = vsub.s32 %v4230, %v7627
  %v7629 = vrot.slane %v6756, %v7628
  %v7630 = vsel %vm4235, %v7629, %v7625
  %v7631 = vlaneseq
  %v7632 = vshrl.u32 %v7631, 7
  %v7633 = vsub.s32 %v4237, %v7632
  %v7634 = vrot.slane %v6759, %v7633
  %v7635 = vsel %vm4242, %v7634, %v7630
  %v7636 = vlaneseq
  %v7637 = vshrl.u32 %v7636, 7
  %v7638 = vsub.s32 %v4244, %v7637
  %v7639 = vrot.slane %v6762, %v7638
  %v7640 = vsel %vm4249, %v7639, %v7635
  %v7641 = vlaneseq
  %v7642 = vshrl.u32 %v7641, 7
  %v7643 = vsub.s32 %v4251, %v7642
  %v7644 = vrot.slane %v6765, %v7643
  %v7645 = vsel %vm4256, %v7644, %v7640
  %v7646 = vlaneseq
  %v7647 = vshrl.u32 %v7646, 7
  %v7648 = vsub.s32 %v4258, %v7647
  %v7649 = vrot.slane %v6768, %v7648
  %v7650 = vsel %vm4263, %v7649, %v7645
  %v7651 = vlaneseq
  %v7652 = vshrl.u32 %v7651, 7
  %v7653 = vsub.s32 %v4265, %v7652
  %v7654 = vrot.slane %v6771, %v7653
  %v7655 = vsel %vm4270, %v7654, %v7650
  %v7656 = vlaneseq
  %v7657 = vshrl.u32 %v7656, 7
  %v7658 = vsub.s32 %v4272, %v7657
  %v7659 = vrot.slane %v6774, %v7658
  %v7660 = vsel %vm4277, %v7659, %v7655
  %v7661 = vlaneseq
  %v7662 = vshrl.u32 %v7661, 7
  %v7663 = vsub.s32 %v4279, %v7662
  %v7664 = vrot.slane %v6777, %v7663
  %v7665 = vsel %vm4284, %v7664, %v7660
  %v7666 = vlaneseq
  %v7667 = vshrl.u32 %v7666, 7
  %v7668 = vsub.s32 %v4286, %v7667
  %v7669 = vrot.slane %v6780, %v7668
  %v7670 = vsel %vm4291, %v7669, %v7665
  %v7671 = vlaneseq
  %v7672 = vshrl.u32 %v7671, 7
  %v7673 = vsub.s32 %v4293, %v7672
  %v7674 = vrot.slane %v6783, %v7673
  %v7675 = vsel %vm4298, %v7674, %v7670
  %v7676 = vlaneseq
  %v7677 = vshrl.u32 %v7676, 7
  %v7678 = vsub.s32 %v4190, %v7677
  %v7679 = vrot.slane %v6786, %v7678
  %v7680 = vlaneseq
  %v7681 = vshrl.u32 %v7680, 7
  %v7682 = vsub.s32 %v4195, %v7681
  %v7683 = vrot.slane %v6789, %v7682
  %v7684 = vsel %vm4200, %v7683, %v7679
  %v7685 = vlaneseq
  %v7686 = vshrl.u32 %v7685, 7
  %v7687 = vsub.s32 %v4202, %v7686
  %v7688 = vrot.slane %v6792, %v7687
  %v7689 = vsel %vm4207, %v7688, %v7684
  %v7690 = vlaneseq
  %v7691 = vshrl.u32 %v7690, 7
  %v7692 = vsub.s32 %v4209, %v7691
  %v7693 = vrot.slane %v6795, %v7692
  %v7694 = vsel %vm4214, %v7693, %v7689
  %v7695 = vlaneseq
  %v7696 = vshrl.u32 %v7695, 7
  %v7697 = vsub.s32 %v4216, %v7696
  %v7698 = vrot.slane %v6798, %v7697
  %v7699 = vsel %vm4221, %v7698, %v7694
  %v7700 = vlaneseq
  %v7701 = vshrl.u32 %v7700, 7
  %v7702 = vsub.s32 %v4223, %v7701
  %v7703 = vrot.slane %v6801, %v7702
  %v7704 = vsel %vm4228, %v7703, %v7699
  %v7705 = vlaneseq
  %v7706 = vshrl.u32 %v7705, 7
  %v7707 = vsub.s32 %v4230, %v7706
  %v7708 = vrot.slane %v6804, %v7707
  %v7709 = vsel %vm4235, %v7708, %v7704
  %v7710 = vlaneseq
  %v7711 = vshrl.u32 %v7710, 7
  %v7712 = vsub.s32 %v4237, %v7711
  %v7713 = vrot.slane %v6807, %v7712
  %v7714 = vsel %vm4242, %v7713, %v7709
  %v7715 = vlaneseq
  %v7716 = vshrl.u32 %v7715, 7
  %v7717 = vsub.s32 %v4244, %v7716
  %v7718 = vrot.slane %v6810, %v7717
  %v7719 = vsel %vm4249, %v7718, %v7714
  %v7720 = vlaneseq
  %v7721 = vshrl.u32 %v7720, 7
  %v7722 = vsub.s32 %v4251, %v7721
  %v7723 = vrot.slane %v6813, %v7722
  %v7724 = vsel %vm4256, %v7723, %v7719
  %v7725 = vlaneseq
  %v7726 = vshrl.u32 %v7725, 7
  %v7727 = vsub.s32 %v4258, %v7726
  %v7728 = vrot.slane %v6816, %v7727
  %v7729 = vsel %vm4263, %v7728, %v7724
  %v7730 = vlaneseq
  %v7731 = vshrl.u32 %v7730, 7
  %v7732 = vsub.s32 %v4265, %v7731
  %v7733 = vrot.slane %v6819, %v7732
  %v7734 = vsel %vm4270, %v7733, %v7729
  %v7735 = vlaneseq
  %v7736 = vshrl.u32 %v7735, 7
  %v7737 = vsub.s32 %v4272, %v7736
  %v7738 = vrot.slane %v6822, %v7737
  %v7739 = vsel %vm4277, %v7738, %v7734
  %v7740 = vlaneseq
  %v7741 = vshrl.u32 %v7740, 7
  %v7742 = vsub.s32 %v4279, %v7741
  %v7743 = vrot.slane %v6825, %v7742
  %v7744 = vsel %vm4284, %v7743, %v7739
  %v7745 = vlaneseq
  %v7746 = vshrl.u32 %v7745, 7
  %v7747 = vsub.s32 %v4286, %v7746
  %v7748 = vrot.slane %v6828, %v7747
  %v7749 = vsel %vm4291, %v7748, %v7744
  %v7750 = vlaneseq
  %v7751 = vshrl.u32 %v7750, 7
  %v7752 = vsub.s32 %v4293, %v7751
  %v7753 = vrot.slane %v6831, %v7752
  %v7754 = vsel %vm4298, %v7753, %v7749
  %v7755 = vlaneseq
  %v7756 = vshrl.u32 %v7755, 7
  %v7757 = vsub.s32 %v4190, %v7756
  %v7758 = vrot.slane %v6834, %v7757
  %v7759 = vlaneseq
  %v7760 = vshrl.u32 %v7759, 7
  %v7761 = vsub.s32 %v4195, %v7760
  %v7762 = vrot.slane %v6837, %v7761
  %v7763 = vsel %vm4200, %v7762, %v7758
  %v7764 = vlaneseq
  %v7765 = vshrl.u32 %v7764, 7
  %v7766 = vsub.s32 %v4202, %v7765
  %v7767 = vrot.slane %v6840, %v7766
  %v7768 = vsel %vm4207, %v7767, %v7763
  %v7769 = vlaneseq
  %v7770 = vshrl.u32 %v7769, 7
  %v7771 = vsub.s32 %v4209, %v7770
  %v7772 = vrot.slane %v6843, %v7771
  %v7773 = vsel %vm4214, %v7772, %v7768
  %v7774 = vlaneseq
  %v7775 = vshrl.u32 %v7774, 7
  %v7776 = vsub.s32 %v4216, %v7775
  %v7777 = vrot.slane %v6846, %v7776
  %v7778 = vsel %vm4221, %v7777, %v7773
  %v7779 = vlaneseq
  %v7780 = vshrl.u32 %v7779, 7
  %v7781 = vsub.s32 %v4223, %v7780
  %v7782 = vrot.slane %v6849, %v7781
  %v7783 = vsel %vm4228, %v7782, %v7778
  %v7784 = vlaneseq
  %v7785 = vshrl.u32 %v7784, 7
  %v7786 = vsub.s32 %v4230, %v7785
  %v7787 = vrot.slane %v6852, %v7786
  %v7788 = vsel %vm4235, %v7787, %v7783
  %v7789 = vlaneseq
  %v7790 = vshrl.u32 %v7789, 7
  %v7791 = vsub.s32 %v4237, %v7790
  %v7792 = vrot.slane %v6855, %v7791
  %v7793 = vsel %vm4242, %v7792, %v7788
  %v7794 = vlaneseq
  %v7795 = vshrl.u32 %v7794, 7
  %v7796 = vsub.s32 %v4244, %v7795
  %v7797 = vrot.slane %v6858, %v7796
  %v7798 = vsel %vm4249, %v7797, %v7793
  %v7799 = vlaneseq
  %v7800 = vshrl.u32 %v7799, 7
  %v7801 = vsub.s32 %v4251, %v7800
  %v7802 = vrot.slane %v6861, %v7801
  %v7803 = vsel %vm4256, %v7802, %v7798
  %v7804 = vlaneseq
  %v7805 = vshrl.u32 %v7804, 7
  %v7806 = vsub.s32 %v4258, %v7805
  %v7807 = vrot.slane %v6864, %v7806
  %v7808 = vsel %vm4263, %v7807, %v7803
  %v7809 = vlaneseq
  %v7810 = vshrl.u32 %v7809, 7
  %v7811 = vsub.s32 %v4265, %v7810
  %v7812 = vrot.slane %v6867, %v7811
  %v7813 = vsel %vm4270, %v7812, %v7808
  %v7814 = vlaneseq
  %v7815 = vshrl.u32 %v7814, 7
  %v7816 = vsub.s32 %v4272, %v7815
  %v7817 = vrot.slane %v6870, %v7816
  %v7818 = vsel %vm4277, %v7817, %v7813
  %v7819 = vlaneseq
  %v7820 = vshrl.u32 %v7819, 7
  %v7821 = vsub.s32 %v4279, %v7820
  %v7822 = vrot.slane %v6873, %v7821
  %v7823 = vsel %vm4284, %v7822, %v7818
  %v7824 = vlaneseq
  %v7825 = vshrl.u32 %v7824, 7
  %v7826 = vsub.s32 %v4286, %v7825
  %v7827 = vrot.slane %v6876, %v7826
  %v7828 = vsel %vm4291, %v7827, %v7823
  %v7829 = vlaneseq
  %v7830 = vshrl.u32 %v7829, 7
  %v7831 = vsub.s32 %v4293, %v7830
  %v7832 = vrot.slane %v6879, %v7831
  %v7833 = vsel %vm4298, %v7832, %v7828
  %v7834 = vlaneseq
  %v7835 = vshrl.u32 %v7834, 7
  %v7836 = vsub.s32 %v4190, %v7835
  %v7837 = vrot.slane %v6882, %v7836
  %v7838 = vlaneseq
  %v7839 = vshrl.u32 %v7838, 7
  %v7840 = vsub.s32 %v4195, %v7839
  %v7841 = vrot.slane %v6885, %v7840
  %v7842 = vsel %vm4200, %v7841, %v7837
  %v7843 = vlaneseq
  %v7844 = vshrl.u32 %v7843, 7
  %v7845 = vsub.s32 %v4202, %v7844
  %v7846 = vrot.slane %v6888, %v7845
  %v7847 = vsel %vm4207, %v7846, %v7842
  %v7848 = vlaneseq
  %v7849 = vshrl.u32 %v7848, 7
  %v7850 = vsub.s32 %v4209, %v7849
  %v7851 = vrot.slane %v6891, %v7850
  %v7852 = vsel %vm4214, %v7851, %v7847
  %v7853 = vlaneseq
  %v7854 = vshrl.u32 %v7853, 7
  %v7855 = vsub.s32 %v4216, %v7854
  %v7856 = vrot.slane %v6894, %v7855
  %v7857 = vsel %vm4221, %v7856, %v7852
  %v7858 = vlaneseq
  %v7859 = vshrl.u32 %v7858, 7
  %v7860 = vsub.s32 %v4223, %v7859
  %v7861 = vrot.slane %v6897, %v7860
  %v7862 = vsel %vm4228, %v7861, %v7857
  %v7863 = vlaneseq
  %v7864 = vshrl.u32 %v7863, 7
  %v7865 = vsub.s32 %v4230, %v7864
  %v7866 = vrot.slane %v6900, %v7865
  %v7867 = vsel %vm4235, %v7866, %v7862
  %v7868 = vlaneseq
  %v7869 = vshrl.u32 %v7868, 7
  %v7870 = vsub.s32 %v4237, %v7869
  %v7871 = vrot.slane %v6903, %v7870
  %v7872 = vsel %vm4242, %v7871, %v7867
  %v7873 = vlaneseq
  %v7874 = vshrl.u32 %v7873, 7
  %v7875 = vsub.s32 %v4244, %v7874
  %v7876 = vrot.slane %v6906, %v7875
  %v7877 = vsel %vm4249, %v7876, %v7872
  %v7878 = vlaneseq
  %v7879 = vshrl.u32 %v7878, 7
  %v7880 = vsub.s32 %v4251, %v7879
  %v7881 = vrot.slane %v6909, %v7880
  %v7882 = vsel %vm4256, %v7881, %v7877
  %v7883 = vlaneseq
  %v7884 = vshrl.u32 %v7883, 7
  %v7885 = vsub.s32 %v4258, %v7884
  %v7886 = vrot.slane %v6912, %v7885
  %v7887 = vsel %vm4263, %v7886, %v7882
  %v7888 = vlaneseq
  %v7889 = vshrl.u32 %v7888, 7
  %v7890 = vsub.s32 %v4265, %v7889
  %v7891 = vrot.slane %v6915, %v7890
  %v7892 = vsel %vm4270, %v7891, %v7887
  %v7893 = vlaneseq
  %v7894 = vshrl.u32 %v7893, 7
  %v7895 = vsub.s32 %v4272, %v7894
  %v7896 = vrot.slane %v6918, %v7895
  %v7897 = vsel %vm4277, %v7896, %v7892
  %v7898 = vlaneseq
  %v7899 = vshrl.u32 %v7898, 7
  %v7900 = vsub.s32 %v4279, %v7899
  %v7901 = vrot.slane %v6921, %v7900
  %v7902 = vsel %vm4284, %v7901, %v7897
  %v7903 = vlaneseq
  %v7904 = vshrl.u32 %v7903, 7
  %v7905 = vsub.s32 %v4286, %v7904
  %v7906 = vrot.slane %v6924, %v7905
  %v7907 = vsel %vm4291, %v7906, %v7902
  %v7908 = vlaneseq
  %v7909 = vshrl.u32 %v7908, 7
  %v7910 = vsub.s32 %v4293, %v7909
  %v7911 = vrot.slane %v6927, %v7910
  %v7912 = vsel %vm4298, %v7911, %v7907
  %v7913 = vlaneseq
  %v7914 = vshrl.u32 %v7913, 7
  %v7915 = vsub.s32 %v4190, %v7914
  %v7916 = vrot.slane %v6930, %v7915
  %v7917 = vlaneseq
  %v7918 = vshrl.u32 %v7917, 7
  %v7919 = vsub.s32 %v4195, %v7918
  %v7920 = vrot.slane %v6933, %v7919
  %v7921 = vsel %vm4200, %v7920, %v7916
  %v7922 = vlaneseq
  %v7923 = vshrl.u32 %v7922, 7
  %v7924 = vsub.s32 %v4202, %v7923
  %v7925 = vrot.slane %v6936, %v7924
  %v7926 = vsel %vm4207, %v7925, %v7921
  %v7927 = vlaneseq
  %v7928 = vshrl.u32 %v7927, 7
  %v7929 = vsub.s32 %v4209, %v7928
  %v7930 = vrot.slane %v6939, %v7929
  %v7931 = vsel %vm4214, %v7930, %v7926
  %v7932 = vlaneseq
  %v7933 = vshrl.u32 %v7932, 7
  %v7934 = vsub.s32 %v4216, %v7933
  %v7935 = vrot.slane %v6942, %v7934
  %v7936 = vsel %vm4221, %v7935, %v7931
  %v7937 = vlaneseq
  %v7938 = vshrl.u32 %v7937, 7
  %v7939 = vsub.s32 %v4223, %v7938
  %v7940 = vrot.slane %v6945, %v7939
  %v7941 = vsel %vm4228, %v7940, %v7936
  %v7942 = vlaneseq
  %v7943 = vshrl.u32 %v7942, 7
  %v7944 = vsub.s32 %v4230, %v7943
  %v7945 = vrot.slane %v6948, %v7944
  %v7946 = vsel %vm4235, %v7945, %v7941
  %v7947 = vlaneseq
  %v7948 = vshrl.u32 %v7947, 7
  %v7949 = vsub.s32 %v4237, %v7948
  %v7950 = vrot.slane %v6951, %v7949
  %v7951 = vsel %vm4242, %v7950, %v7946
  %v7952 = vlaneseq
  %v7953 = vshrl.u32 %v7952, 7
  %v7954 = vsub.s32 %v4244, %v7953
  %v7955 = vrot.slane %v6954, %v7954
  %v7956 = vsel %vm4249, %v7955, %v7951
  %v7957 = vlaneseq
  %v7958 = vshrl.u32 %v7957, 7
  %v7959 = vsub.s32 %v4251, %v7958
  %v7960 = vrot.slane %v6957, %v7959
  %v7961 = vsel %vm4256, %v7960, %v7956
  %v7962 = vlaneseq
  %v7963 = vshrl.u32 %v7962, 7
  %v7964 = vsub.s32 %v4258, %v7963
  %v7965 = vrot.slane %v6960, %v7964
  %v7966 = vsel %vm4263, %v7965, %v7961
  %v7967 = vlaneseq
  %v7968 = vshrl.u32 %v7967, 7
  %v7969 = vsub.s32 %v4265, %v7968
  %v7970 = vrot.slane %v6963, %v7969
  %v7971 = vsel %vm4270, %v7970, %v7966
  %v7972 = vlaneseq
  %v7973 = vshrl.u32 %v7972, 7
  %v7974 = vsub.s32 %v4272, %v7973
  %v7975 = vrot.slane %v6966, %v7974
  %v7976 = vsel %vm4277, %v7975, %v7971
  %v7977 = vlaneseq
  %v7978 = vshrl.u32 %v7977, 7
  %v7979 = vsub.s32 %v4279, %v7978
  %v7980 = vrot.slane %v6969, %v7979
  %v7981 = vsel %vm4284, %v7980, %v7976
  %v7982 = vlaneseq
  %v7983 = vshrl.u32 %v7982, 7
  %v7984 = vsub.s32 %v4286, %v7983
  %v7985 = vrot.slane %v6972, %v7984
  %v7986 = vsel %vm4291, %v7985, %v7981
  %v7987 = vlaneseq
  %v7988 = vshrl.u32 %v7987, 7
  %v7989 = vsub.s32 %v4293, %v7988
  %v7990 = vrot.slane %v6975, %v7989
  %v7991 = vsel %vm4298, %v7990, %v7986
  %v7992 = vlaneseq
  %v7993 = vshrl.u32 %v7992, 7
  %v7994 = vsub.s32 %v4190, %v7993
  %v7995 = vrot.slane %v6978, %v7994
  %v7996 = vlaneseq
  %v7997 = vshrl.u32 %v7996, 7
  %v7998 = vsub.s32 %v4195, %v7997
  %v7999 = vrot.slane %v6981, %v7998
  %v8000 = vsel %vm4200, %v7999, %v7995
  %v8001 = vlaneseq
  %v8002 = vshrl.u32 %v8001, 7
  %v8003 = vsub.s32 %v4202, %v8002
  %v8004 = vrot.slane %v6984, %v8003
  %v8005 = vsel %vm4207, %v8004, %v8000
  %v8006 = vlaneseq
  %v8007 = vshrl.u32 %v8006, 7
  %v8008 = vsub.s32 %v4209, %v8007
  %v8009 = vrot.slane %v6987, %v8008
  %v8010 = vsel %vm4214, %v8009, %v8005
  %v8011 = vlaneseq
  %v8012 = vshrl.u32 %v8011, 7
  %v8013 = vsub.s32 %v4216, %v8012
  %v8014 = vrot.slane %v6990, %v8013
  %v8015 = vsel %vm4221, %v8014, %v8010
  %v8016 = vlaneseq
  %v8017 = vshrl.u32 %v8016, 7
  %v8018 = vsub.s32 %v4223, %v8017
  %v8019 = vrot.slane %v6993, %v8018
  %v8020 = vsel %vm4228, %v8019, %v8015
  %v8021 = vlaneseq
  %v8022 = vshrl.u32 %v8021, 7
  %v8023 = vsub.s32 %v4230, %v8022
  %v8024 = vrot.slane %v6996, %v8023
  %v8025 = vsel %vm4235, %v8024, %v8020
  %v8026 = vlaneseq
  %v8027 = vshrl.u32 %v8026, 7
  %v8028 = vsub.s32 %v4237, %v8027
  %v8029 = vrot.slane %v6999, %v8028
  %v8030 = vsel %vm4242, %v8029, %v8025
  %v8031 = vlaneseq
  %v8032 = vshrl.u32 %v8031, 7
  %v8033 = vsub.s32 %v4244, %v8032
  %v8034 = vrot.slane %v7002, %v8033
  %v8035 = vsel %vm4249, %v8034, %v8030
  %v8036 = vlaneseq
  %v8037 = vshrl.u32 %v8036, 7
  %v8038 = vsub.s32 %v4251, %v8037
  %v8039 = vrot.slane %v7005, %v8038
  %v8040 = vsel %vm4256, %v8039, %v8035
  %v8041 = vlaneseq
  %v8042 = vshrl.u32 %v8041, 7
  %v8043 = vsub.s32 %v4258, %v8042
  %v8044 = vrot.slane %v7008, %v8043
  %v8045 = vsel %vm4263, %v8044, %v8040
  %v8046 = vlaneseq
  %v8047 = vshrl.u32 %v8046, 7
  %v8048 = vsub.s32 %v4265, %v8047
  %v8049 = vrot.slane %v7011, %v8048
  %v8050 = vsel %vm4270, %v8049, %v8045
  %v8051 = vlaneseq
  %v8052 = vshrl.u32 %v8051, 7
  %v8053 = vsub.s32 %v4272, %v8052
  %v8054 = vrot.slane %v7014, %v8053
  %v8055 = vsel %vm4277, %v8054, %v8050
  %v8056 = vlaneseq
  %v8057 = vshrl.u32 %v8056, 7
  %v8058 = vsub.s32 %v4279, %v8057
  %v8059 = vrot.slane %v7017, %v8058
  %v8060 = vsel %vm4284, %v8059, %v8055
  %v8061 = vlaneseq
  %v8062 = vshrl.u32 %v8061, 7
  %v8063 = vsub.s32 %v4286, %v8062
  %v8064 = vrot.slane %v7020, %v8063
  %v8065 = vsel %vm4291, %v8064, %v8060
  %v8066 = vlaneseq
  %v8067 = vshrl.u32 %v8066, 7
  %v8068 = vsub.s32 %v4293, %v8067
  %v8069 = vrot.slane %v7023, %v8068
  %v8070 = vsel %vm4298, %v8069, %v8065
  %v8071 = vlaneseq
  %v8072 = vshrl.u32 %v8071, 7
  %v8073 = vsub.s32 %v4190, %v8072
  %v8074 = vrot.slane %v7026, %v8073
  %v8075 = vlaneseq
  %v8076 = vshrl.u32 %v8075, 7
  %v8077 = vsub.s32 %v4195, %v8076
  %v8078 = vrot.slane %v7029, %v8077
  %v8079 = vsel %vm4200, %v8078, %v8074
  %v8080 = vlaneseq
  %v8081 = vshrl.u32 %v8080, 7
  %v8082 = vsub.s32 %v4202, %v8081
  %v8083 = vrot.slane %v7032, %v8082
  %v8084 = vsel %vm4207, %v8083, %v8079
  %v8085 = vlaneseq
  %v8086 = vshrl.u32 %v8085, 7
  %v8087 = vsub.s32 %v4209, %v8086
  %v8088 = vrot.slane %v7035, %v8087
  %v8089 = vsel %vm4214, %v8088, %v8084
  %v8090 = vlaneseq
  %v8091 = vshrl.u32 %v8090, 7
  %v8092 = vsub.s32 %v4216, %v8091
  %v8093 = vrot.slane %v7038, %v8092
  %v8094 = vsel %vm4221, %v8093, %v8089
  %v8095 = vlaneseq
  %v8096 = vshrl.u32 %v8095, 7
  %v8097 = vsub.s32 %v4223, %v8096
  %v8098 = vrot.slane %v7041, %v8097
  %v8099 = vsel %vm4228, %v8098, %v8094
  %v8100 = vlaneseq
  %v8101 = vshrl.u32 %v8100, 7
  %v8102 = vsub.s32 %v4230, %v8101
  %v8103 = vrot.slane %v7044, %v8102
  %v8104 = vsel %vm4235, %v8103, %v8099
  %v8105 = vlaneseq
  %v8106 = vshrl.u32 %v8105, 7
  %v8107 = vsub.s32 %v4237, %v8106
  %v8108 = vrot.slane %v7047, %v8107
  %v8109 = vsel %vm4242, %v8108, %v8104
  %v8110 = vlaneseq
  %v8111 = vshrl.u32 %v8110, 7
  %v8112 = vsub.s32 %v4244, %v8111
  %v8113 = vrot.slane %v7050, %v8112
  %v8114 = vsel %vm4249, %v8113, %v8109
  %v8115 = vlaneseq
  %v8116 = vshrl.u32 %v8115, 7
  %v8117 = vsub.s32 %v4251, %v8116
  %v8118 = vrot.slane %v7053, %v8117
  %v8119 = vsel %vm4256, %v8118, %v8114
  %v8120 = vlaneseq
  %v8121 = vshrl.u32 %v8120, 7
  %v8122 = vsub.s32 %v4258, %v8121
  %v8123 = vrot.slane %v7056, %v8122
  %v8124 = vsel %vm4263, %v8123, %v8119
  %v8125 = vlaneseq
  %v8126 = vshrl.u32 %v8125, 7
  %v8127 = vsub.s32 %v4265, %v8126
  %v8128 = vrot.slane %v7059, %v8127
  %v8129 = vsel %vm4270, %v8128, %v8124
  %v8130 = vlaneseq
  %v8131 = vshrl.u32 %v8130, 7
  %v8132 = vsub.s32 %v4272, %v8131
  %v8133 = vrot.slane %v7062, %v8132
  %v8134 = vsel %vm4277, %v8133, %v8129
  %v8135 = vlaneseq
  %v8136 = vshrl.u32 %v8135, 7
  %v8137 = vsub.s32 %v4279, %v8136
  %v8138 = vrot.slane %v7065, %v8137
  %v8139 = vsel %vm4284, %v8138, %v8134
  %v8140 = vlaneseq
  %v8141 = vshrl.u32 %v8140, 7
  %v8142 = vsub.s32 %v4286, %v8141
  %v8143 = vrot.slane %v7068, %v8142
  %v8144 = vsel %vm4291, %v8143, %v8139
  %v8145 = vlaneseq
  %v8146 = vshrl.u32 %v8145, 7
  %v8147 = vsub.s32 %v4293, %v8146
  %v8148 = vrot.slane %v7071, %v8147
  %v8149 = vsel %vm4298, %v8148, %v8144
  %v8150 = vlaneseq
  %v8151 = vshrl.u32 %v8150, 7
  %v8152 = vsub.s32 %v4190, %v8151
  %v8153 = vrot.slane %v7074, %v8152
  %v8154 = vlaneseq
  %v8155 = vshrl.u32 %v8154, 7
  %v8156 = vsub.s32 %v4195, %v8155
  %v8157 = vrot.slane %v7077, %v8156
  %v8158 = vsel %vm4200, %v8157, %v8153
  %v8159 = vlaneseq
  %v8160 = vshrl.u32 %v8159, 7
  %v8161 = vsub.s32 %v4202, %v8160
  %v8162 = vrot.slane %v7080, %v8161
  %v8163 = vsel %vm4207, %v8162, %v8158
  %v8164 = vlaneseq
  %v8165 = vshrl.u32 %v8164, 7
  %v8166 = vsub.s32 %v4209, %v8165
  %v8167 = vrot.slane %v7083, %v8166
  %v8168 = vsel %vm4214, %v8167, %v8163
  %v8169 = vlaneseq
  %v8170 = vshrl.u32 %v8169, 7
  %v8171 = vsub.s32 %v4216, %v8170
  %v8172 = vrot.slane %v7086, %v8171
  %v8173 = vsel %vm4221, %v8172, %v8168
  %v8174 = vlaneseq
  %v8175 = vshrl.u32 %v8174, 7
  %v8176 = vsub.s32 %v4223, %v8175
  %v8177 = vrot.slane %v7089, %v8176
  %v8178 = vsel %vm4228, %v8177, %v8173
  %v8179 = vlaneseq
  %v8180 = vshrl.u32 %v8179, 7
  %v8181 = vsub.s32 %v4230, %v8180
  %v8182 = vrot.slane %v7092, %v8181
  %v8183 = vsel %vm4235, %v8182, %v8178
  %v8184 = vlaneseq
  %v8185 = vshrl.u32 %v8184, 7
  %v8186 = vsub.s32 %v4237, %v8185
  %v8187 = vrot.slane %v7095, %v8186
  %v8188 = vsel %vm4242, %v8187, %v8183
  %v8189 = vlaneseq
  %v8190 = vshrl.u32 %v8189, 7
  %v8191 = vsub.s32 %v4244, %v8190
  %v8192 = vrot.slane %v7098, %v8191
  %v8193 = vsel %vm4249, %v8192, %v8188
  %v8194 = vlaneseq
  %v8195 = vshrl.u32 %v8194, 7
  %v8196 = vsub.s32 %v4251, %v8195
  %v8197 = vrot.slane %v7101, %v8196
  %v8198 = vsel %vm4256, %v8197, %v8193
  %v8199 = vlaneseq
  %v8200 = vshrl.u32 %v8199, 7
  %v8201 = vsub.s32 %v4258, %v8200
  %v8202 = vrot.slane %v7104, %v8201
  %v8203 = vsel %vm4263, %v8202, %v8198
  %v8204 = vlaneseq
  %v8205 = vshrl.u32 %v8204, 7
  %v8206 = vsub.s32 %v4265, %v8205
  %v8207 = vrot.slane %v7107, %v8206
  %v8208 = vsel %vm4270, %v8207, %v8203
  %v8209 = vlaneseq
  %v8210 = vshrl.u32 %v8209, 7
  %v8211 = vsub.s32 %v4272, %v8210
  %v8212 = vrot.slane %v7110, %v8211
  %v8213 = vsel %vm4277, %v8212, %v8208
  %v8214 = vlaneseq
  %v8215 = vshrl.u32 %v8214, 7
  %v8216 = vsub.s32 %v4279, %v8215
  %v8217 = vrot.slane %v7113, %v8216
  %v8218 = vsel %vm4284, %v8217, %v8213
  %v8219 = vlaneseq
  %v8220 = vshrl.u32 %v8219, 7
  %v8221 = vsub.s32 %v4286, %v8220
  %v8222 = vrot.slane %v7116, %v8221
  %v8223 = vsel %vm4291, %v8222, %v8218
  %v8224 = vlaneseq
  %v8225 = vshrl.u32 %v8224, 7
  %v8226 = vsub.s32 %v4293, %v8225
  %v8227 = vrot.slane %v7119, %v8226
  %v8228 = vsel %vm4298, %v8227, %v8223
  %v8229 = vlaneseq
  %v8230 = vshrl.u32 %v8229, 7
  %v8231 = vsub.s32 %v4190, %v8230
  %v8232 = vrot.slane %v7122, %v8231
  %v8233 = vlaneseq
  %v8234 = vshrl.u32 %v8233, 7
  %v8235 = vsub.s32 %v4195, %v8234
  %v8236 = vrot.slane %v7125, %v8235
  %v8237 = vsel %vm4200, %v8236, %v8232
  %v8238 = vlaneseq
  %v8239 = vshrl.u32 %v8238, 7
  %v8240 = vsub.s32 %v4202, %v8239
  %v8241 = vrot.slane %v7128, %v8240
  %v8242 = vsel %vm4207, %v8241, %v8237
  %v8243 = vlaneseq
  %v8244 = vshrl.u32 %v8243, 7
  %v8245 = vsub.s32 %v4209, %v8244
  %v8246 = vrot.slane %v7131, %v8245
  %v8247 = vsel %vm4214, %v8246, %v8242
  %v8248 = vlaneseq
  %v8249 = vshrl.u32 %v8248, 7
  %v8250 = vsub.s32 %v4216, %v8249
  %v8251 = vrot.slane %v7134, %v8250
  %v8252 = vsel %vm4221, %v8251, %v8247
  %v8253 = vlaneseq
  %v8254 = vshrl.u32 %v8253, 7
  %v8255 = vsub.s32 %v4223, %v8254
  %v8256 = vrot.slane %v7137, %v8255
  %v8257 = vsel %vm4228, %v8256, %v8252
  %v8258 = vlaneseq
  %v8259 = vshrl.u32 %v8258, 7
  %v8260 = vsub.s32 %v4230, %v8259
  %v8261 = vrot.slane %v7140, %v8260
  %v8262 = vsel %vm4235, %v8261, %v8257
  %v8263 = vlaneseq
  %v8264 = vshrl.u32 %v8263, 7
  %v8265 = vsub.s32 %v4237, %v8264
  %v8266 = vrot.slane %v7143, %v8265
  %v8267 = vsel %vm4242, %v8266, %v8262
  %v8268 = vlaneseq
  %v8269 = vshrl.u32 %v8268, 7
  %v8270 = vsub.s32 %v4244, %v8269
  %v8271 = vrot.slane %v7146, %v8270
  %v8272 = vsel %vm4249, %v8271, %v8267
  %v8273 = vlaneseq
  %v8274 = vshrl.u32 %v8273, 7
  %v8275 = vsub.s32 %v4251, %v8274
  %v8276 = vrot.slane %v7149, %v8275
  %v8277 = vsel %vm4256, %v8276, %v8272
  %v8278 = vlaneseq
  %v8279 = vshrl.u32 %v8278, 7
  %v8280 = vsub.s32 %v4258, %v8279
  %v8281 = vrot.slane %v7152, %v8280
  %v8282 = vsel %vm4263, %v8281, %v8277
  %v8283 = vlaneseq
  %v8284 = vshrl.u32 %v8283, 7
  %v8285 = vsub.s32 %v4265, %v8284
  %v8286 = vrot.slane %v7155, %v8285
  %v8287 = vsel %vm4270, %v8286, %v8282
  %v8288 = vlaneseq
  %v8289 = vshrl.u32 %v8288, 7
  %v8290 = vsub.s32 %v4272, %v8289
  %v8291 = vrot.slane %v7158, %v8290
  %v8292 = vsel %vm4277, %v8291, %v8287
  %v8293 = vlaneseq
  %v8294 = vshrl.u32 %v8293, 7
  %v8295 = vsub.s32 %v4279, %v8294
  %v8296 = vrot.slane %v7161, %v8295
  %v8297 = vsel %vm4284, %v8296, %v8292
  %v8298 = vlaneseq
  %v8299 = vshrl.u32 %v8298, 7
  %v8300 = vsub.s32 %v4286, %v8299
  %v8301 = vrot.slane %v7164, %v8300
  %v8302 = vsel %vm4291, %v8301, %v8297
  %v8303 = vlaneseq
  %v8304 = vshrl.u32 %v8303, 7
  %v8305 = vsub.s32 %v4293, %v8304
  %v8306 = vrot.slane %v7167, %v8305
  %v8307 = vsel %vm4298, %v8306, %v8302
  %v8308 = vlaneseq
  %v8309 = vshrl.u32 %v8308, 7
  %v8310 = vsub.s32 %v4190, %v8309
  %v8311 = vrot.slane %v7170, %v8310
  %v8312 = vlaneseq
  %v8313 = vshrl.u32 %v8312, 7
  %v8314 = vsub.s32 %v4195, %v8313
  %v8315 = vrot.slane %v7173, %v8314
  %v8316 = vsel %vm4200, %v8315, %v8311
  %v8317 = vlaneseq
  %v8318 = vshrl.u32 %v8317, 7
  %v8319 = vsub.s32 %v4202, %v8318
  %v8320 = vrot.slane %v7176, %v8319
  %v8321 = vsel %vm4207, %v8320, %v8316
  %v8322 = vlaneseq
  %v8323 = vshrl.u32 %v8322, 7
  %v8324 = vsub.s32 %v4209, %v8323
  %v8325 = vrot.slane %v7179, %v8324
  %v8326 = vsel %vm4214, %v8325, %v8321
  %v8327 = vlaneseq
  %v8328 = vshrl.u32 %v8327, 7
  %v8329 = vsub.s32 %v4216, %v8328
  %v8330 = vrot.slane %v7182, %v8329
  %v8331 = vsel %vm4221, %v8330, %v8326
  %v8332 = vlaneseq
  %v8333 = vshrl.u32 %v8332, 7
  %v8334 = vsub.s32 %v4223, %v8333
  %v8335 = vrot.slane %v7185, %v8334
  %v8336 = vsel %vm4228, %v8335, %v8331
  %v8337 = vlaneseq
  %v8338 = vshrl.u32 %v8337, 7
  %v8339 = vsub.s32 %v4230, %v8338
  %v8340 = vrot.slane %v7188, %v8339
  %v8341 = vsel %vm4235, %v8340, %v8336
  %v8342 = vlaneseq
  %v8343 = vshrl.u32 %v8342, 7
  %v8344 = vsub.s32 %v4237, %v8343
  %v8345 = vrot.slane %v7191, %v8344
  %v8346 = vsel %vm4242, %v8345, %v8341
  %v8347 = vlaneseq
  %v8348 = vshrl.u32 %v8347, 7
  %v8349 = vsub.s32 %v4244, %v8348
  %v8350 = vrot.slane %v7194, %v8349
  %v8351 = vsel %vm4249, %v8350, %v8346
  %v8352 = vlaneseq
  %v8353 = vshrl.u32 %v8352, 7
  %v8354 = vsub.s32 %v4251, %v8353
  %v8355 = vrot.slane %v7197, %v8354
  %v8356 = vsel %vm4256, %v8355, %v8351
  %v8357 = vlaneseq
  %v8358 = vshrl.u32 %v8357, 7
  %v8359 = vsub.s32 %v4258, %v8358
  %v8360 = vrot.slane %v7200, %v8359
  %v8361 = vsel %vm4263, %v8360, %v8356
  %v8362 = vlaneseq
  %v8363 = vshrl.u32 %v8362, 7
  %v8364 = vsub.s32 %v4265, %v8363
  %v8365 = vrot.slane %v7203, %v8364
  %v8366 = vsel %vm4270, %v8365, %v8361
  %v8367 = vlaneseq
  %v8368 = vshrl.u32 %v8367, 7
  %v8369 = vsub.s32 %v4272, %v8368
  %v8370 = vrot.slane %v7206, %v8369
  %v8371 = vsel %vm4277, %v8370, %v8366
  %v8372 = vlaneseq
  %v8373 = vshrl.u32 %v8372, 7
  %v8374 = vsub.s32 %v4279, %v8373
  %v8375 = vrot.slane %v7209, %v8374
  %v8376 = vsel %vm4284, %v8375, %v8371
  %v8377 = vlaneseq
  %v8378 = vshrl.u32 %v8377, 7
  %v8379 = vsub.s32 %v4286, %v8378
  %v8380 = vrot.slane %v7212, %v8379
  %v8381 = vsel %vm4291, %v8380, %v8376
  %v8382 = vlaneseq
  %v8383 = vshrl.u32 %v8382, 7
  %v8384 = vsub.s32 %v4293, %v8383
  %v8385 = vrot.slane %v7215, %v8384
  %v8386 = vsel %vm4298, %v8385, %v8381
  %v8387 = vlaneseq
  %v8388 = vshrl.u32 %v8387, 7
  %v8389 = vsub.s32 %v4190, %v8388
  %v8390 = vrot.slane %v7218, %v8389
  %v8391 = vlaneseq
  %v8392 = vshrl.u32 %v8391, 7
  %v8393 = vsub.s32 %v4195, %v8392
  %v8394 = vrot.slane %v7221, %v8393
  %v8395 = vsel %vm4200, %v8394, %v8390
  %v8396 = vlaneseq
  %v8397 = vshrl.u32 %v8396, 7
  %v8398 = vsub.s32 %v4202, %v8397
  %v8399 = vrot.slane %v7224, %v8398
  %v8400 = vsel %vm4207, %v8399, %v8395
  %v8401 = vlaneseq
  %v8402 = vshrl.u32 %v8401, 7
  %v8403 = vsub.s32 %v4209, %v8402
  %v8404 = vrot.slane %v7227, %v8403
  %v8405 = vsel %vm4214, %v8404, %v8400
  %v8406 = vlaneseq
  %v8407 = vshrl.u32 %v8406, 7
  %v8408 = vsub.s32 %v4216, %v8407
  %v8409 = vrot.slane %v7230, %v8408
  %v8410 = vsel %vm4221, %v8409, %v8405
  %v8411 = vlaneseq
  %v8412 = vshrl.u32 %v8411, 7
  %v8413 = vsub.s32 %v4223, %v8412
  %v8414 = vrot.slane %v7233, %v8413
  %v8415 = vsel %vm4228, %v8414, %v8410
  %v8416 = vlaneseq
  %v8417 = vshrl.u32 %v8416, 7
  %v8418 = vsub.s32 %v4230, %v8417
  %v8419 = vrot.slane %v7236, %v8418
  %v8420 = vsel %vm4235, %v8419, %v8415
  %v8421 = vlaneseq
  %v8422 = vshrl.u32 %v8421, 7
  %v8423 = vsub.s32 %v4237, %v8422
  %v8424 = vrot.slane %v7239, %v8423
  %v8425 = vsel %vm4242, %v8424, %v8420
  %v8426 = vlaneseq
  %v8427 = vshrl.u32 %v8426, 7
  %v8428 = vsub.s32 %v4244, %v8427
  %v8429 = vrot.slane %v7242, %v8428
  %v8430 = vsel %vm4249, %v8429, %v8425
  %v8431 = vlaneseq
  %v8432 = vshrl.u32 %v8431, 7
  %v8433 = vsub.s32 %v4251, %v8432
  %v8434 = vrot.slane %v7245, %v8433
  %v8435 = vsel %vm4256, %v8434, %v8430
  %v8436 = vlaneseq
  %v8437 = vshrl.u32 %v8436, 7
  %v8438 = vsub.s32 %v4258, %v8437
  %v8439 = vrot.slane %v7248, %v8438
  %v8440 = vsel %vm4263, %v8439, %v8435
  %v8441 = vlaneseq
  %v8442 = vshrl.u32 %v8441, 7
  %v8443 = vsub.s32 %v4265, %v8442
  %v8444 = vrot.slane %v7251, %v8443
  %v8445 = vsel %vm4270, %v8444, %v8440
  %v8446 = vlaneseq
  %v8447 = vshrl.u32 %v8446, 7
  %v8448 = vsub.s32 %v4272, %v8447
  %v8449 = vrot.slane %v7254, %v8448
  %v8450 = vsel %vm4277, %v8449, %v8445
  %v8451 = vlaneseq
  %v8452 = vshrl.u32 %v8451, 7
  %v8453 = vsub.s32 %v4279, %v8452
  %v8454 = vrot.slane %v7257, %v8453
  %v8455 = vsel %vm4284, %v8454, %v8450
  %v8456 = vlaneseq
  %v8457 = vshrl.u32 %v8456, 7
  %v8458 = vsub.s32 %v4286, %v8457
  %v8459 = vrot.slane %v7260, %v8458
  %v8460 = vsel %vm4291, %v8459, %v8455
  %v8461 = vlaneseq
  %v8462 = vshrl.u32 %v8461, 7
  %v8463 = vsub.s32 %v4293, %v8462
  %v8464 = vrot.slane %v7263, %v8463
  %v8465 = vsel %vm4298, %v8464, %v8460
  %v8466 = vlaneseq
  %v8467 = vshrl.u32 %v8466, 7
  %v8468 = vsub.s32 %v4190, %v8467
  %v8469 = vrot.slane %v7266, %v8468
  %v8470 = vlaneseq
  %v8471 = vshrl.u32 %v8470, 7
  %v8472 = vsub.s32 %v4195, %v8471
  %v8473 = vrot.slane %v7269, %v8472
  %v8474 = vsel %vm4200, %v8473, %v8469
  %v8475 = vlaneseq
  %v8476 = vshrl.u32 %v8475, 7
  %v8477 = vsub.s32 %v4202, %v8476
  %v8478 = vrot.slane %v7272, %v8477
  %v8479 = vsel %vm4207, %v8478, %v8474
  %v8480 = vlaneseq
  %v8481 = vshrl.u32 %v8480, 7
  %v8482 = vsub.s32 %v4209, %v8481
  %v8483 = vrot.slane %v7275, %v8482
  %v8484 = vsel %vm4214, %v8483, %v8479
  %v8485 = vlaneseq
  %v8486 = vshrl.u32 %v8485, 7
  %v8487 = vsub.s32 %v4216, %v8486
  %v8488 = vrot.slane %v7278, %v8487
  %v8489 = vsel %vm4221, %v8488, %v8484
  %v8490 = vlaneseq
  %v8491 = vshrl.u32 %v8490, 7
  %v8492 = vsub.s32 %v4223, %v8491
  %v8493 = vrot.slane %v7281, %v8492
  %v8494 = vsel %vm4228, %v8493, %v8489
  %v8495 = vlaneseq
  %v8496 = vshrl.u32 %v8495, 7
  %v8497 = vsub.s32 %v4230, %v8496
  %v8498 = vrot.slane %v7284, %v8497
  %v8499 = vsel %vm4235, %v8498, %v8494
  %v8500 = vlaneseq
  %v8501 = vshrl.u32 %v8500, 7
  %v8502 = vsub.s32 %v4237, %v8501
  %v8503 = vrot.slane %v7287, %v8502
  %v8504 = vsel %vm4242, %v8503, %v8499
  %v8505 = vlaneseq
  %v8506 = vshrl.u32 %v8505, 7
  %v8507 = vsub.s32 %v4244, %v8506
  %v8508 = vrot.slane %v7290, %v8507
  %v8509 = vsel %vm4249, %v8508, %v8504
  %v8510 = vlaneseq
  %v8511 = vshrl.u32 %v8510, 7
  %v8512 = vsub.s32 %v4251, %v8511
  %v8513 = vrot.slane %v7293, %v8512
  %v8514 = vsel %vm4256, %v8513, %v8509
  %v8515 = vlaneseq
  %v8516 = vshrl.u32 %v8515, 7
  %v8517 = vsub.s32 %v4258, %v8516
  %v8518 = vrot.slane %v7296, %v8517
  %v8519 = vsel %vm4263, %v8518, %v8514
  %v8520 = vlaneseq
  %v8521 = vshrl.u32 %v8520, 7
  %v8522 = vsub.s32 %v4265, %v8521
  %v8523 = vrot.slane %v7299, %v8522
  %v8524 = vsel %vm4270, %v8523, %v8519
  %v8525 = vlaneseq
  %v8526 = vshrl.u32 %v8525, 7
  %v8527 = vsub.s32 %v4272, %v8526
  %v8528 = vrot.slane %v7302, %v8527
  %v8529 = vsel %vm4277, %v8528, %v8524
  %v8530 = vlaneseq
  %v8531 = vshrl.u32 %v8530, 7
  %v8532 = vsub.s32 %v4279, %v8531
  %v8533 = vrot.slane %v7305, %v8532
  %v8534 = vsel %vm4284, %v8533, %v8529
  %v8535 = vlaneseq
  %v8536 = vshrl.u32 %v8535, 7
  %v8537 = vsub.s32 %v4286, %v8536
  %v8538 = vrot.slane %v7308, %v8537
  %v8539 = vsel %vm4291, %v8538, %v8534
  %v8540 = vlaneseq
  %v8541 = vshrl.u32 %v8540, 7
  %v8542 = vsub.s32 %v4293, %v8541
  %v8543 = vrot.slane %v7311, %v8542
  %v8544 = vsel %vm4298, %v8543, %v8539
  %v8545 = vlaneseq
  %v8546 = vshrl.u32 %v8545, 7
  %v8547 = vsub.s32 %v4190, %v8546
  %v8548 = vrot.slane %v7314, %v8547
  %v8549 = vlaneseq
  %v8550 = vshrl.u32 %v8549, 7
  %v8551 = vsub.s32 %v4195, %v8550
  %v8552 = vrot.slane %v7317, %v8551
  %v8553 = vsel %vm4200, %v8552, %v8548
  %v8554 = vlaneseq
  %v8555 = vshrl.u32 %v8554, 7
  %v8556 = vsub.s32 %v4202, %v8555
  %v8557 = vrot.slane %v7320, %v8556
  %v8558 = vsel %vm4207, %v8557, %v8553
  %v8559 = vlaneseq
  %v8560 = vshrl.u32 %v8559, 7
  %v8561 = vsub.s32 %v4209, %v8560
  %v8562 = vrot.slane %v7323, %v8561
  %v8563 = vsel %vm4214, %v8562, %v8558
  %v8564 = vlaneseq
  %v8565 = vshrl.u32 %v8564, 7
  %v8566 = vsub.s32 %v4216, %v8565
  %v8567 = vrot.slane %v7326, %v8566
  %v8568 = vsel %vm4221, %v8567, %v8563
  %v8569 = vlaneseq
  %v8570 = vshrl.u32 %v8569, 7
  %v8571 = vsub.s32 %v4223, %v8570
  %v8572 = vrot.slane %v7329, %v8571
  %v8573 = vsel %vm4228, %v8572, %v8568
  %v8574 = vlaneseq
  %v8575 = vshrl.u32 %v8574, 7
  %v8576 = vsub.s32 %v4230, %v8575
  %v8577 = vrot.slane %v7332, %v8576
  %v8578 = vsel %vm4235, %v8577, %v8573
  %v8579 = vlaneseq
  %v8580 = vshrl.u32 %v8579, 7
  %v8581 = vsub.s32 %v4237, %v8580
  %v8582 = vrot.slane %v7335, %v8581
  %v8583 = vsel %vm4242, %v8582, %v8578
  %v8584 = vlaneseq
  %v8585 = vshrl.u32 %v8584, 7
  %v8586 = vsub.s32 %v4244, %v8585
  %v8587 = vrot.slane %v7338, %v8586
  %v8588 = vsel %vm4249, %v8587, %v8583
  %v8589 = vlaneseq
  %v8590 = vshrl.u32 %v8589, 7
  %v8591 = vsub.s32 %v4251, %v8590
  %v8592 = vrot.slane %v7341, %v8591
  %v8593 = vsel %vm4256, %v8592, %v8588
  %v8594 = vlaneseq
  %v8595 = vshrl.u32 %v8594, 7
  %v8596 = vsub.s32 %v4258, %v8595
  %v8597 = vrot.slane %v7344, %v8596
  %v8598 = vsel %vm4263, %v8597, %v8593
  %v8599 = vlaneseq
  %v8600 = vshrl.u32 %v8599, 7
  %v8601 = vsub.s32 %v4265, %v8600
  %v8602 = vrot.slane %v7347, %v8601
  %v8603 = vsel %vm4270, %v8602, %v8598
  %v8604 = vlaneseq
  %v8605 = vshrl.u32 %v8604, 7
  %v8606 = vsub.s32 %v4272, %v8605
  %v8607 = vrot.slane %v7350, %v8606
  %v8608 = vsel %vm4277, %v8607, %v8603
  %v8609 = vlaneseq
  %v8610 = vshrl.u32 %v8609, 7
  %v8611 = vsub.s32 %v4279, %v8610
  %v8612 = vrot.slane %v7353, %v8611
  %v8613 = vsel %vm4284, %v8612, %v8608
  %v8614 = vlaneseq
  %v8615 = vshrl.u32 %v8614, 7
  %v8616 = vsub.s32 %v4286, %v8615
  %v8617 = vrot.slane %v7356, %v8616
  %v8618 = vsel %vm4291, %v8617, %v8613
  %v8619 = vlaneseq
  %v8620 = vshrl.u32 %v8619, 7
  %v8621 = vsub.s32 %v4293, %v8620
  %v8622 = vrot.slane %v7359, %v8621
  %v8623 = vsel %vm4298, %v8622, %v8618
  %v8624 = vsel %vm5485, %v7596, %v7438
  %v8625 = vsel %vm5487, %v7754, %v8624
  %v8626 = vsel %vm5489, %v7912, %v8625
  %v8627 = vsel %vm5491, %v8070, %v8626
  %v8628 = vsel %vm5493, %v8228, %v8627
  %v8629 = vsel %vm5495, %v8386, %v8628
  %v8630 = vsel %vm5497, %v8544, %v8629
  %v8631 = vsel %vm5485, %v7675, %v7517
  %v8632 = vsel %vm5487, %v7833, %v8631
  %v8633 = vsel %vm5489, %v7991, %v8632
  %v8634 = vsel %vm5491, %v8149, %v8633
  %v8635 = vsel %vm5493, %v8307, %v8634
  %v8636 = vsel %vm5495, %v8465, %v8635
  %v8637 = vsel %vm5497, %v8623, %v8636
  %v8640 = vadd.f32 %v8630, %v8637
  %8641 = vadd.xlane.f32.xlu0 %v8640
  %v8642 = vpop.xlane.xlu0 %8641
  %v8643 = vadd.f32 %v6335, %v8642
  %vm8644 = vcmask 7168
  %8645 = vst.msk [vmem:[#allocation4] sm:$0xff] %vm8644, %v8643
  %v8646 = vld [vmem:[#allocation5] sm:$0xff]
  %8648 = vset.pattern.permute.xlu0 0
  %8649 = vperm.xlu0 %8648, %v5521
  %v8650 = vpop.permute.xlu0 %8649
  %v8652 = vmul.f32 %v8650, %v8646
  %v8653 = vunpack.c.l.bf16 %v151
  %v8654 = vunpack.c.l.bf16 %v152
  %v8655 = vunpack.c.l.bf16 %v153
  %v8656 = vunpack.c.l.bf16 %v154
  %v8657 = vunpack.c.l.bf16 %v155
  %v8658 = vunpack.c.l.bf16 %v156
  %v8659 = vunpack.c.l.bf16 %v157
  %v8660 = vunpack.c.l.bf16 %v158
  %v8661 = vunpack.c.l.bf16 %v159
  %v8662 = vunpack.c.l.bf16 %v160
  %v8663 = vunpack.c.l.bf16 %v161
  %v8664 = vunpack.c.l.bf16 %v162
  %v8665 = vunpack.c.l.bf16 %v163
  %v8666 = vunpack.c.l.bf16 %v164
  %v8667 = vunpack.c.l.bf16 %v165
  %v8668 = vunpack.c.l.bf16 %v166
  %v8669 = vunpack.c.l.bf16 %v167
  %v8670 = vunpack.c.l.bf16 %v168
  %v8671 = vunpack.c.l.bf16 %v169
  %v8672 = vunpack.c.l.bf16 %v170
  %v8673 = vunpack.c.l.bf16 %v171
  %v8674 = vunpack.c.l.bf16 %v172
  %v8675 = vunpack.c.l.bf16 %v173
  %v8676 = vunpack.c.l.bf16 %v174
  %v8677 = vunpack.c.l.bf16 %v175
  %v8678 = vunpack.c.l.bf16 %v176
  %v8679 = vunpack.c.l.bf16 %v177
  %v8680 = vunpack.c.l.bf16 %v178
  %v8681 = vunpack.c.l.bf16 %v179
  %v8682 = vunpack.c.l.bf16 %v180
  %v8683 = vunpack.c.l.bf16 %v181
  %v8684 = vunpack.c.l.bf16 %v182
  %v8685 = vunpack.c.l.bf16 %v183
  %v8686 = vunpack.c.l.bf16 %v184
  %v8687 = vunpack.c.l.bf16 %v185
  %v8688 = vunpack.c.l.bf16 %v186
  %v8689 = vunpack.c.l.bf16 %v187
  %v8690 = vunpack.c.l.bf16 %v188
  %v8691 = vunpack.c.l.bf16 %v189
  %v8692 = vunpack.c.l.bf16 %v190
  %v8693 = vunpack.c.l.bf16 %v191
  %v8694 = vunpack.c.l.bf16 %v192
  %v8695 = vunpack.c.l.bf16 %v193
  %v8696 = vunpack.c.l.bf16 %v194
  %v8697 = vunpack.c.l.bf16 %v195
  %v8698 = vunpack.c.l.bf16 %v196
  %v8699 = vunpack.c.l.bf16 %v197
  %v8700 = vunpack.c.l.bf16 %v198
  %v8701 = vunpack.c.l.bf16 %v199
  %v8702 = vunpack.c.l.bf16 %v200
  %v8703 = vunpack.c.l.bf16 %v201
  %v8704 = vunpack.c.l.bf16 %v202
  %v8705 = vunpack.c.l.bf16 %v203
  %v8706 = vunpack.c.l.bf16 %v204
  %v8707 = vunpack.c.l.bf16 %v205
  %v8708 = vunpack.c.l.bf16 %v206
  %v8709 = vunpack.c.l.bf16 %v207
  %v8710 = vunpack.c.l.bf16 %v208
  %v8711 = vunpack.c.l.bf16 %v209
  %v8712 = vunpack.c.l.bf16 %v210
  %v8713 = vunpack.c.l.bf16 %v211
  %v8714 = vunpack.c.l.bf16 %v212
  %v8715 = vunpack.c.l.bf16 %v213
  %v8716 = vunpack.c.l.bf16 %v214
  %v8717 = vunpack.c.l.bf16 %v215
  %v8718 = vunpack.c.l.bf16 %v216
  %v8719 = vunpack.c.l.bf16 %v217
  %v8720 = vunpack.c.l.bf16 %v218
  %v8721 = vunpack.c.l.bf16 %v219
  %v8722 = vunpack.c.l.bf16 %v220
  %v8723 = vunpack.c.l.bf16 %v221
  %v8724 = vunpack.c.l.bf16 %v222
  %v8725 = vunpack.c.l.bf16 %v223
  %v8726 = vunpack.c.l.bf16 %v224
  %v8727 = vunpack.c.l.bf16 %v225
  %v8728 = vunpack.c.l.bf16 %v226
  %v8729 = vunpack.c.l.bf16 %v227
  %v8730 = vunpack.c.l.bf16 %v228
  %v8731 = vunpack.c.l.bf16 %v229
  %v8732 = vunpack.c.l.bf16 %v230
  %v8733 = vunpack.c.l.bf16 %v231
  %v8734 = vunpack.c.l.bf16 %v232
  %v8735 = vunpack.c.l.bf16 %v233
  %v8736 = vunpack.c.l.bf16 %v234
  %v8737 = vunpack.c.l.bf16 %v235
  %v8738 = vunpack.c.l.bf16 %v236
  %v8739 = vunpack.c.l.bf16 %v237
  %v8740 = vunpack.c.l.bf16 %v238
  %v8741 = vunpack.c.l.bf16 %v239
  %v8742 = vunpack.c.l.bf16 %v240
  %v8743 = vunpack.c.l.bf16 %v241
  %v8744 = vunpack.c.l.bf16 %v242
  %v8745 = vunpack.c.l.bf16 %v243
  %v8746 = vunpack.c.l.bf16 %v244
  %v8747 = vunpack.c.l.bf16 %v245
  %v8748 = vunpack.c.l.bf16 %v246
  %v8749 = vunpack.c.l.bf16 %v247
  %v8750 = vunpack.c.l.bf16 %v248
  %v8751 = vunpack.c.l.bf16 %v249
  %v8752 = vunpack.c.l.bf16 %v250
  %v8753 = vunpack.c.l.bf16 %v251
  %v8754 = vunpack.c.l.bf16 %v252
  %v8755 = vunpack.c.l.bf16 %v253
  %v8756 = vunpack.c.l.bf16 %v254
  %v8757 = vunpack.c.l.bf16 %v255
  %v8758 = vunpack.c.l.bf16 %v256
  %v8759 = vunpack.c.l.bf16 %v257
  %v8760 = vunpack.c.l.bf16 %v258
  %v8761 = vunpack.c.l.bf16 %v259
  %v8762 = vunpack.c.l.bf16 %v260
  %v8763 = vunpack.c.l.bf16 %v261
  %v8764 = vunpack.c.l.bf16 %v262
  %v8765 = vunpack.c.l.bf16 %v263
  %v8766 = vunpack.c.l.bf16 %v264
  %v8767 = vunpack.c.l.bf16 %v265
  %v8768 = vunpack.c.l.bf16 %v266
  %v8769 = vunpack.c.l.bf16 %v267
  %v8770 = vunpack.c.l.bf16 %v268
  %v8771 = vunpack.c.l.bf16 %v269
  %v8772 = vunpack.c.l.bf16 %v270
  %v8773 = vunpack.c.l.bf16 %v271
  %v8774 = vunpack.c.l.bf16 %v272
  %v8775 = vunpack.c.l.bf16 %v273
  %v8776 = vunpack.c.l.bf16 %v274
  %v8777 = vunpack.c.l.bf16 %v275
  %v8778 = vunpack.c.l.bf16 %v276
  %v8779 = vunpack.c.l.bf16 %v277
  %v8780 = vunpack.c.l.bf16 %v278
  %v8781 = vunpack.c.l.bf16 %v279
  %v8782 = vunpack.c.l.bf16 %v280
  %v8783 = vunpack.c.l.bf16 %v281
  %v8784 = vunpack.c.l.bf16 %v282
  %v8785 = vunpack.c.l.bf16 %v283
  %v8786 = vunpack.c.l.bf16 %v284
  %v8787 = vunpack.c.l.bf16 %v285
  %v8788 = vunpack.c.l.bf16 %v286
  %v8789 = vunpack.c.l.bf16 %v287
  %v8790 = vunpack.c.l.bf16 %v288
  %v8791 = vunpack.c.l.bf16 %v289
  %v8792 = vunpack.c.l.bf16 %v290
  %v8793 = vunpack.c.l.bf16 %v291
  %v8794 = vunpack.c.l.bf16 %v292
  %v8795 = vunpack.c.l.bf16 %v293
  %v8796 = vunpack.c.l.bf16 %v294
  %v8797 = vunpack.c.l.bf16 %v295
  %v8798 = vunpack.c.l.bf16 %v296
  %v8799 = vunpack.c.l.bf16 %v297
  %v8800 = vunpack.c.l.bf16 %v298
  %v8801 = vunpack.c.l.bf16 %v299
  %v8802 = vunpack.c.l.bf16 %v300
  %v8803 = vunpack.c.l.bf16 %v301
  %v8804 = vunpack.c.l.bf16 %v302
  %v8805 = vunpack.c.l.bf16 %v303
  %v8806 = vunpack.c.l.bf16 %v304
  %v8807 = vunpack.c.l.bf16 %v305
  %v8808 = vunpack.c.l.bf16 %v306
  %v8809 = vunpack.c.l.bf16 %v307
  %v8810 = vunpack.c.l.bf16 %v308
  %v8811 = vunpack.c.l.bf16 %v309
  %v8812 = vunpack.c.l.bf16 %v310
  %v8813 = vunpack.c.l.bf16 %v311
  %v8814 = vunpack.c.l.bf16 %v312
  %v8815 = vunpack.c.l.bf16 %v313
  %v8816 = vunpack.c.l.bf16 %v314
  %v8817 = vunpack.c.l.bf16 %v315
  %v8818 = vunpack.c.l.bf16 %v316
  %v8819 = vunpack.c.l.bf16 %v317
  %v8820 = vunpack.c.l.bf16 %v318
  %v8821 = vunpack.c.l.bf16 %v319
  %v8822 = vunpack.c.l.bf16 %v320
  %v8823 = vunpack.c.l.bf16 %v321
  %v8824 = vunpack.c.l.bf16 %v322
  %v8825 = vunpack.c.l.bf16 %v323
  %v8826 = vunpack.c.l.bf16 %v324
  %v8827 = vunpack.c.l.bf16 %v325
  %v8828 = vunpack.c.l.bf16 %v326
  %v8829 = vunpack.c.l.bf16 %v327
  %v8830 = vunpack.c.l.bf16 %v328
  %v8831 = vunpack.c.l.bf16 %v329
  %v8832 = vunpack.c.l.bf16 %v330
  %v8833 = vunpack.c.l.bf16 %v331
  %v8834 = vunpack.c.l.bf16 %v332
  %v8835 = vunpack.c.l.bf16 %v333
  %v8836 = vunpack.c.l.bf16 %v334
  %v8837 = vunpack.c.l.bf16 %v335
  %v8838 = vunpack.c.l.bf16 %v336
  %v8839 = vunpack.c.l.bf16 %v337
  %v8840 = vunpack.c.l.bf16 %v338
  %v8841 = vunpack.c.l.bf16 %v339
  %v8842 = vunpack.c.l.bf16 %v340
  %v8843 = vunpack.c.l.bf16 %v341
  %v8844 = vunpack.c.l.bf16 %v342
  %v8845 = vunpack.c.l.bf16 %v343
  %v8846 = vunpack.c.l.bf16 %v344
  %v8847 = vunpack.c.l.bf16 %v345
  %v8848 = vunpack.c.l.bf16 %v346
  %v8849 = vunpack.c.l.bf16 %v347
  %v8850 = vunpack.c.l.bf16 %v348
  %v8851 = vunpack.c.l.bf16 %v349
  %v8852 = vunpack.c.l.bf16 %v350
  %v8853 = vunpack.c.l.bf16 %v351
  %v8854 = vunpack.c.l.bf16 %v352
  %v8855 = vunpack.c.l.bf16 %v353
  %v8856 = vunpack.c.l.bf16 %v354
  %v8857 = vunpack.c.l.bf16 %v355
  %v8858 = vunpack.c.l.bf16 %v356
  %v8859 = vunpack.c.l.bf16 %v357
  %v8860 = vunpack.c.l.bf16 %v358
  %v8861 = vunpack.c.l.bf16 %v359
  %v8862 = vunpack.c.l.bf16 %v360
  %v8863 = vunpack.c.l.bf16 %v361
  %v8864 = vunpack.c.l.bf16 %v362
  %v8865 = vunpack.c.l.bf16 %v363
  %v8866 = vunpack.c.l.bf16 %v364
  %v8867 = vunpack.c.l.bf16 %v365
  %v8868 = vunpack.c.l.bf16 %v366
  %v8869 = vunpack.c.l.bf16 %v367
  %v8870 = vunpack.c.l.bf16 %v368
  %v8871 = vunpack.c.l.bf16 %v369
  %v8872 = vunpack.c.l.bf16 %v370
  %v8873 = vunpack.c.l.bf16 %v371
  %v8874 = vunpack.c.l.bf16 %v372
  %v8875 = vunpack.c.l.bf16 %v373
  %v8876 = vunpack.c.l.bf16 %v374
  %v8877 = vunpack.c.l.bf16 %v375
  %v8878 = vunpack.c.l.bf16 %v376
  %v8879 = vunpack.c.l.bf16 %v377
  %v8880 = vunpack.c.l.bf16 %v378
  %v8881 = vunpack.c.l.bf16 %v379
  %v8882 = vunpack.c.l.bf16 %v380
  %v8883 = vunpack.c.l.bf16 %v381
  %v8884 = vunpack.c.l.bf16 %v382
  %v8885 = vunpack.c.l.bf16 %v383
  %v8886 = vunpack.c.l.bf16 %v384
  %v8887 = vunpack.c.l.bf16 %v385
  %v8888 = vunpack.c.l.bf16 %v386
  %v8889 = vunpack.c.l.bf16 %v387
  %v8890 = vunpack.c.l.bf16 %v388
  %v8891 = vunpack.c.l.bf16 %v389
  %v8892 = vunpack.c.l.bf16 %v390
  %v8893 = vunpack.c.l.bf16 %v391
  %v8894 = vunpack.c.l.bf16 %v392
  %v8895 = vunpack.c.l.bf16 %v393
  %v8896 = vunpack.c.l.bf16 %v394
  %v8897 = vunpack.c.l.bf16 %v395
  %v8898 = vunpack.c.l.bf16 %v396
  %v8899 = vunpack.c.l.bf16 %v397
  %v8900 = vunpack.c.l.bf16 %v398
  %v8901 = vunpack.c.l.bf16 %v399
  %v8902 = vunpack.c.l.bf16 %v400
  %v8903 = vunpack.c.l.bf16 %v401
  %v8904 = vunpack.c.l.bf16 %v402
  %v8905 = vunpack.c.l.bf16 %v403
  %v8906 = vunpack.c.l.bf16 %v404
  %v8907 = vunpack.c.l.bf16 %v405
  %v8908 = vunpack.c.l.bf16 %v406
  %v9165 = vmul.f32 %v6594, %v8653
  %v9166 = vmul.f32 %v6597, %v8654
  %v9167 = vmul.f32 %v6600, %v8655
  %v9168 = vmul.f32 %v6603, %v8656
  %v9169 = vmul.f32 %v6606, %v8657
  %v9170 = vmul.f32 %v6609, %v8658
  %v9171 = vmul.f32 %v6612, %v8659
  %v9172 = vmul.f32 %v6615, %v8660
  %v9173 = vmul.f32 %v6618, %v8661
  %v9174 = vmul.f32 %v6621, %v8662
  %v9175 = vmul.f32 %v6624, %v8663
  %v9176 = vmul.f32 %v6627, %v8664
  %v9177 = vmul.f32 %v6630, %v8665
  %v9178 = vmul.f32 %v6633, %v8666
  %v9179 = vmul.f32 %v6636, %v8667
  %v9180 = vmul.f32 %v6639, %v8668
  %v9181 = vmul.f32 %v6642, %v8669
  %v9182 = vmul.f32 %v6645, %v8670
  %v9183 = vmul.f32 %v6648, %v8671
  %v9184 = vmul.f32 %v6651, %v8672
  %v9185 = vmul.f32 %v6654, %v8673
  %v9186 = vmul.f32 %v6657, %v8674
  %v9187 = vmul.f32 %v6660, %v8675
  %v9188 = vmul.f32 %v6663, %v8676
  %v9189 = vmul.f32 %v6666, %v8677
  %v9190 = vmul.f32 %v6669, %v8678
  %v9191 = vmul.f32 %v6672, %v8679
  %v9192 = vmul.f32 %v6675, %v8680
  %v9193 = vmul.f32 %v6678, %v8681
  %v9194 = vmul.f32 %v6681, %v8682
  %v9195 = vmul.f32 %v6684, %v8683
  %v9196 = vmul.f32 %v6687, %v8684
  %v9197 = vmul.f32 %v6690, %v8685
  %v9198 = vmul.f32 %v6693, %v8686
  %v9199 = vmul.f32 %v6696, %v8687
  %v9200 = vmul.f32 %v6699, %v8688
  %v9201 = vmul.f32 %v6702, %v8689
  %v9202 = vmul.f32 %v6705, %v8690
  %v9203 = vmul.f32 %v6708, %v8691
  %v9204 = vmul.f32 %v6711, %v8692
  %v9205 = vmul.f32 %v6714, %v8693
  %v9206 = vmul.f32 %v6717, %v8694
  %v9207 = vmul.f32 %v6720, %v8695
  %v9208 = vmul.f32 %v6723, %v8696
  %v9209 = vmul.f32 %v6726, %v8697
  %v9210 = vmul.f32 %v6729, %v8698
  %v9211 = vmul.f32 %v6732, %v8699
  %v9212 = vmul.f32 %v6735, %v8700
  %v9213 = vmul.f32 %v6738, %v8701
  %v9214 = vmul.f32 %v6741, %v8702
  %v9215 = vmul.f32 %v6744, %v8703
  %v9216 = vmul.f32 %v6747, %v8704
  %v9217 = vmul.f32 %v6750, %v8705
  %v9218 = vmul.f32 %v6753, %v8706
  %v9219 = vmul.f32 %v6756, %v8707
  %v9220 = vmul.f32 %v6759, %v8708
  %v9221 = vmul.f32 %v6762, %v8709
  %v9222 = vmul.f32 %v6765, %v8710
  %v9223 = vmul.f32 %v6768, %v8711
  %v9224 = vmul.f32 %v6771, %v8712
  %v9225 = vmul.f32 %v6774, %v8713
  %v9226 = vmul.f32 %v6777, %v8714
  %v9227 = vmul.f32 %v6780, %v8715
  %v9228 = vmul.f32 %v6783, %v8716
  %v9229 = vmul.f32 %v6786, %v8717
  %v9230 = vmul.f32 %v6789, %v8718
  %v9231 = vmul.f32 %v6792, %v8719
  %v9232 = vmul.f32 %v6795, %v8720
  %v9233 = vmul.f32 %v6798, %v8721
  %v9234 = vmul.f32 %v6801, %v8722
  %v9235 = vmul.f32 %v6804, %v8723
  %v9236 = vmul.f32 %v6807, %v8724
  %v9237 = vmul.f32 %v6810, %v8725
  %v9238 = vmul.f32 %v6813, %v8726
  %v9239 = vmul.f32 %v6816, %v8727
  %v9240 = vmul.f32 %v6819, %v8728
  %v9241 = vmul.f32 %v6822, %v8729
  %v9242 = vmul.f32 %v6825, %v8730
  %v9243 = vmul.f32 %v6828, %v8731
  %v9244 = vmul.f32 %v6831, %v8732
  %v9245 = vmul.f32 %v6834, %v8733
  %v9246 = vmul.f32 %v6837, %v8734
  %v9247 = vmul.f32 %v6840, %v8735
  %v9248 = vmul.f32 %v6843, %v8736
  %v9249 = vmul.f32 %v6846, %v8737
  %v9250 = vmul.f32 %v6849, %v8738
  %v9251 = vmul.f32 %v6852, %v8739
  %v9252 = vmul.f32 %v6855, %v8740
  %v9253 = vmul.f32 %v6858, %v8741
  %v9254 = vmul.f32 %v6861, %v8742
  %v9255 = vmul.f32 %v6864, %v8743
  %v9256 = vmul.f32 %v6867, %v8744
  %v9257 = vmul.f32 %v6870, %v8745
  %v9258 = vmul.f32 %v6873, %v8746
  %v9259 = vmul.f32 %v6876, %v8747
  %v9260 = vmul.f32 %v6879, %v8748
  %v9261 = vmul.f32 %v6882, %v8749
  %v9262 = vmul.f32 %v6885, %v8750
  %v9263 = vmul.f32 %v6888, %v8751
  %v9264 = vmul.f32 %v6891, %v8752
  %v9265 = vmul.f32 %v6894, %v8753
  %v9266 = vmul.f32 %v6897, %v8754
  %v9267 = vmul.f32 %v6900, %v8755
  %v9268 = vmul.f32 %v6903, %v8756
  %v9269 = vmul.f32 %v6906, %v8757
  %v9270 = vmul.f32 %v6909, %v8758
  %v9271 = vmul.f32 %v6912, %v8759
  %v9272 = vmul.f32 %v6915, %v8760
  %v9273 = vmul.f32 %v6918, %v8761
  %v9274 = vmul.f32 %v6921, %v8762
  %v9275 = vmul.f32 %v6924, %v8763
  %v9276 = vmul.f32 %v6927, %v8764
  %v9277 = vmul.f32 %v6930, %v8765
  %v9278 = vmul.f32 %v6933, %v8766
  %v9279 = vmul.f32 %v6936, %v8767
  %v9280 = vmul.f32 %v6939, %v8768
  %v9281 = vmul.f32 %v6942, %v8769
  %v9282 = vmul.f32 %v6945, %v8770
  %v9283 = vmul.f32 %v6948, %v8771
  %v9284 = vmul.f32 %v6951, %v8772
  %v9285 = vmul.f32 %v6954, %v8773
  %v9286 = vmul.f32 %v6957, %v8774
  %v9287 = vmul.f32 %v6960, %v8775
  %v9288 = vmul.f32 %v6963, %v8776
  %v9289 = vmul.f32 %v6966, %v8777
  %v9290 = vmul.f32 %v6969, %v8778
  %v9291 = vmul.f32 %v6972, %v8779
  %v9292 = vmul.f32 %v6975, %v8780
  %v9293 = vmul.f32 %v6978, %v8781
  %v9294 = vmul.f32 %v6981, %v8782
  %v9295 = vmul.f32 %v6984, %v8783
  %v9296 = vmul.f32 %v6987, %v8784
  %v9297 = vmul.f32 %v6990, %v8785
  %v9298 = vmul.f32 %v6993, %v8786
  %v9299 = vmul.f32 %v6996, %v8787
  %v9300 = vmul.f32 %v6999, %v8788
  %v9301 = vmul.f32 %v7002, %v8789
  %v9302 = vmul.f32 %v7005, %v8790
  %v9303 = vmul.f32 %v7008, %v8791
  %v9304 = vmul.f32 %v7011, %v8792
  %v9305 = vmul.f32 %v7014, %v8793
  %v9306 = vmul.f32 %v7017, %v8794
  %v9307 = vmul.f32 %v7020, %v8795
  %v9308 = vmul.f32 %v7023, %v8796
  %v9309 = vmul.f32 %v7026, %v8797
  %v9310 = vmul.f32 %v7029, %v8798
  %v9311 = vmul.f32 %v7032, %v8799
  %v9312 = vmul.f32 %v7035, %v8800
  %v9313 = vmul.f32 %v7038, %v8801
  %v9314 = vmul.f32 %v7041, %v8802
  %v9315 = vmul.f32 %v7044, %v8803
  %v9316 = vmul.f32 %v7047, %v8804
  %v9317 = vmul.f32 %v7050, %v8805
  %v9318 = vmul.f32 %v7053, %v8806
  %v9319 = vmul.f32 %v7056, %v8807
  %v9320 = vmul.f32 %v7059, %v8808
  %v9321 = vmul.f32 %v7062, %v8809
  %v9322 = vmul.f32 %v7065, %v8810
  %v9323 = vmul.f32 %v7068, %v8811
  %v9324 = vmul.f32 %v7071, %v8812
  %v9325 = vmul.f32 %v7074, %v8813
  %v9326 = vmul.f32 %v7077, %v8814
  %v9327 = vmul.f32 %v7080, %v8815
  %v9328 = vmul.f32 %v7083, %v8816
  %v9329 = vmul.f32 %v7086, %v8817
  %v9330 = vmul.f32 %v7089, %v8818
  %v9331 = vmul.f32 %v7092, %v8819
  %v9332 = vmul.f32 %v7095, %v8820
  %v9333 = vmul.f32 %v7098, %v8821
  %v9334 = vmul.f32 %v7101, %v8822
  %v9335 = vmul.f32 %v7104, %v8823
  %v9336 = vmul.f32 %v7107, %v8824
  %v9337 = vmul.f32 %v7110, %v8825
  %v9338 = vmul.f32 %v7113, %v8826
  %v9339 = vmul.f32 %v7116, %v8827
  %v9340 = vmul.f32 %v7119, %v8828
  %v9341 = vmul.f32 %v7122, %v8829
  %v9342 = vmul.f32 %v7125, %v8830
  %v9343 = vmul.f32 %v7128, %v8831
  %v9344 = vmul.f32 %v7131, %v8832
  %v9345 = vmul.f32 %v7134, %v8833
  %v9346 = vmul.f32 %v7137, %v8834
  %v9347 = vmul.f32 %v7140, %v8835
  %v9348 = vmul.f32 %v7143, %v8836
  %v9349 = vmul.f32 %v7146, %v8837
  %v9350 = vmul.f32 %v7149, %v8838
  %v9351 = vmul.f32 %v7152, %v8839
  %v9352 = vmul.f32 %v7155, %v8840
  %v9353 = vmul.f32 %v7158, %v8841
  %v9354 = vmul.f32 %v7161, %v8842
  %v9355 = vmul.f32 %v7164, %v8843
  %v9356 = vmul.f32 %v7167, %v8844
  %v9357 = vmul.f32 %v7170, %v8845
  %v9358 = vmul.f32 %v7173, %v8846
  %v9359 = vmul.f32 %v7176, %v8847
  %v9360 = vmul.f32 %v7179, %v8848
  %v9361 = vmul.f32 %v7182, %v8849
  %v9362 = vmul.f32 %v7185, %v8850
  %v9363 = vmul.f32 %v7188, %v8851
  %v9364 = vmul.f32 %v7191, %v8852
  %v9365 = vmul.f32 %v7194, %v8853
  %v9366 = vmul.f32 %v7197, %v8854
  %v9367 = vmul.f32 %v7200, %v8855
  %v9368 = vmul.f32 %v7203, %v8856
  %v9369 = vmul.f32 %v7206, %v8857
  %v9370 = vmul.f32 %v7209, %v8858
  %v9371 = vmul.f32 %v7212, %v8859
  %v9372 = vmul.f32 %v7215, %v8860
  %v9373 = vmul.f32 %v7218, %v8861
  %v9374 = vmul.f32 %v7221, %v8862
  %v9375 = vmul.f32 %v7224, %v8863
  %v9376 = vmul.f32 %v7227, %v8864
  %v9377 = vmul.f32 %v7230, %v8865
  %v9378 = vmul.f32 %v7233, %v8866
  %v9379 = vmul.f32 %v7236, %v8867
  %v9380 = vmul.f32 %v7239, %v8868
  %v9381 = vmul.f32 %v7242, %v8869
  %v9382 = vmul.f32 %v7245, %v8870
  %v9383 = vmul.f32 %v7248, %v8871
  %v9384 = vmul.f32 %v7251, %v8872
  %v9385 = vmul.f32 %v7254, %v8873
  %v9386 = vmul.f32 %v7257, %v8874
  %v9387 = vmul.f32 %v7260, %v8875
  %v9388 = vmul.f32 %v7263, %v8876
  %v9389 = vmul.f32 %v7266, %v8877
  %v9390 = vmul.f32 %v7269, %v8878
  %v9391 = vmul.f32 %v7272, %v8879
  %v9392 = vmul.f32 %v7275, %v8880
  %v9393 = vmul.f32 %v7278, %v8881
  %v9394 = vmul.f32 %v7281, %v8882
  %v9395 = vmul.f32 %v7284, %v8883
  %v9396 = vmul.f32 %v7287, %v8884
  %v9397 = vmul.f32 %v7290, %v8885
  %v9398 = vmul.f32 %v7293, %v8886
  %v9399 = vmul.f32 %v7296, %v8887
  %v9400 = vmul.f32 %v7299, %v8888
  %v9401 = vmul.f32 %v7302, %v8889
  %v9402 = vmul.f32 %v7305, %v8890
  %v9403 = vmul.f32 %v7308, %v8891
  %v9404 = vmul.f32 %v7311, %v8892
  %v9405 = vmul.f32 %v7314, %v8893
  %v9406 = vmul.f32 %v7317, %v8894
  %v9407 = vmul.f32 %v7320, %v8895
  %v9408 = vmul.f32 %v7323, %v8896
  %v9409 = vmul.f32 %v7326, %v8897
  %v9410 = vmul.f32 %v7329, %v8898
  %v9411 = vmul.f32 %v7332, %v8899
  %v9412 = vmul.f32 %v7335, %v8900
  %v9413 = vmul.f32 %v7338, %v8901
  %v9414 = vmul.f32 %v7341, %v8902
  %v9415 = vmul.f32 %v7344, %v8903
  %v9416 = vmul.f32 %v7347, %v8904
  %v9417 = vmul.f32 %v7350, %v8905
  %v9418 = vmul.f32 %v7353, %v8906
  %v9419 = vmul.f32 %v7356, %v8907
  %v9420 = vmul.f32 %v7359, %v8908
  %v9421 = vadd.f32 %v9165, %v9166
  %v9422 = vadd.f32 %v9421, %v9167
  %v9423 = vadd.f32 %v9422, %v9168
  %v9424 = vadd.f32 %v9423, %v9169
  %v9425 = vadd.f32 %v9424, %v9170
  %v9426 = vadd.f32 %v9425, %v9171
  %v9427 = vadd.f32 %v9426, %v9172
  %v9428 = vadd.f32 %v9427, %v9173
  %v9429 = vadd.f32 %v9428, %v9174
  %v9430 = vadd.f32 %v9429, %v9175
  %v9431 = vadd.f32 %v9430, %v9176
  %v9432 = vadd.f32 %v9431, %v9177
  %v9433 = vadd.f32 %v9432, %v9178
  %v9434 = vadd.f32 %v9433, %v9179
  %v9435 = vadd.f32 %v9434, %v9180
  %v9436 = vadd.f32 %v9435, %v9181
  %v9437 = vadd.f32 %v9436, %v9182
  %v9438 = vadd.f32 %v9437, %v9183
  %v9439 = vadd.f32 %v9438, %v9184
  %v9440 = vadd.f32 %v9439, %v9185
  %v9441 = vadd.f32 %v9440, %v9186
  %v9442 = vadd.f32 %v9441, %v9187
  %v9443 = vadd.f32 %v9442, %v9188
  %v9444 = vadd.f32 %v9443, %v9189
  %v9445 = vadd.f32 %v9444, %v9190
  %v9446 = vadd.f32 %v9445, %v9191
  %v9447 = vadd.f32 %v9446, %v9192
  %v9448 = vadd.f32 %v9447, %v9193
  %v9449 = vadd.f32 %v9448, %v9194
  %v9450 = vadd.f32 %v9449, %v9195
  %v9451 = vadd.f32 %v9450, %v9196
  %v9452 = vrot.slane %v9451, 4
  %v9453 = vadd.f32 %v9451, %v9452
  %v9454 = vrot.slane %v9453, 2
  %v9455 = vadd.f32 %v9453, %v9454
  %v9456 = vrot.slane %v9455, 1
  %v9457 = vadd.f32 %v9455, %v9456
  %v9458 = vadd.f32 %v9197, %v9198
  %v9459 = vadd.f32 %v9458, %v9199
  %v9460 = vadd.f32 %v9459, %v9200
  %v9461 = vadd.f32 %v9460, %v9201
  %v9462 = vadd.f32 %v9461, %v9202
  %v9463 = vadd.f32 %v9462, %v9203
  %v9464 = vadd.f32 %v9463, %v9204
  %v9465 = vadd.f32 %v9464, %v9205
  %v9466 = vadd.f32 %v9465, %v9206
  %v9467 = vadd.f32 %v9466, %v9207
  %v9468 = vadd.f32 %v9467, %v9208
  %v9469 = vadd.f32 %v9468, %v9209
  %v9470 = vadd.f32 %v9469, %v9210
  %v9471 = vadd.f32 %v9470, %v9211
  %v9472 = vadd.f32 %v9471, %v9212
  %v9473 = vadd.f32 %v9472, %v9213
  %v9474 = vadd.f32 %v9473, %v9214
  %v9475 = vadd.f32 %v9474, %v9215
  %v9476 = vadd.f32 %v9475, %v9216
  %v9477 = vadd.f32 %v9476, %v9217
  %v9478 = vadd.f32 %v9477, %v9218
  %v9479 = vadd.f32 %v9478, %v9219
  %v9480 = vadd.f32 %v9479, %v9220
  %v9481 = vadd.f32 %v9480, %v9221
  %v9482 = vadd.f32 %v9481, %v9222
  %v9483 = vadd.f32 %v9482, %v9223
  %v9484 = vadd.f32 %v9483, %v9224
  %v9485 = vadd.f32 %v9484, %v9225
  %v9486 = vadd.f32 %v9485, %v9226
  %v9487 = vadd.f32 %v9486, %v9227
  %v9488 = vadd.f32 %v9487, %v9228
  %v9489 = vrot.slane %v9488, 4
  %v9490 = vadd.f32 %v9488, %v9489
  %v9491 = vrot.slane %v9490, 2
  %v9492 = vadd.f32 %v9490, %v9491
  %v9493 = vrot.slane %v9492, 1
  %v9494 = vadd.f32 %v9492, %v9493
  %v9495 = vadd.f32 %v9229, %v9230
  %v9496 = vadd.f32 %v9495, %v9231
  %v9497 = vadd.f32 %v9496, %v9232
  %v9498 = vadd.f32 %v9497, %v9233
  %v9499 = vadd.f32 %v9498, %v9234
  %v9500 = vadd.f32 %v9499, %v9235
  %v9501 = vadd.f32 %v9500, %v9236
  %v9502 = vadd.f32 %v9501, %v9237
  %v9503 = vadd.f32 %v9502, %v9238
  %v9504 = vadd.f32 %v9503, %v9239
  %v9505 = vadd.f32 %v9504, %v9240
  %v9506 = vadd.f32 %v9505, %v9241
  %v9507 = vadd.f32 %v9506, %v9242
  %v9508 = vadd.f32 %v9507, %v9243
  %v9509 = vadd.f32 %v9508, %v9244
  %v9510 = vadd.f32 %v9509, %v9245
  %v9511 = vadd.f32 %v9510, %v9246
  %v9512 = vadd.f32 %v9511, %v9247
  %v9513 = vadd.f32 %v9512, %v9248
  %v9514 = vadd.f32 %v9513, %v9249
  %v9515 = vadd.f32 %v9514, %v9250
  %v9516 = vadd.f32 %v9515, %v9251
  %v9517 = vadd.f32 %v9516, %v9252
  %v9518 = vadd.f32 %v9517, %v9253
  %v9519 = vadd.f32 %v9518, %v9254
  %v9520 = vadd.f32 %v9519, %v9255
  %v9521 = vadd.f32 %v9520, %v9256
  %v9522 = vadd.f32 %v9521, %v9257
  %v9523 = vadd.f32 %v9522, %v9258
  %v9524 = vadd.f32 %v9523, %v9259
  %v9525 = vadd.f32 %v9524, %v9260
  %v9526 = vrot.slane %v9525, 4
  %v9527 = vadd.f32 %v9525, %v9526
  %v9528 = vrot.slane %v9527, 2
  %v9529 = vadd.f32 %v9527, %v9528
  %v9530 = vrot.slane %v9529, 1
  %v9531 = vadd.f32 %v9529, %v9530
  %v9532 = vadd.f32 %v9261, %v9262
  %v9533 = vadd.f32 %v9532, %v9263
  %v9534 = vadd.f32 %v9533, %v9264
  %v9535 = vadd.f32 %v9534, %v9265
  %v9536 = vadd.f32 %v9535, %v9266
  %v9537 = vadd.f32 %v9536, %v9267
  %v9538 = vadd.f32 %v9537, %v9268
  %v9539 = vadd.f32 %v9538, %v9269
  %v9540 = vadd.f32 %v9539, %v9270
  %v9541 = vadd.f32 %v9540, %v9271
  %v9542 = vadd.f32 %v9541, %v9272
  %v9543 = vadd.f32 %v9542, %v9273
  %v9544 = vadd.f32 %v9543, %v9274
  %v9545 = vadd.f32 %v9544, %v9275
  %v9546 = vadd.f32 %v9545, %v9276
  %v9547 = vadd.f32 %v9546, %v9277
  %v9548 = vadd.f32 %v9547, %v9278
  %v9549 = vadd.f32 %v9548, %v9279
  %v9550 = vadd.f32 %v9549, %v9280
  %v9551 = vadd.f32 %v9550, %v9281
  %v9552 = vadd.f32 %v9551, %v9282
  %v9553 = vadd.f32 %v9552, %v9283
  %v9554 = vadd.f32 %v9553, %v9284
  %v9555 = vadd.f32 %v9554, %v9285
  %v9556 = vadd.f32 %v9555, %v9286
  %v9557 = vadd.f32 %v9556, %v9287
  %v9558 = vadd.f32 %v9557, %v9288
  %v9559 = vadd.f32 %v9558, %v9289
  %v9560 = vadd.f32 %v9559, %v9290
  %v9561 = vadd.f32 %v9560, %v9291
  %v9562 = vadd.f32 %v9561, %v9292
  %v9563 = vrot.slane %v9562, 4
  %v9564 = vadd.f32 %v9562, %v9563
  %v9565 = vrot.slane %v9564, 2
  %v9566 = vadd.f32 %v9564, %v9565
  %v9567 = vrot.slane %v9566, 1
  %v9568 = vadd.f32 %v9566, %v9567
  %v9569 = vadd.f32 %v9293, %v9294
  %v9570 = vadd.f32 %v9569, %v9295
  %v9571 = vadd.f32 %v9570, %v9296
  %v9572 = vadd.f32 %v9571, %v9297
  %v9573 = vadd.f32 %v9572, %v9298
  %v9574 = vadd.f32 %v9573, %v9299
  %v9575 = vadd.f32 %v9574, %v9300
  %v9576 = vadd.f32 %v9575, %v9301
  %v9577 = vadd.f32 %v9576, %v9302
  %v9578 = vadd.f32 %v9577, %v9303
  %v9579 = vadd.f32 %v9578, %v9304
  %v9580 = vadd.f32 %v9579, %v9305
  %v9581 = vadd.f32 %v9580, %v9306
  %v9582 = vadd.f32 %v9581, %v9307
  %v9583 = vadd.f32 %v9582, %v9308
  %v9584 = vadd.f32 %v9583, %v9309
  %v9585 = vadd.f32 %v9584, %v9310
  %v9586 = vadd.f32 %v9585, %v9311
  %v9587 = vadd.f32 %v9586, %v9312
  %v9588 = vadd.f32 %v9587, %v9313
  %v9589 = vadd.f32 %v9588, %v9314
  %v9590 = vadd.f32 %v9589, %v9315
  %v9591 = vadd.f32 %v9590, %v9316
  %v9592 = vadd.f32 %v9591, %v9317
  %v9593 = vadd.f32 %v9592, %v9318
  %v9594 = vadd.f32 %v9593, %v9319
  %v9595 = vadd.f32 %v9594, %v9320
  %v9596 = vadd.f32 %v9595, %v9321
  %v9597 = vadd.f32 %v9596, %v9322
  %v9598 = vadd.f32 %v9597, %v9323
  %v9599 = vadd.f32 %v9598, %v9324
  %v9600 = vrot.slane %v9599, 4
  %v9601 = vadd.f32 %v9599, %v9600
  %v9602 = vrot.slane %v9601, 2
  %v9603 = vadd.f32 %v9601, %v9602
  %v9604 = vrot.slane %v9603, 1
  %v9605 = vadd.f32 %v9603, %v9604
  %v9606 = vadd.f32 %v9325, %v9326
  %v9607 = vadd.f32 %v9606, %v9327
  %v9608 = vadd.f32 %v9607, %v9328
  %v9609 = vadd.f32 %v9608, %v9329
  %v9610 = vadd.f32 %v9609, %v9330
  %v9611 = vadd.f32 %v9610, %v9331
  %v9612 = vadd.f32 %v9611, %v9332
  %v9613 = vadd.f32 %v9612, %v9333
  %v9614 = vadd.f32 %v9613, %v9334
  %v9615 = vadd.f32 %v9614, %v9335
  %v9616 = vadd.f32 %v9615, %v9336
  %v9617 = vadd.f32 %v9616, %v9337
  %v9618 = vadd.f32 %v9617, %v9338
  %v9619 = vadd.f32 %v9618, %v9339
  %v9620 = vadd.f32 %v9619, %v9340
  %v9621 = vadd.f32 %v9620, %v9341
  %v9622 = vadd.f32 %v9621, %v9342
  %v9623 = vadd.f32 %v9622, %v9343
  %v9624 = vadd.f32 %v9623, %v9344
  %v9625 = vadd.f32 %v9624, %v9345
  %v9626 = vadd.f32 %v9625, %v9346
  %v9627 = vadd.f32 %v9626, %v9347
  %v9628 = vadd.f32 %v9627, %v9348
  %v9629 = vadd.f32 %v9628, %v9349
  %v9630 = vadd.f32 %v9629, %v9350
  %v9631 = vadd.f32 %v9630, %v9351
  %v9632 = vadd.f32 %v9631, %v9352
  %v9633 = vadd.f32 %v9632, %v9353
  %v9634 = vadd.f32 %v9633, %v9354
  %v9635 = vadd.f32 %v9634, %v9355
  %v9636 = vadd.f32 %v9635, %v9356
  %v9637 = vrot.slane %v9636, 4
  %v9638 = vadd.f32 %v9636, %v9637
  %v9639 = vrot.slane %v9638, 2
  %v9640 = vadd.f32 %v9638, %v9639
  %v9641 = vrot.slane %v9640, 1
  %v9642 = vadd.f32 %v9640, %v9641
  %v9643 = vadd.f32 %v9357, %v9358
  %v9644 = vadd.f32 %v9643, %v9359
  %v9645 = vadd.f32 %v9644, %v9360
  %v9646 = vadd.f32 %v9645, %v9361
  %v9647 = vadd.f32 %v9646, %v9362
  %v9648 = vadd.f32 %v9647, %v9363
  %v9649 = vadd.f32 %v9648, %v9364
  %v9650 = vadd.f32 %v9649, %v9365
  %v9651 = vadd.f32 %v9650, %v9366
  %v9652 = vadd.f32 %v9651, %v9367
  %v9653 = vadd.f32 %v9652, %v9368
  %v9654 = vadd.f32 %v9653, %v9369
  %v9655 = vadd.f32 %v9654, %v9370
  %v9656 = vadd.f32 %v9655, %v9371
  %v9657 = vadd.f32 %v9656, %v9372
  %v9658 = vadd.f32 %v9657, %v9373
  %v9659 = vadd.f32 %v9658, %v9374
  %v9660 = vadd.f32 %v9659, %v9375
  %v9661 = vadd.f32 %v9660, %v9376
  %v9662 = vadd.f32 %v9661, %v9377
  %v9663 = vadd.f32 %v9662, %v9378
  %v9664 = vadd.f32 %v9663, %v9379
  %v9665 = vadd.f32 %v9664, %v9380
  %v9666 = vadd.f32 %v9665, %v9381
  %v9667 = vadd.f32 %v9666, %v9382
  %v9668 = vadd.f32 %v9667, %v9383
  %v9669 = vadd.f32 %v9668, %v9384
  %v9670 = vadd.f32 %v9669, %v9385
  %v9671 = vadd.f32 %v9670, %v9386
  %v9672 = vadd.f32 %v9671, %v9387
  %v9673 = vadd.f32 %v9672, %v9388
  %v9674 = vrot.slane %v9673, 4
  %v9675 = vadd.f32 %v9673, %v9674
  %v9676 = vrot.slane %v9675, 2
  %v9677 = vadd.f32 %v9675, %v9676
  %v9678 = vrot.slane %v9677, 1
  %v9679 = vadd.f32 %v9677, %v9678
  %v9680 = vadd.f32 %v9389, %v9390
  %v9681 = vadd.f32 %v9680, %v9391
  %v9682 = vadd.f32 %v9681, %v9392
  %v9683 = vadd.f32 %v9682, %v9393
  %v9684 = vadd.f32 %v9683, %v9394
  %v9685 = vadd.f32 %v9684, %v9395
  %v9686 = vadd.f32 %v9685, %v9396
  %v9687 = vadd.f32 %v9686, %v9397
  %v9688 = vadd.f32 %v9687, %v9398
  %v9689 = vadd.f32 %v9688, %v9399
  %v9690 = vadd.f32 %v9689, %v9400
  %v9691 = vadd.f32 %v9690, %v9401
  %v9692 = vadd.f32 %v9691, %v9402
  %v9693 = vadd.f32 %v9692, %v9403
  %v9694 = vadd.f32 %v9693, %v9404
  %v9695 = vadd.f32 %v9694, %v9405
  %v9696 = vadd.f32 %v9695, %v9406
  %v9697 = vadd.f32 %v9696, %v9407
  %v9698 = vadd.f32 %v9697, %v9408
  %v9699 = vadd.f32 %v9698, %v9409
  %v9700 = vadd.f32 %v9699, %v9410
  %v9701 = vadd.f32 %v9700, %v9411
  %v9702 = vadd.f32 %v9701, %v9412
  %v9703 = vadd.f32 %v9702, %v9413
  %v9704 = vadd.f32 %v9703, %v9414
  %v9705 = vadd.f32 %v9704, %v9415
  %v9706 = vadd.f32 %v9705, %v9416
  %v9707 = vadd.f32 %v9706, %v9417
  %v9708 = vadd.f32 %v9707, %v9418
  %v9709 = vadd.f32 %v9708, %v9419
  %v9710 = vadd.f32 %v9709, %v9420
  %v9711 = vrot.slane %v9710, 4
  %v9712 = vadd.f32 %v9710, %v9711
  %v9713 = vrot.slane %v9712, 2
  %v9714 = vadd.f32 %v9712, %v9713
  %v9715 = vrot.slane %v9714, 1
  %v9716 = vadd.f32 %v9714, %v9715
  %v9725 = vsel %vm5485, %v9494, %v9457
  %v9726 = vsel %vm5487, %v9531, %v9725
  %v9727 = vsel %vm5489, %v9568, %v9726
  %v9728 = vsel %vm5491, %v9605, %v9727
  %v9729 = vsel %vm5493, %v9642, %v9728
  %v9730 = vsel %vm5495, %v9679, %v9729
  %v9731 = vsel %vm5497, %v9716, %v9730
  %v9733 = vadd.f32 %v8652, %v9731
  %9734 = vst [vmem:[#allocation5] sm:$0xff] %v9733
  %9735 = vst.msk [vmem:[#allocation3] sm:$0xff] %vm8644, %v5518
  // Predicated region
  $region34: #{bahdanau_attention.1} parent=0 // pred_check
    %p9736 = pneg %p30
  $region35: #{bahdanau_attention.1} parent=0 // pred_check_branch
    %9738 = sbr.rel (%p9736) target = $region37
  $region36: #{bahdanau_attention.1} parent=0 // pred_region
    %v9739 = vld [vmem:[#allocation4] sm:$0xff]
    %v9740 = vrcp.pop %v9739
    %v9741 = vld [vmem:[#allocation5] sm:$0xff]
    %9743 = vset.pattern.permute.xlu0 0
    %9744 = vperm.xlu0 %9743, %v9740
    %v9745 = vpop.permute.xlu0 %9744
    %v9747 = vmul.f32 %v9741, %v9745
    %9748 = vst [vmem:[%s7] sm:$0xff] %v9747
    %v9749 = vld [vmem:[#allocation6] sm:$0xff]
    %v9750 = vld [vmem:[#allocation6 + $0x8] sm:$0xff]
    %v9751 = vld [vmem:[#allocation3] sm:$0xff]
    %9753 = vset.pattern.permute.xlu0 0
    %9754 = vperm.xlu0 %9753, %v9751
    %v9755 = vpop.permute.xlu0 %9754
    %v9757 = vsub.f32 %v9749, %v9755
    %v9758 = vsub.f32 %v9750, %v9755
    %v9759 = vmul.f32 %v9757, 1.442695
    %v9760 = vpow.pop %v9759
    %v9761 = vmul.f32 %v9758, 1.442695
    %v9762 = vpow.pop %v9761
    %v9763 = vmul.f32 %v9760, %v9745
    %v9764 = vmul.f32 %v9762, %v9745
    %9765 = vst [vmem:[%s8] sm:$0xff] %v9763
    %9766 = vst [vmem:[%s8 + $0x8] sm:$0xff] %v9764
  $region37: #{bahdanau_attention.1} parent=0 // pred_fallthru
    _
  // Predicated region
  $region38: #{bahdanau_attention.1} parent=0 // pred_check
    _
  $region39: #{bahdanau_attention.1} parent=0 // pred_check_branch
    %9768 = sbr.rel (0) target = $region41
  $region40: #{bahdanau_attention.1} parent=0 // pred_region
    _
  $region41: #{bahdanau_attention.1} parent=0 // pred_fallthru
    _
  // Predicated region
  $region42: #{bahdanau_attention.1} parent=0 // pred_check
    _
  $region43: #{bahdanau_attention.1} parent=0 // pred_check_branch
    %9770 = sbr.rel (0) target = $region45
  $region44: #{bahdanau_attention.1} parent=0 // pred_region
    _
  $region45: #{bahdanau_attention.1} parent=0 // pred_fallthru
    _
  // Predicated region
  $region46: #{bahdanau_attention.1} parent=0 // pred_check
    _
  $region47: #{bahdanau_attention.1} parent=0 // pred_check_branch
    %9772 = sbr.rel (0) target = $region49
  $region48: #{bahdanau_attention.1} parent=0 // pred_region
    _
  $region49: #{bahdanau_attention.1} parent=0 // pred_fallthru
    _
  // Predicated region
  $region50: #{bahdanau_attention.1} parent=0 // pred_check
    _
  $region51: #{bahdanau_attention.1} parent=0 // pred_check_branch
    %9774 = sbr.rel (0) target = $region53
  $region52: #{bahdanau_attention.1} parent=0 // pred_region
    _
  $region53: #{bahdanau_attention.1} parent=0 // pred_fallthru
    _

</llo_original>
